<compile_context>
chip_gen: v5e
topology: v5e:2x2
jax: 0.10.0
libtpu: 0.0.40
codegen_flags: <defaults>
</compile_context>

<pallas_src>
import functools

import jax
import jax.numpy as jnp
from jax.experimental import pallas as pl
from jax.experimental.pallas import tpu as pltpu


_BN_EPS = 1e-5      # PyTorch BatchNorm2d default


def _round_up(x, m):
    return (x + m - 1) // m * m


def _vmem_limit(block_bytes):
    # Scoped-VMEM limit derived from the blocks actually used by this call.
    # Capped at 56 MiB so the same value is safe on v7x (64 MiB physical).
    return int(min(max(2 * block_bytes + (8 << 20), 32 << 20), 56 << 20))


# ---------------------------------------------------------------------------
# Kernel 1: fused (1x1 conv + folded BN) matmul + bias + ReLU
# ---------------------------------------------------------------------------
def _mm_bias_relu_kernel(x_ref, w_ref, b_ref, o_ref):
    # x_ref: (TM, K1) bf16   w_ref: (K1, TN) bf16   b_ref: (1, TN) f32
    acc = jnp.dot(x_ref[...], w_ref[...], preferred_element_type=jnp.float32)
    o_ref[...] = jnp.maximum(acc + b_ref[...], 0.0).astype(o_ref.dtype)


def conv1x1_bn_relu(x_nhwc, w_folded, b_folded):
    """x_nhwc: (N,H,W,Cin); w_folded: (Cin8, Cout_p) bf16; b_folded: (1, Cout_p) f32."""
    N, H, W, cin = x_nhwc.shape
    K1, cout_p = w_folded.shape
    M = N * H * W

    cap = 2048 if K1 <= 256 else 1024
    TM = min(cap, _round_up(M, 16))
    if _round_up(M, TM) // TM < 2 and M >= 32:       # prefer >=2 M-tiles
        TM = _round_up(_round_up(M, 32) // 2, 16)
    M_pad = _round_up(M, TM)
    TN = 256 if cout_p % 256 == 0 else 128           # v6e/v7x MXU is 256 wide

    x2 = x_nhwc.astype(jnp.bfloat16).reshape(M, cin)
    x2 = jnp.pad(x2, ((0, M_pad - M), (0, K1 - cin)))

    flops = 2 * M_pad * K1 * cout_p
    bytes_accessed = 2 * (M_pad * K1 + K1 * cout_p + M_pad * cout_p) + 4 * cout_p
    block_bytes = 2 * (TM * K1 * 2 + K1 * TN * 2 + TN * 4 + TM * TN * 2)

    out = pl.pallas_call(
        _mm_bias_relu_kernel,
        out_shape=jax.ShapeDtypeStruct((M_pad, cout_p), jnp.bfloat16),
        grid=(M_pad // TM, cout_p // TN),
        in_specs=[
            pl.BlockSpec((TM, K1), lambda m, c: (m, 0)),
            pl.BlockSpec((K1, TN), lambda m, c: (0, c)),
            pl.BlockSpec((1, TN), lambda m, c: (0, c)),
        ],
        out_specs=pl.BlockSpec((TM, TN), lambda m, c: (m, c)),
        compiler_params=pltpu.CompilerParams(
            dimension_semantics=("parallel", "parallel"),
            vmem_limit_bytes=_vmem_limit(block_bytes)),
        cost_estimate=pl.CostEstimate(flops=flops, transcendentals=0,
                                      bytes_accessed=bytes_accessed),
    )(x2, w_folded, b_folded)
    return out[:M].reshape(N, H, W, cout_p)


# ---------------------------------------------------------------------------
# Kernel 2: 3x3 dilated conv (SAME, stride 1) + folded BN bias + ReLU
#           Input streamed as TH-row bands + an 8-row halo block.
# ---------------------------------------------------------------------------
def _conv3x3_bn_relu_kernel(x_ref, halo_ref, w_ref, b_ref, o_ref, lhs_ref, *, dil):
    # x_ref:    (1, TH, WpT, Cin8)  main row band (padded coords rows [t*TH, t*TH+TH))
    # halo_ref: (1, 8,  WpT, Cin8)  next 8 rows; only the first 2*dil are used
    # w_ref:    (9*Cin8, TN)        tap-major folded conv+BN weight (bf16)
    # b_ref:    (1, TN)             folded bias (f32)
    # o_ref:    (1, TH, W8, TN)     lane-dense output band
    # lhs_ref:  (TH*W8, 9*Cin8)     im2col scratch, reused across cout tiles
    _, TH, W8, _ = o_ref.shape
    cin8 = x_ref.shape[-1]

    # Build the fused-K im2col lhs once per row band (cout axis is innermost).
    @pl.when(pl.program_id(2) == 0)
    def _():
        band = jnp.concatenate([x_ref[0], halo_ref[0, :2 * dil]], axis=0)
        taps = [band[i * dil:i * dil + TH, j * dil:j * dil + W8, :]
                for i in range(3) for j in range(3)]
        lhs_ref[...] = jnp.concatenate(taps, axis=-1).reshape(TH * W8, 9 * cin8)

    acc = jnp.dot(lhs_ref[...], w_ref[...], preferred_element_type=jnp.float32)
    y = jnp.maximum(acc + b_ref[...], 0.0)
    o_ref[...] = y.reshape(o_ref.shape).astype(o_ref.dtype)


def conv3x3_bn_relu(x_nhwc, w_folded, b_folded, *, dilation):
    """x_nhwc: (N,H,W,Cin); w_folded: (9*Cin8, Cout_p) bf16; b_folded: (1, Cout_p) f32."""
    N, H, W, cin = x_nhwc.shape
    K, cout_p = w_folded.shape
    cin8 = K // 9
    dil = dilation
    assert 1 <= dil <= 4        # 8-row halo block covers 2*dil rows

    W8 = _round_up(W, 8)
    # Row-band height: multiple of 8, TH*W8 >= 1024 when H is large, but keep
    # at least two bands (pipelining / v7x core split) whenever possible.
    TH = min(_round_up(-(-1024 // W8), 8), 128, _round_up(H, 8))
    while TH > 8 and _round_up(H, TH) // TH < 2:
        TH -= 8
    H_pad = _round_up(H, TH)
    HpT = H_pad + 8                   # top halo (dil rows) + bottom halo/pad
    WpT = W8 + 2 * dil
    TN = 256 if cout_p % 256 == 0 else 128
    th8 = TH // 8

    xp = jnp.pad(x_nhwc.astype(jnp.bfloat16),
                 ((0, 0), (dil, HpT - H - dil), (dil, WpT - W - dil),
                  (0, cin8 - cin)))

    rows = H_pad // TH
    flops = 2 * N * H_pad * W8 * K * cout_p
    bytes_accessed = 2 * (N * HpT * WpT * cin8 + N * rows * 8 * WpT * cin8
                          + K * cout_p + N * H_pad * W8 * cout_p)
    block_bytes = (2 * (TH * WpT * cin8 * 2 + 8 * WpT * cin8 * 2
                        + K * TN * 2 + TN * 4 + TH * W8 * TN * 2)
                   + TH * W8 * K * 2)

    kernel = functools.partial(_conv3x3_bn_relu_kernel, dil=dil)
    out = pl.pallas_call(
        kernel,
        out_shape=jax.ShapeDtypeStruct((N, H_pad, W8, cout_p), jnp.bfloat16),
        grid=(N, rows, cout_p // TN),
        in_specs=[
            pl.BlockSpec((1, TH, WpT, cin8), lambda n, t, c: (n, t, 0, 0)),
            pl.BlockSpec((1, 8, WpT, cin8),
                         lambda n, t, c: (n, (t + 1) * th8, 0, 0)),
            pl.BlockSpec((K, TN), lambda n, t, c: (0, c)),
            pl.BlockSpec((1, TN), lambda n, t, c: (0, c)),
        ],
        out_specs=pl.BlockSpec((1, TH, W8, TN), lambda n, t, c: (n, t, 0, c)),
        scratch_shapes=[pltpu.VMEM((TH * W8, K), jnp.bfloat16)],
        compiler_params=pltpu.CompilerParams(
            dimension_semantics=("parallel", "parallel", "arbitrary"),
            vmem_limit_bytes=_vmem_limit(block_bytes)),
        cost_estimate=pl.CostEstimate(flops=flops, transcendentals=0,
                                      bytes_accessed=bytes_accessed),
    )(xp, xp, w_folded, b_folded)
    return out[:, :H, :W, :]


# ---------------------------------------------------------------------------
# Parameter folding (BN eval stats + conv bias -> per-kernel weight/bias)
# ---------------------------------------------------------------------------
def _bn_scale_bias(gamma, beta, mean, var):
    scale = gamma / jnp.sqrt(var + _BN_EPS)
    return scale, beta - mean * scale


def _fold_conv1x1(w, b, gamma, beta, mean, var):
    """Conv2d(k=1, bias) + BN(eval) -> (Cin8, Cout_p) bf16 weight, (1, Cout_p) f32 bias."""
    scale, bn_bias = _bn_scale_bias(gamma, beta, mean, var)
    cout, cin = w.shape[0], w.shape[1]
    w2 = jnp.transpose(w[:, :, 0, 0] * scale[:, None])            # (Cin, Cout)
    bias = bn_bias + b * scale
    cin8, cout_p = _round_up(cin, 8), _round_up(cout, 128)
    w_p = jnp.zeros((cin8, cout_p), jnp.float32).at[:cin, :cout].set(w2)
    b_p = jnp.zeros((1, cout_p), jnp.float32).at[0, :cout].set(bias)
    return w_p.astype(jnp.bfloat16), b_p


def _fold_conv3x3(w, gamma, beta, mean, var):
    """Conv2d(k=3, no bias) + BN(eval) -> (9*Cin8, Cout_p) bf16 weight, (1, Cout_p) f32 bias."""
    scale, bias = _bn_scale_bias(gamma, beta, mean, var)
    cout, cin = w.shape[0], w.shape[1]
    wt = jnp.transpose(w, (2, 3, 1, 0)) * scale                   # (KH,KW,Cin,Cout)
    cin8, cout_p = _round_up(cin, 8), _round_up(cout, 128)
    w_p = jnp.zeros((3, 3, cin8, cout_p), jnp.float32)
    w_p = w_p.at[:, :, :cin, :cout].set(wt).reshape(9 * cin8, cout_p)
    b_p = jnp.zeros((1, cout_p), jnp.float32).at[0, :cout].set(bias)
    return w_p.astype(jnp.bfloat16), b_p


# ---------------------------------------------------------------------------
# CAM forward
# ---------------------------------------------------------------------------
def cam_forward(params, lf, hf):
    """CAM.forward (eval-mode BatchNorm). lf/hf in NCHW; returns NCHW float32."""
    N, _, H, W = lf.shape
    if hf.shape[2:] != lf.shape[2:]:
        # F.interpolate(bilinear, align_corners=False) == half-pixel bilinear.
        hf = jax.image.resize(hf, (hf.shape[0], hf.shape[1], H, W),
                              method="bilinear")

    channel = params["conv1_2"]["w"].shape[0]
    c4 = channel // 4

    # NCHW -> NHWC exactly once; activations stay channel-last (bf16) between layers.
    lf_t = jnp.transpose(lf, (0, 2, 3, 1))
    hf_t = jnp.transpose(hf, (0, 2, 3, 1))
    x_in = jnp.concatenate([lf_t, hf_t], axis=-1)

    w11, b11 = _fold_conv1x1(**params["conv1_1"])
    w12, b12 = _fold_conv1x1(**params["conv1_2"])
    w31, b31 = _fold_conv3x3(**params["conv3_1"])
    w51, b51 = _fold_conv3x3(**params["dconv5_1"])
    w71, b71 = _fold_conv3x3(**params["dconv7_1"])
    w91, b91 = _fold_conv3x3(**params["dconv9_1"])
    w33, b33 = _fold_conv3x3(**params["conv3_3"])

    x = conv1x1_bn_relu(x_in, w11, b11)[..., :channel]
    xc = [x[..., k * c4:(k + 1) * c4] for k in range(4)]

    x0 = conv3x3_bn_relu(xc[0] + xc[1], w31, b31, dilation=1)[..., :c4]
    x1 = conv3x3_bn_relu(xc[1] + x0 + xc[2], w51, b51, dilation=2)[..., :c4]
    x2 = conv3x3_bn_relu(xc[2] + x1 + xc[3], w71, b71, dilation=3)[..., :c4]
    x3 = conv3x3_bn_relu(xc[3] + x2, w91, b91, dilation=4)[..., :c4]

    xx = conv1x1_bn_relu(jnp.concatenate([x0, x1, x2, x3], axis=-1),
                         w12, b12)[..., :channel]
    out = conv3x3_bn_relu(x + xx, w33, b33, dilation=1)[..., :channel]

    return jnp.transpose(out, (0, 3, 1, 2)).astype(jnp.float32)


# ---------------------------------------------------------------------------
# Pure-JAX reference (NCHW, f32, eval-mode BN), for validation
# ---------------------------------------------------------------------------
def _cam_reference(params, lf, hf):
    hp = jax.lax.Precision.HIGHEST

    def conv2d(x, w, dilation=1, padding=0):
        return jax.lax.conv_general_dilated(
            x, w, window_strides=(1, 1),
            padding=((padding, padding), (padding, padding)),
            rhs_dilation=(dilation, dilation),
            dimension_numbers=("NCHW", "OIHW", "NCHW"), precision=hp)

    def bn_relu(x, q):
        scale = (q["gamma"] / jnp.sqrt(q["var"] + _BN_EPS)).reshape(1, -1, 1, 1)
        bias = (q["beta"] - q["mean"] * q["gamma"] /
                jnp.sqrt(q["var"] + _BN_EPS)).reshape(1, -1, 1, 1)
        return jnp.maximum(x * scale + bias, 0.0)

    def conv1x1(name, x):
        q = params[name]
        return bn_relu(conv2d(x, q["w"]) + q["b"].reshape(1, -1, 1, 1), q)

    def convbnr(name, x, dilation=1):
        q = params[name]
        return bn_relu(conv2d(x, q["w"], dilation=dilation, padding=dilation), q)

    N, _, H, W = lf.shape
    if hf.shape[2:] != lf.shape[2:]:
        hf = jax.image.resize(hf, (hf.shape[0], hf.shape[1], H, W),
                              method="bilinear")
    x = jnp.concatenate([lf, hf], axis=1)
    x = conv1x1("conv1_1", x)
    channel = params["conv1_2"]["w"].shape[0]
    c4 = channel // 4
    xc = [x[:, k * c4:(k + 1) * c4] for k in range(4)]
    x0 = convbnr("conv3_1", xc[0] + xc[1], 1)
    x1 = convbnr("dconv5_1", xc[1] + x0 + xc[2], 2)
    x2 = convbnr("dconv7_1", xc[2] + x1 + xc[3], 3)
    x3 = convbnr("dconv9_1", xc[3] + x2, 4)
    xx = conv1x1("conv1_2", jnp.concatenate([x0, x1, x2, x3], axis=1))
    return convbnr("conv3_3", x + xx, 1)


if __name__ == "__main__":
    key = jax.random.PRNGKey(0)

    N = 2
    hchannel, channel = 16, 16
    H, W = 16, 16
    Hh, Wh = 8, 8          # hf at lower resolution -> exercises the resize path
    c4 = channel // 4

    def conv_params(k, cout, cin, ksize, with_bias):
        ks = jax.random.split(k, 6)
        p = {"w": 0.1 * jax.random.normal(ks[0], (cout, cin, ksize, ksize), jnp.float32),
             "gamma": 1.0 + 0.1 * jax.random.normal(ks[1], (cout,), jnp.float32),
             "beta": 0.1 * jax.random.normal(ks[2], (cout,), jnp.float32),
             "mean": 0.1 * jax.random.normal(ks[3], (cout,), jnp.float32),
             "var": jax.random.uniform(ks[4], (cout,), jnp.float32, 0.5, 1.5)}
        if with_bias:
            p["b"] = 0.1 * jax.random.normal(ks[5], (cout,), jnp.float32)
        return p

    keys = jax.random.split(key, 9)
    params = {
        "conv1_1": conv_params(keys[0], channel, hchannel + channel, 1, True),
        "conv3_1": conv_params(keys[1], c4, c4, 3, False),
        "dconv5_1": conv_params(keys[2], c4, c4, 3, False),
        "dconv7_1": conv_params(keys[3], c4, c4, 3, False),
        "dconv9_1": conv_params(keys[4], c4, c4, 3, False),
        "conv1_2": conv_params(keys[5], channel, channel, 1, True),
        "conv3_3": conv_params(keys[6], channel, channel, 3, False),
    }
    lf = jax.random.normal(keys[7], (N, channel, H, W), jnp.float32)
    hf = jax.random.normal(keys[8], (N, hchannel, Hh, Wh), jnp.float32)

    out = jax.jit(cam_forward)(params, lf, hf)
    out = jax.block_until_ready(out)
    assert out.shape == (N, channel, H, W), out.shape

    # bf16 activations/weights -> relaxed tolerance vs. the f32 reference.
    ref = _cam_reference(params, lf, hf)
    max_err = float(jnp.max(jnp.abs(out - ref)))
    assert jnp.allclose(out, ref, atol=1e-1, rtol=1e-1), f"max abs err {max_err}"

    print("KERNEL_OK")
</pallas_src>

<mosaic_0001>
module attributes {stable_mosaic.version = 11 : i64} {
  func.func @_mm_bias_relu_kernel(%arg0: i32, %arg1: i32, %arg2: memref<256x32xbf16, #tpu.memory_space<vmem>>, %arg3: memref<32x128xbf16, #tpu.memory_space<vmem>>, %arg4: memref<1x128xf32, #tpu.memory_space<vmem>>, %arg5: memref<256x128xbf16, #tpu.memory_space<vmem>>) attributes {dimension_semantics = [#tpu.dimension_semantics<parallel>, #tpu.dimension_semantics<parallel>], iteration_bounds = array<i64: 2, 1>, scalar_prefetch = 0 : i64, scratch_operands = 0 : i64, tpu.core_type = #tpu.core_type<tc>, window_params = [{transform_indices = @transform_0, window_bounds = array<i64: 256, 32>}, {transform_indices = @transform_1, window_bounds = array<i64: 32, 128>}, {transform_indices = @transform_2, window_bounds = array<i64: 1, 128>}, {transform_indices = @transform_3, window_bounds = array<i64: 256, 128>}]} {
    %c0 = arith.constant 0 : index
    %c0_0 = arith.constant 0 : index
    %0 = vector.load %arg2[%c0, %c0_0] : memref<256x32xbf16, #tpu.memory_space<vmem>>, vector<256x32xbf16>
    %c0_1 = arith.constant 0 : index
    %c0_2 = arith.constant 0 : index
    %1 = vector.load %arg3[%c0_1, %c0_2] : memref<32x128xbf16, #tpu.memory_space<vmem>>, vector<32x128xbf16>
    %cst = arith.constant dense<0.000000e+00> : vector<256x128xf32>
    %2 = tpu.matmul %0, %1, %cst {dimension_numbers = #tpu.dot_dimension_numbers<[1], [0], [0], [1], [0, 0, 1, 1], [], []>} : vector<256x32xbf16>, vector<32x128xbf16>, vector<256x128xf32> -> vector<256x128xf32>
    %c0_3 = arith.constant 0 : index
    %c0_4 = arith.constant 0 : index
    %3 = vector.load %arg4[%c0_3, %c0_4] : memref<1x128xf32, #tpu.memory_space<vmem>>, vector<1x128xf32>
    %4 = vector.broadcast %3 : vector<1x128xf32> to vector<256x128xf32>
    %5 = arith.addf %2, %4 : vector<256x128xf32>
    %cst_5 = arith.constant 0.000000e+00 : f32
    %6 = vector.broadcast %cst_5 : f32 to vector<256x128xf32>
    %7 = arith.maximumf %5, %6 : vector<256x128xf32>
    %8 = arith.truncf %7 : vector<256x128xf32> to vector<256x128xbf16>
    %c0_6 = arith.constant 0 : index
    %c0_7 = arith.constant 0 : index
    %9 = vector.load %arg5[%c0_6, %c0_7] : memref<256x128xbf16, #tpu.memory_space<vmem>>, vector<256x128xbf16>
    tpu.vector_store %arg5[%c0_6, %c0_7], %8 {strides = array<i32>} : memref<256x128xbf16, #tpu.memory_space<vmem>>, vector<256x128xbf16>,
    return
  }
  func.func @transform_0(%arg0: i32, %arg1: i32) -> (i32, i32) {
    %c0_i32 = arith.constant 0 : i32
    %c0_i32_0 = arith.constant 0 : i32
    return %arg0, %c0_i32 : i32, i32
  }
  func.func @transform_1(%arg0: i32, %arg1: i32) -> (i32, i32) {
    %c0_i32 = arith.constant 0 : i32
    %c0_i32_0 = arith.constant 0 : i32
    return %c0_i32, %arg1 : i32, i32
  }
  func.func @transform_2(%arg0: i32, %arg1: i32) -> (i32, i32) {
    %c0_i32 = arith.constant 0 : i32
    %c0_i32_0 = arith.constant 0 : i32
    return %c0_i32, %arg1 : i32, i32
  }
  func.func @transform_3(%arg0: i32, %arg1: i32) -> (i32, i32) {
    %c0_i32 = arith.constant 0 : i32
    return %arg0, %arg1 : i32, i32
  }
}

module attributes {stable_mosaic.version = 11 : i64} {
  func.func @_conv3x3_bn_relu_kernel(%arg0: i32, %arg1: i32, %arg2: i32, %arg3: memref<1x8x18x8xbf16, #tpu.memory_space<vmem>>, %arg4: memref<1x8x18x8xbf16, #tpu.memory_space<vmem>>, %arg5: memref<72x128xbf16, #tpu.memory_space<vmem>>, %arg6: memref<1x128xf32, #tpu.memory_space<vmem>>, %arg7: memref<1x8x16x128xbf16, #tpu.memory_space<vmem>>, %arg8: memref<128x72xbf16, #tpu.memory_space<vmem>>) attributes {dimension_semantics = [#tpu.dimension_semantics<parallel>, #tpu.dimension_semantics<parallel>, #tpu.dimension_semantics<arbitrary>], iteration_bounds = array<i64: 2, 2, 1>, scalar_prefetch = 0 : i64, scratch_operands = 1 : i64, tpu.core_type = #tpu.core_type<tc>, window_params = [{transform_indices = @transform_0, window_bounds = array<i64: 1, 8, 18, 8>}, {transform_indices = @transform_1, window_bounds = array<i64: 1, 8, 18, 8>}, {transform_indices = @transform_2, window_bounds = array<i64: 72, 128>}, {transform_indices = @transform_3, window_bounds = array<i64: 1, 128>}, {transform_indices = @transform_4, window_bounds = array<i64: 1, 8, 16, 128>}]} {
    %c0_i32 = arith.constant 0 : i32
    %0 = arith.cmpi eq, %arg2, %c0_i32 : i32
    %1 = arith.extui %0 : i1 to i32
    %c0_i32_0 = arith.constant 0 : i32
    %2 = arith.cmpi ne, %1, %c0_i32_0 : i32
    scf.if %2 {
      %c0_11 = arith.constant 0 : index
      %c0_12 = arith.constant 0 : index
      %c0_13 = arith.constant 0 : index
      %c0_14 = arith.constant 0 : index
      %14 = vector.load %arg3[%c0_11, %c0_12, %c0_13, %c0_14] : memref<1x8x18x8xbf16, #tpu.memory_space<vmem>>, vector<1x8x18x8xbf16>
      %15 = vector.shape_cast %14 : vector<1x8x18x8xbf16> to vector<8x18x8xbf16>
      %c0_15 = arith.constant 0 : index
      %c0_16 = arith.constant 0 : index
      %c0_17 = arith.constant 0 : index
      %c0_18 = arith.constant 0 : index
      %16 = vector.load %arg4[%c0_15, %c0_16, %c0_17, %c0_18] : memref<1x8x18x8xbf16, #tpu.memory_space<vmem>>, vector<1x2x18x8xbf16>
      %17 = vector.shape_cast %16 : vector<1x2x18x8xbf16> to vector<2x18x8xbf16>
      %18 = tpu.concatenate %15, %17 in 0 : vector<8x18x8xbf16>, vector<2x18x8xbf16> -> vector<10x18x8xbf16>
      %19 = vector.extract_strided_slice %18 {offsets = [0, 0, 0], sizes = [8, 16, 8], strides = [1, 1, 1]} : vector<10x18x8xbf16> to vector<8x16x8xbf16>
      %20 = vector.extract_strided_slice %18 {offsets = [0, 1, 0], sizes = [8, 16, 8], strides = [1, 1, 1]} : vector<10x18x8xbf16> to vector<8x16x8xbf16>
      %21 = vector.extract_strided_slice %18 {offsets = [0, 2, 0], sizes = [8, 16, 8], strides = [1, 1, 1]} : vector<10x18x8xbf16> to vector<8x16x8xbf16>
      %22 = vector.extract_strided_slice %18 {offsets = [1, 0, 0], sizes = [8, 16, 8], strides = [1, 1, 1]} : vector<10x18x8xbf16> to vector<8x16x8xbf16>
      %23 = vector.extract_strided_slice %18 {offsets = [1, 1, 0], sizes = [8, 16, 8], strides = [1, 1, 1]} : vector<10x18x8xbf16> to vector<8x16x8xbf16>
      %24 = vector.extract_strided_slice %18 {offsets = [1, 2, 0], sizes = [8, 16, 8], strides = [1, 1, 1]} : vector<10x18x8xbf16> to vector<8x16x8xbf16>
      %25 = vector.extract_strided_slice %18 {offsets = [2, 0, 0], sizes = [8, 16, 8], strides = [1, 1, 1]} : vector<10x18x8xbf16> to vector<8x16x8xbf16>
      %26 = vector.extract_strided_slice %18 {offsets = [2, 1, 0], sizes = [8, 16, 8], strides = [1, 1, 1]} : vector<10x18x8xbf16> to vector<8x16x8xbf16>
      %27 = vector.extract_strided_slice %18 {offsets = [2, 2, 0], sizes = [8, 16, 8], strides = [1, 1, 1]} : vector<10x18x8xbf16> to vector<8x16x8xbf16>
      %28 = tpu.concatenate %19, %20, %21, %22, %23, %24, %25, %26, %27 in 2 : vector<8x16x8xbf16>, vector<8x16x8xbf16>, vector<8x16x8xbf16>, vector<8x16x8xbf16>, vector<8x16x8xbf16>, vector<8x16x8xbf16>, vector<8x16x8xbf16>, vector<8x16x8xbf16>, vector<8x16x8xbf16> -> vector<8x16x72xbf16>
      %29 = vector.shape_cast %28 : vector<8x16x72xbf16> to vector<128x72xbf16>
      %c0_19 = arith.constant 0 : index
      %c0_20 = arith.constant 0 : index
      %30 = vector.load %arg8[%c0_19, %c0_20] : memref<128x72xbf16, #tpu.memory_space<vmem>>, vector<128x72xbf16>
      tpu.vector_store %arg8[%c0_19, %c0_20], %29 {strides = array<i32>} : memref<128x72xbf16, #tpu.memory_space<vmem>>, vector<128x72xbf16>,
    } else {
    }
    %c0 = arith.constant 0 : index
    %c0_1 = arith.constant 0 : index
    %3 = vector.load %arg8[%c0, %c0_1] : memref<128x72xbf16, #tpu.memory_space<vmem>>, vector<128x72xbf16>
    %c0_2 = arith.constant 0 : index
    %c0_3 = arith.constant 0 : index
    %4 = vector.load %arg5[%c0_2, %c0_3] : memref<72x128xbf16, #tpu.memory_space<vmem>>, vector<72x128xbf16>
    %cst = arith.constant dense<0.000000e+00> : vector<128x128xf32>
    %5 = tpu.matmul %3, %4, %cst {dimension_numbers = #tpu.dot_dimension_numbers<[1], [0], [0], [1], [0, 0, 1, 1], [], []>} : vector<128x72xbf16>, vector<72x128xbf16>, vector<128x128xf32> -> vector<128x128xf32>
    %c0_4 = arith.constant 0 : index
    %c0_5 = arith.constant 0 : index
    %6 = vector.load %arg6[%c0_4, %c0_5] : memref<1x128xf32, #tpu.memory_space<vmem>>, vector<1x128xf32>
    %7 = vector.broadcast %6 : vector<1x128xf32> to vector<128x128xf32>
    %8 = arith.addf %5, %7 : vector<128x128xf32>
    %cst_6 = arith.constant 0.000000e+00 : f32
    %9 = vector.broadcast %cst_6 : f32 to vector<128x128xf32>
    %10 = arith.maximumf %8, %9 : vector<128x128xf32>
    %11 = vector.shape_cast %10 : vector<128x128xf32> to vector<1x8x16x128xf32>
    %12 = arith.truncf %11 : vector<1x8x16x128xf32> to vector<1x8x16x128xbf16>
    %c0_7 = arith.constant 0 : index
    %c0_8 = arith.constant 0 : index
    %c0_9 = arith.constant 0 : index
    %c0_10 = arith.constant 0 : index
    %13 = vector.load %arg7[%c0_7, %c0_8, %c0_9, %c0_10] : memref<1x8x16x128xbf16, #tpu.memory_space<vmem>>, vector<1x8x16x128xbf16>
    tpu.vector_store %arg7[%c0_7, %c0_8, %c0_9, %c0_10], %12 {strides = array<i32>} : memref<1x8x16x128xbf16, #tpu.memory_space<vmem>>, vector<1x8x16x128xbf16>,
    return
  }
  func.func @transform_0(%arg0: i32, %arg1: i32, %arg2: i32) -> (i32, i32, i32, i32) {
    %c0_i32 = arith.constant 0 : i32
    %c0_i32_0 = arith.constant 0 : i32
    %c0_i32_1 = arith.constant 0 : i32
    return %arg0, %arg1, %c0_i32, %c0_i32_0 : i32, i32, i32, i32
  }
  func.func @transform_1(%arg0: i32, %arg1: i32, %arg2: i32) -> (i32, i32, i32, i32) {
    %c1_i32 = arith.constant 1 : i32
    %0 = arith.addi %arg1, %c1_i32 : i32
    %c1_i32_0 = arith.constant 1 : i32
    %1 = arith.muli %0, %c1_i32_0 : i32
    %c0_i32 = arith.constant 0 : i32
    %c0_i32_1 = arith.constant 0 : i32
    %c0_i32_2 = arith.constant 0 : i32
    return %arg0, %1, %c0_i32, %c0_i32_1 : i32, i32, i32, i32
  }
  func.func @transform_2(%arg0: i32, %arg1: i32, %arg2: i32) -> (i32, i32) {
    %c0_i32 = arith.constant 0 : i32
    %c0_i32_0 = arith.constant 0 : i32
    return %c0_i32, %arg2 : i32, i32
  }
  func.func @transform_3(%arg0: i32, %arg1: i32, %arg2: i32) -> (i32, i32) {
    %c0_i32 = arith.constant 0 : i32
    %c0_i32_0 = arith.constant 0 : i32
    return %c0_i32, %arg2 : i32, i32
  }
  func.func @transform_4(%arg0: i32, %arg1: i32, %arg2: i32) -> (i32, i32, i32, i32) {
    %c0_i32 = arith.constant 0 : i32
    %c0_i32_0 = arith.constant 0 : i32
    return %arg0, %arg1, %c0_i32, %arg2 : i32, i32, i32, i32
  }
}

module attributes {stable_mosaic.version = 11 : i64} {
  func.func @_conv3x3_bn_relu_kernel(%arg0: i32, %arg1: i32, %arg2: i32, %arg3: memref<1x8x20x8xbf16, #tpu.memory_space<vmem>>, %arg4: memref<1x8x20x8xbf16, #tpu.memory_space<vmem>>, %arg5: memref<72x128xbf16, #tpu.memory_space<vmem>>, %arg6: memref<1x128xf32, #tpu.memory_space<vmem>>, %arg7: memref<1x8x16x128xbf16, #tpu.memory_space<vmem>>, %arg8: memref<128x72xbf16, #tpu.memory_space<vmem>>) attributes {dimension_semantics = [#tpu.dimension_semantics<parallel>, #tpu.dimension_semantics<parallel>, #tpu.dimension_semantics<arbitrary>], iteration_bounds = array<i64: 2, 2, 1>, scalar_prefetch = 0 : i64, scratch_operands = 1 : i64, tpu.core_type = #tpu.core_type<tc>, window_params = [{transform_indices = @transform_0, window_bounds = array<i64: 1, 8, 20, 8>}, {transform_indices = @transform_1, window_bounds = array<i64: 1, 8, 20, 8>}, {transform_indices = @transform_2, window_bounds = array<i64: 72, 128>}, {transform_indices = @transform_3, window_bounds = array<i64: 1, 128>}, {transform_indices = @transform_4, window_bounds = array<i64: 1, 8, 16, 128>}]} {
    %c0_i32 = arith.constant 0 : i32
    %0 = arith.cmpi eq, %arg2, %c0_i32 : i32
    %1 = arith.extui %0 : i1 to i32
    %c0_i32_0 = arith.constant 0 : i32
    %2 = arith.cmpi ne, %1, %c0_i32_0 : i32
    scf.if %2 {
      %c0_11 = arith.constant 0 : index
      %c0_12 = arith.constant 0 : index
      %c0_13 = arith.constant 0 : index
      %c0_14 = arith.constant 0 : index
      %14 = vector.load %arg3[%c0_11, %c0_12, %c0_13, %c0_14] : memref<1x8x20x8xbf16, #tpu.memory_space<vmem>>, vector<1x8x20x8xbf16>
      %15 = vector.shape_cast %14 : vector<1x8x20x8xbf16> to vector<8x20x8xbf16>
      %c0_15 = arith.constant 0 : index
      %c0_16 = arith.constant 0 : index
      %c0_17 = arith.constant 0 : index
      %c0_18 = arith.constant 0 : index
      %16 = vector.load %arg4[%c0_15, %c0_16, %c0_17, %c0_18] : memref<1x8x20x8xbf16, #tpu.memory_space<vmem>>, vector<1x4x20x8xbf16>
      %17 = vector.shape_cast %16 : vector<1x4x20x8xbf16> to vector<4x20x8xbf16>
      %18 = tpu.concatenate %15, %17 in 0 : vector<8x20x8xbf16>, vector<4x20x8xbf16> -> vector<12x20x8xbf16>
      %19 = vector.extract_strided_slice %18 {offsets = [0, 0, 0], sizes = [8, 16, 8], strides = [1, 1, 1]} : vector<12x20x8xbf16> to vector<8x16x8xbf16>
      %20 = vector.extract_strided_slice %18 {offsets = [0, 2, 0], sizes = [8, 16, 8], strides = [1, 1, 1]} : vector<12x20x8xbf16> to vector<8x16x8xbf16>
      %21 = vector.extract_strided_slice %18 {offsets = [0, 4, 0], sizes = [8, 16, 8], strides = [1, 1, 1]} : vector<12x20x8xbf16> to vector<8x16x8xbf16>
      %22 = vector.extract_strided_slice %18 {offsets = [2, 0, 0], sizes = [8, 16, 8], strides = [1, 1, 1]} : vector<12x20x8xbf16> to vector<8x16x8xbf16>
      %23 = vector.extract_strided_slice %18 {offsets = [2, 2, 0], sizes = [8, 16, 8], strides = [1, 1, 1]} : vector<12x20x8xbf16> to vector<8x16x8xbf16>
      %24 = vector.extract_strided_slice %18 {offsets = [2, 4, 0], sizes = [8, 16, 8], strides = [1, 1, 1]} : vector<12x20x8xbf16> to vector<8x16x8xbf16>
      %25 = vector.extract_strided_slice %18 {offsets = [4, 0, 0], sizes = [8, 16, 8], strides = [1, 1, 1]} : vector<12x20x8xbf16> to vector<8x16x8xbf16>
      %26 = vector.extract_strided_slice %18 {offsets = [4, 2, 0], sizes = [8, 16, 8], strides = [1, 1, 1]} : vector<12x20x8xbf16> to vector<8x16x8xbf16>
      %27 = vector.extract_strided_slice %18 {offsets = [4, 4, 0], sizes = [8, 16, 8], strides = [1, 1, 1]} : vector<12x20x8xbf16> to vector<8x16x8xbf16>
      %28 = tpu.concatenate %19, %20, %21, %22, %23, %24, %25, %26, %27 in 2 : vector<8x16x8xbf16>, vector<8x16x8xbf16>, vector<8x16x8xbf16>, vector<8x16x8xbf16>, vector<8x16x8xbf16>, vector<8x16x8xbf16>, vector<8x16x8xbf16>, vector<8x16x8xbf16>, vector<8x16x8xbf16> -> vector<8x16x72xbf16>
      %29 = vector.shape_cast %28 : vector<8x16x72xbf16> to vector<128x72xbf16>
      %c0_19 = arith.constant 0 : index
      %c0_20 = arith.constant 0 : index
      %30 = vector.load %arg8[%c0_19, %c0_20] : memref<128x72xbf16, #tpu.memory_space<vmem>>, vector<128x72xbf16>
      tpu.vector_store %arg8[%c0_19, %c0_20], %29 {strides = array<i32>} : memref<128x72xbf16, #tpu.memory_space<vmem>>, vector<128x72xbf16>,
    } else {
    }
    %c0 = arith.constant 0 : index
    %c0_1 = arith.constant 0 : index
    %3 = vector.load %arg8[%c0, %c0_1] : memref<128x72xbf16, #tpu.memory_space<vmem>>, vector<128x72xbf16>
    %c0_2 = arith.constant 0 : index
    %c0_3 = arith.constant 0 : index
    %4 = vector.load %arg5[%c0_2, %c0_3] : memref<72x128xbf16, #tpu.memory_space<vmem>>, vector<72x128xbf16>
    %cst = arith.constant dense<0.000000e+00> : vector<128x128xf32>
    %5 = tpu.matmul %3, %4, %cst {dimension_numbers = #tpu.dot_dimension_numbers<[1], [0], [0], [1], [0, 0, 1, 1], [], []>} : vector<128x72xbf16>, vector<72x128xbf16>, vector<128x128xf32> -> vector<128x128xf32>
    %c0_4 = arith.constant 0 : index
    %c0_5 = arith.constant 0 : index
    %6 = vector.load %arg6[%c0_4, %c0_5] : memref<1x128xf32, #tpu.memory_space<vmem>>, vector<1x128xf32>
    %7 = vector.broadcast %6 : vector<1x128xf32> to vector<128x128xf32>
    %8 = arith.addf %5, %7 : vector<128x128xf32>
    %cst_6 = arith.constant 0.000000e+00 : f32
    %9 = vector.broadcast %cst_6 : f32 to vector<128x128xf32>
    %10 = arith.maximumf %8, %9 : vector<128x128xf32>
    %11 = vector.shape_cast %10 : vector<128x128xf32> to vector<1x8x16x128xf32>
    %12 = arith.truncf %11 : vector<1x8x16x128xf32> to vector<1x8x16x128xbf16>
    %c0_7 = arith.constant 0 : index
    %c0_8 = arith.constant 0 : index
    %c0_9 = arith.constant 0 : index
    %c0_10 = arith.constant 0 : index
    %13 = vector.load %arg7[%c0_7, %c0_8, %c0_9, %c0_10] : memref<1x8x16x128xbf16, #tpu.memory_space<vmem>>, vector<1x8x16x128xbf16>
    tpu.vector_store %arg7[%c0_7, %c0_8, %c0_9, %c0_10], %12 {strides = array<i32>} : memref<1x8x16x128xbf16, #tpu.memory_space<vmem>>, vector<1x8x16x128xbf16>,
    return
  }
  func.func @transform_0(%arg0: i32, %arg1: i32, %arg2: i32) -> (i32, i32, i32, i32) {
    %c0_i32 = arith.constant 0 : i32
    %c0_i32_0 = arith.constant 0 : i32
    %c0_i32_1 = arith.constant 0 : i32
    return %arg0, %arg1, %c0_i32, %c0_i32_0 : i32, i32, i32, i32
  }
  func.func @transform_1(%arg0: i32, %arg1: i32, %arg2: i32) -> (i32, i32, i32, i32) {
    %c1_i32 = arith.constant 1 : i32
    %0 = arith.addi %arg1, %c1_i32 : i32
    %c1_i32_0 = arith.constant 1 : i32
    %1 = arith.muli %0, %c1_i32_0 : i32
    %c0_i32 = arith.constant 0 : i32
    %c0_i32_1 = arith.constant 0 : i32
    %c0_i32_2 = arith.constant 0 : i32
    return %arg0, %1, %c0_i32, %c0_i32_1 : i32, i32, i32, i32
  }
  func.func @transform_2(%arg0: i32, %arg1: i32, %arg2: i32) -> (i32, i32) {
    %c0_i32 = arith.constant 0 : i32
    %c0_i32_0 = arith.constant 0 : i32
    return %c0_i32, %arg2 : i32, i32
  }
  func.func @transform_3(%arg0: i32, %arg1: i32, %arg2: i32) -> (i32, i32) {
    %c0_i32 = arith.constant 0 : i32
    %c0_i32_0 = arith.constant 0 : i32
    return %c0_i32, %arg2 : i32, i32
  }
  func.func @transform_4(%arg0: i32, %arg1: i32, %arg2: i32) -> (i32, i32, i32, i32) {
    %c0_i32 = arith.constant 0 : i32
    %c0_i32_0 = arith.constant 0 : i32
    return %arg0, %arg1, %c0_i32, %arg2 : i32, i32, i32, i32
  }
}

module attributes {stable_mosaic.version = 11 : i64} {
  func.func @_conv3x3_bn_relu_kernel(%arg0: i32, %arg1: i32, %arg2: i32, %arg3: memref<1x8x22x8xbf16, #tpu.memory_space<vmem>>, %arg4: memref<1x8x22x8xbf16, #tpu.memory_space<vmem>>, %arg5: memref<72x128xbf16, #tpu.memory_space<vmem>>, %arg6: memref<1x128xf32, #tpu.memory_space<vmem>>, %arg7: memref<1x8x16x128xbf16, #tpu.memory_space<vmem>>, %arg8: memref<128x72xbf16, #tpu.memory_space<vmem>>) attributes {dimension_semantics = [#tpu.dimension_semantics<parallel>, #tpu.dimension_semantics<parallel>, #tpu.dimension_semantics<arbitrary>], iteration_bounds = array<i64: 2, 2, 1>, scalar_prefetch = 0 : i64, scratch_operands = 1 : i64, tpu.core_type = #tpu.core_type<tc>, window_params = [{transform_indices = @transform_0, window_bounds = array<i64: 1, 8, 22, 8>}, {transform_indices = @transform_1, window_bounds = array<i64: 1, 8, 22, 8>}, {transform_indices = @transform_2, window_bounds = array<i64: 72, 128>}, {transform_indices = @transform_3, window_bounds = array<i64: 1, 128>}, {transform_indices = @transform_4, window_bounds = array<i64: 1, 8, 16, 128>}]} {
    %c0_i32 = arith.constant 0 : i32
    %0 = arith.cmpi eq, %arg2, %c0_i32 : i32
    %1 = arith.extui %0 : i1 to i32
    %c0_i32_0 = arith.constant 0 : i32
    %2 = arith.cmpi ne, %1, %c0_i32_0 : i32
    scf.if %2 {
      %c0_11 = arith.constant 0 : index
      %c0_12 = arith.constant 0 : index
      %c0_13 = arith.constant 0 : index
      %c0_14 = arith.constant 0 : index
      %14 = vector.load %arg3[%c0_11, %c0_12, %c0_13, %c0_14] : memref<1x8x22x8xbf16, #tpu.memory_space<vmem>>, vector<1x8x22x8xbf16>
      %15 = vector.shape_cast %14 : vector<1x8x22x8xbf16> to vector<8x22x8xbf16>
      %c0_15 = arith.constant 0 : index
      %c0_16 = arith.constant 0 : index
      %c0_17 = arith.constant 0 : index
      %c0_18 = arith.constant 0 : index
      %16 = vector.load %arg4[%c0_15, %c0_16, %c0_17, %c0_18] : memref<1x8x22x8xbf16, #tpu.memory_space<vmem>>, vector<1x6x22x8xbf16>
      %17 = vector.shape_cast %16 : vector<1x6x22x8xbf16> to vector<6x22x8xbf16>
      %18 = tpu.concatenate %15, %17 in 0 : vector<8x22x8xbf16>, vector<6x22x8xbf16> -> vector<14x22x8xbf16>
      %19 = vector.extract_strided_slice %18 {offsets = [0, 0, 0], sizes = [8, 16, 8], strides = [1, 1, 1]} : vector<14x22x8xbf16> to vector<8x16x8xbf16>
      %20 = vector.extract_strided_slice %18 {offsets = [0, 3, 0], sizes = [8, 16, 8], strides = [1, 1, 1]} : vector<14x22x8xbf16> to vector<8x16x8xbf16>
      %21 = vector.extract_strided_slice %18 {offsets = [0, 6, 0], sizes = [8, 16, 8], strides = [1, 1, 1]} : vector<14x22x8xbf16> to vector<8x16x8xbf16>
      %22 = vector.extract_strided_slice %18 {offsets = [3, 0, 0], sizes = [8, 16, 8], strides = [1, 1, 1]} : vector<14x22x8xbf16> to vector<8x16x8xbf16>
      %23 = vector.extract_strided_slice %18 {offsets = [3, 3, 0], sizes = [8, 16, 8], strides = [1, 1, 1]} : vector<14x22x8xbf16> to vector<8x16x8xbf16>
      %24 = vector.extract_strided_slice %18 {offsets = [3, 6, 0], sizes = [8, 16, 8], strides = [1, 1, 1]} : vector<14x22x8xbf16> to vector<8x16x8xbf16>
      %25 = vector.extract_strided_slice %18 {offsets = [6, 0, 0], sizes = [8, 16, 8], strides = [1, 1, 1]} : vector<14x22x8xbf16> to vector<8x16x8xbf16>
      %26 = vector.extract_strided_slice %18 {offsets = [6, 3, 0], sizes = [8, 16, 8], strides = [1, 1, 1]} : vector<14x22x8xbf16> to vector<8x16x8xbf16>
      %27 = vector.extract_strided_slice %18 {offsets = [6, 6, 0], sizes = [8, 16, 8], strides = [1, 1, 1]} : vector<14x22x8xbf16> to vector<8x16x8xbf16>
      %28 = tpu.concatenate %19, %20, %21, %22, %23, %24, %25, %26, %27 in 2 : vector<8x16x8xbf16>, vector<8x16x8xbf16>, vector<8x16x8xbf16>, vector<8x16x8xbf16>, vector<8x16x8xbf16>, vector<8x16x8xbf16>, vector<8x16x8xbf16>, vector<8x16x8xbf16>, vector<8x16x8xbf16> -> vector<8x16x72xbf16>
      %29 = vector.shape_cast %28 : vector<8x16x72xbf16> to vector<128x72xbf16>
      %c0_19 = arith.constant 0 : index
      %c0_20 = arith.constant 0 : index
      %30 = vector.load %arg8[%c0_19, %c0_20] : memref<128x72xbf16, #tpu.memory_space<vmem>>, vector<128x72xbf16>
      tpu.vector_store %arg8[%c0_19, %c0_20], %29 {strides = array<i32>} : memref<128x72xbf16, #tpu.memory_space<vmem>>, vector<128x72xbf16>,
    } else {
    }
    %c0 = arith.constant 0 : index
    %c0_1 = arith.constant 0 : index
    %3 = vector.load %arg8[%c0, %c0_1] : memref<128x72xbf16, #tpu.memory_space<vmem>>, vector<128x72xbf16>
    %c0_2 = arith.constant 0 : index
    %c0_3 = arith.constant 0 : index
    %4 = vector.load %arg5[%c0_2, %c0_3] : memref<72x128xbf16, #tpu.memory_space<vmem>>, vector<72x128xbf16>
    %cst = arith.constant dense<0.000000e+00> : vector<128x128xf32>
    %5 = tpu.matmul %3, %4, %cst {dimension_numbers = #tpu.dot_dimension_numbers<[1], [0], [0], [1], [0, 0, 1, 1], [], []>} : vector<128x72xbf16>, vector<72x128xbf16>, vector<128x128xf32> -> vector<128x128xf32>
    %c0_4 = arith.constant 0 : index
    %c0_5 = arith.constant 0 : index
    %6 = vector.load %arg6[%c0_4, %c0_5] : memref<1x128xf32, #tpu.memory_space<vmem>>, vector<1x128xf32>
    %7 = vector.broadcast %6 : vector<1x128xf32> to vector<128x128xf32>
    %8 = arith.addf %5, %7 : vector<128x128xf32>
    %cst_6 = arith.constant 0.000000e+00 : f32
    %9 = vector.broadcast %cst_6 : f32 to vector<128x128xf32>
    %10 = arith.maximumf %8, %9 : vector<128x128xf32>
    %11 = vector.shape_cast %10 : vector<128x128xf32> to vector<1x8x16x128xf32>
    %12 = arith.truncf %11 : vector<1x8x16x128xf32> to vector<1x8x16x128xbf16>
    %c0_7 = arith.constant 0 : index
    %c0_8 = arith.constant 0 : index
    %c0_9 = arith.constant 0 : index
    %c0_10 = arith.constant 0 : index
    %13 = vector.load %arg7[%c0_7, %c0_8, %c0_9, %c0_10] : memref<1x8x16x128xbf16, #tpu.memory_space<vmem>>, vector<1x8x16x128xbf16>
    tpu.vector_store %arg7[%c0_7, %c0_8, %c0_9, %c0_10], %12 {strides = array<i32>} : memref<1x8x16x128xbf16, #tpu.memory_space<vmem>>, vector<1x8x16x128xbf16>,
    return
  }
  func.func @transform_0(%arg0: i32, %arg1: i32, %arg2: i32) -> (i32, i32, i32, i32) {
    %c0_i32 = arith.constant 0 : i32
    %c0_i32_0 = arith.constant 0 : i32
    %c0_i32_1 = arith.constant 0 : i32
    return %arg0, %arg1, %c0_i32, %c0_i32_0 : i32, i32, i32, i32
  }
  func.func @transform_1(%arg0: i32, %arg1: i32, %arg2: i32) -> (i32, i32, i32, i32) {
    %c1_i32 = arith.constant 1 : i32
    %0 = arith.addi %arg1, %c1_i32 : i32
    %c1_i32_0 = arith.constant 1 : i32
    %1 = arith.muli %0, %c1_i32_0 : i32
    %c0_i32 = arith.constant 0 : i32
    %c0_i32_1 = arith.constant 0 : i32
    %c0_i32_2 = arith.constant 0 : i32
    return %arg0, %1, %c0_i32, %c0_i32_1 : i32, i32, i32, i32
  }
  func.func @transform_2(%arg0: i32, %arg1: i32, %arg2: i32) -> (i32, i32) {
    %c0_i32 = arith.constant 0 : i32
    %c0_i32_0 = arith.constant 0 : i32
    return %c0_i32, %arg2 : i32, i32
  }
  func.func @transform_3(%arg0: i32, %arg1: i32, %arg2: i32) -> (i32, i32) {
    %c0_i32 = arith.constant 0 : i32
    %c0_i32_0 = arith.constant 0 : i32
    return %c0_i32, %arg2 : i32, i32
  }
  func.func @transform_4(%arg0: i32, %arg1: i32, %arg2: i32) -> (i32, i32, i32, i32) {
    %c0_i32 = arith.constant 0 : i32
    %c0_i32_0 = arith.constant 0 : i32
    return %arg0, %arg1, %c0_i32, %arg2 : i32, i32, i32, i32
  }
}

module attributes {stable_mosaic.version = 11 : i64} {
  func.func @_conv3x3_bn_relu_kernel(%arg0: i32, %arg1: i32, %arg2: i32, %arg3: memref<1x8x24x8xbf16, #tpu.memory_space<vmem>>, %arg4: memref<1x8x24x8xbf16, #tpu.memory_space<vmem>>, %arg5: memref<72x128xbf16, #tpu.memory_space<vmem>>, %arg6: memref<1x128xf32, #tpu.memory_space<vmem>>, %arg7: memref<1x8x16x128xbf16, #tpu.memory_space<vmem>>, %arg8: memref<128x72xbf16, #tpu.memory_space<vmem>>) attributes {dimension_semantics = [#tpu.dimension_semantics<parallel>, #tpu.dimension_semantics<parallel>, #tpu.dimension_semantics<arbitrary>], iteration_bounds = array<i64: 2, 2, 1>, scalar_prefetch = 0 : i64, scratch_operands = 1 : i64, tpu.core_type = #tpu.core_type<tc>, window_params = [{transform_indices = @transform_0, window_bounds = array<i64: 1, 8, 24, 8>}, {transform_indices = @transform_1, window_bounds = array<i64: 1, 8, 24, 8>}, {transform_indices = @transform_2, window_bounds = array<i64: 72, 128>}, {transform_indices = @transform_3, window_bounds = array<i64: 1, 128>}, {transform_indices = @transform_4, window_bounds = array<i64: 1, 8, 16, 128>}]} {
    %c0_i32 = arith.constant 0 : i32
    %0 = arith.cmpi eq, %arg2, %c0_i32 : i32
    %1 = arith.extui %0 : i1 to i32
    %c0_i32_0 = arith.constant 0 : i32
    %2 = arith.cmpi ne, %1, %c0_i32_0 : i32
    scf.if %2 {
      %c0_11 = arith.constant 0 : index
      %c0_12 = arith.constant 0 : index
      %c0_13 = arith.constant 0 : index
      %c0_14 = arith.constant 0 : index
      %14 = vector.load %arg3[%c0_11, %c0_12, %c0_13, %c0_14] : memref<1x8x24x8xbf16, #tpu.memory_space<vmem>>, vector<1x8x24x8xbf16>
      %15 = vector.shape_cast %14 : vector<1x8x24x8xbf16> to vector<8x24x8xbf16>
      %c0_15 = arith.constant 0 : index
      %c0_16 = arith.constant 0 : index
      %c0_17 = arith.constant 0 : index
      %c0_18 = arith.constant 0 : index
      %16 = vector.load %arg4[%c0_15, %c0_16, %c0_17, %c0_18] : memref<1x8x24x8xbf16, #tpu.memory_space<vmem>>, vector<1x8x24x8xbf16>
      %17 = vector.shape_cast %16 : vector<1x8x24x8xbf16> to vector<8x24x8xbf16>
      %18 = tpu.concatenate %15, %17 in 0 : vector<8x24x8xbf16>, vector<8x24x8xbf16> -> vector<16x24x8xbf16>
      %19 = vector.extract_strided_slice %18 {offsets = [0, 0, 0], sizes = [8, 16, 8], strides = [1, 1, 1]} : vector<16x24x8xbf16> to vector<8x16x8xbf16>
      %20 = vector.extract_strided_slice %18 {offsets = [0, 4, 0], sizes = [8, 16, 8], strides = [1, 1, 1]} : vector<16x24x8xbf16> to vector<8x16x8xbf16>
      %21 = vector.extract_strided_slice %18 {offsets = [0, 8, 0], sizes = [8, 16, 8], strides = [1, 1, 1]} : vector<16x24x8xbf16> to vector<8x16x8xbf16>
      %22 = vector.extract_strided_slice %18 {offsets = [4, 0, 0], sizes = [8, 16, 8], strides = [1, 1, 1]} : vector<16x24x8xbf16> to vector<8x16x8xbf16>
      %23 = vector.extract_strided_slice %18 {offsets = [4, 4, 0], sizes = [8, 16, 8], strides = [1, 1, 1]} : vector<16x24x8xbf16> to vector<8x16x8xbf16>
      %24 = vector.extract_strided_slice %18 {offsets = [4, 8, 0], sizes = [8, 16, 8], strides = [1, 1, 1]} : vector<16x24x8xbf16> to vector<8x16x8xbf16>
      %25 = vector.extract_strided_slice %18 {offsets = [8, 0, 0], sizes = [8, 16, 8], strides = [1, 1, 1]} : vector<16x24x8xbf16> to vector<8x16x8xbf16>
      %26 = vector.extract_strided_slice %18 {offsets = [8, 4, 0], sizes = [8, 16, 8], strides = [1, 1, 1]} : vector<16x24x8xbf16> to vector<8x16x8xbf16>
      %27 = vector.extract_strided_slice %18 {offsets = [8, 8, 0], sizes = [8, 16, 8], strides = [1, 1, 1]} : vector<16x24x8xbf16> to vector<8x16x8xbf16>
      %28 = tpu.concatenate %19, %20, %21, %22, %23, %24, %25, %26, %27 in 2 : vector<8x16x8xbf16>, vector<8x16x8xbf16>, vector<8x16x8xbf16>, vector<8x16x8xbf16>, vector<8x16x8xbf16>, vector<8x16x8xbf16>, vector<8x16x8xbf16>, vector<8x16x8xbf16>, vector<8x16x8xbf16> -> vector<8x16x72xbf16>
      %29 = vector.shape_cast %28 : vector<8x16x72xbf16> to vector<128x72xbf16>
      %c0_19 = arith.constant 0 : index
      %c0_20 = arith.constant 0 : index
      %30 = vector.load %arg8[%c0_19, %c0_20] : memref<128x72xbf16, #tpu.memory_space<vmem>>, vector<128x72xbf16>
      tpu.vector_store %arg8[%c0_19, %c0_20], %29 {strides = array<i32>} : memref<128x72xbf16, #tpu.memory_space<vmem>>, vector<128x72xbf16>,
    } else {
    }
    %c0 = arith.constant 0 : index
    %c0_1 = arith.constant 0 : index
    %3 = vector.load %arg8[%c0, %c0_1] : memref<128x72xbf16, #tpu.memory_space<vmem>>, vector<128x72xbf16>
    %c0_2 = arith.constant 0 : index
    %c0_3 = arith.constant 0 : index
    %4 = vector.load %arg5[%c0_2, %c0_3] : memref<72x128xbf16, #tpu.memory_space<vmem>>, vector<72x128xbf16>
    %cst = arith.constant dense<0.000000e+00> : vector<128x128xf32>
    %5 = tpu.matmul %3, %4, %cst {dimension_numbers = #tpu.dot_dimension_numbers<[1], [0], [0], [1], [0, 0, 1, 1], [], []>} : vector<128x72xbf16>, vector<72x128xbf16>, vector<128x128xf32> -> vector<128x128xf32>
    %c0_4 = arith.constant 0 : index
    %c0_5 = arith.constant 0 : index
    %6 = vector.load %arg6[%c0_4, %c0_5] : memref<1x128xf32, #tpu.memory_space<vmem>>, vector<1x128xf32>
    %7 = vector.broadcast %6 : vector<1x128xf32> to vector<128x128xf32>
    %8 = arith.addf %5, %7 : vector<128x128xf32>
    %cst_6 = arith.constant 0.000000e+00 : f32
    %9 = vector.broadcast %cst_6 : f32 to vector<128x128xf32>
    %10 = arith.maximumf %8, %9 : vector<128x128xf32>
    %11 = vector.shape_cast %10 : vector<128x128xf32> to vector<1x8x16x128xf32>
    %12 = arith.truncf %11 : vector<1x8x16x128xf32> to vector<1x8x16x128xbf16>
    %c0_7 = arith.constant 0 : index
    %c0_8 = arith.constant 0 : index
    %c0_9 = arith.constant 0 : index
    %c0_10 = arith.constant 0 : index
    %13 = vector.load %arg7[%c0_7, %c0_8, %c0_9, %c0_10] : memref<1x8x16x128xbf16, #tpu.memory_space<vmem>>, vector<1x8x16x128xbf16>
    tpu.vector_store %arg7[%c0_7, %c0_8, %c0_9, %c0_10], %12 {strides = array<i32>} : memref<1x8x16x128xbf16, #tpu.memory_space<vmem>>, vector<1x8x16x128xbf16>,
    return
  }
  func.func @transform_0(%arg0: i32, %arg1: i32, %arg2: i32) -> (i32, i32, i32, i32) {
    %c0_i32 = arith.constant 0 : i32
    %c0_i32_0 = arith.constant 0 : i32
    %c0_i32_1 = arith.constant 0 : i32
    return %arg0, %arg1, %c0_i32, %c0_i32_0 : i32, i32, i32, i32
  }
  func.func @transform_1(%arg0: i32, %arg1: i32, %arg2: i32) -> (i32, i32, i32, i32) {
    %c1_i32 = arith.constant 1 : i32
    %0 = arith.addi %arg1, %c1_i32 : i32
    %c1_i32_0 = arith.constant 1 : i32
    %1 = arith.muli %0, %c1_i32_0 : i32
    %c0_i32 = arith.constant 0 : i32
    %c0_i32_1 = arith.constant 0 : i32
    %c0_i32_2 = arith.constant 0 : i32
    return %arg0, %1, %c0_i32, %c0_i32_1 : i32, i32, i32, i32
  }
  func.func @transform_2(%arg0: i32, %arg1: i32, %arg2: i32) -> (i32, i32) {
    %c0_i32 = arith.constant 0 : i32
    %c0_i32_0 = arith.constant 0 : i32
    return %c0_i32, %arg2 : i32, i32
  }
  func.func @transform_3(%arg0: i32, %arg1: i32, %arg2: i32) -> (i32, i32) {
    %c0_i32 = arith.constant 0 : i32
    %c0_i32_0 = arith.constant 0 : i32
    return %c0_i32, %arg2 : i32, i32
  }
  func.func @transform_4(%arg0: i32, %arg1: i32, %arg2: i32) -> (i32, i32, i32, i32) {
    %c0_i32 = arith.constant 0 : i32
    %c0_i32_0 = arith.constant 0 : i32
    return %arg0, %arg1, %c0_i32, %arg2 : i32, i32, i32, i32
  }
}

module attributes {stable_mosaic.version = 11 : i64} {
  func.func @_mm_bias_relu_kernel(%arg0: i32, %arg1: i32, %arg2: memref<256x16xbf16, #tpu.memory_space<vmem>>, %arg3: memref<16x128xbf16, #tpu.memory_space<vmem>>, %arg4: memref<1x128xf32, #tpu.memory_space<vmem>>, %arg5: memref<256x128xbf16, #tpu.memory_space<vmem>>) attributes {dimension_semantics = [#tpu.dimension_semantics<parallel>, #tpu.dimension_semantics<parallel>], iteration_bounds = array<i64: 2, 1>, scalar_prefetch = 0 : i64, scratch_operands = 0 : i64, tpu.core_type = #tpu.core_type<tc>, window_params = [{transform_indices = @transform_0, window_bounds = array<i64: 256, 16>}, {transform_indices = @transform_1, window_bounds = array<i64: 16, 128>}, {transform_indices = @transform_2, window_bounds = array<i64: 1, 128>}, {transform_indices = @transform_3, window_bounds = array<i64: 256, 128>}]} {
    %c0 = arith.constant 0 : index
    %c0_0 = arith.constant 0 : index
    %0 = vector.load %arg2[%c0, %c0_0] : memref<256x16xbf16, #tpu.memory_space<vmem>>, vector<256x16xbf16>
    %c0_1 = arith.constant 0 : index
    %c0_2 = arith.constant 0 : index
    %1 = vector.load %arg3[%c0_1, %c0_2] : memref<16x128xbf16, #tpu.memory_space<vmem>>, vector<16x128xbf16>
    %cst = arith.constant dense<0.000000e+00> : vector<256x128xf32>
    %2 = tpu.matmul %0, %1, %cst {dimension_numbers = #tpu.dot_dimension_numbers<[1], [0], [0], [1], [0, 0, 1, 1], [], []>} : vector<256x16xbf16>, vector<16x128xbf16>, vector<256x128xf32> -> vector<256x128xf32>
    %c0_3 = arith.constant 0 : index
    %c0_4 = arith.constant 0 : index
    %3 = vector.load %arg4[%c0_3, %c0_4] : memref<1x128xf32, #tpu.memory_space<vmem>>, vector<1x128xf32>
    %4 = vector.broadcast %3 : vector<1x128xf32> to vector<256x128xf32>
    %5 = arith.addf %2, %4 : vector<256x128xf32>
    %cst_5 = arith.constant 0.000000e+00 : f32
    %6 = vector.broadcast %cst_5 : f32 to vector<256x128xf32>
    %7 = arith.maximumf %5, %6 : vector<256x128xf32>
    %8 = arith.truncf %7 : vector<256x128xf32> to vector<256x128xbf16>
    %c0_6 = arith.constant 0 : index
    %c0_7 = arith.constant 0 : index
    %9 = vector.load %arg5[%c0_6, %c0_7] : memref<256x128xbf16, #tpu.memory_space<vmem>>, vector<256x128xbf16>
    tpu.vector_store %arg5[%c0_6, %c0_7], %8 {strides = array<i32>} : memref<256x128xbf16, #tpu.memory_space<vmem>>, vector<256x128xbf16>,
    return
  }
  func.func @transform_0(%arg0: i32, %arg1: i32) -> (i32, i32) {
    %c0_i32 = arith.constant 0 : i32
    %c0_i32_0 = arith.constant 0 : i32
    return %arg0, %c0_i32 : i32, i32
  }
  func.func @transform_1(%arg0: i32, %arg1: i32) -> (i32, i32) {
    %c0_i32 = arith.constant 0 : i32
    %c0_i32_0 = arith.constant 0 : i32
    return %c0_i32, %arg1 : i32, i32
  }
  func.func @transform_2(%arg0: i32, %arg1: i32) -> (i32, i32) {
    %c0_i32 = arith.constant 0 : i32
    %c0_i32_0 = arith.constant 0 : i32
    return %c0_i32, %arg1 : i32, i32
  }
  func.func @transform_3(%arg0: i32, %arg1: i32) -> (i32, i32) {
    %c0_i32 = arith.constant 0 : i32
    return %arg0, %arg1 : i32, i32
  }
}

module attributes {stable_mosaic.version = 11 : i64} {
  func.func @_conv3x3_bn_relu_kernel(%arg0: i32, %arg1: i32, %arg2: i32, %arg3: memref<1x8x18x16xbf16, #tpu.memory_space<vmem>>, %arg4: memref<1x8x18x16xbf16, #tpu.memory_space<vmem>>, %arg5: memref<144x128xbf16, #tpu.memory_space<vmem>>, %arg6: memref<1x128xf32, #tpu.memory_space<vmem>>, %arg7: memref<1x8x16x128xbf16, #tpu.memory_space<vmem>>, %arg8: memref<128x144xbf16, #tpu.memory_space<vmem>>) attributes {dimension_semantics = [#tpu.dimension_semantics<parallel>, #tpu.dimension_semantics<parallel>, #tpu.dimension_semantics<arbitrary>], iteration_bounds = array<i64: 2, 2, 1>, scalar_prefetch = 0 : i64, scratch_operands = 1 : i64, tpu.core_type = #tpu.core_type<tc>, window_params = [{transform_indices = @transform_0, window_bounds = array<i64: 1, 8, 18, 16>}, {transform_indices = @transform_1, window_bounds = array<i64: 1, 8, 18, 16>}, {transform_indices = @transform_2, window_bounds = array<i64: 144, 128>}, {transform_indices = @transform_3, window_bounds = array<i64: 1, 128>}, {transform_indices = @transform_4, window_bounds = array<i64: 1, 8, 16, 128>}]} {
    %c0_i32 = arith.constant 0 : i32
    %0 = arith.cmpi eq, %arg2, %c0_i32 : i32
    %1 = arith.extui %0 : i1 to i32
    %c0_i32_0 = arith.constant 0 : i32
    %2 = arith.cmpi ne, %1, %c0_i32_0 : i32
    scf.if %2 {
      %c0_11 = arith.constant 0 : index
      %c0_12 = arith.constant 0 : index
      %c0_13 = arith.constant 0 : index
      %c0_14 = arith.constant 0 : index
      %14 = vector.load %arg3[%c0_11, %c0_12, %c0_13, %c0_14] : memref<1x8x18x16xbf16, #tpu.memory_space<vmem>>, vector<1x8x18x16xbf16>
      %15 = vector.shape_cast %14 : vector<1x8x18x16xbf16> to vector<8x18x16xbf16>
      %c0_15 = arith.constant 0 : index
      %c0_16 = arith.constant 0 : index
      %c0_17 = arith.constant 0 : index
      %c0_18 = arith.constant 0 : index
      %16 = vector.load %arg4[%c0_15, %c0_16, %c0_17, %c0_18] : memref<1x8x18x16xbf16, #tpu.memory_space<vmem>>, vector<1x2x18x16xbf16>
      %17 = vector.shape_cast %16 : vector<1x2x18x16xbf16> to vector<2x18x16xbf16>
      %18 = tpu.concatenate %15, %17 in 0 : vector<8x18x16xbf16>, vector<2x18x16xbf16> -> vector<10x18x16xbf16>
      %19 = vector.extract_strided_slice %18 {offsets = [0, 0, 0], sizes = [8, 16, 16], strides = [1, 1, 1]} : vector<10x18x16xbf16> to vector<8x16x16xbf16>
      %20 = vector.extract_strided_slice %18 {offsets = [0, 1, 0], sizes = [8, 16, 16], strides = [1, 1, 1]} : vector<10x18x16xbf16> to vector<8x16x16xbf16>
      %21 = vector.extract_strided_slice %18 {offsets = [0, 2, 0], sizes = [8, 16, 16], strides = [1, 1, 1]} : vector<10x18x16xbf16> to vector<8x16x16xbf16>
      %22 = vector.extract_strided_slice %18 {offsets = [1, 0, 0], sizes = [8, 16, 16], strides = [1, 1, 1]} : vector<10x18x16xbf16> to vector<8x16x16xbf16>
      %23 = vector.extract_strided_slice %18 {offsets = [1, 1, 0], sizes = [8, 16, 16], strides = [1, 1, 1]} : vector<10x18x16xbf16> to vector<8x16x16xbf16>
      %24 = vector.extract_strided_slice %18 {offsets = [1, 2, 0], sizes = [8, 16, 16], strides = [1, 1, 1]} : vector<10x18x16xbf16> to vector<8x16x16xbf16>
      %25 = vector.extract_strided_slice %18 {offsets = [2, 0, 0], sizes = [8, 16, 16], strides = [1, 1, 1]} : vector<10x18x16xbf16> to vector<8x16x16xbf16>
      %26 = vector.extract_strided_slice %18 {offsets = [2, 1, 0], sizes = [8, 16, 16], strides = [1, 1, 1]} : vector<10x18x16xbf16> to vector<8x16x16xbf16>
      %27 = vector.extract_strided_slice %18 {offsets = [2, 2, 0], sizes = [8, 16, 16], strides = [1, 1, 1]} : vector<10x18x16xbf16> to vector<8x16x16xbf16>
      %28 = tpu.concatenate %19, %20, %21, %22, %23, %24, %25, %26, %27 in 2 : vector<8x16x16xbf16>, vector<8x16x16xbf16>, vector<8x16x16xbf16>, vector<8x16x16xbf16>, vector<8x16x16xbf16>, vector<8x16x16xbf16>, vector<8x16x16xbf16>, vector<8x16x16xbf16>, vector<8x16x16xbf16> -> vector<8x16x144xbf16>
      %29 = vector.shape_cast %28 : vector<8x16x144xbf16> to vector<128x144xbf16>
      %c0_19 = arith.constant 0 : index
      %c0_20 = arith.constant 0 : index
      %30 = vector.load %arg8[%c0_19, %c0_20] : memref<128x144xbf16, #tpu.memory_space<vmem>>, vector<128x144xbf16>
      tpu.vector_store %arg8[%c0_19, %c0_20], %29 {strides = array<i32>} : memref<128x144xbf16, #tpu.memory_space<vmem>>, vector<128x144xbf16>,
    } else {
    }
    %c0 = arith.constant 0 : index
    %c0_1 = arith.constant 0 : index
    %3 = vector.load %arg8[%c0, %c0_1] : memref<128x144xbf16, #tpu.memory_space<vmem>>, vector<128x144xbf16>
    %c0_2 = arith.constant 0 : index
    %c0_3 = arith.constant 0 : index
    %4 = vector.load %arg5[%c0_2, %c0_3] : memref<144x128xbf16, #tpu.memory_space<vmem>>, vector<144x128xbf16>
    %cst = arith.constant dense<0.000000e+00> : vector<128x128xf32>
    %5 = tpu.matmul %3, %4, %cst {dimension_numbers = #tpu.dot_dimension_numbers<[1], [0], [0], [1], [0, 0, 1, 1], [], []>} : vector<128x144xbf16>, vector<144x128xbf16>, vector<128x128xf32> -> vector<128x128xf32>
    %c0_4 = arith.constant 0 : index
    %c0_5 = arith.constant 0 : index
    %6 = vector.load %arg6[%c0_4, %c0_5] : memref<1x128xf32, #tpu.memory_space<vmem>>, vector<1x128xf32>
    %7 = vector.broadcast %6 : vector<1x128xf32> to vector<128x128xf32>
    %8 = arith.addf %5, %7 : vector<128x128xf32>
    %cst_6 = arith.constant 0.000000e+00 : f32
    %9 = vector.broadcast %cst_6 : f32 to vector<128x128xf32>
    %10 = arith.maximumf %8, %9 : vector<128x128xf32>
    %11 = vector.shape_cast %10 : vector<128x128xf32> to vector<1x8x16x128xf32>
    %12 = arith.truncf %11 : vector<1x8x16x128xf32> to vector<1x8x16x128xbf16>
    %c0_7 = arith.constant 0 : index
    %c0_8 = arith.constant 0 : index
    %c0_9 = arith.constant 0 : index
    %c0_10 = arith.constant 0 : index
    %13 = vector.load %arg7[%c0_7, %c0_8, %c0_9, %c0_10] : memref<1x8x16x128xbf16, #tpu.memory_space<vmem>>, vector<1x8x16x128xbf16>
    tpu.vector_store %arg7[%c0_7, %c0_8, %c0_9, %c0_10], %12 {strides = array<i32>} : memref<1x8x16x128xbf16, #tpu.memory_space<vmem>>, vector<1x8x16x128xbf16>,
    return
  }
  func.func @transform_0(%arg0: i32, %arg1: i32, %arg2: i32) -> (i32, i32, i32, i32) {
    %c0_i32 = arith.constant 0 : i32
    %c0_i32_0 = arith.constant 0 : i32
    %c0_i32_1 = arith.constant 0 : i32
    return %arg0, %arg1, %c0_i32, %c0_i32_0 : i32, i32, i32, i32
  }
  func.func @transform_1(%arg0: i32, %arg1: i32, %arg2: i32) -> (i32, i32, i32, i32) {
    %c1_i32 = arith.constant 1 : i32
    %0 = arith.addi %arg1, %c1_i32 : i32
    %c1_i32_0 = arith.constant 1 : i32
    %1 = arith.muli %0, %c1_i32_0 : i32
    %c0_i32 = arith.constant 0 : i32
    %c0_i32_1 = arith.constant 0 : i32
    %c0_i32_2 = arith.constant 0 : i32
    return %arg0, %1, %c0_i32, %c0_i32_1 : i32, i32, i32, i32
  }
  func.func @transform_2(%arg0: i32, %arg1: i32, %arg2: i32) -> (i32, i32) {
    %c0_i32 = arith.constant 0 : i32
    %c0_i32_0 = arith.constant 0 : i32
    return %c0_i32, %arg2 : i32, i32
  }
  func.func @transform_3(%arg0: i32, %arg1: i32, %arg2: i32) -> (i32, i32) {
    %c0_i32 = arith.constant 0 : i32
    %c0_i32_0 = arith.constant 0 : i32
    return %c0_i32, %arg2 : i32, i32
  }
  func.func @transform_4(%arg0: i32, %arg1: i32, %arg2: i32) -> (i32, i32, i32, i32) {
    %c0_i32 = arith.constant 0 : i32
    %c0_i32_0 = arith.constant 0 : i32
    return %arg0, %arg1, %c0_i32, %arg2 : i32, i32, i32, i32
  }
}

</mosaic_0001>

<llo_original>
// kernel: cam_forward.7
$region0: #{cam_forward.7}
  #allocation0 [shape = 'u32[]', space=smem, size = 0x4, offset = 0x4, fixed_abs, tag = 'smem constant byte address 0x4 - core index']
  #allocation1 [shape = 'u32[72,128]{1,0:T(1,128)}', space=vmem, size = 0x9000, scoped, tag = 'internal scratch']
  %s0 = inlined_call_operand.vmem [shape: bf16[512,32], index: 0, kind: input, shape index: {}]
  %s1 = inlined_call_operand.vmem [shape: bf16[32,128], index: 1, kind: input, shape index: {}]
  %s2 = inlined_call_operand.vmem [shape: f32[1,128], index: 2, kind: input, shape index: {}]
  %s3 = inlined_call_operand.vmem [shape: bf16[512,128], index: 3, kind: output, shape index: {}]
  %s4 = sld [smem:[#allocation0]]
  $region45: #{cam_forward.7} parent=0
    _
  %s6 = ssub.s32 1, %s4
  %s7 = scalar_select 0, %s6, %s4
  loop: start=0, step=1, limit=4
  $region2: #{cam_forward.7} parent=0 // loop_pre_header
    _
  $region3: #{cam_forward.7} parent=0 // loop_header
    %s9 = sphi 0, %s13
    %p10 = scmp.ge.s32.totalorder %s9, 4
    %s16 = sphi 0, %s28
    %s17 = sphi 0, %s24
    %s18 = sphi 0, %s16
    %s19 = sphi 0, %s17
    %s20 = sphi 0, %s18
    %s21 = sphi 0, %s19
    %s31 = sphi 0, %s33
    %s34 = sphi 0, %s31
    %s35 = sphi 0, %s34
    %s51 = sphi 0, %s35
    %s57 = sphi 0, %s59
    %s60 = sphi 0, %s57
    %s61 = sphi 0, %s60
    %s77 = sphi 0, %s61
    %s83 = sphi 0, %s85
    %s86 = sphi 0, %s83
    %s87 = sphi 0, %s86
    %s103 = sphi 0, %s87
    %s111 = sphi 0, %s113
    %s114 = sphi 0, %s111
    %s115 = sphi 0, %s114
    %s131 = sphi 0, %s115
  $region4: #{cam_forward.7} parent=0 // loop_header_branch
    %12 = sbr.rel (%p10) target = $region8
  $region5: #{cam_forward.7} parent=0 // loop_body
    %s14 = ssub.s32 %s9, 1
    %s15 = ssub.s32 %s9, 2
    %s22 = sadd.s32 1, %s17
    %p23 = scmp.ge.s32.totalorder %s22, 1
    %s24 = scalar_select %p23, 0, %s22
    %s25 = sadd.s32 1, %s16
    %s26 = scalar_select %p23, %s25, %s16
    %p27 = scmp.ge.s32.totalorder %s26, 2
    %s28 = scalar_select %p27, 0, %s26
    %s29 = ssub.s32 %s16, %s28
    %p30 = scmp.eq.s32.totalorder %s29, 0
    %s32 = sadd.s32 %s31, 1
    %s33 = scalar_select %p30, %s31, %s32
    %p36 = pneg %p30
    %p37 = scmp.eq.s32.totalorder %s9, 1
    %p38 = por %p36, %p37
    %p39 = scmp.ne.s32.totalorder %s31, %s34
    %p40 = scmp.eq.s32.totalorder %s9, 0
    %p41 = por %p39, %p40
    %p42 = scmp.ne.s32.totalorder %s31, %s34
    %p43 = scmp.eq.s32.totalorder %s14, 1
    %p44 = por %p42, %p43
    %p45 = scmp.ne.s32.totalorder %s34, %s35
    %p46 = scmp.eq.s32.totalorder %s14, 0
    %p47 = por %p45, %p46
    %p48 = scmp.ne.s32.totalorder %s34, %s35
    %p49 = scmp.eq.s32.totalorder %s15, 1
    %p50 = por %p48, %p49
    %p52 = scmp.ne.s32.totalorder %s35, %s51
    %p53 = scmp.eq.s32.totalorder %s15, 0
    %p54 = por %p52, %p53
    %s55 = ssub.s32 %s17, %s24
    %p56 = scmp.eq.s32.totalorder %s55, 0
    %s58 = sadd.s32 %s57, 1
    %s59 = scalar_select %p56, %s57, %s58
    %p62 = pneg %p56
    %p63 = scmp.eq.s32.totalorder %s9, 1
    %p64 = por %p62, %p63
    %p65 = scmp.ne.s32.totalorder %s57, %s60
    %p66 = scmp.eq.s32.totalorder %s9, 0
    %p67 = por %p65, %p66
    %p68 = scmp.ne.s32.totalorder %s57, %s60
    %p69 = scmp.eq.s32.totalorder %s14, 1
    %p70 = por %p68, %p69
    %p71 = scmp.ne.s32.totalorder %s60, %s61
    %p72 = scmp.eq.s32.totalorder %s14, 0
    %p73 = por %p71, %p72
    %p74 = scmp.ne.s32.totalorder %s60, %s61
    %p75 = scmp.eq.s32.totalorder %s15, 1
    %p76 = por %p74, %p75
    %p78 = scmp.ne.s32.totalorder %s61, %s77
    %p79 = scmp.eq.s32.totalorder %s15, 0
    %p80 = por %p78, %p79
    %s81 = ssub.s32 %s17, %s24
    %p82 = scmp.eq.s32.totalorder %s81, 0
    %s84 = sadd.s32 %s83, 1
    %s85 = scalar_select %p82, %s83, %s84
    %p88 = pneg %p82
    %p89 = scmp.eq.s32.totalorder %s9, 1
    %p90 = por %p88, %p89
    %p91 = scmp.ne.s32.totalorder %s83, %s86
    %p92 = scmp.eq.s32.totalorder %s9, 0
    %p93 = por %p91, %p92
    %p94 = scmp.ne.s32.totalorder %s83, %s86
    %p95 = scmp.eq.s32.totalorder %s14, 1
    %p96 = por %p94, %p95
    %p97 = scmp.ne.s32.totalorder %s86, %s87
    %p98 = scmp.eq.s32.totalorder %s14, 0
    %p99 = por %p97, %p98
    %p100 = scmp.ne.s32.totalorder %s86, %s87
    %p101 = scmp.eq.s32.totalorder %s15, 1
    %p102 = por %p100, %p101
    %p104 = scmp.ne.s32.totalorder %s87, %s103
    %p105 = scmp.eq.s32.totalorder %s15, 0
    %p106 = por %p104, %p105
    %s107 = ssub.s32 %s16, %s28
    %s108 = ssub.s32 %s17, %s24
    %s109 = sor.u32 %s107, %s108
    %p110 = scmp.eq.s32.totalorder %s109, 0
    %s112 = sadd.s32 %s111, 1
    %s113 = scalar_select %p110, %s111, %s112
    %p116 = pneg %p110
    %p117 = scmp.eq.s32.totalorder %s9, 1
    %p118 = por %p116, %p117
    %p119 = scmp.ne.s32.totalorder %s111, %s114
    %p120 = scmp.eq.s32.totalorder %s9, 0
    %p121 = por %p119, %p120
    %p122 = scmp.ne.s32.totalorder %s111, %s114
    %p123 = scmp.eq.s32.totalorder %s14, 1
    %p124 = por %p122, %p123
    %p125 = scmp.ne.s32.totalorder %s114, %s115
    %p126 = scmp.eq.s32.totalorder %s14, 0
    %p127 = por %p125, %p126
    %p128 = scmp.ne.s32.totalorder %s114, %s115
    %p129 = scmp.eq.s32.totalorder %s15, 1
    %p130 = por %p128, %p129
    %p132 = scmp.ne.s32.totalorder %s115, %s131
    %p133 = scmp.eq.s32.totalorder %s15, 0
    %p134 = por %p132, %p133
    %p135 = scmp.le.s32.totalorder 1, %s9
    %p136 = scmp.lt.s32.totalorder %s9, 3
    %p137 = pnand %p135, %p136
    %p138 = pneg %p137
    // Predicated region
    $region9: #{cam_forward.7} parent=5 // pred_check
      _
    $region10: #{cam_forward.7} parent=5 // pred_check_branch
      %140 = sbr.rel (%p137) target = $region12
    $region11: #{cam_forward.7} parent=5 // pred_region
      %s141 = ssub.s32 %s9, 1
      // Predicated region
      $region13: #{cam_forward.7} parent=11 // pred_check
        %p142 = pneg %p73
      $region14: #{cam_forward.7} parent=11 // pred_check_branch
        %144 = sbr.rel (%p142) target = $region16
      $region15: #{cam_forward.7} parent=11 // pred_region
        %p145 = scmp.lt.s32.totalorder %s19, 0
        %s146 = scalar_select %p145, %s19, 0
        %s147 = smul.addr %s146, 4
        %s148 = scalar_lea.vmem %s1, %s147
      $region16: #{cam_forward.7} parent=11 // pred_fallthru
        _
      // Predicated region
      $region17: #{cam_forward.7} parent=11 // pred_check
        %p149 = pneg %p99
      $region18: #{cam_forward.7} parent=11 // pred_check_branch
        %151 = sbr.rel (%p149) target = $region20
      $region19: #{cam_forward.7} parent=11 // pred_region
        %p152 = scmp.lt.s32.totalorder %s19, 0
        %s153 = scalar_select %p152, %s19, 0
        %s154 = scalar_lea.vmem %s2, %s153
      $region20: #{cam_forward.7} parent=11 // pred_fallthru
        _
    $region12: #{cam_forward.7} parent=5 // pred_fallthru
      _
    %p155 = scmp.lt.s32.totalorder %s9, 2
    // Predicated region
    $region21: #{cam_forward.7} parent=5 // pred_check
      %p156 = pneg %p155
    $region22: #{cam_forward.7} parent=5 // pred_check_branch
      %158 = sbr.rel (%p156) target = $region24
    $region23: #{cam_forward.7} parent=5 // pred_region
      // Predicated region
      $region25: #{cam_forward.7} parent=23 // pred_check
        %p159 = pneg %p41
      $region26: #{cam_forward.7} parent=23 // pred_check_branch
        %161 = sbr.rel (%p159) target = $region28
      $region27: #{cam_forward.7} parent=23 // pred_region
        %s162 = smul.u32 32, %s16
        %p163 = scmp.lt.s32.totalorder %s162, 63
        %s164 = scalar_select %p163, %s162, 63
        %s165 = smul.addr %s164, 4
        %s166 = scalar_lea.vmem %s0, %s165
        %s167 = smul.u32 32, %s16
      $region28: #{cam_forward.7} parent=23 // pred_fallthru
        _
    $region24: #{cam_forward.7} parent=5 // pred_fallthru
      _
    %p168 = scmp.le.s32.totalorder 1, %s9
    %p169 = scmp.lt.s32.totalorder %s9, 3
    %p170 = pnand %p168, %p169
    %p171 = pneg %p170
    // Predicated region
    $region29: #{cam_forward.7} parent=5 // pred_check
      _
    $region30: #{cam_forward.7} parent=5 // pred_check_branch
      %173 = sbr.rel (%p170) target = $region32
    $region31: #{cam_forward.7} parent=5 // pred_region
      %s174 = ssub.s32 %s9, 1
      %s175 = smul.u32 32, %s18
      %p176 = scmp.lt.s32.totalorder %s175, 63
      %s177 = scalar_select %p176, %s175, 63
      %s178 = smul.addr %s177, 4
      %s179 = scalar_lea.vmem %s0, %s178
      %p180 = pneg %p47
      %p181 = pneg %p44
      %p182 = scmp.lt.s32.totalorder %s19, 0
      %s183 = scalar_select %p182, %s19, 0
      %s184 = smul.addr %s183, 4
      %s185 = scalar_lea.vmem %s1, %s184
      %p186 = pneg %p73
      %p187 = pneg %p70
      %p188 = scmp.lt.s32.totalorder %s19, 0
      %s189 = scalar_select %p188, %s19, 0
      %s190 = scalar_lea.vmem %s2, %s189
      %p191 = pneg %p99
      %p192 = pneg %p96
      %p193 = pneg %p127
      %p194 = pneg %p124
      %s195 = smul.u32 32, %s18
      %p196 = scmp.lt.s32.totalorder %s195, 63
      %s197 = scalar_select %p196, %s195, 63
      %p198 = scmp.lt.s32.totalorder %s19, 0
      %s199 = scalar_select %p198, %s19, 0
      %s200 = sadd.s32 %s199, %s197
      %s201 = smul.addr %s200, 4
      %s202 = scalar_lea.vmem %s3, %s201
      %s203 = smul.u32 32, %s18
      %p204 = scmp.lt.s32.totalorder %s203, 63
      %s205 = scalar_select %p204, %s203, 63
      %s206 = smul.addr %s205, 4
      %s207 = scalar_lea.vmem %s0, %s206
      %s208 = smul.u32 32, %s18
      %p209 = scmp.lt.s32.totalorder %s19, 0
      %s210 = scalar_select %p209, %s19, 0
      %s211 = smul.addr %s210, 4
      %s212 = scalar_lea.vmem %s1, %s211
      %p213 = scmp.lt.s32.totalorder %s19, 0
      %s214 = scalar_select %p213, %s19, 0
      %s215 = scalar_lea.vmem %s2, %s214
      %s216 = smul.u32 32, %s18
      %p217 = scmp.lt.s32.totalorder %s216, 63
      %s218 = scalar_select %p217, %s216, 63
      %p219 = scmp.lt.s32.totalorder %s19, 0
      %s220 = scalar_select %p219, %s19, 0
      %s221 = sadd.s32 %s220, %s218
      %s222 = smul.addr %s221, 4
      %s223 = scalar_lea.vmem %s3, %s222
      %s224 = smul.u32 32, %s18
      %v226 = vld [vmem:[%s207] sm:$0xf]
      %v227 = vld [vmem:[%s207 + $0x4] sm:$0xf]
      %v228 = vld [vmem:[%s207 + $0x8] sm:$0xf]
      %v229 = vld [vmem:[%s207 + $0xc] sm:$0xf]
      %v230 = vld [vmem:[%s207 + $0x10] sm:$0xf]
      %v231 = vld [vmem:[%s207 + $0x14] sm:$0xf]
      %v232 = vld [vmem:[%s207 + $0x18] sm:$0xf]
      %v233 = vld [vmem:[%s207 + $0x1c] sm:$0xf]
      %v234 = vld [vmem:[%s207 + $0x20] sm:$0xf]
      %v235 = vld [vmem:[%s207 + $0x24] sm:$0xf]
      %v236 = vld [vmem:[%s207 + $0x28] sm:$0xf]
      %v237 = vld [vmem:[%s207 + $0x2c] sm:$0xf]
      %v238 = vld [vmem:[%s207 + $0x30] sm:$0xf]
      %v239 = vld [vmem:[%s207 + $0x34] sm:$0xf]
      %v240 = vld [vmem:[%s207 + $0x38] sm:$0xf]
      %v241 = vld [vmem:[%s207 + $0x3c] sm:$0xf]
      %v242 = vld [vmem:[%s207 + $0x40] sm:$0xf]
      %v243 = vld [vmem:[%s207 + $0x44] sm:$0xf]
      %v244 = vld [vmem:[%s207 + $0x48] sm:$0xf]
      %v245 = vld [vmem:[%s207 + $0x4c] sm:$0xf]
      %v246 = vld [vmem:[%s207 + $0x50] sm:$0xf]
      %v247 = vld [vmem:[%s207 + $0x54] sm:$0xf]
      %v248 = vld [vmem:[%s207 + $0x58] sm:$0xf]
      %v249 = vld [vmem:[%s207 + $0x5c] sm:$0xf]
      %v250 = vld [vmem:[%s207 + $0x60] sm:$0xf]
      %v251 = vld [vmem:[%s207 + $0x64] sm:$0xf]
      %v252 = vld [vmem:[%s207 + $0x68] sm:$0xf]
      %v253 = vld [vmem:[%s207 + $0x6c] sm:$0xf]
      %v254 = vld [vmem:[%s207 + $0x70] sm:$0xf]
      %v255 = vld [vmem:[%s207 + $0x74] sm:$0xf]
      %v256 = vld [vmem:[%s207 + $0x78] sm:$0xf]
      %v257 = vld [vmem:[%s207 + $0x7c] sm:$0xf]
      %v258 = vld [vmem:[%s212] sm:$0xf]
      %v259 = vld [vmem:[%s212 + $0x4] sm:$0xf]
      %v260 = vld [vmem:[%s212 + $0x8] sm:$0xf]
      %v261 = vld [vmem:[%s212 + $0xc] sm:$0xf]
      %v262 = vld [vmem:[%s215] sm:$0x1]
      %v264 = vperm.slane %v262, 0
      %v298 = vunpack.c.l.b16 %v226
      %v299 = vunpack.c.l.b16 %v227
      %v300 = vunpack.c.l.b16 %v228
      %v301 = vunpack.c.l.b16 %v229
      %v302 = vunpack.c.l.b16 %v230
      %v303 = vunpack.c.l.b16 %v231
      %v304 = vunpack.c.l.b16 %v232
      %v305 = vunpack.c.l.b16 %v233
      %v306 = vunpack.c.l.b16 %v234
      %v307 = vunpack.c.l.b16 %v235
      %v308 = vunpack.c.l.b16 %v236
      %v309 = vunpack.c.l.b16 %v237
      %v310 = vunpack.c.l.b16 %v238
      %v311 = vunpack.c.l.b16 %v239
      %v312 = vunpack.c.l.b16 %v240
      %v313 = vunpack.c.l.b16 %v241
      %v314 = vunpack.c.l.b16 %v242
      %v315 = vunpack.c.l.b16 %v243
      %v316 = vunpack.c.l.b16 %v244
      %v317 = vunpack.c.l.b16 %v245
      %v318 = vunpack.c.l.b16 %v246
      %v319 = vunpack.c.l.b16 %v247
      %v320 = vunpack.c.l.b16 %v248
      %v321 = vunpack.c.l.b16 %v249
      %v322 = vunpack.c.l.b16 %v250
      %v323 = vunpack.c.l.b16 %v251
      %v324 = vunpack.c.l.b16 %v252
      %v325 = vunpack.c.l.b16 %v253
      %v326 = vunpack.c.l.b16 %v254
      %v327 = vunpack.c.l.b16 %v255
      %v328 = vunpack.c.l.b16 %v256
      %v329 = vunpack.c.l.b16 %v257
      %v330 = vpack.c.b16 %v299, %v298
      %v331 = vpack.c.b16 %v301, %v300
      %v332 = vpack.c.b16 %v303, %v302
      %v333 = vpack.c.b16 %v305, %v304
      %v334 = vpack.c.b16 %v307, %v306
      %v335 = vpack.c.b16 %v309, %v308
      %v336 = vpack.c.b16 %v311, %v310
      %v337 = vpack.c.b16 %v313, %v312
      %v338 = vpack.c.b16 %v315, %v314
      %v339 = vpack.c.b16 %v317, %v316
      %v340 = vpack.c.b16 %v319, %v318
      %v341 = vpack.c.b16 %v321, %v320
      %v342 = vpack.c.b16 %v323, %v322
      %v343 = vpack.c.b16 %v325, %v324
      %v344 = vpack.c.b16 %v327, %v326
      %v345 = vpack.c.b16 %v329, %v328
      %v350 = vunpack.c.l.b16 %v258
      %v351 = vunpack.c.l.b16 %v259
      %v352 = vunpack.c.l.b16 %v260
      %v353 = vunpack.c.l.b16 %v261
      %v354 = vpack.c.b16 %v351, %v350
      %v355 = vpack.c.b16 %v353, %v352
      %vm358 = vcmask 261120
      %v360 = vsel %vm358, %v330, 0
      %v363 = vsel %vm358, %v331, 0
      %v366 = vsel %vm358, %v332, 0
      %v369 = vsel %vm358, %v333, 0
      %v372 = vsel %vm358, %v334, 0
      %v375 = vsel %vm358, %v335, 0
      %v378 = vsel %vm358, %v336, 0
      %v381 = vsel %vm358, %v337, 0
      %v384 = vsel %vm358, %v338, 0
      %v387 = vsel %vm358, %v339, 0
      %v390 = vsel %vm358, %v340, 0
      %v393 = vsel %vm358, %v341, 0
      %v396 = vsel %vm358, %v342, 0
      %v399 = vsel %vm358, %v343, 0
      %v402 = vsel %vm358, %v344, 0
      %v405 = vsel %vm358, %v345, 0
      %407 = vmatpush.bf16.msra.mxu0 0
      %408 = vmatpush.bf16.msra.mxu0 0
      %409 = vmatpush.bf16.msra.mxu0 0
      %410 = vmatpush.bf16.msra.mxu0 0
      %411 = vmatpush.bf16.msra.mxu0 0
      %412 = vmatpush.bf16.msra.mxu0 0
      %413 = vmatpush.bf16.msra.mxu0 %v355
      %414 = vmatpush.bf16.msra.mxu0 %v354
      %415 = vmatmul.bf16.gmra.mxu0 %v360
      %v416 = vpop.f32.mrf.mxu0
      %v417 = vadd.f32 %v264, %v416
      %v418 = vpop.f32.mrf.mxu0
      %v419 = vadd.f32 %v264, %v418
      %420 = vmatmul.bf16.gmra.mxu0 %v363
      %v421 = vpop.f32.mrf.mxu0
      %v422 = vadd.f32 %v264, %v421
      %v423 = vpop.f32.mrf.mxu0
      %v424 = vadd.f32 %v264, %v423
      %425 = vmatmul.bf16.gmra.mxu0 %v366
      %v426 = vpop.f32.mrf.mxu0
      %v427 = vadd.f32 %v264, %v426
      %v428 = vpop.f32.mrf.mxu0
      %v429 = vadd.f32 %v264, %v428
      %430 = vmatmul.bf16.gmra.mxu0 %v369
      %v431 = vpop.f32.mrf.mxu0
      %v432 = vadd.f32 %v264, %v431
      %v433 = vpop.f32.mrf.mxu0
      %v434 = vadd.f32 %v264, %v433
      %435 = vmatmul.bf16.gmra.mxu0 %v372
      %v436 = vpop.f32.mrf.mxu0
      %v437 = vadd.f32 %v264, %v436
      %v438 = vpop.f32.mrf.mxu0
      %v439 = vadd.f32 %v264, %v438
      %440 = vmatmul.bf16.gmra.mxu0 %v375
      %v441 = vpop.f32.mrf.mxu0
      %v442 = vadd.f32 %v264, %v441
      %v443 = vpop.f32.mrf.mxu0
      %v444 = vadd.f32 %v264, %v443
      %445 = vmatmul.bf16.gmra.mxu0 %v378
      %v446 = vpop.f32.mrf.mxu0
      %v447 = vadd.f32 %v264, %v446
      %v448 = vpop.f32.mrf.mxu0
      %v449 = vadd.f32 %v264, %v448
      %450 = vmatmul.bf16.gmra.mxu0 %v381
      %v451 = vpop.f32.mrf.mxu0
      %v452 = vadd.f32 %v264, %v451
      %v453 = vpop.f32.mrf.mxu0
      %v454 = vadd.f32 %v264, %v453
      %455 = vmatmul.bf16.gmra.mxu0 %v384
      %v456 = vpop.f32.mrf.mxu0
      %v457 = vadd.f32 %v264, %v456
      %v458 = vpop.f32.mrf.mxu0
      %v459 = vadd.f32 %v264, %v458
      %460 = vmatmul.bf16.gmra.mxu0 %v387
      %v461 = vpop.f32.mrf.mxu0
      %v462 = vadd.f32 %v264, %v461
      %v463 = vpop.f32.mrf.mxu0
      %v464 = vadd.f32 %v264, %v463
      %465 = vmatmul.bf16.gmra.mxu0 %v390
      %v466 = vpop.f32.mrf.mxu0
      %v467 = vadd.f32 %v264, %v466
      %v468 = vpop.f32.mrf.mxu0
      %v469 = vadd.f32 %v264, %v468
      %470 = vmatmul.bf16.gmra.mxu0 %v393
      %v471 = vpop.f32.mrf.mxu0
      %v472 = vadd.f32 %v264, %v471
      %v473 = vpop.f32.mrf.mxu0
      %v474 = vadd.f32 %v264, %v473
      %475 = vmatmul.bf16.gmra.mxu0 %v396
      %v476 = vpop.f32.mrf.mxu0
      %v477 = vadd.f32 %v264, %v476
      %v478 = vpop.f32.mrf.mxu0
      %v479 = vadd.f32 %v264, %v478
      %480 = vmatmul.bf16.gmra.mxu0 %v399
      %v481 = vpop.f32.mrf.mxu0
      %v482 = vadd.f32 %v264, %v481
      %v483 = vpop.f32.mrf.mxu0
      %v484 = vadd.f32 %v264, %v483
      %485 = vmatmul.bf16.gmra.mxu0 %v402
      %v486 = vpop.f32.mrf.mxu0
      %v487 = vadd.f32 %v264, %v486
      %v488 = vpop.f32.mrf.mxu0
      %v489 = vadd.f32 %v264, %v488
      %490 = vmatmul.bf16.gmra.mxu0 %v405
      %v491 = vpop.f32.mrf.mxu0
      %v492 = vadd.f32 %v264, %v491
      %v493 = vpop.f32.mrf.mxu0
      %v494 = vadd.f32 %v264, %v493
      %495 = vdwg.mxu0
      %v496 = vmax.f32 %v417, 0.0
      %v497 = vmax.f32 %v419, 0.0
      %v498 = vmax.f32 %v422, 0.0
      %v499 = vmax.f32 %v424, 0.0
      %v500 = vmax.f32 %v427, 0.0
      %v501 = vmax.f32 %v429, 0.0
      %v502 = vmax.f32 %v432, 0.0
      %v503 = vmax.f32 %v434, 0.0
      %v504 = vmax.f32 %v437, 0.0
      %v505 = vmax.f32 %v439, 0.0
      %v506 = vmax.f32 %v442, 0.0
      %v507 = vmax.f32 %v444, 0.0
      %v508 = vmax.f32 %v447, 0.0
      %v509 = vmax.f32 %v449, 0.0
      %v510 = vmax.f32 %v452, 0.0
      %v511 = vmax.f32 %v454, 0.0
      %v512 = vmax.f32 %v457, 0.0
      %v513 = vmax.f32 %v459, 0.0
      %v514 = vmax.f32 %v462, 0.0
      %v515 = vmax.f32 %v464, 0.0
      %v516 = vmax.f32 %v467, 0.0
      %v517 = vmax.f32 %v469, 0.0
      %v518 = vmax.f32 %v472, 0.0
      %v519 = vmax.f32 %v474, 0.0
      %v520 = vmax.f32 %v477, 0.0
      %v521 = vmax.f32 %v479, 0.0
      %v522 = vmax.f32 %v482, 0.0
      %v523 = vmax.f32 %v484, 0.0
      %v524 = vmax.f32 %v487, 0.0
      %v525 = vmax.f32 %v489, 0.0
      %v526 = vmax.f32 %v492, 0.0
      %v527 = vmax.f32 %v494, 0.0
      %v528 = vpack.c.bf16 %v496, %v496
      %v529 = vpack.c.bf16 %v497, %v497
      %v530 = vpack.c.bf16 %v498, %v498
      %v531 = vpack.c.bf16 %v499, %v499
      %v532 = vpack.c.bf16 %v500, %v500
      %v533 = vpack.c.bf16 %v501, %v501
      %v534 = vpack.c.bf16 %v502, %v502
      %v535 = vpack.c.bf16 %v503, %v503
      %v536 = vpack.c.bf16 %v504, %v504
      %v537 = vpack.c.bf16 %v505, %v505
      %v538 = vpack.c.bf16 %v506, %v506
      %v539 = vpack.c.bf16 %v507, %v507
      %v540 = vpack.c.bf16 %v508, %v508
      %v541 = vpack.c.bf16 %v509, %v509
      %v542 = vpack.c.bf16 %v510, %v510
      %v543 = vpack.c.bf16 %v511, %v511
      %v544 = vpack.c.bf16 %v512, %v512
      %v545 = vpack.c.bf16 %v513, %v513
      %v546 = vpack.c.bf16 %v514, %v514
      %v547 = vpack.c.bf16 %v515, %v515
      %v548 = vpack.c.bf16 %v516, %v516
      %v549 = vpack.c.bf16 %v517, %v517
      %v550 = vpack.c.bf16 %v518, %v518
      %v551 = vpack.c.bf16 %v519, %v519
      %v552 = vpack.c.bf16 %v520, %v520
      %v553 = vpack.c.bf16 %v521, %v521
      %v554 = vpack.c.bf16 %v522, %v522
      %v555 = vpack.c.bf16 %v523, %v523
      %v556 = vpack.c.bf16 %v524, %v524
      %v557 = vpack.c.bf16 %v525, %v525
      %v558 = vpack.c.bf16 %v526, %v526
      %v559 = vpack.c.bf16 %v527, %v527
      %560 = vst [vmem:[%s223] sm:$0xf] %v528
      %561 = vst [vmem:[%s223 + $0x4] sm:$0xf] %v529
      %562 = vst [vmem:[%s223 + $0x8] sm:$0xf] %v530
      %563 = vst [vmem:[%s223 + $0xc] sm:$0xf] %v531
      %564 = vst [vmem:[%s223 + $0x10] sm:$0xf] %v532
      %565 = vst [vmem:[%s223 + $0x14] sm:$0xf] %v533
      %566 = vst [vmem:[%s223 + $0x18] sm:$0xf] %v534
      %567 = vst [vmem:[%s223 + $0x1c] sm:$0xf] %v535
      %568 = vst [vmem:[%s223 + $0x20] sm:$0xf] %v536
      %569 = vst [vmem:[%s223 + $0x24] sm:$0xf] %v537
      %570 = vst [vmem:[%s223 + $0x28] sm:$0xf] %v538
      %571 = vst [vmem:[%s223 + $0x2c] sm:$0xf] %v539
      %572 = vst [vmem:[%s223 + $0x30] sm:$0xf] %v540
      %573 = vst [vmem:[%s223 + $0x34] sm:$0xf] %v541
      %574 = vst [vmem:[%s223 + $0x38] sm:$0xf] %v542
      %575 = vst [vmem:[%s223 + $0x3c] sm:$0xf] %v543
      %576 = vst [vmem:[%s223 + $0x40] sm:$0xf] %v544
      %577 = vst [vmem:[%s223 + $0x44] sm:$0xf] %v545
      %578 = vst [vmem:[%s223 + $0x48] sm:$0xf] %v546
      %579 = vst [vmem:[%s223 + $0x4c] sm:$0xf] %v547
      %580 = vst [vmem:[%s223 + $0x50] sm:$0xf] %v548
      %581 = vst [vmem:[%s223 + $0x54] sm:$0xf] %v549
      %582 = vst [vmem:[%s223 + $0x58] sm:$0xf] %v550
      %583 = vst [vmem:[%s223 + $0x5c] sm:$0xf] %v551
      %584 = vst [vmem:[%s223 + $0x60] sm:$0xf] %v552
      %585 = vst [vmem:[%s223 + $0x64] sm:$0xf] %v553
      %586 = vst [vmem:[%s223 + $0x68] sm:$0xf] %v554
      %587 = vst [vmem:[%s223 + $0x6c] sm:$0xf] %v555
      %588 = vst [vmem:[%s223 + $0x70] sm:$0xf] %v556
      %589 = vst [vmem:[%s223 + $0x74] sm:$0xf] %v557
      %590 = vst [vmem:[%s223 + $0x78] sm:$0xf] %v558
      %591 = vst [vmem:[%s223 + $0x7c] sm:$0xf] %v559
      %s592 = smul.u32 32, %s18
      %p593 = scmp.lt.s32.totalorder %s592, 63
      %s594 = scalar_select %p593, %s592, 63
      %p595 = scmp.lt.s32.totalorder %s19, 0
      %s596 = scalar_select %p595, %s19, 0
      %s597 = sadd.s32 %s596, %s594
      %s598 = smul.addr %s597, 4
      %s599 = scalar_lea.vmem %s3, %s598
      // Predicated region
      $region33: #{cam_forward.7} parent=31 // pred_check
        %p600 = pneg %p124
      $region34: #{cam_forward.7} parent=31 // pred_check_branch
        %602 = sbr.rel (%p600) target = $region36
      $region35: #{cam_forward.7} parent=31 // pred_region
        %s603 = smul.u32 32, %s18
      $region36: #{cam_forward.7} parent=31 // pred_fallthru
        _
    $region32: #{cam_forward.7} parent=5 // pred_fallthru
      _
    %p604 = scmp.le.s32.totalorder 2, %s9
    // Predicated region
    $region37: #{cam_forward.7} parent=5 // pred_check
      %p605 = pneg %p604
    $region38: #{cam_forward.7} parent=5 // pred_check_branch
      %607 = sbr.rel (%p605) target = $region40
    $region39: #{cam_forward.7} parent=5 // pred_region
      %s608 = ssub.s32 %s9, 2
      // Predicated region
      $region41: #{cam_forward.7} parent=39 // pred_check
        %p609 = pneg %p130
      $region42: #{cam_forward.7} parent=39 // pred_check_branch
        %611 = sbr.rel (%p609) target = $region44
      $region43: #{cam_forward.7} parent=39 // pred_region
        %s612 = smul.u32 32, %s20
        %p613 = scmp.lt.s32.totalorder %s612, 63
        %s614 = scalar_select %p613, %s612, 63
        %p615 = scmp.lt.s32.totalorder %s21, 0
        %s616 = scalar_select %p615, %s21, 0
        %s617 = sadd.s32 %s616, %s614
        %s618 = smul.addr %s617, 4
        %s619 = scalar_lea.vmem %s3, %s618
      $region44: #{cam_forward.7} parent=39 // pred_fallthru
        _
    $region40: #{cam_forward.7} parent=5 // pred_fallthru
      _
  $region6: #{cam_forward.7} parent=0 // loop_footer
    %s13 = sadd.s32 1, %s9
  $region7: #{cam_forward.7} parent=0 // loop_footer_branch
    %8 = sbr.rel target = $region3
  $region8: #{cam_forward.7} parent=0 // loop_exit
    _

// kernel: cam_forward.8
$region0: #{cam_forward.8}
  #allocation0 [shape = 'u32[]', space=smem, size = 0x4, offset = 0x4, fixed_abs, tag = 'smem constant byte address 0x4 - core index']
  #allocation1 [shape = 'u32[72,128]{1,0:T(1,128)}', space=vmem, size = 0x9000, scoped, tag = 'internal scratch']
  #allocation2 [shape = 'bf16[128,72]{1,0:T(8,128)(2,1)}', space=vmem, size = 0x8000, scoped, tag = 'scratch operand']
  %s0 = inlined_call_operand.vmem [shape: bf16[2,24,18,8], index: 0, kind: input, shape index: {}, may-alias: {0,1}]
  %s1 = inlined_call_operand.vmem [shape: bf16[2,24,18,8], index: 1, kind: input, shape index: {}, may-alias: {0,1}]
  %s2 = inlined_call_operand.vmem [shape: bf16[72,128], index: 2, kind: input, shape index: {}]
  %s3 = inlined_call_operand.vmem [shape: f32[1,128], index: 3, kind: input, shape index: {}]
  %s4 = inlined_call_operand.vmem [shape: bf16[2,16,16,128], index: 4, kind: output, shape index: {}]
  %s5 = sld [smem:[#allocation0]]
  $region53: #{cam_forward.8} parent=0
    _
  %s7 = ssub.s32 1, %s5
  %s8 = scalar_select 0, %s7, %s5
  loop: start=0, step=1, limit=6
  $region2: #{cam_forward.8} parent=0 // loop_pre_header
    _
  $region3: #{cam_forward.8} parent=0 // loop_header
    %s10 = sphi 0, %s14
    %p11 = scmp.ge.s32.totalorder %s10, 6
    %s17 = sphi 0, %s36
    %s18 = sphi 0, %s32
    %s19 = sphi 0, %s28
    %s20 = sphi 0, %s17
    %s21 = sphi 0, %s18
    %s22 = sphi 0, %s19
    %s23 = sphi 0, %s20
    %s24 = sphi 0, %s21
    %s25 = sphi 0, %s22
    %s41 = sphi 0, %s43
    %s44 = sphi 0, %s41
    %s45 = sphi 0, %s44
    %s61 = sphi 0, %s45
    %s71 = sphi 0, %s73
    %s74 = sphi 0, %s71
    %s75 = sphi 0, %s74
    %s91 = sphi 0, %s75
    %s97 = sphi 0, %s99
    %s100 = sphi 0, %s97
    %s101 = sphi 0, %s100
    %s117 = sphi 0, %s101
    %s123 = sphi 0, %s125
    %s126 = sphi 0, %s123
    %s127 = sphi 0, %s126
    %s143 = sphi 0, %s127
    %s153 = sphi 0, %s155
    %s156 = sphi 0, %s153
    %s157 = sphi 0, %s156
    %s173 = sphi 0, %s157
  $region4: #{cam_forward.8} parent=0 // loop_header_branch
    %13 = sbr.rel (%p11) target = $region8
  $region5: #{cam_forward.8} parent=0 // loop_body
    %s15 = ssub.s32 %s10, 1
    %s16 = ssub.s32 %s10, 2
    %s26 = sadd.s32 1, %s19
    %p27 = scmp.ge.s32.totalorder %s26, 1
    %s28 = scalar_select %p27, 0, %s26
    %s29 = sadd.s32 1, %s18
    %s30 = scalar_select %p27, %s29, %s18
    %p31 = scmp.ge.s32.totalorder %s30, 2
    %s32 = scalar_select %p31, 0, %s30
    %s33 = sadd.s32 1, %s17
    %s34 = scalar_select %p31, %s33, %s17
    %p35 = scmp.ge.s32.totalorder %s34, 2
    %s36 = scalar_select %p35, 0, %s34
    %s37 = ssub.s32 %s17, %s36
    %s38 = ssub.s32 %s18, %s32
    %s39 = sor.u32 %s37, %s38
    %p40 = scmp.eq.s32.totalorder %s39, 0
    %s42 = sadd.s32 %s41, 1
    %s43 = scalar_select %p40, %s41, %s42
    %p46 = pneg %p40
    %p47 = scmp.eq.s32.totalorder %s10, 3
    %p48 = por %p46, %p47
    %p49 = scmp.ne.s32.totalorder %s41, %s44
    %p50 = scmp.eq.s32.totalorder %s10, 0
    %p51 = por %p49, %p50
    %p52 = scmp.ne.s32.totalorder %s41, %s44
    %p53 = scmp.eq.s32.totalorder %s15, 3
    %p54 = por %p52, %p53
    %p55 = scmp.ne.s32.totalorder %s44, %s45
    %p56 = scmp.eq.s32.totalorder %s15, 0
    %p57 = por %p55, %p56
    %p58 = scmp.ne.s32.totalorder %s44, %s45
    %p59 = scmp.eq.s32.totalorder %s16, 3
    %p60 = por %p58, %p59
    %p62 = scmp.ne.s32.totalorder %s45, %s61
    %p63 = scmp.eq.s32.totalorder %s16, 0
    %p64 = por %p62, %p63
    %s65 = sadd.s32 %s18, 1
    %s66 = sadd.s32 %s32, 1
    %s67 = ssub.s32 %s17, %s36
    %s68 = ssub.s32 %s65, %s66
    %s69 = sor.u32 %s67, %s68
    %p70 = scmp.eq.s32.totalorder %s69, 0
    %s72 = sadd.s32 %s71, 1
    %s73 = scalar_select %p70, %s71, %s72
    %p76 = pneg %p70
    %p77 = scmp.eq.s32.totalorder %s10, 3
    %p78 = por %p76, %p77
    %p79 = scmp.ne.s32.totalorder %s71, %s74
    %p80 = scmp.eq.s32.totalorder %s10, 0
    %p81 = por %p79, %p80
    %p82 = scmp.ne.s32.totalorder %s71, %s74
    %p83 = scmp.eq.s32.totalorder %s15, 3
    %p84 = por %p82, %p83
    %p85 = scmp.ne.s32.totalorder %s74, %s75
    %p86 = scmp.eq.s32.totalorder %s15, 0
    %p87 = por %p85, %p86
    %p88 = scmp.ne.s32.totalorder %s74, %s75
    %p89 = scmp.eq.s32.totalorder %s16, 3
    %p90 = por %p88, %p89
    %p92 = scmp.ne.s32.totalorder %s75, %s91
    %p93 = scmp.eq.s32.totalorder %s16, 0
    %p94 = por %p92, %p93
    %s95 = ssub.s32 %s19, %s28
    %p96 = scmp.eq.s32.totalorder %s95, 0
    %s98 = sadd.s32 %s97, 1
    %s99 = scalar_select %p96, %s97, %s98
    %p102 = pneg %p96
    %p103 = scmp.eq.s32.totalorder %s10, 3
    %p104 = por %p102, %p103
    %p105 = scmp.ne.s32.totalorder %s97, %s100
    %p106 = scmp.eq.s32.totalorder %s10, 0
    %p107 = por %p105, %p106
    %p108 = scmp.ne.s32.totalorder %s97, %s100
    %p109 = scmp.eq.s32.totalorder %s15, 3
    %p110 = por %p108, %p109
    %p111 = scmp.ne.s32.totalorder %s100, %s101
    %p112 = scmp.eq.s32.totalorder %s15, 0
    %p113 = por %p111, %p112
    %p114 = scmp.ne.s32.totalorder %s100, %s101
    %p115 = scmp.eq.s32.totalorder %s16, 3
    %p116 = por %p114, %p115
    %p118 = scmp.ne.s32.totalorder %s101, %s117
    %p119 = scmp.eq.s32.totalorder %s16, 0
    %p120 = por %p118, %p119
    %s121 = ssub.s32 %s19, %s28
    %p122 = scmp.eq.s32.totalorder %s121, 0
    %s124 = sadd.s32 %s123, 1
    %s125 = scalar_select %p122, %s123, %s124
    %p128 = pneg %p122
    %p129 = scmp.eq.s32.totalorder %s10, 3
    %p130 = por %p128, %p129
    %p131 = scmp.ne.s32.totalorder %s123, %s126
    %p132 = scmp.eq.s32.totalorder %s10, 0
    %p133 = por %p131, %p132
    %p134 = scmp.ne.s32.totalorder %s123, %s126
    %p135 = scmp.eq.s32.totalorder %s15, 3
    %p136 = por %p134, %p135
    %p137 = scmp.ne.s32.totalorder %s126, %s127
    %p138 = scmp.eq.s32.totalorder %s15, 0
    %p139 = por %p137, %p138
    %p140 = scmp.ne.s32.totalorder %s126, %s127
    %p141 = scmp.eq.s32.totalorder %s16, 3
    %p142 = por %p140, %p141
    %p144 = scmp.ne.s32.totalorder %s127, %s143
    %p145 = scmp.eq.s32.totalorder %s16, 0
    %p146 = por %p144, %p145
    %s147 = ssub.s32 %s17, %s36
    %s148 = ssub.s32 %s18, %s32
    %s149 = sor.u32 %s147, %s148
    %s150 = ssub.s32 %s19, %s28
    %s151 = sor.u32 %s149, %s150
    %p152 = scmp.eq.s32.totalorder %s151, 0
    %s154 = sadd.s32 %s153, 1
    %s155 = scalar_select %p152, %s153, %s154
    %p158 = pneg %p152
    %p159 = scmp.eq.s32.totalorder %s10, 3
    %p160 = por %p158, %p159
    %p161 = scmp.ne.s32.totalorder %s153, %s156
    %p162 = scmp.eq.s32.totalorder %s10, 0
    %p163 = por %p161, %p162
    %p164 = scmp.ne.s32.totalorder %s153, %s156
    %p165 = scmp.eq.s32.totalorder %s15, 3
    %p166 = por %p164, %p165
    %p167 = scmp.ne.s32.totalorder %s156, %s157
    %p168 = scmp.eq.s32.totalorder %s15, 0
    %p169 = por %p167, %p168
    %p170 = scmp.ne.s32.totalorder %s156, %s157
    %p171 = scmp.eq.s32.totalorder %s16, 3
    %p172 = por %p170, %p171
    %p174 = scmp.ne.s32.totalorder %s157, %s173
    %p175 = scmp.eq.s32.totalorder %s16, 0
    %p176 = por %p174, %p175
    %p177 = scmp.le.s32.totalorder 1, %s10
    %p178 = scmp.lt.s32.totalorder %s10, 5
    %p179 = pnand %p177, %p178
    %p180 = pneg %p179
    // Predicated region
    $region9: #{cam_forward.8} parent=5 // pred_check
      _
    $region10: #{cam_forward.8} parent=5 // pred_check_branch
      %182 = sbr.rel (%p179) target = $region12
    $region11: #{cam_forward.8} parent=5 // pred_region
      %s183 = ssub.s32 %s10, 1
      // Predicated region
      $region13: #{cam_forward.8} parent=11 // pred_check
        %p184 = pneg %p113
      $region14: #{cam_forward.8} parent=11 // pred_check_branch
        %186 = sbr.rel (%p184) target = $region16
      $region15: #{cam_forward.8} parent=11 // pred_region
        %p187 = scmp.lt.s32.totalorder %s22, 0
        %s188 = scalar_select %p187, %s22, 0
        %s189 = smul.addr %s188, 4
        %s190 = scalar_lea.vmem %s2, %s189
      $region16: #{cam_forward.8} parent=11 // pred_fallthru
        _
      // Predicated region
      $region17: #{cam_forward.8} parent=11 // pred_check
        %p191 = pneg %p139
      $region18: #{cam_forward.8} parent=11 // pred_check_branch
        %193 = sbr.rel (%p191) target = $region20
      $region19: #{cam_forward.8} parent=11 // pred_region
        %p194 = scmp.lt.s32.totalorder %s22, 0
        %s195 = scalar_select %p194, %s22, 0
        %s196 = scalar_lea.vmem %s3, %s195
      $region20: #{cam_forward.8} parent=11 // pred_fallthru
        _
    $region12: #{cam_forward.8} parent=5 // pred_fallthru
      _
    %p197 = scmp.lt.s32.totalorder %s10, 4
    // Predicated region
    $region21: #{cam_forward.8} parent=5 // pred_check
      %p198 = pneg %p197
    $region22: #{cam_forward.8} parent=5 // pred_check_branch
      %200 = sbr.rel (%p198) target = $region24
    $region23: #{cam_forward.8} parent=5 // pred_region
      // Predicated region
      $region25: #{cam_forward.8} parent=23 // pred_check
        %p201 = pneg %p51
      $region26: #{cam_forward.8} parent=23 // pred_check_branch
        %203 = sbr.rel (%p201) target = $region28
      $region27: #{cam_forward.8} parent=23 // pred_region
        %s204 = smul.u32 8, %s18
        %p205 = scmp.lt.s32.totalorder %s17, 1
        %s206 = scalar_select %p205, %s17, 1
        %p207 = scmp.lt.s32.totalorder %s204, 23
        %s208 = scalar_select %p207, %s204, 23
        %s209 = smul.addr %s208, 3
        %s210 = smul.addr %s206, 72
        %s211 = sadd.s32 %s209, %s210
        %s212 = smul.addr %s211, 4
        %s213 = scalar_lea.vmem %s0, %s212
        %s214 = smul.u32 8, %s18
      $region28: #{cam_forward.8} parent=23 // pred_fallthru
        _
      // Predicated region
      $region29: #{cam_forward.8} parent=23 // pred_check
        %p215 = pneg %p81
      $region30: #{cam_forward.8} parent=23 // pred_check_branch
        %217 = sbr.rel (%p215) target = $region32
      $region31: #{cam_forward.8} parent=23 // pred_region
        %s218 = sadd.s32 %s18, 1
        %s219 = smul.u32 8, %s218
        %p220 = scmp.lt.s32.totalorder %s17, 1
        %s221 = scalar_select %p220, %s17, 1
        %p222 = scmp.lt.s32.totalorder %s219, 23
        %s223 = scalar_select %p222, %s219, 23
        %s224 = smul.addr %s223, 3
        %s225 = smul.addr %s221, 72
        %s226 = sadd.s32 %s224, %s225
        %s227 = smul.addr %s226, 4
        %s228 = scalar_lea.vmem %s1, %s227
        %s229 = sadd.s32 %s18, 1
        %s230 = smul.u32 8, %s229
      $region32: #{cam_forward.8} parent=23 // pred_fallthru
        _
    $region24: #{cam_forward.8} parent=5 // pred_fallthru
      _
    %p231 = scmp.le.s32.totalorder 1, %s10
    %p232 = scmp.lt.s32.totalorder %s10, 5
    %p233 = pnand %p231, %p232
    %p234 = pneg %p233
    // Predicated region
    $region33: #{cam_forward.8} parent=5 // pred_check
      _
    $region34: #{cam_forward.8} parent=5 // pred_check_branch
      %236 = sbr.rel (%p233) target = $region36
    $region35: #{cam_forward.8} parent=5 // pred_region
      %s237 = ssub.s32 %s10, 1
      %s238 = smul.u32 8, %s21
      %p239 = scmp.lt.s32.totalorder %s20, 1
      %s240 = scalar_select %p239, %s20, 1
      %p241 = scmp.lt.s32.totalorder %s238, 23
      %s242 = scalar_select %p241, %s238, 23
      %s243 = smul.addr %s242, 3
      %s244 = smul.addr %s240, 72
      %s245 = sadd.s32 %s243, %s244
      %s246 = smul.addr %s245, 4
      %s247 = scalar_lea.vmem %s0, %s246
      %p248 = pneg %p57
      %p249 = pneg %p54
      %s250 = sadd.s32 %s21, 1
      %s251 = smul.u32 8, %s250
      %p252 = scmp.lt.s32.totalorder %s20, 1
      %s253 = scalar_select %p252, %s20, 1
      %p254 = scmp.lt.s32.totalorder %s251, 23
      %s255 = scalar_select %p254, %s251, 23
      %s256 = smul.addr %s255, 3
      %s257 = smul.addr %s253, 72
      %s258 = sadd.s32 %s256, %s257
      %s259 = smul.addr %s258, 4
      %s260 = scalar_lea.vmem %s1, %s259
      %p261 = pneg %p87
      %p262 = pneg %p84
      %p263 = scmp.lt.s32.totalorder %s22, 0
      %s264 = scalar_select %p263, %s22, 0
      %s265 = smul.addr %s264, 4
      %s266 = scalar_lea.vmem %s2, %s265
      %p267 = pneg %p113
      %p268 = pneg %p110
      %p269 = scmp.lt.s32.totalorder %s22, 0
      %s270 = scalar_select %p269, %s22, 0
      %s271 = scalar_lea.vmem %s3, %s270
      %p272 = pneg %p139
      %p273 = pneg %p136
      %p274 = pneg %p169
      %p275 = pneg %p166
      %s276 = smul.u32 8, %s21
      %p277 = scmp.lt.s32.totalorder %s20, 1
      %s278 = scalar_select %p277, %s20, 1
      %p279 = scmp.lt.s32.totalorder %s276, 15
      %s280 = scalar_select %p279, %s276, 15
      %p281 = scmp.lt.s32.totalorder %s22, 0
      %s282 = scalar_select %p281, %s22, 0
      %s283 = smul.addr %s280, 2
      %s284 = sadd.s32 %s282, %s283
      %s285 = smul.addr %s278, 32
      %s286 = sadd.s32 %s284, %s285
      %s287 = smul.addr %s286, 4
      %s288 = scalar_lea.vmem %s4, %s287
      %s289 = smul.u32 8, %s21
      %p290 = scmp.lt.s32.totalorder %s20, 1
      %s291 = scalar_select %p290, %s20, 1
      %p292 = scmp.lt.s32.totalorder %s289, 23
      %s293 = scalar_select %p292, %s289, 23
      %s294 = smul.addr %s293, 3
      %s295 = smul.addr %s291, 72
      %s296 = sadd.s32 %s294, %s295
      %s297 = smul.addr %s296, 4
      %s298 = scalar_lea.vmem %s0, %s297
      %s299 = smul.u32 8, %s21
      %s300 = sadd.s32 %s21, 1
      %s301 = smul.u32 8, %s300
      %p302 = scmp.lt.s32.totalorder %s20, 1
      %s303 = scalar_select %p302, %s20, 1
      %p304 = scmp.lt.s32.totalorder %s301, 23
      %s305 = scalar_select %p304, %s301, 23
      %s306 = smul.addr %s305, 3
      %s307 = smul.addr %s303, 72
      %s308 = sadd.s32 %s306, %s307
      %s309 = smul.addr %s308, 4
      %s310 = scalar_lea.vmem %s1, %s309
      %s311 = sadd.s32 %s21, 1
      %s312 = smul.u32 8, %s311
      %p313 = scmp.lt.s32.totalorder %s22, 0
      %s314 = scalar_select %p313, %s22, 0
      %s315 = smul.addr %s314, 4
      %s316 = scalar_lea.vmem %s2, %s315
      %p317 = scmp.lt.s32.totalorder %s22, 0
      %s318 = scalar_select %p317, %s22, 0
      %s319 = scalar_lea.vmem %s3, %s318
      %s320 = smul.u32 8, %s21
      %p321 = scmp.lt.s32.totalorder %s20, 1
      %s322 = scalar_select %p321, %s20, 1
      %p323 = scmp.lt.s32.totalorder %s320, 15
      %s324 = scalar_select %p323, %s320, 15
      %p325 = scmp.lt.s32.totalorder %s22, 0
      %s326 = scalar_select %p325, %s22, 0
      %s327 = smul.addr %s324, 2
      %s328 = sadd.s32 %s326, %s327
      %s329 = smul.addr %s322, 32
      %s330 = sadd.s32 %s328, %s329
      %s331 = smul.addr %s330, 4
      %s332 = scalar_lea.vmem %s4, %s331
      %s333 = smul.u32 8, %s21
      %p335 = scmp.eq.s32.totalorder %s22, 0
      // Predicated region
      $region37: #{cam_forward.8} parent=35 // pred_check
        %p336 = pneg %p335
      $region38: #{cam_forward.8} parent=35 // pred_check_branch
        %338 = sbr.rel (%p336) target = $region40
      $region39: #{cam_forward.8} parent=35 // pred_region
        %v339 = vld [vmem:[%s298] sm:$0xf]
        %v340 = vld [vmem:[%s298 + $0x4] sm:$0xf]
        %v341 = vld [vmem:[%s298 + $0x8] sm:$0x1]
        %v342 = vld [vmem:[%s298 + $0xc] sm:$0xf]
        %v343 = vld [vmem:[%s298 + $0x10] sm:$0xf]
        %v344 = vld [vmem:[%s298 + $0x14] sm:$0x1]
        %v345 = vld [vmem:[%s298 + $0x18] sm:$0xf]
        %v346 = vld [vmem:[%s298 + $0x1c] sm:$0xf]
        %v347 = vld [vmem:[%s298 + $0x20] sm:$0x1]
        %v348 = vld [vmem:[%s298 + $0x24] sm:$0xf]
        %v349 = vld [vmem:[%s298 + $0x28] sm:$0xf]
        %v350 = vld [vmem:[%s298 + $0x2c] sm:$0x1]
        %v351 = vld [vmem:[%s298 + $0x30] sm:$0xf]
        %v352 = vld [vmem:[%s298 + $0x34] sm:$0xf]
        %v353 = vld [vmem:[%s298 + $0x38] sm:$0x1]
        %v354 = vld [vmem:[%s298 + $0x3c] sm:$0xf]
        %v355 = vld [vmem:[%s298 + $0x40] sm:$0xf]
        %v356 = vld [vmem:[%s298 + $0x44] sm:$0x1]
        %v357 = vld [vmem:[%s298 + $0x48] sm:$0xf]
        %v358 = vld [vmem:[%s298 + $0x4c] sm:$0xf]
        %v359 = vld [vmem:[%s298 + $0x50] sm:$0x1]
        %v360 = vld [vmem:[%s298 + $0x54] sm:$0xf]
        %v361 = vld [vmem:[%s298 + $0x58] sm:$0xf]
        %v362 = vld [vmem:[%s298 + $0x5c] sm:$0x1]
        %v363 = vld [vmem:[%s310] sm:$0xf]
        %v364 = vld [vmem:[%s310 + $0x4] sm:$0xf]
        %v365 = vld [vmem:[%s310 + $0x8] sm:$0x1]
        %v366 = vld [vmem:[%s310 + $0xc] sm:$0xf]
        %v367 = vld [vmem:[%s310 + $0x10] sm:$0xf]
        %v368 = vld [vmem:[%s310 + $0x14] sm:$0x1]
        %v385 = vunpack.c.l.b16 %v339
        %v386 = vunpack.c.l.b16 %v340
        %v387 = vunpack.c.l.b16 %v342
        %v388 = vunpack.c.l.b16 %v343
        %v389 = vunpack.c.l.b16 %v345
        %v390 = vunpack.c.l.b16 %v346
        %v391 = vunpack.c.l.b16 %v348
        %v392 = vunpack.c.l.b16 %v349
        %v393 = vunpack.c.l.b16 %v351
        %v394 = vunpack.c.l.b16 %v352
        %v395 = vunpack.c.l.b16 %v354
        %v396 = vunpack.c.l.b16 %v355
        %v397 = vunpack.c.l.b16 %v357
        %v398 = vunpack.c.l.b16 %v358
        %v399 = vunpack.c.l.b16 %v360
        %v400 = vunpack.c.l.b16 %v361
        %v401 = vpack.c.b16 %v386, %v385
        %v402 = vpack.c.b16 %v388, %v387
        %v403 = vpack.c.b16 %v390, %v389
        %v404 = vpack.c.b16 %v392, %v391
        %v405 = vpack.c.b16 %v394, %v393
        %v406 = vpack.c.b16 %v396, %v395
        %v407 = vpack.c.b16 %v398, %v397
        %v408 = vpack.c.b16 %v400, %v399
        %v417 = vunpack.c.l.b16 %v341
        %v418 = vunpack.c.l.b16 %v344
        %v419 = vunpack.c.l.b16 %v347
        %v420 = vunpack.c.l.b16 %v350
        %v421 = vunpack.c.l.b16 %v353
        %v422 = vunpack.c.l.b16 %v356
        %v423 = vunpack.c.l.b16 %v359
        %v424 = vunpack.c.l.b16 %v362
        %v425 = vpack.c.b16 %v417, %v417
        %v426 = vpack.c.b16 %v418, %v418
        %v427 = vpack.c.b16 %v419, %v419
        %v428 = vpack.c.b16 %v420, %v420
        %v429 = vpack.c.b16 %v421, %v421
        %v430 = vpack.c.b16 %v422, %v422
        %v431 = vpack.c.b16 %v423, %v423
        %v432 = vpack.c.b16 %v424, %v424
        %vm433 = vsmask.f32 7424
        %v435 = vshrl.u32 %v401, 16
        %v437 = vshll.u32 %v401, 16
        %v439 = vrot.slane %v437, 1
        %v440 = vor.u32 %v435, %v439
        %v442 = vshll.u32 %v425, 16
        %v444 = vrot.slane %v442, 1
        %v445 = vsel %vm433, %v440, %v444
        %v447 = vshrl.u32 %v402, 16
        %v449 = vshll.u32 %v402, 16
        %v451 = vrot.slane %v449, 1
        %v452 = vor.u32 %v447, %v451
        %v454 = vshll.u32 %v426, 16
        %v456 = vrot.slane %v454, 1
        %v457 = vsel %vm433, %v452, %v456
        %v459 = vshrl.u32 %v403, 16
        %v461 = vshll.u32 %v403, 16
        %v463 = vrot.slane %v461, 1
        %v464 = vor.u32 %v459, %v463
        %v466 = vshll.u32 %v427, 16
        %v468 = vrot.slane %v466, 1
        %v469 = vsel %vm433, %v464, %v468
        %v471 = vshrl.u32 %v404, 16
        %v473 = vshll.u32 %v404, 16
        %v475 = vrot.slane %v473, 1
        %v476 = vor.u32 %v471, %v475
        %v478 = vshll.u32 %v428, 16
        %v480 = vrot.slane %v478, 1
        %v481 = vsel %vm433, %v476, %v480
        %v483 = vshrl.u32 %v405, 16
        %v485 = vshll.u32 %v405, 16
        %v487 = vrot.slane %v485, 1
        %v488 = vor.u32 %v483, %v487
        %v490 = vshll.u32 %v429, 16
        %v492 = vrot.slane %v490, 1
        %v493 = vsel %vm433, %v488, %v492
        %v495 = vshrl.u32 %v406, 16
        %v497 = vshll.u32 %v406, 16
        %v499 = vrot.slane %v497, 1
        %v500 = vor.u32 %v495, %v499
        %v502 = vshll.u32 %v430, 16
        %v504 = vrot.slane %v502, 1
        %v505 = vsel %vm433, %v500, %v504
        %v507 = vshrl.u32 %v407, 16
        %v509 = vshll.u32 %v407, 16
        %v511 = vrot.slane %v509, 1
        %v512 = vor.u32 %v507, %v511
        %v514 = vshll.u32 %v431, 16
        %v516 = vrot.slane %v514, 1
        %v517 = vsel %vm433, %v512, %v516
        %v519 = vshrl.u32 %v408, 16
        %v521 = vshll.u32 %v408, 16
        %v523 = vrot.slane %v521, 1
        %v524 = vor.u32 %v519, %v523
        %v526 = vshll.u32 %v432, 16
        %v528 = vrot.slane %v526, 1
        %v529 = vsel %vm433, %v524, %v528
        %530 = vrot.lane.b32.xlu0 %v445, 8
        %v531 = vpop.permute.xlu0 %530
        %532 = vrot.lane.b32.xlu0 %v457, 8
        %v533 = vpop.permute.xlu0 %532
        %534 = vrot.lane.b32.xlu0 %v469, 8
        %v535 = vpop.permute.xlu0 %534
        %536 = vrot.lane.b32.xlu0 %v481, 8
        %v537 = vpop.permute.xlu0 %536
        %538 = vrot.lane.b32.xlu0 %v493, 8
        %v539 = vpop.permute.xlu0 %538
        %540 = vrot.lane.b32.xlu0 %v505, 8
        %v541 = vpop.permute.xlu0 %540
        %542 = vrot.lane.b32.xlu0 %v517, 8
        %v543 = vpop.permute.xlu0 %542
        %544 = vrot.lane.b32.xlu0 %v529, 8
        %v545 = vpop.permute.xlu0 %544
        %vm546 = vcmask 1046528
        %v547 = vrot.slane %v401, 1
        %v548 = vrot.slane %v425, 1
        %v549 = vsel %vm546, %v547, %v548
        %v550 = vrot.slane %v402, 1
        %v551 = vrot.slane %v426, 1
        %v552 = vsel %vm546, %v550, %v551
        %v553 = vrot.slane %v403, 1
        %v554 = vrot.slane %v427, 1
        %v555 = vsel %vm546, %v553, %v554
        %v556 = vrot.slane %v404, 1
        %v557 = vrot.slane %v428, 1
        %v558 = vsel %vm546, %v556, %v557
        %v559 = vrot.slane %v405, 1
        %v560 = vrot.slane %v429, 1
        %v561 = vsel %vm546, %v559, %v560
        %v562 = vrot.slane %v406, 1
        %v563 = vrot.slane %v430, 1
        %v564 = vsel %vm546, %v562, %v563
        %v565 = vrot.slane %v407, 1
        %v566 = vrot.slane %v431, 1
        %v567 = vsel %vm546, %v565, %v566
        %v568 = vrot.slane %v408, 1
        %v569 = vrot.slane %v432, 1
        %v570 = vsel %vm546, %v568, %v569
        %571 = vrot.lane.b32.xlu0 %v549, 16
        %v572 = vpop.permute.xlu0 %571
        %573 = vrot.lane.b32.xlu0 %v552, 16
        %v574 = vpop.permute.xlu0 %573
        %575 = vrot.lane.b32.xlu0 %v555, 16
        %v576 = vpop.permute.xlu0 %575
        %577 = vrot.lane.b32.xlu0 %v558, 16
        %v578 = vpop.permute.xlu0 %577
        %579 = vrot.lane.b32.xlu0 %v561, 16
        %v580 = vpop.permute.xlu0 %579
        %581 = vrot.lane.b32.xlu0 %v564, 16
        %v582 = vpop.permute.xlu0 %581
        %583 = vrot.lane.b32.xlu0 %v567, 16
        %v584 = vpop.permute.xlu0 %583
        %585 = vrot.lane.b32.xlu0 %v570, 16
        %v586 = vpop.permute.xlu0 %585
        %v589 = vunpack.c.l.b16 %v363
        %v590 = vunpack.c.l.b16 %v364
        %v591 = vpack.c.b16 %v590, %v589
        %592 = vrot.lane.b32.xlu0 %v402, 24
        %v593 = vpop.permute.xlu0 %592
        %594 = vrot.lane.b32.xlu0 %v403, 24
        %v595 = vpop.permute.xlu0 %594
        %596 = vrot.lane.b32.xlu0 %v404, 24
        %v597 = vpop.permute.xlu0 %596
        %598 = vrot.lane.b32.xlu0 %v405, 24
        %v599 = vpop.permute.xlu0 %598
        %600 = vrot.lane.b32.xlu0 %v406, 24
        %v601 = vpop.permute.xlu0 %600
        %602 = vrot.lane.b32.xlu0 %v407, 24
        %v603 = vpop.permute.xlu0 %602
        %604 = vrot.lane.b32.xlu0 %v408, 24
        %v605 = vpop.permute.xlu0 %604
        %606 = vrot.lane.b32.xlu0 %v591, 24
        %v607 = vpop.permute.xlu0 %606
        %v609 = vunpack.c.l.b16 %v365
        %v610 = vpack.c.b16 %v609, %v609
        %v612 = vshrl.u32 %v591, 16
        %v614 = vshll.u32 %v591, 16
        %v616 = vrot.slane %v614, 1
        %v617 = vor.u32 %v612, %v616
        %v619 = vshll.u32 %v610, 16
        %v621 = vrot.slane %v619, 1
        %v622 = vsel %vm433, %v617, %v621
        %623 = vrot.lane.b32.xlu0 %v457, 32
        %v624 = vpop.permute.xlu0 %623
        %625 = vrot.lane.b32.xlu0 %v469, 32
        %v626 = vpop.permute.xlu0 %625
        %627 = vrot.lane.b32.xlu0 %v481, 32
        %v628 = vpop.permute.xlu0 %627
        %629 = vrot.lane.b32.xlu0 %v493, 32
        %v630 = vpop.permute.xlu0 %629
        %631 = vrot.lane.b32.xlu0 %v505, 32
        %v632 = vpop.permute.xlu0 %631
        %633 = vrot.lane.b32.xlu0 %v517, 32
        %v634 = vpop.permute.xlu0 %633
        %635 = vrot.lane.b32.xlu0 %v529, 32
        %v636 = vpop.permute.xlu0 %635
        %637 = vrot.lane.b32.xlu0 %v622, 32
        %v638 = vpop.permute.xlu0 %637
        %v639 = vrot.slane %v591, 1
        %v640 = vrot.slane %v610, 1
        %v641 = vsel %vm546, %v639, %v640
        %642 = vrot.lane.b32.xlu0 %v552, 40
        %v643 = vpop.permute.xlu0 %642
        %644 = vrot.lane.b32.xlu0 %v555, 40
        %v645 = vpop.permute.xlu0 %644
        %646 = vrot.lane.b32.xlu0 %v558, 40
        %v647 = vpop.permute.xlu0 %646
        %648 = vrot.lane.b32.xlu0 %v561, 40
        %v649 = vpop.permute.xlu0 %648
        %650 = vrot.lane.b32.xlu0 %v564, 40
        %v651 = vpop.permute.xlu0 %650
        %652 = vrot.lane.b32.xlu0 %v567, 40
        %v653 = vpop.permute.xlu0 %652
        %654 = vrot.lane.b32.xlu0 %v570, 40
        %v655 = vpop.permute.xlu0 %654
        %656 = vrot.lane.b32.xlu0 %v641, 40
        %v657 = vpop.permute.xlu0 %656
        %v660 = vunpack.c.l.b16 %v366
        %v661 = vunpack.c.l.b16 %v367
        %v662 = vpack.c.b16 %v661, %v660
        %663 = vrot.lane.b32.xlu0 %v403, 48
        %v664 = vpop.permute.xlu0 %663
        %665 = vrot.lane.b32.xlu0 %v404, 48
        %v666 = vpop.permute.xlu0 %665
        %667 = vrot.lane.b32.xlu0 %v405, 48
        %v668 = vpop.permute.xlu0 %667
        %669 = vrot.lane.b32.xlu0 %v406, 48
        %v670 = vpop.permute.xlu0 %669
        %671 = vrot.lane.b32.xlu0 %v407, 48
        %v672 = vpop.permute.xlu0 %671
        %673 = vrot.lane.b32.xlu0 %v408, 48
        %v674 = vpop.permute.xlu0 %673
        %675 = vrot.lane.b32.xlu0 %v591, 48
        %v676 = vpop.permute.xlu0 %675
        %677 = vrot.lane.b32.xlu0 %v662, 48
        %v678 = vpop.permute.xlu0 %677
        %v680 = vunpack.c.l.b16 %v368
        %v681 = vpack.c.b16 %v680, %v680
        %v683 = vshrl.u32 %v662, 16
        %v685 = vshll.u32 %v662, 16
        %v687 = vrot.slane %v685, 1
        %v688 = vor.u32 %v683, %v687
        %v690 = vshll.u32 %v681, 16
        %v692 = vrot.slane %v690, 1
        %v693 = vsel %vm433, %v688, %v692
        %694 = vrot.lane.b32.xlu0 %v469, 56
        %v695 = vpop.permute.xlu0 %694
        %696 = vrot.lane.b32.xlu0 %v481, 56
        %v697 = vpop.permute.xlu0 %696
        %698 = vrot.lane.b32.xlu0 %v493, 56
        %v699 = vpop.permute.xlu0 %698
        %700 = vrot.lane.b32.xlu0 %v505, 56
        %v701 = vpop.permute.xlu0 %700
        %702 = vrot.lane.b32.xlu0 %v517, 56
        %v703 = vpop.permute.xlu0 %702
        %704 = vrot.lane.b32.xlu0 %v529, 56
        %v705 = vpop.permute.xlu0 %704
        %706 = vrot.lane.b32.xlu0 %v622, 56
        %v707 = vpop.permute.xlu0 %706
        %708 = vrot.lane.b32.xlu0 %v693, 56
        %v709 = vpop.permute.xlu0 %708
        %v710 = vrot.slane %v662, 1
        %v711 = vrot.slane %v681, 1
        %v712 = vsel %vm546, %v710, %v711
        %713 = vrot.lane.b32.xlu0 %v555, 64
        %v714 = vpop.permute.xlu0 %713
        %715 = vrot.lane.b32.xlu0 %v558, 64
        %v716 = vpop.permute.xlu0 %715
        %717 = vrot.lane.b32.xlu0 %v561, 64
        %v718 = vpop.permute.xlu0 %717
        %719 = vrot.lane.b32.xlu0 %v564, 64
        %v720 = vpop.permute.xlu0 %719
        %721 = vrot.lane.b32.xlu0 %v567, 64
        %v722 = vpop.permute.xlu0 %721
        %723 = vrot.lane.b32.xlu0 %v570, 64
        %v724 = vpop.permute.xlu0 %723
        %725 = vrot.lane.b32.xlu0 %v641, 64
        %v726 = vpop.permute.xlu0 %725
        %727 = vrot.lane.b32.xlu0 %v712, 64
        %v728 = vpop.permute.xlu0 %727
        %vm729 = vcmask 64512
        %v731 = vsel %vm729, %v401, %v531
        %v733 = vsel %vm729, %v402, %v533
        %v735 = vsel %vm729, %v403, %v535
        %v737 = vsel %vm729, %v404, %v537
        %v739 = vsel %vm729, %v405, %v539
        %v741 = vsel %vm729, %v406, %v541
        %v743 = vsel %vm729, %v407, %v543
        %v745 = vsel %vm729, %v408, %v545
        %vm746 = vcmask 130048
        %v748 = vsel %vm746, %v731, %v572
        %v750 = vsel %vm746, %v733, %v574
        %v752 = vsel %vm746, %v735, %v576
        %v754 = vsel %vm746, %v737, %v578
        %v756 = vsel %vm746, %v739, %v580
        %v758 = vsel %vm746, %v741, %v582
        %v760 = vsel %vm746, %v743, %v584
        %v762 = vsel %vm746, %v745, %v586
        %vm763 = vcmask 195584
        %v765 = vsel %vm763, %v748, %v593
        %v767 = vsel %vm763, %v750, %v595
        %v769 = vsel %vm763, %v752, %v597
        %v771 = vsel %vm763, %v754, %v599
        %v773 = vsel %vm763, %v756, %v601
        %v775 = vsel %vm763, %v758, %v603
        %v777 = vsel %vm763, %v760, %v605
        %v779 = vsel %vm763, %v762, %v607
        %vm780 = vcmask 261120
        %v782 = vsel %vm780, %v765, %v624
        %v784 = vsel %vm780, %v767, %v626
        %v786 = vsel %vm780, %v769, %v628
        %v788 = vsel %vm780, %v771, %v630
        %v790 = vsel %vm780, %v773, %v632
        %v792 = vsel %vm780, %v775, %v634
        %v794 = vsel %vm780, %v777, %v636
        %v796 = vsel %vm780, %v779, %v638
        %vm797 = vcmask 326656
        %v799 = vsel %vm797, %v782, %v643
        %v801 = vsel %vm797, %v784, %v645
        %v803 = vsel %vm797, %v786, %v647
        %v805 = vsel %vm797, %v788, %v649
        %v807 = vsel %vm797, %v790, %v651
        %v809 = vsel %vm797, %v792, %v653
        %v811 = vsel %vm797, %v794, %v655
        %v813 = vsel %vm797, %v796, %v657
        %vm814 = vcmask 392192
        %v816 = vsel %vm814, %v799, %v664
        %v818 = vsel %vm814, %v801, %v666
        %v820 = vsel %vm814, %v803, %v668
        %v822 = vsel %vm814, %v805, %v670
        %v824 = vsel %vm814, %v807, %v672
        %v826 = vsel %vm814, %v809, %v674
        %v828 = vsel %vm814, %v811, %v676
        %v830 = vsel %vm814, %v813, %v678
        %vm831 = vcmask 457728
        %v833 = vsel %vm831, %v816, %v695
        %v835 = vsel %vm831, %v818, %v697
        %v837 = vsel %vm831, %v820, %v699
        %v839 = vsel %vm831, %v822, %v701
        %v841 = vsel %vm831, %v824, %v703
        %v843 = vsel %vm831, %v826, %v705
        %v845 = vsel %vm831, %v828, %v707
        %v847 = vsel %vm831, %v830, %v709
        %vm848 = vcmask 523264
        %v850 = vsel %vm848, %v833, %v714
        %v852 = vsel %vm848, %v835, %v716
        %v854 = vsel %vm848, %v837, %v718
        %v856 = vsel %vm848, %v839, %v720
        %v858 = vsel %vm848, %v841, %v722
        %v860 = vsel %vm848, %v843, %v724
        %v862 = vsel %vm848, %v845, %v726
        %v864 = vsel %vm848, %v847, %v728
        %v873 = vunpack.c.l.b16 %v850
        %v874 = vunpack.c.h.b16 %v850
        %v875 = vunpack.c.l.b16 %v852
        %v876 = vunpack.c.h.b16 %v852
        %v877 = vunpack.c.l.b16 %v854
        %v878 = vunpack.c.h.b16 %v854
        %v879 = vunpack.c.l.b16 %v856
        %v880 = vunpack.c.h.b16 %v856
        %v881 = vunpack.c.l.b16 %v858
        %v882 = vunpack.c.h.b16 %v858
        %v883 = vunpack.c.l.b16 %v860
        %v884 = vunpack.c.h.b16 %v860
        %v885 = vunpack.c.l.b16 %v862
        %v886 = vunpack.c.h.b16 %v862
        %v887 = vunpack.c.l.b16 %v864
        %v888 = vunpack.c.h.b16 %v864
        %v889 = vpack.c.b16 %v873, %v873
        %v890 = vpack.c.b16 %v874, %v874
        %v891 = vpack.c.b16 %v875, %v875
        %v892 = vpack.c.b16 %v876, %v876
        %v893 = vpack.c.b16 %v877, %v877
        %v894 = vpack.c.b16 %v878, %v878
        %v895 = vpack.c.b16 %v879, %v879
        %v896 = vpack.c.b16 %v880, %v880
        %v897 = vpack.c.b16 %v881, %v881
        %v898 = vpack.c.b16 %v882, %v882
        %v899 = vpack.c.b16 %v883, %v883
        %v900 = vpack.c.b16 %v884, %v884
        %v901 = vpack.c.b16 %v885, %v885
        %v902 = vpack.c.b16 %v886, %v886
        %v903 = vpack.c.b16 %v887, %v887
        %v904 = vpack.c.b16 %v888, %v888
        %vm921 = vcmask 584704
        %922 = vst.msk [vmem:[#allocation2] sm:$0xf] %vm921, %v889
        %923 = vst.msk [vmem:[#allocation2 + $0x4] sm:$0xf] %vm921, %v890
        %924 = vst.msk [vmem:[#allocation2 + $0x8] sm:$0xf] %vm921, %v891
        %925 = vst.msk [vmem:[#allocation2 + $0xc] sm:$0xf] %vm921, %v892
        %926 = vst.msk [vmem:[#allocation2 + $0x10] sm:$0xf] %vm921, %v893
        %927 = vst.msk [vmem:[#allocation2 + $0x14] sm:$0xf] %vm921, %v894
        %928 = vst.msk [vmem:[#allocation2 + $0x18] sm:$0xf] %vm921, %v895
        %929 = vst.msk [vmem:[#allocation2 + $0x1c] sm:$0xf] %vm921, %v896
        %930 = vst.msk [vmem:[#allocation2 + $0x20] sm:$0xf] %vm921, %v897
        %931 = vst.msk [vmem:[#allocation2 + $0x24] sm:$0xf] %vm921, %v898
        %932 = vst.msk [vmem:[#allocation2 + $0x28] sm:$0xf] %vm921, %v899
        %933 = vst.msk [vmem:[#allocation2 + $0x2c] sm:$0xf] %vm921, %v900
        %934 = vst.msk [vmem:[#allocation2 + $0x30] sm:$0xf] %vm921, %v901
        %935 = vst.msk [vmem:[#allocation2 + $0x34] sm:$0xf] %vm921, %v902
        %936 = vst.msk [vmem:[#allocation2 + $0x38] sm:$0xf] %vm921, %v903
        %937 = vst.msk [vmem:[#allocation2 + $0x3c] sm:$0xf] %vm921, %v904
      $region40: #{cam_forward.8} parent=35 // pred_fallthru
        _
      %v938 = vld [vmem:[#allocation2] sm:$0xf]
      %v939 = vld [vmem:[#allocation2 + $0x4] sm:$0xf]
      %v940 = vld [vmem:[#allocation2 + $0x8] sm:$0xf]
      %v941 = vld [vmem:[#allocation2 + $0xc] sm:$0xf]
      %v942 = vld [vmem:[#allocation2 + $0x10] sm:$0xf]
      %v943 = vld [vmem:[#allocation2 + $0x14] sm:$0xf]
      %v944 = vld [vmem:[#allocation2 + $0x18] sm:$0xf]
      %v945 = vld [vmem:[#allocation2 + $0x1c] sm:$0xf]
      %v946 = vld [vmem:[#allocation2 + $0x20] sm:$0xf]
      %v947 = vld [vmem:[#allocation2 + $0x24] sm:$0xf]
      %v948 = vld [vmem:[#allocation2 + $0x28] sm:$0xf]
      %v949 = vld [vmem:[#allocation2 + $0x2c] sm:$0xf]
      %v950 = vld [vmem:[#allocation2 + $0x30] sm:$0xf]
      %v951 = vld [vmem:[#allocation2 + $0x34] sm:$0xf]
      %v952 = vld [vmem:[#allocation2 + $0x38] sm:$0xf]
      %v953 = vld [vmem:[#allocation2 + $0x3c] sm:$0xf]
      %v954 = vld [vmem:[%s316] sm:$0xf]
      %v955 = vld [vmem:[%s316 + $0x4] sm:$0xf]
      %v956 = vld [vmem:[%s316 + $0x8] sm:$0xf]
      %v957 = vld [vmem:[%s316 + $0xc] sm:$0xf]
      %v958 = vld [vmem:[%s316 + $0x10] sm:$0xf]
      %v959 = vld [vmem:[%s316 + $0x14] sm:$0xf]
      %v960 = vld [vmem:[%s316 + $0x18] sm:$0xf]
      %v961 = vld [vmem:[%s316 + $0x1c] sm:$0xf]
      %v962 = vld [vmem:[%s316 + $0x20] sm:$0xf]
      %v963 = vld [vmem:[%s319] sm:$0x1]
      %v965 = vperm.slane %v963, 0
      %v983 = vunpack.c.l.b16 %v938
      %v984 = vunpack.c.l.b16 %v939
      %v985 = vunpack.c.l.b16 %v940
      %v986 = vunpack.c.l.b16 %v941
      %v987 = vunpack.c.l.b16 %v942
      %v988 = vunpack.c.l.b16 %v943
      %v989 = vunpack.c.l.b16 %v944
      %v990 = vunpack.c.l.b16 %v945
      %v991 = vunpack.c.l.b16 %v946
      %v992 = vunpack.c.l.b16 %v947
      %v993 = vunpack.c.l.b16 %v948
      %v994 = vunpack.c.l.b16 %v949
      %v995 = vunpack.c.l.b16 %v950
      %v996 = vunpack.c.l.b16 %v951
      %v997 = vunpack.c.l.b16 %v952
      %v998 = vunpack.c.l.b16 %v953
      %v999 = vpack.c.b16 %v984, %v983
      %v1000 = vpack.c.b16 %v986, %v985
      %v1001 = vpack.c.b16 %v988, %v987
      %v1002 = vpack.c.b16 %v990, %v989
      %v1003 = vpack.c.b16 %v992, %v991
      %v1004 = vpack.c.b16 %v994, %v993
      %v1005 = vpack.c.b16 %v996, %v995
      %v1006 = vpack.c.b16 %v998, %v997
      %v1016 = vunpack.c.l.b16 %v954
      %v1017 = vunpack.c.l.b16 %v955
      %v1018 = vunpack.c.l.b16 %v956
      %v1019 = vunpack.c.l.b16 %v957
      %v1020 = vunpack.c.l.b16 %v958
      %v1021 = vunpack.c.l.b16 %v959
      %v1022 = vunpack.c.l.b16 %v960
      %v1023 = vunpack.c.l.b16 %v961
      %v1024 = vunpack.c.l.b16 %v962
      %v1025 = vpack.c.b16 %v1017, %v1016
      %v1026 = vpack.c.b16 %v1019, %v1018
      %v1027 = vpack.c.b16 %v1021, %v1020
      %v1028 = vpack.c.b16 %v1023, %v1022
      %v1029 = vpack.c.b16 %v1024, %v1024
      %vm1034 = vcmask 588800
      %v1036 = vsel %vm1034, %v999, 0
      %v1039 = vsel %vm1034, %v1000, 0
      %v1042 = vsel %vm1034, %v1001, 0
      %v1045 = vsel %vm1034, %v1002, 0
      %v1048 = vsel %vm1034, %v1003, 0
      %v1051 = vsel %vm1034, %v1004, 0
      %v1054 = vsel %vm1034, %v1005, 0
      %v1057 = vsel %vm1034, %v1006, 0
      %vm1059 = vcmask 1043456
      %v1061 = vsel %vm1059, %v1029, 0
      %1063 = vmatpush.bf16.msra.mxu0 0
      %1064 = vmatpush.bf16.msra.mxu0 0
      %1065 = vmatpush.bf16.msra.mxu0 0
      %1066 = vmatpush.bf16.msra.mxu0 %v1061
      %1067 = vmatpush.bf16.msra.mxu0 %v1028
      %1068 = vmatpush.bf16.msra.mxu0 %v1027
      %1069 = vmatpush.bf16.msra.mxu0 %v1026
      %1070 = vmatpush.bf16.msra.mxu0 %v1025
      %1071 = vmatmul.bf16.gmra.mxu0 %v1036
      %v1072 = vpop.f32.mrf.mxu0
      %v1073 = vadd.f32 %v965, %v1072
      %v1074 = vpop.f32.mrf.mxu0
      %v1075 = vadd.f32 %v965, %v1074
      %1076 = vmatmul.bf16.gmra.mxu0 %v1039
      %v1077 = vpop.f32.mrf.mxu0
      %v1078 = vadd.f32 %v965, %v1077
      %v1079 = vpop.f32.mrf.mxu0
      %v1080 = vadd.f32 %v965, %v1079
      %1081 = vmatmul.bf16.gmra.mxu0 %v1042
      %v1082 = vpop.f32.mrf.mxu0
      %v1083 = vadd.f32 %v965, %v1082
      %v1084 = vpop.f32.mrf.mxu0
      %v1085 = vadd.f32 %v965, %v1084
      %1086 = vmatmul.bf16.gmra.mxu0 %v1045
      %v1087 = vpop.f32.mrf.mxu0
      %v1088 = vadd.f32 %v965, %v1087
      %v1089 = vpop.f32.mrf.mxu0
      %v1090 = vadd.f32 %v965, %v1089
      %1091 = vmatmul.bf16.gmra.mxu0 %v1048
      %v1092 = vpop.f32.mrf.mxu0
      %v1093 = vadd.f32 %v965, %v1092
      %v1094 = vpop.f32.mrf.mxu0
      %v1095 = vadd.f32 %v965, %v1094
      %1096 = vmatmul.bf16.gmra.mxu0 %v1051
      %v1097 = vpop.f32.mrf.mxu0
      %v1098 = vadd.f32 %v965, %v1097
      %v1099 = vpop.f32.mrf.mxu0
      %v1100 = vadd.f32 %v965, %v1099
      %1101 = vmatmul.bf16.gmra.mxu0 %v1054
      %v1102 = vpop.f32.mrf.mxu0
      %v1103 = vadd.f32 %v965, %v1102
      %v1104 = vpop.f32.mrf.mxu0
      %v1105 = vadd.f32 %v965, %v1104
      %1106 = vmatmul.bf16.gmra.mxu0 %v1057
      %v1107 = vpop.f32.mrf.mxu0
      %v1108 = vadd.f32 %v965, %v1107
      %v1109 = vpop.f32.mrf.mxu0
      %v1110 = vadd.f32 %v965, %v1109
      %1111 = vdwg.mxu0
      %v1112 = vmax.f32 %v1073, 0.0
      %v1113 = vmax.f32 %v1075, 0.0
      %v1114 = vmax.f32 %v1078, 0.0
      %v1115 = vmax.f32 %v1080, 0.0
      %v1116 = vmax.f32 %v1083, 0.0
      %v1117 = vmax.f32 %v1085, 0.0
      %v1118 = vmax.f32 %v1088, 0.0
      %v1119 = vmax.f32 %v1090, 0.0
      %v1120 = vmax.f32 %v1093, 0.0
      %v1121 = vmax.f32 %v1095, 0.0
      %v1122 = vmax.f32 %v1098, 0.0
      %v1123 = vmax.f32 %v1100, 0.0
      %v1124 = vmax.f32 %v1103, 0.0
      %v1125 = vmax.f32 %v1105, 0.0
      %v1126 = vmax.f32 %v1108, 0.0
      %v1127 = vmax.f32 %v1110, 0.0
      %v1128 = vpack.c.bf16 %v1112, %v1112
      %v1129 = vpack.c.bf16 %v1113, %v1113
      %v1130 = vpack.c.bf16 %v1114, %v1114
      %v1131 = vpack.c.bf16 %v1115, %v1115
      %v1132 = vpack.c.bf16 %v1116, %v1116
      %v1133 = vpack.c.bf16 %v1117, %v1117
      %v1134 = vpack.c.bf16 %v1118, %v1118
      %v1135 = vpack.c.bf16 %v1119, %v1119
      %v1136 = vpack.c.bf16 %v1120, %v1120
      %v1137 = vpack.c.bf16 %v1121, %v1121
      %v1138 = vpack.c.bf16 %v1122, %v1122
      %v1139 = vpack.c.bf16 %v1123, %v1123
      %v1140 = vpack.c.bf16 %v1124, %v1124
      %v1141 = vpack.c.bf16 %v1125, %v1125
      %v1142 = vpack.c.bf16 %v1126, %v1126
      %v1143 = vpack.c.bf16 %v1127, %v1127
      %1144 = vst [vmem:[%s332] sm:$0xf] %v1128
      %1145 = vst [vmem:[%s332 + $0x4] sm:$0xf] %v1129
      %1146 = vst [vmem:[%s332 + $0x8] sm:$0xf] %v1130
      %1147 = vst [vmem:[%s332 + $0xc] sm:$0xf] %v1131
      %1148 = vst [vmem:[%s332 + $0x10] sm:$0xf] %v1132
      %1149 = vst [vmem:[%s332 + $0x14] sm:$0xf] %v1133
      %1150 = vst [vmem:[%s332 + $0x18] sm:$0xf] %v1134
      %1151 = vst [vmem:[%s332 + $0x1c] sm:$0xf] %v1135
      %1152 = vst [vmem:[%s332 + $0x20] sm:$0xf] %v1136
      %1153 = vst [vmem:[%s332 + $0x24] sm:$0xf] %v1137
      %1154 = vst [vmem:[%s332 + $0x28] sm:$0xf] %v1138
      %1155 = vst [vmem:[%s332 + $0x2c] sm:$0xf] %v1139
      %1156 = vst [vmem:[%s332 + $0x30] sm:$0xf] %v1140
      %1157 = vst [vmem:[%s332 + $0x34] sm:$0xf] %v1141
      %1158 = vst [vmem:[%s332 + $0x38] sm:$0xf] %v1142
      %1159 = vst [vmem:[%s332 + $0x3c] sm:$0xf] %v1143
      %s1160 = smul.u32 8, %s21
      %p1161 = scmp.lt.s32.totalorder %s20, 1
      %s1162 = scalar_select %p1161, %s20, 1
      %p1163 = scmp.lt.s32.totalorder %s1160, 15
      %s1164 = scalar_select %p1163, %s1160, 15
      %p1165 = scmp.lt.s32.totalorder %s22, 0
      %s1166 = scalar_select %p1165, %s22, 0
      %s1167 = smul.addr %s1164, 2
      %s1168 = sadd.s32 %s1166, %s1167
      %s1169 = smul.addr %s1162, 32
      %s1170 = sadd.s32 %s1168, %s1169
      %s1171 = smul.addr %s1170, 4
      %s1172 = scalar_lea.vmem %s4, %s1171
      // Predicated region
      $region41: #{cam_forward.8} parent=35 // pred_check
        %p1173 = pneg %p166
      $region42: #{cam_forward.8} parent=35 // pred_check_branch
        %1175 = sbr.rel (%p1173) target = $region44
      $region43: #{cam_forward.8} parent=35 // pred_region
        %s1176 = smul.u32 8, %s21
      $region44: #{cam_forward.8} parent=35 // pred_fallthru
        _
    $region36: #{cam_forward.8} parent=5 // pred_fallthru
      _
    %p1177 = scmp.le.s32.totalorder 2, %s10
    // Predicated region
    $region45: #{cam_forward.8} parent=5 // pred_check
      %p1178 = pneg %p1177
    $region46: #{cam_forward.8} parent=5 // pred_check_branch
      %1180 = sbr.rel (%p1178) target = $region48
    $region47: #{cam_forward.8} parent=5 // pred_region
      %s1181 = ssub.s32 %s10, 2
      // Predicated region
      $region49: #{cam_forward.8} parent=47 // pred_check
        %p1182 = pneg %p172
      $region50: #{cam_forward.8} parent=47 // pred_check_branch
        %1184 = sbr.rel (%p1182) target = $region52
      $region51: #{cam_forward.8} parent=47 // pred_region
        %s1185 = smul.u32 8, %s24
        %p1186 = scmp.lt.s32.totalorder %s23, 1
        %s1187 = scalar_select %p1186, %s23, 1
        %p1188 = scmp.lt.s32.totalorder %s1185, 15
        %s1189 = scalar_select %p1188, %s1185, 15
        %p1190 = scmp.lt.s32.totalorder %s25, 0
        %s1191 = scalar_select %p1190, %s25, 0
        %s1192 = smul.addr %s1189, 2
        %s1193 = sadd.s32 %s1191, %s1192
        %s1194 = smul.addr %s1187, 32
        %s1195 = sadd.s32 %s1193, %s1194
        %s1196 = smul.addr %s1195, 4
        %s1197 = scalar_lea.vmem %s4, %s1196
      $region52: #{cam_forward.8} parent=47 // pred_fallthru
        _
    $region48: #{cam_forward.8} parent=5 // pred_fallthru
      _
  $region6: #{cam_forward.8} parent=0 // loop_footer
    %s14 = sadd.s32 1, %s10
  $region7: #{cam_forward.8} parent=0 // loop_footer_branch
    %9 = sbr.rel target = $region3
  $region8: #{cam_forward.8} parent=0 // loop_exit
    _

// kernel: cam_forward.9
$region0: #{cam_forward.9}
  #allocation0 [shape = 'u32[]', space=smem, size = 0x4, offset = 0x4, fixed_abs, tag = 'smem constant byte address 0x4 - core index']
  #allocation1 [shape = 'u32[72,128]{1,0:T(1,128)}', space=vmem, size = 0x9000, scoped, tag = 'internal scratch']
  #allocation2 [shape = 'bf16[128,72]{1,0:T(8,128)(2,1)}', space=vmem, size = 0x8000, scoped, tag = 'scratch operand']
  %s0 = inlined_call_operand.vmem [shape: bf16[2,24,20,8], index: 0, kind: input, shape index: {}, may-alias: {0,1}]
  %s1 = inlined_call_operand.vmem [shape: bf16[2,24,20,8], index: 1, kind: input, shape index: {}, may-alias: {0,1}]
  %s2 = inlined_call_operand.vmem [shape: bf16[72,128], index: 2, kind: input, shape index: {}]
  %s3 = inlined_call_operand.vmem [shape: f32[1,128], index: 3, kind: input, shape index: {}]
  %s4 = inlined_call_operand.vmem [shape: bf16[2,16,16,128], index: 4, kind: output, shape index: {}]
  %s5 = sld [smem:[#allocation0]]
  $region53: #{cam_forward.9} parent=0
    _
  %s7 = ssub.s32 1, %s5
  %s8 = scalar_select 0, %s7, %s5
  loop: start=0, step=1, limit=6
  $region2: #{cam_forward.9} parent=0 // loop_pre_header
    _
  $region3: #{cam_forward.9} parent=0 // loop_header
    %s10 = sphi 0, %s14
    %p11 = scmp.ge.s32.totalorder %s10, 6
    %s17 = sphi 0, %s36
    %s18 = sphi 0, %s32
    %s19 = sphi 0, %s28
    %s20 = sphi 0, %s17
    %s21 = sphi 0, %s18
    %s22 = sphi 0, %s19
    %s23 = sphi 0, %s20
    %s24 = sphi 0, %s21
    %s25 = sphi 0, %s22
    %s41 = sphi 0, %s43
    %s44 = sphi 0, %s41
    %s45 = sphi 0, %s44
    %s61 = sphi 0, %s45
    %s71 = sphi 0, %s73
    %s74 = sphi 0, %s71
    %s75 = sphi 0, %s74
    %s91 = sphi 0, %s75
    %s97 = sphi 0, %s99
    %s100 = sphi 0, %s97
    %s101 = sphi 0, %s100
    %s117 = sphi 0, %s101
    %s123 = sphi 0, %s125
    %s126 = sphi 0, %s123
    %s127 = sphi 0, %s126
    %s143 = sphi 0, %s127
    %s153 = sphi 0, %s155
    %s156 = sphi 0, %s153
    %s157 = sphi 0, %s156
    %s173 = sphi 0, %s157
  $region4: #{cam_forward.9} parent=0 // loop_header_branch
    %13 = sbr.rel (%p11) target = $region8
  $region5: #{cam_forward.9} parent=0 // loop_body
    %s15 = ssub.s32 %s10, 1
    %s16 = ssub.s32 %s10, 2
    %s26 = sadd.s32 1, %s19
    %p27 = scmp.ge.s32.totalorder %s26, 1
    %s28 = scalar_select %p27, 0, %s26
    %s29 = sadd.s32 1, %s18
    %s30 = scalar_select %p27, %s29, %s18
    %p31 = scmp.ge.s32.totalorder %s30, 2
    %s32 = scalar_select %p31, 0, %s30
    %s33 = sadd.s32 1, %s17
    %s34 = scalar_select %p31, %s33, %s17
    %p35 = scmp.ge.s32.totalorder %s34, 2
    %s36 = scalar_select %p35, 0, %s34
    %s37 = ssub.s32 %s17, %s36
    %s38 = ssub.s32 %s18, %s32
    %s39 = sor.u32 %s37, %s38
    %p40 = scmp.eq.s32.totalorder %s39, 0
    %s42 = sadd.s32 %s41, 1
    %s43 = scalar_select %p40, %s41, %s42
    %p46 = pneg %p40
    %p47 = scmp.eq.s32.totalorder %s10, 3
    %p48 = por %p46, %p47
    %p49 = scmp.ne.s32.totalorder %s41, %s44
    %p50 = scmp.eq.s32.totalorder %s10, 0
    %p51 = por %p49, %p50
    %p52 = scmp.ne.s32.totalorder %s41, %s44
    %p53 = scmp.eq.s32.totalorder %s15, 3
    %p54 = por %p52, %p53
    %p55 = scmp.ne.s32.totalorder %s44, %s45
    %p56 = scmp.eq.s32.totalorder %s15, 0
    %p57 = por %p55, %p56
    %p58 = scmp.ne.s32.totalorder %s44, %s45
    %p59 = scmp.eq.s32.totalorder %s16, 3
    %p60 = por %p58, %p59
    %p62 = scmp.ne.s32.totalorder %s45, %s61
    %p63 = scmp.eq.s32.totalorder %s16, 0
    %p64 = por %p62, %p63
    %s65 = sadd.s32 %s18, 1
    %s66 = sadd.s32 %s32, 1
    %s67 = ssub.s32 %s17, %s36
    %s68 = ssub.s32 %s65, %s66
    %s69 = sor.u32 %s67, %s68
    %p70 = scmp.eq.s32.totalorder %s69, 0
    %s72 = sadd.s32 %s71, 1
    %s73 = scalar_select %p70, %s71, %s72
    %p76 = pneg %p70
    %p77 = scmp.eq.s32.totalorder %s10, 3
    %p78 = por %p76, %p77
    %p79 = scmp.ne.s32.totalorder %s71, %s74
    %p80 = scmp.eq.s32.totalorder %s10, 0
    %p81 = por %p79, %p80
    %p82 = scmp.ne.s32.totalorder %s71, %s74
    %p83 = scmp.eq.s32.totalorder %s15, 3
    %p84 = por %p82, %p83
    %p85 = scmp.ne.s32.totalorder %s74, %s75
    %p86 = scmp.eq.s32.totalorder %s15, 0
    %p87 = por %p85, %p86
    %p88 = scmp.ne.s32.totalorder %s74, %s75
    %p89 = scmp.eq.s32.totalorder %s16, 3
    %p90 = por %p88, %p89
    %p92 = scmp.ne.s32.totalorder %s75, %s91
    %p93 = scmp.eq.s32.totalorder %s16, 0
    %p94 = por %p92, %p93
    %s95 = ssub.s32 %s19, %s28
    %p96 = scmp.eq.s32.totalorder %s95, 0
    %s98 = sadd.s32 %s97, 1
    %s99 = scalar_select %p96, %s97, %s98
    %p102 = pneg %p96
    %p103 = scmp.eq.s32.totalorder %s10, 3
    %p104 = por %p102, %p103
    %p105 = scmp.ne.s32.totalorder %s97, %s100
    %p106 = scmp.eq.s32.totalorder %s10, 0
    %p107 = por %p105, %p106
    %p108 = scmp.ne.s32.totalorder %s97, %s100
    %p109 = scmp.eq.s32.totalorder %s15, 3
    %p110 = por %p108, %p109
    %p111 = scmp.ne.s32.totalorder %s100, %s101
    %p112 = scmp.eq.s32.totalorder %s15, 0
    %p113 = por %p111, %p112
    %p114 = scmp.ne.s32.totalorder %s100, %s101
    %p115 = scmp.eq.s32.totalorder %s16, 3
    %p116 = por %p114, %p115
    %p118 = scmp.ne.s32.totalorder %s101, %s117
    %p119 = scmp.eq.s32.totalorder %s16, 0
    %p120 = por %p118, %p119
    %s121 = ssub.s32 %s19, %s28
    %p122 = scmp.eq.s32.totalorder %s121, 0
    %s124 = sadd.s32 %s123, 1
    %s125 = scalar_select %p122, %s123, %s124
    %p128 = pneg %p122
    %p129 = scmp.eq.s32.totalorder %s10, 3
    %p130 = por %p128, %p129
    %p131 = scmp.ne.s32.totalorder %s123, %s126
    %p132 = scmp.eq.s32.totalorder %s10, 0
    %p133 = por %p131, %p132
    %p134 = scmp.ne.s32.totalorder %s123, %s126
    %p135 = scmp.eq.s32.totalorder %s15, 3
    %p136 = por %p134, %p135
    %p137 = scmp.ne.s32.totalorder %s126, %s127
    %p138 = scmp.eq.s32.totalorder %s15, 0
    %p139 = por %p137, %p138
    %p140 = scmp.ne.s32.totalorder %s126, %s127
    %p141 = scmp.eq.s32.totalorder %s16, 3
    %p142 = por %p140, %p141
    %p144 = scmp.ne.s32.totalorder %s127, %s143
    %p145 = scmp.eq.s32.totalorder %s16, 0
    %p146 = por %p144, %p145
    %s147 = ssub.s32 %s17, %s36
    %s148 = ssub.s32 %s18, %s32
    %s149 = sor.u32 %s147, %s148
    %s150 = ssub.s32 %s19, %s28
    %s151 = sor.u32 %s149, %s150
    %p152 = scmp.eq.s32.totalorder %s151, 0
    %s154 = sadd.s32 %s153, 1
    %s155 = scalar_select %p152, %s153, %s154
    %p158 = pneg %p152
    %p159 = scmp.eq.s32.totalorder %s10, 3
    %p160 = por %p158, %p159
    %p161 = scmp.ne.s32.totalorder %s153, %s156
    %p162 = scmp.eq.s32.totalorder %s10, 0
    %p163 = por %p161, %p162
    %p164 = scmp.ne.s32.totalorder %s153, %s156
    %p165 = scmp.eq.s32.totalorder %s15, 3
    %p166 = por %p164, %p165
    %p167 = scmp.ne.s32.totalorder %s156, %s157
    %p168 = scmp.eq.s32.totalorder %s15, 0
    %p169 = por %p167, %p168
    %p170 = scmp.ne.s32.totalorder %s156, %s157
    %p171 = scmp.eq.s32.totalorder %s16, 3
    %p172 = por %p170, %p171
    %p174 = scmp.ne.s32.totalorder %s157, %s173
    %p175 = scmp.eq.s32.totalorder %s16, 0
    %p176 = por %p174, %p175
    %p177 = scmp.le.s32.totalorder 1, %s10
    %p178 = scmp.lt.s32.totalorder %s10, 5
    %p179 = pnand %p177, %p178
    %p180 = pneg %p179
    // Predicated region
    $region9: #{cam_forward.9} parent=5 // pred_check
      _
    $region10: #{cam_forward.9} parent=5 // pred_check_branch
      %182 = sbr.rel (%p179) target = $region12
    $region11: #{cam_forward.9} parent=5 // pred_region
      %s183 = ssub.s32 %s10, 1
      // Predicated region
      $region13: #{cam_forward.9} parent=11 // pred_check
        %p184 = pneg %p113
      $region14: #{cam_forward.9} parent=11 // pred_check_branch
        %186 = sbr.rel (%p184) target = $region16
      $region15: #{cam_forward.9} parent=11 // pred_region
        %p187 = scmp.lt.s32.totalorder %s22, 0
        %s188 = scalar_select %p187, %s22, 0
        %s189 = smul.addr %s188, 4
        %s190 = scalar_lea.vmem %s2, %s189
      $region16: #{cam_forward.9} parent=11 // pred_fallthru
        _
      // Predicated region
      $region17: #{cam_forward.9} parent=11 // pred_check
        %p191 = pneg %p139
      $region18: #{cam_forward.9} parent=11 // pred_check_branch
        %193 = sbr.rel (%p191) target = $region20
      $region19: #{cam_forward.9} parent=11 // pred_region
        %p194 = scmp.lt.s32.totalorder %s22, 0
        %s195 = scalar_select %p194, %s22, 0
        %s196 = scalar_lea.vmem %s3, %s195
      $region20: #{cam_forward.9} parent=11 // pred_fallthru
        _
    $region12: #{cam_forward.9} parent=5 // pred_fallthru
      _
    %p197 = scmp.lt.s32.totalorder %s10, 4
    // Predicated region
    $region21: #{cam_forward.9} parent=5 // pred_check
      %p198 = pneg %p197
    $region22: #{cam_forward.9} parent=5 // pred_check_branch
      %200 = sbr.rel (%p198) target = $region24
    $region23: #{cam_forward.9} parent=5 // pred_region
      // Predicated region
      $region25: #{cam_forward.9} parent=23 // pred_check
        %p201 = pneg %p51
      $region26: #{cam_forward.9} parent=23 // pred_check_branch
        %203 = sbr.rel (%p201) target = $region28
      $region27: #{cam_forward.9} parent=23 // pred_region
        %s204 = smul.u32 8, %s18
        %p205 = scmp.lt.s32.totalorder %s17, 1
        %s206 = scalar_select %p205, %s17, 1
        %p207 = scmp.lt.s32.totalorder %s204, 23
        %s208 = scalar_select %p207, %s204, 23
        %s209 = smul.addr %s208, 3
        %s210 = smul.addr %s206, 72
        %s211 = sadd.s32 %s209, %s210
        %s212 = smul.addr %s211, 4
        %s213 = scalar_lea.vmem %s0, %s212
        %s214 = smul.u32 8, %s18
      $region28: #{cam_forward.9} parent=23 // pred_fallthru
        _
      // Predicated region
      $region29: #{cam_forward.9} parent=23 // pred_check
        %p215 = pneg %p81
      $region30: #{cam_forward.9} parent=23 // pred_check_branch
        %217 = sbr.rel (%p215) target = $region32
      $region31: #{cam_forward.9} parent=23 // pred_region
        %s218 = sadd.s32 %s18, 1
        %s219 = smul.u32 8, %s218
        %p220 = scmp.lt.s32.totalorder %s17, 1
        %s221 = scalar_select %p220, %s17, 1
        %p222 = scmp.lt.s32.totalorder %s219, 23
        %s223 = scalar_select %p222, %s219, 23
        %s224 = smul.addr %s223, 3
        %s225 = smul.addr %s221, 72
        %s226 = sadd.s32 %s224, %s225
        %s227 = smul.addr %s226, 4
        %s228 = scalar_lea.vmem %s1, %s227
        %s229 = sadd.s32 %s18, 1
        %s230 = smul.u32 8, %s229
      $region32: #{cam_forward.9} parent=23 // pred_fallthru
        _
    $region24: #{cam_forward.9} parent=5 // pred_fallthru
      _
    %p231 = scmp.le.s32.totalorder 1, %s10
    %p232 = scmp.lt.s32.totalorder %s10, 5
    %p233 = pnand %p231, %p232
    %p234 = pneg %p233
    // Predicated region
    $region33: #{cam_forward.9} parent=5 // pred_check
      _
    $region34: #{cam_forward.9} parent=5 // pred_check_branch
      %236 = sbr.rel (%p233) target = $region36
    $region35: #{cam_forward.9} parent=5 // pred_region
      %s237 = ssub.s32 %s10, 1
      %s238 = smul.u32 8, %s21
      %p239 = scmp.lt.s32.totalorder %s20, 1
      %s240 = scalar_select %p239, %s20, 1
      %p241 = scmp.lt.s32.totalorder %s238, 23
      %s242 = scalar_select %p241, %s238, 23
      %s243 = smul.addr %s242, 3
      %s244 = smul.addr %s240, 72
      %s245 = sadd.s32 %s243, %s244
      %s246 = smul.addr %s245, 4
      %s247 = scalar_lea.vmem %s0, %s246
      %p248 = pneg %p57
      %p249 = pneg %p54
      %s250 = sadd.s32 %s21, 1
      %s251 = smul.u32 8, %s250
      %p252 = scmp.lt.s32.totalorder %s20, 1
      %s253 = scalar_select %p252, %s20, 1
      %p254 = scmp.lt.s32.totalorder %s251, 23
      %s255 = scalar_select %p254, %s251, 23
      %s256 = smul.addr %s255, 3
      %s257 = smul.addr %s253, 72
      %s258 = sadd.s32 %s256, %s257
      %s259 = smul.addr %s258, 4
      %s260 = scalar_lea.vmem %s1, %s259
      %p261 = pneg %p87
      %p262 = pneg %p84
      %p263 = scmp.lt.s32.totalorder %s22, 0
      %s264 = scalar_select %p263, %s22, 0
      %s265 = smul.addr %s264, 4
      %s266 = scalar_lea.vmem %s2, %s265
      %p267 = pneg %p113
      %p268 = pneg %p110
      %p269 = scmp.lt.s32.totalorder %s22, 0
      %s270 = scalar_select %p269, %s22, 0
      %s271 = scalar_lea.vmem %s3, %s270
      %p272 = pneg %p139
      %p273 = pneg %p136
      %p274 = pneg %p169
      %p275 = pneg %p166
      %s276 = smul.u32 8, %s21
      %p277 = scmp.lt.s32.totalorder %s20, 1
      %s278 = scalar_select %p277, %s20, 1
      %p279 = scmp.lt.s32.totalorder %s276, 15
      %s280 = scalar_select %p279, %s276, 15
      %p281 = scmp.lt.s32.totalorder %s22, 0
      %s282 = scalar_select %p281, %s22, 0
      %s283 = smul.addr %s280, 2
      %s284 = sadd.s32 %s282, %s283
      %s285 = smul.addr %s278, 32
      %s286 = sadd.s32 %s284, %s285
      %s287 = smul.addr %s286, 4
      %s288 = scalar_lea.vmem %s4, %s287
      %s289 = smul.u32 8, %s21
      %p290 = scmp.lt.s32.totalorder %s20, 1
      %s291 = scalar_select %p290, %s20, 1
      %p292 = scmp.lt.s32.totalorder %s289, 23
      %s293 = scalar_select %p292, %s289, 23
      %s294 = smul.addr %s293, 3
      %s295 = smul.addr %s291, 72
      %s296 = sadd.s32 %s294, %s295
      %s297 = smul.addr %s296, 4
      %s298 = scalar_lea.vmem %s0, %s297
      %s299 = smul.u32 8, %s21
      %s300 = sadd.s32 %s21, 1
      %s301 = smul.u32 8, %s300
      %p302 = scmp.lt.s32.totalorder %s20, 1
      %s303 = scalar_select %p302, %s20, 1
      %p304 = scmp.lt.s32.totalorder %s301, 23
      %s305 = scalar_select %p304, %s301, 23
      %s306 = smul.addr %s305, 3
      %s307 = smul.addr %s303, 72
      %s308 = sadd.s32 %s306, %s307
      %s309 = smul.addr %s308, 4
      %s310 = scalar_lea.vmem %s1, %s309
      %s311 = sadd.s32 %s21, 1
      %s312 = smul.u32 8, %s311
      %p313 = scmp.lt.s32.totalorder %s22, 0
      %s314 = scalar_select %p313, %s22, 0
      %s315 = smul.addr %s314, 4
      %s316 = scalar_lea.vmem %s2, %s315
      %p317 = scmp.lt.s32.totalorder %s22, 0
      %s318 = scalar_select %p317, %s22, 0
      %s319 = scalar_lea.vmem %s3, %s318
      %s320 = smul.u32 8, %s21
      %p321 = scmp.lt.s32.totalorder %s20, 1
      %s322 = scalar_select %p321, %s20, 1
      %p323 = scmp.lt.s32.totalorder %s320, 15
      %s324 = scalar_select %p323, %s320, 15
      %p325 = scmp.lt.s32.totalorder %s22, 0
      %s326 = scalar_select %p325, %s22, 0
      %s327 = smul.addr %s324, 2
      %s328 = sadd.s32 %s326, %s327
      %s329 = smul.addr %s322, 32
      %s330 = sadd.s32 %s328, %s329
      %s331 = smul.addr %s330, 4
      %s332 = scalar_lea.vmem %s4, %s331
      %s333 = smul.u32 8, %s21
      %p335 = scmp.eq.s32.totalorder %s22, 0
      // Predicated region
      $region37: #{cam_forward.9} parent=35 // pred_check
        %p336 = pneg %p335
      $region38: #{cam_forward.9} parent=35 // pred_check_branch
        %338 = sbr.rel (%p336) target = $region40
      $region39: #{cam_forward.9} parent=35 // pred_region
        %v339 = vld [vmem:[%s298] sm:$0xf]
        %v340 = vld [vmem:[%s298 + $0x4] sm:$0xf]
        %v341 = vld [vmem:[%s298 + $0x8] sm:$0x3]
        %v342 = vld [vmem:[%s298 + $0xc] sm:$0xf]
        %v343 = vld [vmem:[%s298 + $0x10] sm:$0xf]
        %v344 = vld [vmem:[%s298 + $0x14] sm:$0x3]
        %v345 = vld [vmem:[%s298 + $0x18] sm:$0xf]
        %v346 = vld [vmem:[%s298 + $0x1c] sm:$0xf]
        %v347 = vld [vmem:[%s298 + $0x20] sm:$0x3]
        %v348 = vld [vmem:[%s298 + $0x24] sm:$0xf]
        %v349 = vld [vmem:[%s298 + $0x28] sm:$0xf]
        %v350 = vld [vmem:[%s298 + $0x2c] sm:$0x3]
        %v351 = vld [vmem:[%s298 + $0x30] sm:$0xf]
        %v352 = vld [vmem:[%s298 + $0x34] sm:$0xf]
        %v353 = vld [vmem:[%s298 + $0x38] sm:$0x3]
        %v354 = vld [vmem:[%s298 + $0x3c] sm:$0xf]
        %v355 = vld [vmem:[%s298 + $0x40] sm:$0xf]
        %v356 = vld [vmem:[%s298 + $0x44] sm:$0x3]
        %v357 = vld [vmem:[%s298 + $0x48] sm:$0xf]
        %v358 = vld [vmem:[%s298 + $0x4c] sm:$0xf]
        %v359 = vld [vmem:[%s298 + $0x50] sm:$0x3]
        %v360 = vld [vmem:[%s298 + $0x54] sm:$0xf]
        %v361 = vld [vmem:[%s298 + $0x58] sm:$0xf]
        %v362 = vld [vmem:[%s298 + $0x5c] sm:$0x3]
        %v363 = vld [vmem:[%s310] sm:$0xf]
        %v364 = vld [vmem:[%s310 + $0x4] sm:$0xf]
        %v365 = vld [vmem:[%s310 + $0x8] sm:$0x3]
        %v366 = vld [vmem:[%s310 + $0xc] sm:$0xf]
        %v367 = vld [vmem:[%s310 + $0x10] sm:$0xf]
        %v368 = vld [vmem:[%s310 + $0x14] sm:$0x3]
        %v369 = vld [vmem:[%s310 + $0x18] sm:$0xf]
        %v370 = vld [vmem:[%s310 + $0x1c] sm:$0xf]
        %v371 = vld [vmem:[%s310 + $0x20] sm:$0x3]
        %v372 = vld [vmem:[%s310 + $0x24] sm:$0xf]
        %v373 = vld [vmem:[%s310 + $0x28] sm:$0xf]
        %v374 = vld [vmem:[%s310 + $0x2c] sm:$0x3]
        %v391 = vunpack.c.l.b16 %v339
        %v392 = vunpack.c.l.b16 %v340
        %v393 = vunpack.c.l.b16 %v342
        %v394 = vunpack.c.l.b16 %v343
        %v395 = vunpack.c.l.b16 %v345
        %v396 = vunpack.c.l.b16 %v346
        %v397 = vunpack.c.l.b16 %v348
        %v398 = vunpack.c.l.b16 %v349
        %v399 = vunpack.c.l.b16 %v351
        %v400 = vunpack.c.l.b16 %v352
        %v401 = vunpack.c.l.b16 %v354
        %v402 = vunpack.c.l.b16 %v355
        %v403 = vunpack.c.l.b16 %v357
        %v404 = vunpack.c.l.b16 %v358
        %v405 = vunpack.c.l.b16 %v360
        %v406 = vunpack.c.l.b16 %v361
        %v407 = vpack.c.b16 %v392, %v391
        %v408 = vpack.c.b16 %v394, %v393
        %v409 = vpack.c.b16 %v396, %v395
        %v410 = vpack.c.b16 %v398, %v397
        %v411 = vpack.c.b16 %v400, %v399
        %v412 = vpack.c.b16 %v402, %v401
        %v413 = vpack.c.b16 %v404, %v403
        %v414 = vpack.c.b16 %v406, %v405
        %v423 = vunpack.c.l.b16 %v341
        %v424 = vunpack.c.l.b16 %v344
        %v425 = vunpack.c.l.b16 %v347
        %v426 = vunpack.c.l.b16 %v350
        %v427 = vunpack.c.l.b16 %v353
        %v428 = vunpack.c.l.b16 %v356
        %v429 = vunpack.c.l.b16 %v359
        %v430 = vunpack.c.l.b16 %v362
        %v431 = vpack.c.b16 %v423, %v423
        %v432 = vpack.c.b16 %v424, %v424
        %v433 = vpack.c.b16 %v425, %v425
        %v434 = vpack.c.b16 %v426, %v426
        %v435 = vpack.c.b16 %v427, %v427
        %v436 = vpack.c.b16 %v428, %v428
        %v437 = vpack.c.b16 %v429, %v429
        %v438 = vpack.c.b16 %v430, %v430
        %vm439 = vcmask 1046528
        %v440 = vrot.slane %v407, 1
        %v441 = vrot.slane %v431, 1
        %v442 = vsel %vm439, %v440, %v441
        %v443 = vrot.slane %v408, 1
        %v444 = vrot.slane %v432, 1
        %v445 = vsel %vm439, %v443, %v444
        %v446 = vrot.slane %v409, 1
        %v447 = vrot.slane %v433, 1
        %v448 = vsel %vm439, %v446, %v447
        %v449 = vrot.slane %v410, 1
        %v450 = vrot.slane %v434, 1
        %v451 = vsel %vm439, %v449, %v450
        %v452 = vrot.slane %v411, 1
        %v453 = vrot.slane %v435, 1
        %v454 = vsel %vm439, %v452, %v453
        %v455 = vrot.slane %v412, 1
        %v456 = vrot.slane %v436, 1
        %v457 = vsel %vm439, %v455, %v456
        %v458 = vrot.slane %v413, 1
        %v459 = vrot.slane %v437, 1
        %v460 = vsel %vm439, %v458, %v459
        %v461 = vrot.slane %v414, 1
        %v462 = vrot.slane %v438, 1
        %v463 = vsel %vm439, %v461, %v462
        %464 = vrot.lane.b32.xlu0 %v442, 8
        %v465 = vpop.permute.xlu0 %464
        %466 = vrot.lane.b32.xlu0 %v445, 8
        %v467 = vpop.permute.xlu0 %466
        %468 = vrot.lane.b32.xlu0 %v448, 8
        %v469 = vpop.permute.xlu0 %468
        %470 = vrot.lane.b32.xlu0 %v451, 8
        %v471 = vpop.permute.xlu0 %470
        %472 = vrot.lane.b32.xlu0 %v454, 8
        %v473 = vpop.permute.xlu0 %472
        %474 = vrot.lane.b32.xlu0 %v457, 8
        %v475 = vpop.permute.xlu0 %474
        %476 = vrot.lane.b32.xlu0 %v460, 8
        %v477 = vpop.permute.xlu0 %476
        %478 = vrot.lane.b32.xlu0 %v463, 8
        %v479 = vpop.permute.xlu0 %478
        %vm480 = vcmask 1045504
        %v481 = vrot.slane %v407, 2
        %v482 = vrot.slane %v431, 2
        %v483 = vsel %vm480, %v481, %v482
        %v484 = vrot.slane %v408, 2
        %v485 = vrot.slane %v432, 2
        %v486 = vsel %vm480, %v484, %v485
        %v487 = vrot.slane %v409, 2
        %v488 = vrot.slane %v433, 2
        %v489 = vsel %vm480, %v487, %v488
        %v490 = vrot.slane %v410, 2
        %v491 = vrot.slane %v434, 2
        %v492 = vsel %vm480, %v490, %v491
        %v493 = vrot.slane %v411, 2
        %v494 = vrot.slane %v435, 2
        %v495 = vsel %vm480, %v493, %v494
        %v496 = vrot.slane %v412, 2
        %v497 = vrot.slane %v436, 2
        %v498 = vsel %vm480, %v496, %v497
        %v499 = vrot.slane %v413, 2
        %v500 = vrot.slane %v437, 2
        %v501 = vsel %vm480, %v499, %v500
        %v502 = vrot.slane %v414, 2
        %v503 = vrot.slane %v438, 2
        %v504 = vsel %vm480, %v502, %v503
        %505 = vrot.lane.b32.xlu0 %v483, 16
        %v506 = vpop.permute.xlu0 %505
        %507 = vrot.lane.b32.xlu0 %v486, 16
        %v508 = vpop.permute.xlu0 %507
        %509 = vrot.lane.b32.xlu0 %v489, 16
        %v510 = vpop.permute.xlu0 %509
        %511 = vrot.lane.b32.xlu0 %v492, 16
        %v512 = vpop.permute.xlu0 %511
        %513 = vrot.lane.b32.xlu0 %v495, 16
        %v514 = vpop.permute.xlu0 %513
        %515 = vrot.lane.b32.xlu0 %v498, 16
        %v516 = vpop.permute.xlu0 %515
        %517 = vrot.lane.b32.xlu0 %v501, 16
        %v518 = vpop.permute.xlu0 %517
        %519 = vrot.lane.b32.xlu0 %v504, 16
        %v520 = vpop.permute.xlu0 %519
        %v525 = vunpack.c.l.b16 %v363
        %v526 = vunpack.c.l.b16 %v364
        %v527 = vunpack.c.l.b16 %v366
        %v528 = vunpack.c.l.b16 %v367
        %v529 = vpack.c.b16 %v526, %v525
        %v530 = vpack.c.b16 %v528, %v527
        %531 = vrot.lane.b32.xlu0 %v409, 24
        %v532 = vpop.permute.xlu0 %531
        %533 = vrot.lane.b32.xlu0 %v410, 24
        %v534 = vpop.permute.xlu0 %533
        %535 = vrot.lane.b32.xlu0 %v411, 24
        %v536 = vpop.permute.xlu0 %535
        %537 = vrot.lane.b32.xlu0 %v412, 24
        %v538 = vpop.permute.xlu0 %537
        %539 = vrot.lane.b32.xlu0 %v413, 24
        %v540 = vpop.permute.xlu0 %539
        %541 = vrot.lane.b32.xlu0 %v414, 24
        %v542 = vpop.permute.xlu0 %541
        %543 = vrot.lane.b32.xlu0 %v529, 24
        %v544 = vpop.permute.xlu0 %543
        %545 = vrot.lane.b32.xlu0 %v530, 24
        %v546 = vpop.permute.xlu0 %545
        %v549 = vunpack.c.l.b16 %v365
        %v550 = vunpack.c.l.b16 %v368
        %v551 = vpack.c.b16 %v549, %v549
        %v552 = vpack.c.b16 %v550, %v550
        %v553 = vrot.slane %v529, 1
        %v554 = vrot.slane %v551, 1
        %v555 = vsel %vm439, %v553, %v554
        %v556 = vrot.slane %v530, 1
        %v557 = vrot.slane %v552, 1
        %v558 = vsel %vm439, %v556, %v557
        %559 = vrot.lane.b32.xlu0 %v448, 32
        %v560 = vpop.permute.xlu0 %559
        %561 = vrot.lane.b32.xlu0 %v451, 32
        %v562 = vpop.permute.xlu0 %561
        %563 = vrot.lane.b32.xlu0 %v454, 32
        %v564 = vpop.permute.xlu0 %563
        %565 = vrot.lane.b32.xlu0 %v457, 32
        %v566 = vpop.permute.xlu0 %565
        %567 = vrot.lane.b32.xlu0 %v460, 32
        %v568 = vpop.permute.xlu0 %567
        %569 = vrot.lane.b32.xlu0 %v463, 32
        %v570 = vpop.permute.xlu0 %569
        %571 = vrot.lane.b32.xlu0 %v555, 32
        %v572 = vpop.permute.xlu0 %571
        %573 = vrot.lane.b32.xlu0 %v558, 32
        %v574 = vpop.permute.xlu0 %573
        %v575 = vrot.slane %v529, 2
        %v576 = vrot.slane %v551, 2
        %v577 = vsel %vm480, %v575, %v576
        %v578 = vrot.slane %v530, 2
        %v579 = vrot.slane %v552, 2
        %v580 = vsel %vm480, %v578, %v579
        %581 = vrot.lane.b32.xlu0 %v489, 40
        %v582 = vpop.permute.xlu0 %581
        %583 = vrot.lane.b32.xlu0 %v492, 40
        %v584 = vpop.permute.xlu0 %583
        %585 = vrot.lane.b32.xlu0 %v495, 40
        %v586 = vpop.permute.xlu0 %585
        %587 = vrot.lane.b32.xlu0 %v498, 40
        %v588 = vpop.permute.xlu0 %587
        %589 = vrot.lane.b32.xlu0 %v501, 40
        %v590 = vpop.permute.xlu0 %589
        %591 = vrot.lane.b32.xlu0 %v504, 40
        %v592 = vpop.permute.xlu0 %591
        %593 = vrot.lane.b32.xlu0 %v577, 40
        %v594 = vpop.permute.xlu0 %593
        %595 = vrot.lane.b32.xlu0 %v580, 40
        %v596 = vpop.permute.xlu0 %595
        %v601 = vunpack.c.l.b16 %v369
        %v602 = vunpack.c.l.b16 %v370
        %v603 = vunpack.c.l.b16 %v372
        %v604 = vunpack.c.l.b16 %v373
        %v605 = vpack.c.b16 %v602, %v601
        %v606 = vpack.c.b16 %v604, %v603
        %607 = vrot.lane.b32.xlu0 %v411, 48
        %v608 = vpop.permute.xlu0 %607
        %609 = vrot.lane.b32.xlu0 %v412, 48
        %v610 = vpop.permute.xlu0 %609
        %611 = vrot.lane.b32.xlu0 %v413, 48
        %v612 = vpop.permute.xlu0 %611
        %613 = vrot.lane.b32.xlu0 %v414, 48
        %v614 = vpop.permute.xlu0 %613
        %615 = vrot.lane.b32.xlu0 %v529, 48
        %v616 = vpop.permute.xlu0 %615
        %617 = vrot.lane.b32.xlu0 %v530, 48
        %v618 = vpop.permute.xlu0 %617
        %619 = vrot.lane.b32.xlu0 %v605, 48
        %v620 = vpop.permute.xlu0 %619
        %621 = vrot.lane.b32.xlu0 %v606, 48
        %v622 = vpop.permute.xlu0 %621
        %v625 = vunpack.c.l.b16 %v371
        %v626 = vunpack.c.l.b16 %v374
        %v627 = vpack.c.b16 %v625, %v625
        %v628 = vpack.c.b16 %v626, %v626
        %v629 = vrot.slane %v605, 1
        %v630 = vrot.slane %v627, 1
        %v631 = vsel %vm439, %v629, %v630
        %v632 = vrot.slane %v606, 1
        %v633 = vrot.slane %v628, 1
        %v634 = vsel %vm439, %v632, %v633
        %635 = vrot.lane.b32.xlu0 %v454, 56
        %v636 = vpop.permute.xlu0 %635
        %637 = vrot.lane.b32.xlu0 %v457, 56
        %v638 = vpop.permute.xlu0 %637
        %639 = vrot.lane.b32.xlu0 %v460, 56
        %v640 = vpop.permute.xlu0 %639
        %641 = vrot.lane.b32.xlu0 %v463, 56
        %v642 = vpop.permute.xlu0 %641
        %643 = vrot.lane.b32.xlu0 %v555, 56
        %v644 = vpop.permute.xlu0 %643
        %645 = vrot.lane.b32.xlu0 %v558, 56
        %v646 = vpop.permute.xlu0 %645
        %647 = vrot.lane.b32.xlu0 %v631, 56
        %v648 = vpop.permute.xlu0 %647
        %649 = vrot.lane.b32.xlu0 %v634, 56
        %v650 = vpop.permute.xlu0 %649
        %v651 = vrot.slane %v605, 2
        %v652 = vrot.slane %v627, 2
        %v653 = vsel %vm480, %v651, %v652
        %v654 = vrot.slane %v606, 2
        %v655 = vrot.slane %v628, 2
        %v656 = vsel %vm480, %v654, %v655
        %657 = vrot.lane.b32.xlu0 %v495, 64
        %v658 = vpop.permute.xlu0 %657
        %659 = vrot.lane.b32.xlu0 %v498, 64
        %v660 = vpop.permute.xlu0 %659
        %661 = vrot.lane.b32.xlu0 %v501, 64
        %v662 = vpop.permute.xlu0 %661
        %663 = vrot.lane.b32.xlu0 %v504, 64
        %v664 = vpop.permute.xlu0 %663
        %665 = vrot.lane.b32.xlu0 %v577, 64
        %v666 = vpop.permute.xlu0 %665
        %667 = vrot.lane.b32.xlu0 %v580, 64
        %v668 = vpop.permute.xlu0 %667
        %669 = vrot.lane.b32.xlu0 %v653, 64
        %v670 = vpop.permute.xlu0 %669
        %671 = vrot.lane.b32.xlu0 %v656, 64
        %v672 = vpop.permute.xlu0 %671
        %vm673 = vcmask 64512
        %v676 = vsel %vm673, %v407, %v465
        %v679 = vsel %vm673, %v408, %v467
        %v682 = vsel %vm673, %v409, %v469
        %v685 = vsel %vm673, %v410, %v471
        %v688 = vsel %vm673, %v411, %v473
        %v691 = vsel %vm673, %v412, %v475
        %v694 = vsel %vm673, %v413, %v477
        %v697 = vsel %vm673, %v414, %v479
        %vm698 = vcmask 130048
        %v700 = vsel %vm698, %v676, %v506
        %v702 = vsel %vm698, %v679, %v508
        %v704 = vsel %vm698, %v682, %v510
        %v706 = vsel %vm698, %v685, %v512
        %v708 = vsel %vm698, %v688, %v514
        %v710 = vsel %vm698, %v691, %v516
        %v712 = vsel %vm698, %v694, %v518
        %v714 = vsel %vm698, %v697, %v520
        %vm715 = vcmask 195584
        %v717 = vsel %vm715, %v700, %v532
        %v719 = vsel %vm715, %v702, %v534
        %v721 = vsel %vm715, %v704, %v536
        %v723 = vsel %vm715, %v706, %v538
        %v725 = vsel %vm715, %v708, %v540
        %v727 = vsel %vm715, %v710, %v542
        %v729 = vsel %vm715, %v712, %v544
        %v731 = vsel %vm715, %v714, %v546
        %vm732 = vcmask 261120
        %v734 = vsel %vm732, %v717, %v560
        %v736 = vsel %vm732, %v719, %v562
        %v738 = vsel %vm732, %v721, %v564
        %v740 = vsel %vm732, %v723, %v566
        %v742 = vsel %vm732, %v725, %v568
        %v744 = vsel %vm732, %v727, %v570
        %v746 = vsel %vm732, %v729, %v572
        %v748 = vsel %vm732, %v731, %v574
        %vm749 = vcmask 326656
        %v751 = vsel %vm749, %v734, %v582
        %v753 = vsel %vm749, %v736, %v584
        %v755 = vsel %vm749, %v738, %v586
        %v757 = vsel %vm749, %v740, %v588
        %v759 = vsel %vm749, %v742, %v590
        %v761 = vsel %vm749, %v744, %v592
        %v763 = vsel %vm749, %v746, %v594
        %v765 = vsel %vm749, %v748, %v596
        %vm766 = vcmask 392192
        %v768 = vsel %vm766, %v751, %v608
        %v770 = vsel %vm766, %v753, %v610
        %v772 = vsel %vm766, %v755, %v612
        %v774 = vsel %vm766, %v757, %v614
        %v776 = vsel %vm766, %v759, %v616
        %v778 = vsel %vm766, %v761, %v618
        %v780 = vsel %vm766, %v763, %v620
        %v782 = vsel %vm766, %v765, %v622
        %vm783 = vcmask 457728
        %v785 = vsel %vm783, %v768, %v636
        %v787 = vsel %vm783, %v770, %v638
        %v789 = vsel %vm783, %v772, %v640
        %v791 = vsel %vm783, %v774, %v642
        %v793 = vsel %vm783, %v776, %v644
        %v795 = vsel %vm783, %v778, %v646
        %v797 = vsel %vm783, %v780, %v648
        %v799 = vsel %vm783, %v782, %v650
        %vm800 = vcmask 523264
        %v802 = vsel %vm800, %v785, %v658
        %v804 = vsel %vm800, %v787, %v660
        %v806 = vsel %vm800, %v789, %v662
        %v808 = vsel %vm800, %v791, %v664
        %v810 = vsel %vm800, %v793, %v666
        %v812 = vsel %vm800, %v795, %v668
        %v814 = vsel %vm800, %v797, %v670
        %v816 = vsel %vm800, %v799, %v672
        %v825 = vunpack.c.l.b16 %v802
        %v826 = vunpack.c.h.b16 %v802
        %v827 = vunpack.c.l.b16 %v804
        %v828 = vunpack.c.h.b16 %v804
        %v829 = vunpack.c.l.b16 %v806
        %v830 = vunpack.c.h.b16 %v806
        %v831 = vunpack.c.l.b16 %v808
        %v832 = vunpack.c.h.b16 %v808
        %v833 = vunpack.c.l.b16 %v810
        %v834 = vunpack.c.h.b16 %v810
        %v835 = vunpack.c.l.b16 %v812
        %v836 = vunpack.c.h.b16 %v812
        %v837 = vunpack.c.l.b16 %v814
        %v838 = vunpack.c.h.b16 %v814
        %v839 = vunpack.c.l.b16 %v816
        %v840 = vunpack.c.h.b16 %v816
        %v841 = vpack.c.b16 %v825, %v825
        %v842 = vpack.c.b16 %v826, %v826
        %v843 = vpack.c.b16 %v827, %v827
        %v844 = vpack.c.b16 %v828, %v828
        %v845 = vpack.c.b16 %v829, %v829
        %v846 = vpack.c.b16 %v830, %v830
        %v847 = vpack.c.b16 %v831, %v831
        %v848 = vpack.c.b16 %v832, %v832
        %v849 = vpack.c.b16 %v833, %v833
        %v850 = vpack.c.b16 %v834, %v834
        %v851 = vpack.c.b16 %v835, %v835
        %v852 = vpack.c.b16 %v836, %v836
        %v853 = vpack.c.b16 %v837, %v837
        %v854 = vpack.c.b16 %v838, %v838
        %v855 = vpack.c.b16 %v839, %v839
        %v856 = vpack.c.b16 %v840, %v840
        %vm873 = vcmask 584704
        %874 = vst.msk [vmem:[#allocation2] sm:$0xf] %vm873, %v841
        %875 = vst.msk [vmem:[#allocation2 + $0x4] sm:$0xf] %vm873, %v842
        %876 = vst.msk [vmem:[#allocation2 + $0x8] sm:$0xf] %vm873, %v843
        %877 = vst.msk [vmem:[#allocation2 + $0xc] sm:$0xf] %vm873, %v844
        %878 = vst.msk [vmem:[#allocation2 + $0x10] sm:$0xf] %vm873, %v845
        %879 = vst.msk [vmem:[#allocation2 + $0x14] sm:$0xf] %vm873, %v846
        %880 = vst.msk [vmem:[#allocation2 + $0x18] sm:$0xf] %vm873, %v847
        %881 = vst.msk [vmem:[#allocation2 + $0x1c] sm:$0xf] %vm873, %v848
        %882 = vst.msk [vmem:[#allocation2 + $0x20] sm:$0xf] %vm873, %v849
        %883 = vst.msk [vmem:[#allocation2 + $0x24] sm:$0xf] %vm873, %v850
        %884 = vst.msk [vmem:[#allocation2 + $0x28] sm:$0xf] %vm873, %v851
        %885 = vst.msk [vmem:[#allocation2 + $0x2c] sm:$0xf] %vm873, %v852
        %886 = vst.msk [vmem:[#allocation2 + $0x30] sm:$0xf] %vm873, %v853
        %887 = vst.msk [vmem:[#allocation2 + $0x34] sm:$0xf] %vm873, %v854
        %888 = vst.msk [vmem:[#allocation2 + $0x38] sm:$0xf] %vm873, %v855
        %889 = vst.msk [vmem:[#allocation2 + $0x3c] sm:$0xf] %vm873, %v856
      $region40: #{cam_forward.9} parent=35 // pred_fallthru
        _
      %v890 = vld [vmem:[#allocation2] sm:$0xf]
      %v891 = vld [vmem:[#allocation2 + $0x4] sm:$0xf]
      %v892 = vld [vmem:[#allocation2 + $0x8] sm:$0xf]
      %v893 = vld [vmem:[#allocation2 + $0xc] sm:$0xf]
      %v894 = vld [vmem:[#allocation2 + $0x10] sm:$0xf]
      %v895 = vld [vmem:[#allocation2 + $0x14] sm:$0xf]
      %v896 = vld [vmem:[#allocation2 + $0x18] sm:$0xf]
      %v897 = vld [vmem:[#allocation2 + $0x1c] sm:$0xf]
      %v898 = vld [vmem:[#allocation2 + $0x20] sm:$0xf]
      %v899 = vld [vmem:[#allocation2 + $0x24] sm:$0xf]
      %v900 = vld [vmem:[#allocation2 + $0x28] sm:$0xf]
      %v901 = vld [vmem:[#allocation2 + $0x2c] sm:$0xf]
      %v902 = vld [vmem:[#allocation2 + $0x30] sm:$0xf]
      %v903 = vld [vmem:[#allocation2 + $0x34] sm:$0xf]
      %v904 = vld [vmem:[#allocation2 + $0x38] sm:$0xf]
      %v905 = vld [vmem:[#allocation2 + $0x3c] sm:$0xf]
      %v906 = vld [vmem:[%s316] sm:$0xf]
      %v907 = vld [vmem:[%s316 + $0x4] sm:$0xf]
      %v908 = vld [vmem:[%s316 + $0x8] sm:$0xf]
      %v909 = vld [vmem:[%s316 + $0xc] sm:$0xf]
      %v910 = vld [vmem:[%s316 + $0x10] sm:$0xf]
      %v911 = vld [vmem:[%s316 + $0x14] sm:$0xf]
      %v912 = vld [vmem:[%s316 + $0x18] sm:$0xf]
      %v913 = vld [vmem:[%s316 + $0x1c] sm:$0xf]
      %v914 = vld [vmem:[%s316 + $0x20] sm:$0xf]
      %v915 = vld [vmem:[%s319] sm:$0x1]
      %v917 = vperm.slane %v915, 0
      %v935 = vunpack.c.l.b16 %v890
      %v936 = vunpack.c.l.b16 %v891
      %v937 = vunpack.c.l.b16 %v892
      %v938 = vunpack.c.l.b16 %v893
      %v939 = vunpack.c.l.b16 %v894
      %v940 = vunpack.c.l.b16 %v895
      %v941 = vunpack.c.l.b16 %v896
      %v942 = vunpack.c.l.b16 %v897
      %v943 = vunpack.c.l.b16 %v898
      %v944 = vunpack.c.l.b16 %v899
      %v945 = vunpack.c.l.b16 %v900
      %v946 = vunpack.c.l.b16 %v901
      %v947 = vunpack.c.l.b16 %v902
      %v948 = vunpack.c.l.b16 %v903
      %v949 = vunpack.c.l.b16 %v904
      %v950 = vunpack.c.l.b16 %v905
      %v951 = vpack.c.b16 %v936, %v935
      %v952 = vpack.c.b16 %v938, %v937
      %v953 = vpack.c.b16 %v940, %v939
      %v954 = vpack.c.b16 %v942, %v941
      %v955 = vpack.c.b16 %v944, %v943
      %v956 = vpack.c.b16 %v946, %v945
      %v957 = vpack.c.b16 %v948, %v947
      %v958 = vpack.c.b16 %v950, %v949
      %v968 = vunpack.c.l.b16 %v906
      %v969 = vunpack.c.l.b16 %v907
      %v970 = vunpack.c.l.b16 %v908
      %v971 = vunpack.c.l.b16 %v909
      %v972 = vunpack.c.l.b16 %v910
      %v973 = vunpack.c.l.b16 %v911
      %v974 = vunpack.c.l.b16 %v912
      %v975 = vunpack.c.l.b16 %v913
      %v976 = vunpack.c.l.b16 %v914
      %v977 = vpack.c.b16 %v969, %v968
      %v978 = vpack.c.b16 %v971, %v970
      %v979 = vpack.c.b16 %v973, %v972
      %v980 = vpack.c.b16 %v975, %v974
      %v981 = vpack.c.b16 %v976, %v976
      %vm986 = vcmask 588800
      %v988 = vsel %vm986, %v951, 0
      %v991 = vsel %vm986, %v952, 0
      %v994 = vsel %vm986, %v953, 0
      %v997 = vsel %vm986, %v954, 0
      %v1000 = vsel %vm986, %v955, 0
      %v1003 = vsel %vm986, %v956, 0
      %v1006 = vsel %vm986, %v957, 0
      %v1009 = vsel %vm986, %v958, 0
      %vm1011 = vcmask 1043456
      %v1013 = vsel %vm1011, %v981, 0
      %1015 = vmatpush.bf16.msra.mxu0 0
      %1016 = vmatpush.bf16.msra.mxu0 0
      %1017 = vmatpush.bf16.msra.mxu0 0
      %1018 = vmatpush.bf16.msra.mxu0 %v1013
      %1019 = vmatpush.bf16.msra.mxu0 %v980
      %1020 = vmatpush.bf16.msra.mxu0 %v979
      %1021 = vmatpush.bf16.msra.mxu0 %v978
      %1022 = vmatpush.bf16.msra.mxu0 %v977
      %1023 = vmatmul.bf16.gmra.mxu0 %v988
      %v1024 = vpop.f32.mrf.mxu0
      %v1025 = vadd.f32 %v917, %v1024
      %v1026 = vpop.f32.mrf.mxu0
      %v1027 = vadd.f32 %v917, %v1026
      %1028 = vmatmul.bf16.gmra.mxu0 %v991
      %v1029 = vpop.f32.mrf.mxu0
      %v1030 = vadd.f32 %v917, %v1029
      %v1031 = vpop.f32.mrf.mxu0
      %v1032 = vadd.f32 %v917, %v1031
      %1033 = vmatmul.bf16.gmra.mxu0 %v994
      %v1034 = vpop.f32.mrf.mxu0
      %v1035 = vadd.f32 %v917, %v1034
      %v1036 = vpop.f32.mrf.mxu0
      %v1037 = vadd.f32 %v917, %v1036
      %1038 = vmatmul.bf16.gmra.mxu0 %v997
      %v1039 = vpop.f32.mrf.mxu0
      %v1040 = vadd.f32 %v917, %v1039
      %v1041 = vpop.f32.mrf.mxu0
      %v1042 = vadd.f32 %v917, %v1041
      %1043 = vmatmul.bf16.gmra.mxu0 %v1000
      %v1044 = vpop.f32.mrf.mxu0
      %v1045 = vadd.f32 %v917, %v1044
      %v1046 = vpop.f32.mrf.mxu0
      %v1047 = vadd.f32 %v917, %v1046
      %1048 = vmatmul.bf16.gmra.mxu0 %v1003
      %v1049 = vpop.f32.mrf.mxu0
      %v1050 = vadd.f32 %v917, %v1049
      %v1051 = vpop.f32.mrf.mxu0
      %v1052 = vadd.f32 %v917, %v1051
      %1053 = vmatmul.bf16.gmra.mxu0 %v1006
      %v1054 = vpop.f32.mrf.mxu0
      %v1055 = vadd.f32 %v917, %v1054
      %v1056 = vpop.f32.mrf.mxu0
      %v1057 = vadd.f32 %v917, %v1056
      %1058 = vmatmul.bf16.gmra.mxu0 %v1009
      %v1059 = vpop.f32.mrf.mxu0
      %v1060 = vadd.f32 %v917, %v1059
      %v1061 = vpop.f32.mrf.mxu0
      %v1062 = vadd.f32 %v917, %v1061
      %1063 = vdwg.mxu0
      %v1064 = vmax.f32 %v1025, 0.0
      %v1065 = vmax.f32 %v1027, 0.0
      %v1066 = vmax.f32 %v1030, 0.0
      %v1067 = vmax.f32 %v1032, 0.0
      %v1068 = vmax.f32 %v1035, 0.0
      %v1069 = vmax.f32 %v1037, 0.0
      %v1070 = vmax.f32 %v1040, 0.0
      %v1071 = vmax.f32 %v1042, 0.0
      %v1072 = vmax.f32 %v1045, 0.0
      %v1073 = vmax.f32 %v1047, 0.0
      %v1074 = vmax.f32 %v1050, 0.0
      %v1075 = vmax.f32 %v1052, 0.0
      %v1076 = vmax.f32 %v1055, 0.0
      %v1077 = vmax.f32 %v1057, 0.0
      %v1078 = vmax.f32 %v1060, 0.0
      %v1079 = vmax.f32 %v1062, 0.0
      %v1080 = vpack.c.bf16 %v1064, %v1064
      %v1081 = vpack.c.bf16 %v1065, %v1065
      %v1082 = vpack.c.bf16 %v1066, %v1066
      %v1083 = vpack.c.bf16 %v1067, %v1067
      %v1084 = vpack.c.bf16 %v1068, %v1068
      %v1085 = vpack.c.bf16 %v1069, %v1069
      %v1086 = vpack.c.bf16 %v1070, %v1070
      %v1087 = vpack.c.bf16 %v1071, %v1071
      %v1088 = vpack.c.bf16 %v1072, %v1072
      %v1089 = vpack.c.bf16 %v1073, %v1073
      %v1090 = vpack.c.bf16 %v1074, %v1074
      %v1091 = vpack.c.bf16 %v1075, %v1075
      %v1092 = vpack.c.bf16 %v1076, %v1076
      %v1093 = vpack.c.bf16 %v1077, %v1077
      %v1094 = vpack.c.bf16 %v1078, %v1078
      %v1095 = vpack.c.bf16 %v1079, %v1079
      %1096 = vst [vmem:[%s332] sm:$0xf] %v1080
      %1097 = vst [vmem:[%s332 + $0x4] sm:$0xf] %v1081
      %1098 = vst [vmem:[%s332 + $0x8] sm:$0xf] %v1082
      %1099 = vst [vmem:[%s332 + $0xc] sm:$0xf] %v1083
      %1100 = vst [vmem:[%s332 + $0x10] sm:$0xf] %v1084
      %1101 = vst [vmem:[%s332 + $0x14] sm:$0xf] %v1085
      %1102 = vst [vmem:[%s332 + $0x18] sm:$0xf] %v1086
      %1103 = vst [vmem:[%s332 + $0x1c] sm:$0xf] %v1087
      %1104 = vst [vmem:[%s332 + $0x20] sm:$0xf] %v1088
      %1105 = vst [vmem:[%s332 + $0x24] sm:$0xf] %v1089
      %1106 = vst [vmem:[%s332 + $0x28] sm:$0xf] %v1090
      %1107 = vst [vmem:[%s332 + $0x2c] sm:$0xf] %v1091
      %1108 = vst [vmem:[%s332 + $0x30] sm:$0xf] %v1092
      %1109 = vst [vmem:[%s332 + $0x34] sm:$0xf] %v1093
      %1110 = vst [vmem:[%s332 + $0x38] sm:$0xf] %v1094
      %1111 = vst [vmem:[%s332 + $0x3c] sm:$0xf] %v1095
      %s1112 = smul.u32 8, %s21
      %p1113 = scmp.lt.s32.totalorder %s20, 1
      %s1114 = scalar_select %p1113, %s20, 1
      %p1115 = scmp.lt.s32.totalorder %s1112, 15
      %s1116 = scalar_select %p1115, %s1112, 15
      %p1117 = scmp.lt.s32.totalorder %s22, 0
      %s1118 = scalar_select %p1117, %s22, 0
      %s1119 = smul.addr %s1116, 2
      %s1120 = sadd.s32 %s1118, %s1119
      %s1121 = smul.addr %s1114, 32
      %s1122 = sadd.s32 %s1120, %s1121
      %s1123 = smul.addr %s1122, 4
      %s1124 = scalar_lea.vmem %s4, %s1123
      // Predicated region
      $region41: #{cam_forward.9} parent=35 // pred_check
        %p1125 = pneg %p166
      $region42: #{cam_forward.9} parent=35 // pred_check_branch
        %1127 = sbr.rel (%p1125) target = $region44
      $region43: #{cam_forward.9} parent=35 // pred_region
        %s1128 = smul.u32 8, %s21
      $region44: #{cam_forward.9} parent=35 // pred_fallthru
        _
    $region36: #{cam_forward.9} parent=5 // pred_fallthru
      _
    %p1129 = scmp.le.s32.totalorder 2, %s10
    // Predicated region
    $region45: #{cam_forward.9} parent=5 // pred_check
      %p1130 = pneg %p1129
    $region46: #{cam_forward.9} parent=5 // pred_check_branch
      %1132 = sbr.rel (%p1130) target = $region48
    $region47: #{cam_forward.9} parent=5 // pred_region
      %s1133 = ssub.s32 %s10, 2
      // Predicated region
      $region49: #{cam_forward.9} parent=47 // pred_check
        %p1134 = pneg %p172
      $region50: #{cam_forward.9} parent=47 // pred_check_branch
        %1136 = sbr.rel (%p1134) target = $region52
      $region51: #{cam_forward.9} parent=47 // pred_region
        %s1137 = smul.u32 8, %s24
        %p1138 = scmp.lt.s32.totalorder %s23, 1
        %s1139 = scalar_select %p1138, %s23, 1
        %p1140 = scmp.lt.s32.totalorder %s1137, 15
        %s1141 = scalar_select %p1140, %s1137, 15
        %p1142 = scmp.lt.s32.totalorder %s25, 0
        %s1143 = scalar_select %p1142, %s25, 0
        %s1144 = smul.addr %s1141, 2
        %s1145 = sadd.s32 %s1143, %s1144
        %s1146 = smul.addr %s1139, 32
        %s1147 = sadd.s32 %s1145, %s1146
        %s1148 = smul.addr %s1147, 4
        %s1149 = scalar_lea.vmem %s4, %s1148
      $region52: #{cam_forward.9} parent=47 // pred_fallthru
        _
    $region48: #{cam_forward.9} parent=5 // pred_fallthru
      _
  $region6: #{cam_forward.9} parent=0 // loop_footer
    %s14 = sadd.s32 1, %s10
  $region7: #{cam_forward.9} parent=0 // loop_footer_branch
    %9 = sbr.rel target = $region3
  $region8: #{cam_forward.9} parent=0 // loop_exit
    _

// kernel: cam_forward.10
$region0: #{cam_forward.10}
  #allocation0 [shape = 'u32[]', space=smem, size = 0x4, offset = 0x4, fixed_abs, tag = 'smem constant byte address 0x4 - core index']
  #allocation1 [shape = 'u32[72,128]{1,0:T(1,128)}', space=vmem, size = 0x9000, scoped, tag = 'internal scratch']
  #allocation2 [shape = 'bf16[128,72]{1,0:T(8,128)(2,1)}', space=vmem, size = 0x8000, scoped, tag = 'scratch operand']
  %s0 = inlined_call_operand.vmem [shape: bf16[2,24,22,8], index: 0, kind: input, shape index: {}, may-alias: {0,1}]
  %s1 = inlined_call_operand.vmem [shape: bf16[2,24,22,8], index: 1, kind: input, shape index: {}, may-alias: {0,1}]
  %s2 = inlined_call_operand.vmem [shape: bf16[72,128], index: 2, kind: input, shape index: {}]
  %s3 = inlined_call_operand.vmem [shape: f32[1,128], index: 3, kind: input, shape index: {}]
  %s4 = inlined_call_operand.vmem [shape: bf16[2,16,16,128], index: 4, kind: output, shape index: {}]
  %s5 = sld [smem:[#allocation0]]
  $region53: #{cam_forward.10} parent=0
    _
  %s7 = ssub.s32 1, %s5
  %s8 = scalar_select 0, %s7, %s5
  loop: start=0, step=1, limit=6
  $region2: #{cam_forward.10} parent=0 // loop_pre_header
    _
  $region3: #{cam_forward.10} parent=0 // loop_header
    %s10 = sphi 0, %s14
    %p11 = scmp.ge.s32.totalorder %s10, 6
    %s17 = sphi 0, %s36
    %s18 = sphi 0, %s32
    %s19 = sphi 0, %s28
    %s20 = sphi 0, %s17
    %s21 = sphi 0, %s18
    %s22 = sphi 0, %s19
    %s23 = sphi 0, %s20
    %s24 = sphi 0, %s21
    %s25 = sphi 0, %s22
    %s41 = sphi 0, %s43
    %s44 = sphi 0, %s41
    %s45 = sphi 0, %s44
    %s61 = sphi 0, %s45
    %s71 = sphi 0, %s73
    %s74 = sphi 0, %s71
    %s75 = sphi 0, %s74
    %s91 = sphi 0, %s75
    %s97 = sphi 0, %s99
    %s100 = sphi 0, %s97
    %s101 = sphi 0, %s100
    %s117 = sphi 0, %s101
    %s123 = sphi 0, %s125
    %s126 = sphi 0, %s123
    %s127 = sphi 0, %s126
    %s143 = sphi 0, %s127
    %s153 = sphi 0, %s155
    %s156 = sphi 0, %s153
    %s157 = sphi 0, %s156
    %s173 = sphi 0, %s157
  $region4: #{cam_forward.10} parent=0 // loop_header_branch
    %13 = sbr.rel (%p11) target = $region8
  $region5: #{cam_forward.10} parent=0 // loop_body
    %s15 = ssub.s32 %s10, 1
    %s16 = ssub.s32 %s10, 2
    %s26 = sadd.s32 1, %s19
    %p27 = scmp.ge.s32.totalorder %s26, 1
    %s28 = scalar_select %p27, 0, %s26
    %s29 = sadd.s32 1, %s18
    %s30 = scalar_select %p27, %s29, %s18
    %p31 = scmp.ge.s32.totalorder %s30, 2
    %s32 = scalar_select %p31, 0, %s30
    %s33 = sadd.s32 1, %s17
    %s34 = scalar_select %p31, %s33, %s17
    %p35 = scmp.ge.s32.totalorder %s34, 2
    %s36 = scalar_select %p35, 0, %s34
    %s37 = ssub.s32 %s17, %s36
    %s38 = ssub.s32 %s18, %s32
    %s39 = sor.u32 %s37, %s38
    %p40 = scmp.eq.s32.totalorder %s39, 0
    %s42 = sadd.s32 %s41, 1
    %s43 = scalar_select %p40, %s41, %s42
    %p46 = pneg %p40
    %p47 = scmp.eq.s32.totalorder %s10, 3
    %p48 = por %p46, %p47
    %p49 = scmp.ne.s32.totalorder %s41, %s44
    %p50 = scmp.eq.s32.totalorder %s10, 0
    %p51 = por %p49, %p50
    %p52 = scmp.ne.s32.totalorder %s41, %s44
    %p53 = scmp.eq.s32.totalorder %s15, 3
    %p54 = por %p52, %p53
    %p55 = scmp.ne.s32.totalorder %s44, %s45
    %p56 = scmp.eq.s32.totalorder %s15, 0
    %p57 = por %p55, %p56
    %p58 = scmp.ne.s32.totalorder %s44, %s45
    %p59 = scmp.eq.s32.totalorder %s16, 3
    %p60 = por %p58, %p59
    %p62 = scmp.ne.s32.totalorder %s45, %s61
    %p63 = scmp.eq.s32.totalorder %s16, 0
    %p64 = por %p62, %p63
    %s65 = sadd.s32 %s18, 1
    %s66 = sadd.s32 %s32, 1
    %s67 = ssub.s32 %s17, %s36
    %s68 = ssub.s32 %s65, %s66
    %s69 = sor.u32 %s67, %s68
    %p70 = scmp.eq.s32.totalorder %s69, 0
    %s72 = sadd.s32 %s71, 1
    %s73 = scalar_select %p70, %s71, %s72
    %p76 = pneg %p70
    %p77 = scmp.eq.s32.totalorder %s10, 3
    %p78 = por %p76, %p77
    %p79 = scmp.ne.s32.totalorder %s71, %s74
    %p80 = scmp.eq.s32.totalorder %s10, 0
    %p81 = por %p79, %p80
    %p82 = scmp.ne.s32.totalorder %s71, %s74
    %p83 = scmp.eq.s32.totalorder %s15, 3
    %p84 = por %p82, %p83
    %p85 = scmp.ne.s32.totalorder %s74, %s75
    %p86 = scmp.eq.s32.totalorder %s15, 0
    %p87 = por %p85, %p86
    %p88 = scmp.ne.s32.totalorder %s74, %s75
    %p89 = scmp.eq.s32.totalorder %s16, 3
    %p90 = por %p88, %p89
    %p92 = scmp.ne.s32.totalorder %s75, %s91
    %p93 = scmp.eq.s32.totalorder %s16, 0
    %p94 = por %p92, %p93
    %s95 = ssub.s32 %s19, %s28
    %p96 = scmp.eq.s32.totalorder %s95, 0
    %s98 = sadd.s32 %s97, 1
    %s99 = scalar_select %p96, %s97, %s98
    %p102 = pneg %p96
    %p103 = scmp.eq.s32.totalorder %s10, 3
    %p104 = por %p102, %p103
    %p105 = scmp.ne.s32.totalorder %s97, %s100
    %p106 = scmp.eq.s32.totalorder %s10, 0
    %p107 = por %p105, %p106
    %p108 = scmp.ne.s32.totalorder %s97, %s100
    %p109 = scmp.eq.s32.totalorder %s15, 3
    %p110 = por %p108, %p109
    %p111 = scmp.ne.s32.totalorder %s100, %s101
    %p112 = scmp.eq.s32.totalorder %s15, 0
    %p113 = por %p111, %p112
    %p114 = scmp.ne.s32.totalorder %s100, %s101
    %p115 = scmp.eq.s32.totalorder %s16, 3
    %p116 = por %p114, %p115
    %p118 = scmp.ne.s32.totalorder %s101, %s117
    %p119 = scmp.eq.s32.totalorder %s16, 0
    %p120 = por %p118, %p119
    %s121 = ssub.s32 %s19, %s28
    %p122 = scmp.eq.s32.totalorder %s121, 0
    %s124 = sadd.s32 %s123, 1
    %s125 = scalar_select %p122, %s123, %s124
    %p128 = pneg %p122
    %p129 = scmp.eq.s32.totalorder %s10, 3
    %p130 = por %p128, %p129
    %p131 = scmp.ne.s32.totalorder %s123, %s126
    %p132 = scmp.eq.s32.totalorder %s10, 0
    %p133 = por %p131, %p132
    %p134 = scmp.ne.s32.totalorder %s123, %s126
    %p135 = scmp.eq.s32.totalorder %s15, 3
    %p136 = por %p134, %p135
    %p137 = scmp.ne.s32.totalorder %s126, %s127
    %p138 = scmp.eq.s32.totalorder %s15, 0
    %p139 = por %p137, %p138
    %p140 = scmp.ne.s32.totalorder %s126, %s127
    %p141 = scmp.eq.s32.totalorder %s16, 3
    %p142 = por %p140, %p141
    %p144 = scmp.ne.s32.totalorder %s127, %s143
    %p145 = scmp.eq.s32.totalorder %s16, 0
    %p146 = por %p144, %p145
    %s147 = ssub.s32 %s17, %s36
    %s148 = ssub.s32 %s18, %s32
    %s149 = sor.u32 %s147, %s148
    %s150 = ssub.s32 %s19, %s28
    %s151 = sor.u32 %s149, %s150
    %p152 = scmp.eq.s32.totalorder %s151, 0
    %s154 = sadd.s32 %s153, 1
    %s155 = scalar_select %p152, %s153, %s154
    %p158 = pneg %p152
    %p159 = scmp.eq.s32.totalorder %s10, 3
    %p160 = por %p158, %p159
    %p161 = scmp.ne.s32.totalorder %s153, %s156
    %p162 = scmp.eq.s32.totalorder %s10, 0
    %p163 = por %p161, %p162
    %p164 = scmp.ne.s32.totalorder %s153, %s156
    %p165 = scmp.eq.s32.totalorder %s15, 3
    %p166 = por %p164, %p165
    %p167 = scmp.ne.s32.totalorder %s156, %s157
    %p168 = scmp.eq.s32.totalorder %s15, 0
    %p169 = por %p167, %p168
    %p170 = scmp.ne.s32.totalorder %s156, %s157
    %p171 = scmp.eq.s32.totalorder %s16, 3
    %p172 = por %p170, %p171
    %p174 = scmp.ne.s32.totalorder %s157, %s173
    %p175 = scmp.eq.s32.totalorder %s16, 0
    %p176 = por %p174, %p175
    %p177 = scmp.le.s32.totalorder 1, %s10
    %p178 = scmp.lt.s32.totalorder %s10, 5
    %p179 = pnand %p177, %p178
    %p180 = pneg %p179
    // Predicated region
    $region9: #{cam_forward.10} parent=5 // pred_check
      _
    $region10: #{cam_forward.10} parent=5 // pred_check_branch
      %182 = sbr.rel (%p179) target = $region12
    $region11: #{cam_forward.10} parent=5 // pred_region
      %s183 = ssub.s32 %s10, 1
      // Predicated region
      $region13: #{cam_forward.10} parent=11 // pred_check
        %p184 = pneg %p113
      $region14: #{cam_forward.10} parent=11 // pred_check_branch
        %186 = sbr.rel (%p184) target = $region16
      $region15: #{cam_forward.10} parent=11 // pred_region
        %p187 = scmp.lt.s32.totalorder %s22, 0
        %s188 = scalar_select %p187, %s22, 0
        %s189 = smul.addr %s188, 4
        %s190 = scalar_lea.vmem %s2, %s189
      $region16: #{cam_forward.10} parent=11 // pred_fallthru
        _
      // Predicated region
      $region17: #{cam_forward.10} parent=11 // pred_check
        %p191 = pneg %p139
      $region18: #{cam_forward.10} parent=11 // pred_check_branch
        %193 = sbr.rel (%p191) target = $region20
      $region19: #{cam_forward.10} parent=11 // pred_region
        %p194 = scmp.lt.s32.totalorder %s22, 0
        %s195 = scalar_select %p194, %s22, 0
        %s196 = scalar_lea.vmem %s3, %s195
      $region20: #{cam_forward.10} parent=11 // pred_fallthru
        _
    $region12: #{cam_forward.10} parent=5 // pred_fallthru
      _
    %p197 = scmp.lt.s32.totalorder %s10, 4
    // Predicated region
    $region21: #{cam_forward.10} parent=5 // pred_check
      %p198 = pneg %p197
    $region22: #{cam_forward.10} parent=5 // pred_check_branch
      %200 = sbr.rel (%p198) target = $region24
    $region23: #{cam_forward.10} parent=5 // pred_region
      // Predicated region
      $region25: #{cam_forward.10} parent=23 // pred_check
        %p201 = pneg %p51
      $region26: #{cam_forward.10} parent=23 // pred_check_branch
        %203 = sbr.rel (%p201) target = $region28
      $region27: #{cam_forward.10} parent=23 // pred_region
        %s204 = smul.u32 8, %s18
        %p205 = scmp.lt.s32.totalorder %s17, 1
        %s206 = scalar_select %p205, %s17, 1
        %p207 = scmp.lt.s32.totalorder %s204, 23
        %s208 = scalar_select %p207, %s204, 23
        %s209 = smul.addr %s208, 3
        %s210 = smul.addr %s206, 72
        %s211 = sadd.s32 %s209, %s210
        %s212 = smul.addr %s211, 4
        %s213 = scalar_lea.vmem %s0, %s212
        %s214 = smul.u32 8, %s18
      $region28: #{cam_forward.10} parent=23 // pred_fallthru
        _
      // Predicated region
      $region29: #{cam_forward.10} parent=23 // pred_check
        %p215 = pneg %p81
      $region30: #{cam_forward.10} parent=23 // pred_check_branch
        %217 = sbr.rel (%p215) target = $region32
      $region31: #{cam_forward.10} parent=23 // pred_region
        %s218 = sadd.s32 %s18, 1
        %s219 = smul.u32 8, %s218
        %p220 = scmp.lt.s32.totalorder %s17, 1
        %s221 = scalar_select %p220, %s17, 1
        %p222 = scmp.lt.s32.totalorder %s219, 23
        %s223 = scalar_select %p222, %s219, 23
        %s224 = smul.addr %s223, 3
        %s225 = smul.addr %s221, 72
        %s226 = sadd.s32 %s224, %s225
        %s227 = smul.addr %s226, 4
        %s228 = scalar_lea.vmem %s1, %s227
        %s229 = sadd.s32 %s18, 1
        %s230 = smul.u32 8, %s229
      $region32: #{cam_forward.10} parent=23 // pred_fallthru
        _
    $region24: #{cam_forward.10} parent=5 // pred_fallthru
      _
    %p231 = scmp.le.s32.totalorder 1, %s10
    %p232 = scmp.lt.s32.totalorder %s10, 5
    %p233 = pnand %p231, %p232
    %p234 = pneg %p233
    // Predicated region
    $region33: #{cam_forward.10} parent=5 // pred_check
      _
    $region34: #{cam_forward.10} parent=5 // pred_check_branch
      %236 = sbr.rel (%p233) target = $region36
    $region35: #{cam_forward.10} parent=5 // pred_region
      %s237 = ssub.s32 %s10, 1
      %s238 = smul.u32 8, %s21
      %p239 = scmp.lt.s32.totalorder %s20, 1
      %s240 = scalar_select %p239, %s20, 1
      %p241 = scmp.lt.s32.totalorder %s238, 23
      %s242 = scalar_select %p241, %s238, 23
      %s243 = smul.addr %s242, 3
      %s244 = smul.addr %s240, 72
      %s245 = sadd.s32 %s243, %s244
      %s246 = smul.addr %s245, 4
      %s247 = scalar_lea.vmem %s0, %s246
      %p248 = pneg %p57
      %p249 = pneg %p54
      %s250 = sadd.s32 %s21, 1
      %s251 = smul.u32 8, %s250
      %p252 = scmp.lt.s32.totalorder %s20, 1
      %s253 = scalar_select %p252, %s20, 1
      %p254 = scmp.lt.s32.totalorder %s251, 23
      %s255 = scalar_select %p254, %s251, 23
      %s256 = smul.addr %s255, 3
      %s257 = smul.addr %s253, 72
      %s258 = sadd.s32 %s256, %s257
      %s259 = smul.addr %s258, 4
      %s260 = scalar_lea.vmem %s1, %s259
      %p261 = pneg %p87
      %p262 = pneg %p84
      %p263 = scmp.lt.s32.totalorder %s22, 0
      %s264 = scalar_select %p263, %s22, 0
      %s265 = smul.addr %s264, 4
      %s266 = scalar_lea.vmem %s2, %s265
      %p267 = pneg %p113
      %p268 = pneg %p110
      %p269 = scmp.lt.s32.totalorder %s22, 0
      %s270 = scalar_select %p269, %s22, 0
      %s271 = scalar_lea.vmem %s3, %s270
      %p272 = pneg %p139
      %p273 = pneg %p136
      %p274 = pneg %p169
      %p275 = pneg %p166
      %s276 = smul.u32 8, %s21
      %p277 = scmp.lt.s32.totalorder %s20, 1
      %s278 = scalar_select %p277, %s20, 1
      %p279 = scmp.lt.s32.totalorder %s276, 15
      %s280 = scalar_select %p279, %s276, 15
      %p281 = scmp.lt.s32.totalorder %s22, 0
      %s282 = scalar_select %p281, %s22, 0
      %s283 = smul.addr %s280, 2
      %s284 = sadd.s32 %s282, %s283
      %s285 = smul.addr %s278, 32
      %s286 = sadd.s32 %s284, %s285
      %s287 = smul.addr %s286, 4
      %s288 = scalar_lea.vmem %s4, %s287
      %s289 = smul.u32 8, %s21
      %p290 = scmp.lt.s32.totalorder %s20, 1
      %s291 = scalar_select %p290, %s20, 1
      %p292 = scmp.lt.s32.totalorder %s289, 23
      %s293 = scalar_select %p292, %s289, 23
      %s294 = smul.addr %s293, 3
      %s295 = smul.addr %s291, 72
      %s296 = sadd.s32 %s294, %s295
      %s297 = smul.addr %s296, 4
      %s298 = scalar_lea.vmem %s0, %s297
      %s299 = smul.u32 8, %s21
      %s300 = sadd.s32 %s21, 1
      %s301 = smul.u32 8, %s300
      %p302 = scmp.lt.s32.totalorder %s20, 1
      %s303 = scalar_select %p302, %s20, 1
      %p304 = scmp.lt.s32.totalorder %s301, 23
      %s305 = scalar_select %p304, %s301, 23
      %s306 = smul.addr %s305, 3
      %s307 = smul.addr %s303, 72
      %s308 = sadd.s32 %s306, %s307
      %s309 = smul.addr %s308, 4
      %s310 = scalar_lea.vmem %s1, %s309
      %s311 = sadd.s32 %s21, 1
      %s312 = smul.u32 8, %s311
      %p313 = scmp.lt.s32.totalorder %s22, 0
      %s314 = scalar_select %p313, %s22, 0
      %s315 = smul.addr %s314, 4
      %s316 = scalar_lea.vmem %s2, %s315
      %p317 = scmp.lt.s32.totalorder %s22, 0
      %s318 = scalar_select %p317, %s22, 0
      %s319 = scalar_lea.vmem %s3, %s318
      %s320 = smul.u32 8, %s21
      %p321 = scmp.lt.s32.totalorder %s20, 1
      %s322 = scalar_select %p321, %s20, 1
      %p323 = scmp.lt.s32.totalorder %s320, 15
      %s324 = scalar_select %p323, %s320, 15
      %p325 = scmp.lt.s32.totalorder %s22, 0
      %s326 = scalar_select %p325, %s22, 0
      %s327 = smul.addr %s324, 2
      %s328 = sadd.s32 %s326, %s327
      %s329 = smul.addr %s322, 32
      %s330 = sadd.s32 %s328, %s329
      %s331 = smul.addr %s330, 4
      %s332 = scalar_lea.vmem %s4, %s331
      %s333 = smul.u32 8, %s21
      %p335 = scmp.eq.s32.totalorder %s22, 0
      // Predicated region
      $region37: #{cam_forward.10} parent=35 // pred_check
        %p336 = pneg %p335
      $region38: #{cam_forward.10} parent=35 // pred_check_branch
        %338 = sbr.rel (%p336) target = $region40
      $region39: #{cam_forward.10} parent=35 // pred_region
        %v339 = vld [vmem:[%s298] sm:$0xf]
        %v340 = vld [vmem:[%s298 + $0x4] sm:$0xf]
        %v341 = vld [vmem:[%s298 + $0x8] sm:$0x7]
        %v342 = vld [vmem:[%s298 + $0xc] sm:$0xf]
        %v343 = vld [vmem:[%s298 + $0x10] sm:$0xf]
        %v344 = vld [vmem:[%s298 + $0x14] sm:$0x7]
        %v345 = vld [vmem:[%s298 + $0x18] sm:$0xf]
        %v346 = vld [vmem:[%s298 + $0x1c] sm:$0xf]
        %v347 = vld [vmem:[%s298 + $0x20] sm:$0x7]
        %v348 = vld [vmem:[%s298 + $0x24] sm:$0xf]
        %v349 = vld [vmem:[%s298 + $0x28] sm:$0xf]
        %v350 = vld [vmem:[%s298 + $0x2c] sm:$0x7]
        %v351 = vld [vmem:[%s298 + $0x30] sm:$0xf]
        %v352 = vld [vmem:[%s298 + $0x34] sm:$0xf]
        %v353 = vld [vmem:[%s298 + $0x38] sm:$0x7]
        %v354 = vld [vmem:[%s298 + $0x3c] sm:$0xf]
        %v355 = vld [vmem:[%s298 + $0x40] sm:$0xf]
        %v356 = vld [vmem:[%s298 + $0x44] sm:$0x7]
        %v357 = vld [vmem:[%s298 + $0x48] sm:$0xf]
        %v358 = vld [vmem:[%s298 + $0x4c] sm:$0xf]
        %v359 = vld [vmem:[%s298 + $0x50] sm:$0x7]
        %v360 = vld [vmem:[%s298 + $0x54] sm:$0xf]
        %v361 = vld [vmem:[%s298 + $0x58] sm:$0xf]
        %v362 = vld [vmem:[%s298 + $0x5c] sm:$0x7]
        %v363 = vld [vmem:[%s310] sm:$0xf]
        %v364 = vld [vmem:[%s310 + $0x4] sm:$0xf]
        %v365 = vld [vmem:[%s310 + $0x8] sm:$0x7]
        %v366 = vld [vmem:[%s310 + $0xc] sm:$0xf]
        %v367 = vld [vmem:[%s310 + $0x10] sm:$0xf]
        %v368 = vld [vmem:[%s310 + $0x14] sm:$0x7]
        %v369 = vld [vmem:[%s310 + $0x18] sm:$0xf]
        %v370 = vld [vmem:[%s310 + $0x1c] sm:$0xf]
        %v371 = vld [vmem:[%s310 + $0x20] sm:$0x7]
        %v372 = vld [vmem:[%s310 + $0x24] sm:$0xf]
        %v373 = vld [vmem:[%s310 + $0x28] sm:$0xf]
        %v374 = vld [vmem:[%s310 + $0x2c] sm:$0x7]
        %v375 = vld [vmem:[%s310 + $0x30] sm:$0xf]
        %v376 = vld [vmem:[%s310 + $0x34] sm:$0xf]
        %v377 = vld [vmem:[%s310 + $0x38] sm:$0x7]
        %v378 = vld [vmem:[%s310 + $0x3c] sm:$0xf]
        %v379 = vld [vmem:[%s310 + $0x40] sm:$0xf]
        %v380 = vld [vmem:[%s310 + $0x44] sm:$0x7]
        %v397 = vunpack.c.l.b16 %v339
        %v398 = vunpack.c.l.b16 %v340
        %v399 = vunpack.c.l.b16 %v342
        %v400 = vunpack.c.l.b16 %v343
        %v401 = vunpack.c.l.b16 %v345
        %v402 = vunpack.c.l.b16 %v346
        %v403 = vunpack.c.l.b16 %v348
        %v404 = vunpack.c.l.b16 %v349
        %v405 = vunpack.c.l.b16 %v351
        %v406 = vunpack.c.l.b16 %v352
        %v407 = vunpack.c.l.b16 %v354
        %v408 = vunpack.c.l.b16 %v355
        %v409 = vunpack.c.l.b16 %v357
        %v410 = vunpack.c.l.b16 %v358
        %v411 = vunpack.c.l.b16 %v360
        %v412 = vunpack.c.l.b16 %v361
        %v413 = vpack.c.b16 %v398, %v397
        %v414 = vpack.c.b16 %v400, %v399
        %v415 = vpack.c.b16 %v402, %v401
        %v416 = vpack.c.b16 %v404, %v403
        %v417 = vpack.c.b16 %v406, %v405
        %v418 = vpack.c.b16 %v408, %v407
        %v419 = vpack.c.b16 %v410, %v409
        %v420 = vpack.c.b16 %v412, %v411
        %v429 = vunpack.c.l.b16 %v341
        %v430 = vunpack.c.l.b16 %v344
        %v431 = vunpack.c.l.b16 %v347
        %v432 = vunpack.c.l.b16 %v350
        %v433 = vunpack.c.l.b16 %v353
        %v434 = vunpack.c.l.b16 %v356
        %v435 = vunpack.c.l.b16 %v359
        %v436 = vunpack.c.l.b16 %v362
        %v437 = vpack.c.b16 %v429, %v429
        %v438 = vpack.c.b16 %v430, %v430
        %v439 = vpack.c.b16 %v431, %v431
        %v440 = vpack.c.b16 %v432, %v432
        %v441 = vpack.c.b16 %v433, %v433
        %v442 = vpack.c.b16 %v434, %v434
        %v443 = vpack.c.b16 %v435, %v435
        %v444 = vpack.c.b16 %v436, %v436
        %vm445 = vsmask.f32 6400
        %v447 = vshrl.u32 %v413, 16
        %v449 = vrot.slane %v447, 1
        %v450 = vshll.u32 %v413, 16
        %v452 = vrot.slane %v450, 2
        %v453 = vor.u32 %v449, %v452
        %v455 = vshrl.u32 %v437, 16
        %v457 = vrot.slane %v455, 1
        %v458 = vshll.u32 %v437, 16
        %v460 = vrot.slane %v458, 2
        %v461 = vor.u32 %v457, %v460
        %v462 = vsel %vm445, %v453, %v461
        %v464 = vshrl.u32 %v414, 16
        %v466 = vrot.slane %v464, 1
        %v467 = vshll.u32 %v414, 16
        %v469 = vrot.slane %v467, 2
        %v470 = vor.u32 %v466, %v469
        %v472 = vshrl.u32 %v438, 16
        %v474 = vrot.slane %v472, 1
        %v475 = vshll.u32 %v438, 16
        %v477 = vrot.slane %v475, 2
        %v478 = vor.u32 %v474, %v477
        %v479 = vsel %vm445, %v470, %v478
        %v481 = vshrl.u32 %v415, 16
        %v483 = vrot.slane %v481, 1
        %v484 = vshll.u32 %v415, 16
        %v486 = vrot.slane %v484, 2
        %v487 = vor.u32 %v483, %v486
        %v489 = vshrl.u32 %v439, 16
        %v491 = vrot.slane %v489, 1
        %v492 = vshll.u32 %v439, 16
        %v494 = vrot.slane %v492, 2
        %v495 = vor.u32 %v491, %v494
        %v496 = vsel %vm445, %v487, %v495
        %v498 = vshrl.u32 %v416, 16
        %v500 = vrot.slane %v498, 1
        %v501 = vshll.u32 %v416, 16
        %v503 = vrot.slane %v501, 2
        %v504 = vor.u32 %v500, %v503
        %v506 = vshrl.u32 %v440, 16
        %v508 = vrot.slane %v506, 1
        %v509 = vshll.u32 %v440, 16
        %v511 = vrot.slane %v509, 2
        %v512 = vor.u32 %v508, %v511
        %v513 = vsel %vm445, %v504, %v512
        %v515 = vshrl.u32 %v417, 16
        %v517 = vrot.slane %v515, 1
        %v518 = vshll.u32 %v417, 16
        %v520 = vrot.slane %v518, 2
        %v521 = vor.u32 %v517, %v520
        %v523 = vshrl.u32 %v441, 16
        %v525 = vrot.slane %v523, 1
        %v526 = vshll.u32 %v441, 16
        %v528 = vrot.slane %v526, 2
        %v529 = vor.u32 %v525, %v528
        %v530 = vsel %vm445, %v521, %v529
        %v532 = vshrl.u32 %v418, 16
        %v534 = vrot.slane %v532, 1
        %v535 = vshll.u32 %v418, 16
        %v537 = vrot.slane %v535, 2
        %v538 = vor.u32 %v534, %v537
        %v540 = vshrl.u32 %v442, 16
        %v542 = vrot.slane %v540, 1
        %v543 = vshll.u32 %v442, 16
        %v545 = vrot.slane %v543, 2
        %v546 = vor.u32 %v542, %v545
        %v547 = vsel %vm445, %v538, %v546
        %v549 = vshrl.u32 %v419, 16
        %v551 = vrot.slane %v549, 1
        %v552 = vshll.u32 %v419, 16
        %v554 = vrot.slane %v552, 2
        %v555 = vor.u32 %v551, %v554
        %v557 = vshrl.u32 %v443, 16
        %v559 = vrot.slane %v557, 1
        %v560 = vshll.u32 %v443, 16
        %v562 = vrot.slane %v560, 2
        %v563 = vor.u32 %v559, %v562
        %v564 = vsel %vm445, %v555, %v563
        %v566 = vshrl.u32 %v420, 16
        %v568 = vrot.slane %v566, 1
        %v569 = vshll.u32 %v420, 16
        %v571 = vrot.slane %v569, 2
        %v572 = vor.u32 %v568, %v571
        %v574 = vshrl.u32 %v444, 16
        %v576 = vrot.slane %v574, 1
        %v577 = vshll.u32 %v444, 16
        %v579 = vrot.slane %v577, 2
        %v580 = vor.u32 %v576, %v579
        %v581 = vsel %vm445, %v572, %v580
        %582 = vrot.lane.b32.xlu0 %v462, 8
        %v583 = vpop.permute.xlu0 %582
        %584 = vrot.lane.b32.xlu0 %v479, 8
        %v585 = vpop.permute.xlu0 %584
        %586 = vrot.lane.b32.xlu0 %v496, 8
        %v587 = vpop.permute.xlu0 %586
        %588 = vrot.lane.b32.xlu0 %v513, 8
        %v589 = vpop.permute.xlu0 %588
        %590 = vrot.lane.b32.xlu0 %v530, 8
        %v591 = vpop.permute.xlu0 %590
        %592 = vrot.lane.b32.xlu0 %v547, 8
        %v593 = vpop.permute.xlu0 %592
        %594 = vrot.lane.b32.xlu0 %v564, 8
        %v595 = vpop.permute.xlu0 %594
        %596 = vrot.lane.b32.xlu0 %v581, 8
        %v597 = vpop.permute.xlu0 %596
        %vm598 = vcmask 1044480
        %v599 = vrot.slane %v413, 3
        %v600 = vrot.slane %v437, 3
        %v601 = vsel %vm598, %v599, %v600
        %v602 = vrot.slane %v414, 3
        %v603 = vrot.slane %v438, 3
        %v604 = vsel %vm598, %v602, %v603
        %v605 = vrot.slane %v415, 3
        %v606 = vrot.slane %v439, 3
        %v607 = vsel %vm598, %v605, %v606
        %v608 = vrot.slane %v416, 3
        %v609 = vrot.slane %v440, 3
        %v610 = vsel %vm598, %v608, %v609
        %v611 = vrot.slane %v417, 3
        %v612 = vrot.slane %v441, 3
        %v613 = vsel %vm598, %v611, %v612
        %v614 = vrot.slane %v418, 3
        %v615 = vrot.slane %v442, 3
        %v616 = vsel %vm598, %v614, %v615
        %v617 = vrot.slane %v419, 3
        %v618 = vrot.slane %v443, 3
        %v619 = vsel %vm598, %v617, %v618
        %v620 = vrot.slane %v420, 3
        %v621 = vrot.slane %v444, 3
        %v622 = vsel %vm598, %v620, %v621
        %623 = vrot.lane.b32.xlu0 %v601, 16
        %v624 = vpop.permute.xlu0 %623
        %625 = vrot.lane.b32.xlu0 %v604, 16
        %v626 = vpop.permute.xlu0 %625
        %627 = vrot.lane.b32.xlu0 %v607, 16
        %v628 = vpop.permute.xlu0 %627
        %629 = vrot.lane.b32.xlu0 %v610, 16
        %v630 = vpop.permute.xlu0 %629
        %631 = vrot.lane.b32.xlu0 %v613, 16
        %v632 = vpop.permute.xlu0 %631
        %633 = vrot.lane.b32.xlu0 %v616, 16
        %v634 = vpop.permute.xlu0 %633
        %635 = vrot.lane.b32.xlu0 %v619, 16
        %v636 = vpop.permute.xlu0 %635
        %637 = vrot.lane.b32.xlu0 %v622, 16
        %v638 = vpop.permute.xlu0 %637
        %v645 = vunpack.c.l.b16 %v363
        %v646 = vunpack.c.l.b16 %v364
        %v647 = vunpack.c.l.b16 %v366
        %v648 = vunpack.c.l.b16 %v367
        %v649 = vunpack.c.l.b16 %v369
        %v650 = vunpack.c.l.b16 %v370
        %v651 = vpack.c.b16 %v646, %v645
        %v652 = vpack.c.b16 %v648, %v647
        %v653 = vpack.c.b16 %v650, %v649
        %654 = vrot.lane.b32.xlu0 %v416, 24
        %v655 = vpop.permute.xlu0 %654
        %656 = vrot.lane.b32.xlu0 %v417, 24
        %v657 = vpop.permute.xlu0 %656
        %658 = vrot.lane.b32.xlu0 %v418, 24
        %v659 = vpop.permute.xlu0 %658
        %660 = vrot.lane.b32.xlu0 %v419, 24
        %v661 = vpop.permute.xlu0 %660
        %662 = vrot.lane.b32.xlu0 %v420, 24
        %v663 = vpop.permute.xlu0 %662
        %664 = vrot.lane.b32.xlu0 %v651, 24
        %v665 = vpop.permute.xlu0 %664
        %666 = vrot.lane.b32.xlu0 %v652, 24
        %v667 = vpop.permute.xlu0 %666
        %668 = vrot.lane.b32.xlu0 %v653, 24
        %v669 = vpop.permute.xlu0 %668
        %v673 = vunpack.c.l.b16 %v365
        %v674 = vunpack.c.l.b16 %v368
        %v675 = vunpack.c.l.b16 %v371
        %v676 = vpack.c.b16 %v673, %v673
        %v677 = vpack.c.b16 %v674, %v674
        %v678 = vpack.c.b16 %v675, %v675
        %v680 = vshrl.u32 %v651, 16
        %v682 = vrot.slane %v680, 1
        %v683 = vshll.u32 %v651, 16
        %v685 = vrot.slane %v683, 2
        %v686 = vor.u32 %v682, %v685
        %v688 = vshrl.u32 %v676, 16
        %v690 = vrot.slane %v688, 1
        %v691 = vshll.u32 %v676, 16
        %v693 = vrot.slane %v691, 2
        %v694 = vor.u32 %v690, %v693
        %v695 = vsel %vm445, %v686, %v694
        %v697 = vshrl.u32 %v652, 16
        %v699 = vrot.slane %v697, 1
        %v700 = vshll.u32 %v652, 16
        %v702 = vrot.slane %v700, 2
        %v703 = vor.u32 %v699, %v702
        %v705 = vshrl.u32 %v677, 16
        %v707 = vrot.slane %v705, 1
        %v708 = vshll.u32 %v677, 16
        %v710 = vrot.slane %v708, 2
        %v711 = vor.u32 %v707, %v710
        %v712 = vsel %vm445, %v703, %v711
        %v714 = vshrl.u32 %v653, 16
        %v716 = vrot.slane %v714, 1
        %v717 = vshll.u32 %v653, 16
        %v719 = vrot.slane %v717, 2
        %v720 = vor.u32 %v716, %v719
        %v722 = vshrl.u32 %v678, 16
        %v724 = vrot.slane %v722, 1
        %v725 = vshll.u32 %v678, 16
        %v727 = vrot.slane %v725, 2
        %v728 = vor.u32 %v724, %v727
        %v729 = vsel %vm445, %v720, %v728
        %730 = vrot.lane.b32.xlu0 %v513, 32
        %v731 = vpop.permute.xlu0 %730
        %732 = vrot.lane.b32.xlu0 %v530, 32
        %v733 = vpop.permute.xlu0 %732
        %734 = vrot.lane.b32.xlu0 %v547, 32
        %v735 = vpop.permute.xlu0 %734
        %736 = vrot.lane.b32.xlu0 %v564, 32
        %v737 = vpop.permute.xlu0 %736
        %738 = vrot.lane.b32.xlu0 %v581, 32
        %v739 = vpop.permute.xlu0 %738
        %740 = vrot.lane.b32.xlu0 %v695, 32
        %v741 = vpop.permute.xlu0 %740
        %742 = vrot.lane.b32.xlu0 %v712, 32
        %v743 = vpop.permute.xlu0 %742
        %744 = vrot.lane.b32.xlu0 %v729, 32
        %v745 = vpop.permute.xlu0 %744
        %v746 = vrot.slane %v651, 3
        %v747 = vrot.slane %v676, 3
        %v748 = vsel %vm598, %v746, %v747
        %v749 = vrot.slane %v652, 3
        %v750 = vrot.slane %v677, 3
        %v751 = vsel %vm598, %v749, %v750
        %v752 = vrot.slane %v653, 3
        %v753 = vrot.slane %v678, 3
        %v754 = vsel %vm598, %v752, %v753
        %755 = vrot.lane.b32.xlu0 %v610, 40
        %v756 = vpop.permute.xlu0 %755
        %757 = vrot.lane.b32.xlu0 %v613, 40
        %v758 = vpop.permute.xlu0 %757
        %759 = vrot.lane.b32.xlu0 %v616, 40
        %v760 = vpop.permute.xlu0 %759
        %761 = vrot.lane.b32.xlu0 %v619, 40
        %v762 = vpop.permute.xlu0 %761
        %763 = vrot.lane.b32.xlu0 %v622, 40
        %v764 = vpop.permute.xlu0 %763
        %765 = vrot.lane.b32.xlu0 %v748, 40
        %v766 = vpop.permute.xlu0 %765
        %767 = vrot.lane.b32.xlu0 %v751, 40
        %v768 = vpop.permute.xlu0 %767
        %769 = vrot.lane.b32.xlu0 %v754, 40
        %v770 = vpop.permute.xlu0 %769
        %v777 = vunpack.c.l.b16 %v372
        %v778 = vunpack.c.l.b16 %v373
        %v779 = vunpack.c.l.b16 %v375
        %v780 = vunpack.c.l.b16 %v376
        %v781 = vunpack.c.l.b16 %v378
        %v782 = vunpack.c.l.b16 %v379
        %v783 = vpack.c.b16 %v778, %v777
        %v784 = vpack.c.b16 %v780, %v779
        %v785 = vpack.c.b16 %v782, %v781
        %786 = vrot.lane.b32.xlu0 %v419, 48
        %v787 = vpop.permute.xlu0 %786
        %788 = vrot.lane.b32.xlu0 %v420, 48
        %v789 = vpop.permute.xlu0 %788
        %790 = vrot.lane.b32.xlu0 %v651, 48
        %v791 = vpop.permute.xlu0 %790
        %792 = vrot.lane.b32.xlu0 %v652, 48
        %v793 = vpop.permute.xlu0 %792
        %794 = vrot.lane.b32.xlu0 %v653, 48
        %v795 = vpop.permute.xlu0 %794
        %796 = vrot.lane.b32.xlu0 %v783, 48
        %v797 = vpop.permute.xlu0 %796
        %798 = vrot.lane.b32.xlu0 %v784, 48
        %v799 = vpop.permute.xlu0 %798
        %800 = vrot.lane.b32.xlu0 %v785, 48
        %v801 = vpop.permute.xlu0 %800
        %v805 = vunpack.c.l.b16 %v374
        %v806 = vunpack.c.l.b16 %v377
        %v807 = vunpack.c.l.b16 %v380
        %v808 = vpack.c.b16 %v805, %v805
        %v809 = vpack.c.b16 %v806, %v806
        %v810 = vpack.c.b16 %v807, %v807
        %v812 = vshrl.u32 %v783, 16
        %v814 = vrot.slane %v812, 1
        %v815 = vshll.u32 %v783, 16
        %v817 = vrot.slane %v815, 2
        %v818 = vor.u32 %v814, %v817
        %v820 = vshrl.u32 %v808, 16
        %v822 = vrot.slane %v820, 1
        %v823 = vshll.u32 %v808, 16
        %v825 = vrot.slane %v823, 2
        %v826 = vor.u32 %v822, %v825
        %v827 = vsel %vm445, %v818, %v826
        %v829 = vshrl.u32 %v784, 16
        %v831 = vrot.slane %v829, 1
        %v832 = vshll.u32 %v784, 16
        %v834 = vrot.slane %v832, 2
        %v835 = vor.u32 %v831, %v834
        %v837 = vshrl.u32 %v809, 16
        %v839 = vrot.slane %v837, 1
        %v840 = vshll.u32 %v809, 16
        %v842 = vrot.slane %v840, 2
        %v843 = vor.u32 %v839, %v842
        %v844 = vsel %vm445, %v835, %v843
        %v846 = vshrl.u32 %v785, 16
        %v848 = vrot.slane %v846, 1
        %v849 = vshll.u32 %v785, 16
        %v851 = vrot.slane %v849, 2
        %v852 = vor.u32 %v848, %v851
        %v854 = vshrl.u32 %v810, 16
        %v856 = vrot.slane %v854, 1
        %v857 = vshll.u32 %v810, 16
        %v859 = vrot.slane %v857, 2
        %v860 = vor.u32 %v856, %v859
        %v861 = vsel %vm445, %v852, %v860
        %862 = vrot.lane.b32.xlu0 %v564, 56
        %v863 = vpop.permute.xlu0 %862
        %864 = vrot.lane.b32.xlu0 %v581, 56
        %v865 = vpop.permute.xlu0 %864
        %866 = vrot.lane.b32.xlu0 %v695, 56
        %v867 = vpop.permute.xlu0 %866
        %868 = vrot.lane.b32.xlu0 %v712, 56
        %v869 = vpop.permute.xlu0 %868
        %870 = vrot.lane.b32.xlu0 %v729, 56
        %v871 = vpop.permute.xlu0 %870
        %872 = vrot.lane.b32.xlu0 %v827, 56
        %v873 = vpop.permute.xlu0 %872
        %874 = vrot.lane.b32.xlu0 %v844, 56
        %v875 = vpop.permute.xlu0 %874
        %876 = vrot.lane.b32.xlu0 %v861, 56
        %v877 = vpop.permute.xlu0 %876
        %v878 = vrot.slane %v783, 3
        %v879 = vrot.slane %v808, 3
        %v880 = vsel %vm598, %v878, %v879
        %v881 = vrot.slane %v784, 3
        %v882 = vrot.slane %v809, 3
        %v883 = vsel %vm598, %v881, %v882
        %v884 = vrot.slane %v785, 3
        %v885 = vrot.slane %v810, 3
        %v886 = vsel %vm598, %v884, %v885
        %887 = vrot.lane.b32.xlu0 %v619, 64
        %v888 = vpop.permute.xlu0 %887
        %889 = vrot.lane.b32.xlu0 %v622, 64
        %v890 = vpop.permute.xlu0 %889
        %891 = vrot.lane.b32.xlu0 %v748, 64
        %v892 = vpop.permute.xlu0 %891
        %893 = vrot.lane.b32.xlu0 %v751, 64
        %v894 = vpop.permute.xlu0 %893
        %895 = vrot.lane.b32.xlu0 %v754, 64
        %v896 = vpop.permute.xlu0 %895
        %897 = vrot.lane.b32.xlu0 %v880, 64
        %v898 = vpop.permute.xlu0 %897
        %899 = vrot.lane.b32.xlu0 %v883, 64
        %v900 = vpop.permute.xlu0 %899
        %901 = vrot.lane.b32.xlu0 %v886, 64
        %v902 = vpop.permute.xlu0 %901
        %vm903 = vcmask 64512
        %v905 = vsel %vm903, %v413, %v583
        %v907 = vsel %vm903, %v414, %v585
        %v909 = vsel %vm903, %v415, %v587
        %v911 = vsel %vm903, %v416, %v589
        %v913 = vsel %vm903, %v417, %v591
        %v915 = vsel %vm903, %v418, %v593
        %v917 = vsel %vm903, %v419, %v595
        %v919 = vsel %vm903, %v420, %v597
        %vm920 = vcmask 130048
        %v922 = vsel %vm920, %v905, %v624
        %v924 = vsel %vm920, %v907, %v626
        %v926 = vsel %vm920, %v909, %v628
        %v928 = vsel %vm920, %v911, %v630
        %v930 = vsel %vm920, %v913, %v632
        %v932 = vsel %vm920, %v915, %v634
        %v934 = vsel %vm920, %v917, %v636
        %v936 = vsel %vm920, %v919, %v638
        %vm937 = vcmask 195584
        %v939 = vsel %vm937, %v922, %v655
        %v941 = vsel %vm937, %v924, %v657
        %v943 = vsel %vm937, %v926, %v659
        %v945 = vsel %vm937, %v928, %v661
        %v947 = vsel %vm937, %v930, %v663
        %v949 = vsel %vm937, %v932, %v665
        %v951 = vsel %vm937, %v934, %v667
        %v953 = vsel %vm937, %v936, %v669
        %vm954 = vcmask 261120
        %v956 = vsel %vm954, %v939, %v731
        %v958 = vsel %vm954, %v941, %v733
        %v960 = vsel %vm954, %v943, %v735
        %v962 = vsel %vm954, %v945, %v737
        %v964 = vsel %vm954, %v947, %v739
        %v966 = vsel %vm954, %v949, %v741
        %v968 = vsel %vm954, %v951, %v743
        %v970 = vsel %vm954, %v953, %v745
        %vm971 = vcmask 326656
        %v973 = vsel %vm971, %v956, %v756
        %v975 = vsel %vm971, %v958, %v758
        %v977 = vsel %vm971, %v960, %v760
        %v979 = vsel %vm971, %v962, %v762
        %v981 = vsel %vm971, %v964, %v764
        %v983 = vsel %vm971, %v966, %v766
        %v985 = vsel %vm971, %v968, %v768
        %v987 = vsel %vm971, %v970, %v770
        %vm988 = vcmask 392192
        %v990 = vsel %vm988, %v973, %v787
        %v992 = vsel %vm988, %v975, %v789
        %v994 = vsel %vm988, %v977, %v791
        %v996 = vsel %vm988, %v979, %v793
        %v998 = vsel %vm988, %v981, %v795
        %v1000 = vsel %vm988, %v983, %v797
        %v1002 = vsel %vm988, %v985, %v799
        %v1004 = vsel %vm988, %v987, %v801
        %vm1005 = vcmask 457728
        %v1007 = vsel %vm1005, %v990, %v863
        %v1009 = vsel %vm1005, %v992, %v865
        %v1011 = vsel %vm1005, %v994, %v867
        %v1013 = vsel %vm1005, %v996, %v869
        %v1015 = vsel %vm1005, %v998, %v871
        %v1017 = vsel %vm1005, %v1000, %v873
        %v1019 = vsel %vm1005, %v1002, %v875
        %v1021 = vsel %vm1005, %v1004, %v877
        %vm1022 = vcmask 523264
        %v1024 = vsel %vm1022, %v1007, %v888
        %v1026 = vsel %vm1022, %v1009, %v890
        %v1028 = vsel %vm1022, %v1011, %v892
        %v1030 = vsel %vm1022, %v1013, %v894
        %v1032 = vsel %vm1022, %v1015, %v896
        %v1034 = vsel %vm1022, %v1017, %v898
        %v1036 = vsel %vm1022, %v1019, %v900
        %v1038 = vsel %vm1022, %v1021, %v902
        %v1047 = vunpack.c.l.b16 %v1024
        %v1048 = vunpack.c.h.b16 %v1024
        %v1049 = vunpack.c.l.b16 %v1026
        %v1050 = vunpack.c.h.b16 %v1026
        %v1051 = vunpack.c.l.b16 %v1028
        %v1052 = vunpack.c.h.b16 %v1028
        %v1053 = vunpack.c.l.b16 %v1030
        %v1054 = vunpack.c.h.b16 %v1030
        %v1055 = vunpack.c.l.b16 %v1032
        %v1056 = vunpack.c.h.b16 %v1032
        %v1057 = vunpack.c.l.b16 %v1034
        %v1058 = vunpack.c.h.b16 %v1034
        %v1059 = vunpack.c.l.b16 %v1036
        %v1060 = vunpack.c.h.b16 %v1036
        %v1061 = vunpack.c.l.b16 %v1038
        %v1062 = vunpack.c.h.b16 %v1038
        %v1063 = vpack.c.b16 %v1047, %v1047
        %v1064 = vpack.c.b16 %v1048, %v1048
        %v1065 = vpack.c.b16 %v1049, %v1049
        %v1066 = vpack.c.b16 %v1050, %v1050
        %v1067 = vpack.c.b16 %v1051, %v1051
        %v1068 = vpack.c.b16 %v1052, %v1052
        %v1069 = vpack.c.b16 %v1053, %v1053
        %v1070 = vpack.c.b16 %v1054, %v1054
        %v1071 = vpack.c.b16 %v1055, %v1055
        %v1072 = vpack.c.b16 %v1056, %v1056
        %v1073 = vpack.c.b16 %v1057, %v1057
        %v1074 = vpack.c.b16 %v1058, %v1058
        %v1075 = vpack.c.b16 %v1059, %v1059
        %v1076 = vpack.c.b16 %v1060, %v1060
        %v1077 = vpack.c.b16 %v1061, %v1061
        %v1078 = vpack.c.b16 %v1062, %v1062
        %vm1095 = vcmask 584704
        %1096 = vst.msk [vmem:[#allocation2] sm:$0xf] %vm1095, %v1063
        %1097 = vst.msk [vmem:[#allocation2 + $0x4] sm:$0xf] %vm1095, %v1064
        %1098 = vst.msk [vmem:[#allocation2 + $0x8] sm:$0xf] %vm1095, %v1065
        %1099 = vst.msk [vmem:[#allocation2 + $0xc] sm:$0xf] %vm1095, %v1066
        %1100 = vst.msk [vmem:[#allocation2 + $0x10] sm:$0xf] %vm1095, %v1067
        %1101 = vst.msk [vmem:[#allocation2 + $0x14] sm:$0xf] %vm1095, %v1068
        %1102 = vst.msk [vmem:[#allocation2 + $0x18] sm:$0xf] %vm1095, %v1069
        %1103 = vst.msk [vmem:[#allocation2 + $0x1c] sm:$0xf] %vm1095, %v1070
        %1104 = vst.msk [vmem:[#allocation2 + $0x20] sm:$0xf] %vm1095, %v1071
        %1105 = vst.msk [vmem:[#allocation2 + $0x24] sm:$0xf] %vm1095, %v1072
        %1106 = vst.msk [vmem:[#allocation2 + $0x28] sm:$0xf] %vm1095, %v1073
        %1107 = vst.msk [vmem:[#allocation2 + $0x2c] sm:$0xf] %vm1095, %v1074
        %1108 = vst.msk [vmem:[#allocation2 + $0x30] sm:$0xf] %vm1095, %v1075
        %1109 = vst.msk [vmem:[#allocation2 + $0x34] sm:$0xf] %vm1095, %v1076
        %1110 = vst.msk [vmem:[#allocation2 + $0x38] sm:$0xf] %vm1095, %v1077
        %1111 = vst.msk [vmem:[#allocation2 + $0x3c] sm:$0xf] %vm1095, %v1078
      $region40: #{cam_forward.10} parent=35 // pred_fallthru
        _
      %v1112 = vld [vmem:[#allocation2] sm:$0xf]
      %v1113 = vld [vmem:[#allocation2 + $0x4] sm:$0xf]
      %v1114 = vld [vmem:[#allocation2 + $0x8] sm:$0xf]
      %v1115 = vld [vmem:[#allocation2 + $0xc] sm:$0xf]
      %v1116 = vld [vmem:[#allocation2 + $0x10] sm:$0xf]
      %v1117 = vld [vmem:[#allocation2 + $0x14] sm:$0xf]
      %v1118 = vld [vmem:[#allocation2 + $0x18] sm:$0xf]
      %v1119 = vld [vmem:[#allocation2 + $0x1c] sm:$0xf]
      %v1120 = vld [vmem:[#allocation2 + $0x20] sm:$0xf]
      %v1121 = vld [vmem:[#allocation2 + $0x24] sm:$0xf]
      %v1122 = vld [vmem:[#allocation2 + $0x28] sm:$0xf]
      %v1123 = vld [vmem:[#allocation2 + $0x2c] sm:$0xf]
      %v1124 = vld [vmem:[#allocation2 + $0x30] sm:$0xf]
      %v1125 = vld [vmem:[#allocation2 + $0x34] sm:$0xf]
      %v1126 = vld [vmem:[#allocation2 + $0x38] sm:$0xf]
      %v1127 = vld [vmem:[#allocation2 + $0x3c] sm:$0xf]
      %v1128 = vld [vmem:[%s316] sm:$0xf]
      %v1129 = vld [vmem:[%s316 + $0x4] sm:$0xf]
      %v1130 = vld [vmem:[%s316 + $0x8] sm:$0xf]
      %v1131 = vld [vmem:[%s316 + $0xc] sm:$0xf]
      %v1132 = vld [vmem:[%s316 + $0x10] sm:$0xf]
      %v1133 = vld [vmem:[%s316 + $0x14] sm:$0xf]
      %v1134 = vld [vmem:[%s316 + $0x18] sm:$0xf]
      %v1135 = vld [vmem:[%s316 + $0x1c] sm:$0xf]
      %v1136 = vld [vmem:[%s316 + $0x20] sm:$0xf]
      %v1137 = vld [vmem:[%s319] sm:$0x1]
      %v1139 = vperm.slane %v1137, 0
      %v1157 = vunpack.c.l.b16 %v1112
      %v1158 = vunpack.c.l.b16 %v1113
      %v1159 = vunpack.c.l.b16 %v1114
      %v1160 = vunpack.c.l.b16 %v1115
      %v1161 = vunpack.c.l.b16 %v1116
      %v1162 = vunpack.c.l.b16 %v1117
      %v1163 = vunpack.c.l.b16 %v1118
      %v1164 = vunpack.c.l.b16 %v1119
      %v1165 = vunpack.c.l.b16 %v1120
      %v1166 = vunpack.c.l.b16 %v1121
      %v1167 = vunpack.c.l.b16 %v1122
      %v1168 = vunpack.c.l.b16 %v1123
      %v1169 = vunpack.c.l.b16 %v1124
      %v1170 = vunpack.c.l.b16 %v1125
      %v1171 = vunpack.c.l.b16 %v1126
      %v1172 = vunpack.c.l.b16 %v1127
      %v1173 = vpack.c.b16 %v1158, %v1157
      %v1174 = vpack.c.b16 %v1160, %v1159
      %v1175 = vpack.c.b16 %v1162, %v1161
      %v1176 = vpack.c.b16 %v1164, %v1163
      %v1177 = vpack.c.b16 %v1166, %v1165
      %v1178 = vpack.c.b16 %v1168, %v1167
      %v1179 = vpack.c.b16 %v1170, %v1169
      %v1180 = vpack.c.b16 %v1172, %v1171
      %v1190 = vunpack.c.l.b16 %v1128
      %v1191 = vunpack.c.l.b16 %v1129
      %v1192 = vunpack.c.l.b16 %v1130
      %v1193 = vunpack.c.l.b16 %v1131
      %v1194 = vunpack.c.l.b16 %v1132
      %v1195 = vunpack.c.l.b16 %v1133
      %v1196 = vunpack.c.l.b16 %v1134
      %v1197 = vunpack.c.l.b16 %v1135
      %v1198 = vunpack.c.l.b16 %v1136
      %v1199 = vpack.c.b16 %v1191, %v1190
      %v1200 = vpack.c.b16 %v1193, %v1192
      %v1201 = vpack.c.b16 %v1195, %v1194
      %v1202 = vpack.c.b16 %v1197, %v1196
      %v1203 = vpack.c.b16 %v1198, %v1198
      %vm1208 = vcmask 588800
      %v1210 = vsel %vm1208, %v1173, 0
      %v1213 = vsel %vm1208, %v1174, 0
      %v1216 = vsel %vm1208, %v1175, 0
      %v1219 = vsel %vm1208, %v1176, 0
      %v1222 = vsel %vm1208, %v1177, 0
      %v1225 = vsel %vm1208, %v1178, 0
      %v1228 = vsel %vm1208, %v1179, 0
      %v1231 = vsel %vm1208, %v1180, 0
      %vm1233 = vcmask 1043456
      %v1235 = vsel %vm1233, %v1203, 0
      %1237 = vmatpush.bf16.msra.mxu0 0
      %1238 = vmatpush.bf16.msra.mxu0 0
      %1239 = vmatpush.bf16.msra.mxu0 0
      %1240 = vmatpush.bf16.msra.mxu0 %v1235
      %1241 = vmatpush.bf16.msra.mxu0 %v1202
      %1242 = vmatpush.bf16.msra.mxu0 %v1201
      %1243 = vmatpush.bf16.msra.mxu0 %v1200
      %1244 = vmatpush.bf16.msra.mxu0 %v1199
      %1245 = vmatmul.bf16.gmra.mxu0 %v1210
      %v1246 = vpop.f32.mrf.mxu0
      %v1247 = vadd.f32 %v1139, %v1246
      %v1248 = vpop.f32.mrf.mxu0
      %v1249 = vadd.f32 %v1139, %v1248
      %1250 = vmatmul.bf16.gmra.mxu0 %v1213
      %v1251 = vpop.f32.mrf.mxu0
      %v1252 = vadd.f32 %v1139, %v1251
      %v1253 = vpop.f32.mrf.mxu0
      %v1254 = vadd.f32 %v1139, %v1253
      %1255 = vmatmul.bf16.gmra.mxu0 %v1216
      %v1256 = vpop.f32.mrf.mxu0
      %v1257 = vadd.f32 %v1139, %v1256
      %v1258 = vpop.f32.mrf.mxu0
      %v1259 = vadd.f32 %v1139, %v1258
      %1260 = vmatmul.bf16.gmra.mxu0 %v1219
      %v1261 = vpop.f32.mrf.mxu0
      %v1262 = vadd.f32 %v1139, %v1261
      %v1263 = vpop.f32.mrf.mxu0
      %v1264 = vadd.f32 %v1139, %v1263
      %1265 = vmatmul.bf16.gmra.mxu0 %v1222
      %v1266 = vpop.f32.mrf.mxu0
      %v1267 = vadd.f32 %v1139, %v1266
      %v1268 = vpop.f32.mrf.mxu0
      %v1269 = vadd.f32 %v1139, %v1268
      %1270 = vmatmul.bf16.gmra.mxu0 %v1225
      %v1271 = vpop.f32.mrf.mxu0
      %v1272 = vadd.f32 %v1139, %v1271
      %v1273 = vpop.f32.mrf.mxu0
      %v1274 = vadd.f32 %v1139, %v1273
      %1275 = vmatmul.bf16.gmra.mxu0 %v1228
      %v1276 = vpop.f32.mrf.mxu0
      %v1277 = vadd.f32 %v1139, %v1276
      %v1278 = vpop.f32.mrf.mxu0
      %v1279 = vadd.f32 %v1139, %v1278
      %1280 = vmatmul.bf16.gmra.mxu0 %v1231
      %v1281 = vpop.f32.mrf.mxu0
      %v1282 = vadd.f32 %v1139, %v1281
      %v1283 = vpop.f32.mrf.mxu0
      %v1284 = vadd.f32 %v1139, %v1283
      %1285 = vdwg.mxu0
      %v1286 = vmax.f32 %v1247, 0.0
      %v1287 = vmax.f32 %v1249, 0.0
      %v1288 = vmax.f32 %v1252, 0.0
      %v1289 = vmax.f32 %v1254, 0.0
      %v1290 = vmax.f32 %v1257, 0.0
      %v1291 = vmax.f32 %v1259, 0.0
      %v1292 = vmax.f32 %v1262, 0.0
      %v1293 = vmax.f32 %v1264, 0.0
      %v1294 = vmax.f32 %v1267, 0.0
      %v1295 = vmax.f32 %v1269, 0.0
      %v1296 = vmax.f32 %v1272, 0.0
      %v1297 = vmax.f32 %v1274, 0.0
      %v1298 = vmax.f32 %v1277, 0.0
      %v1299 = vmax.f32 %v1279, 0.0
      %v1300 = vmax.f32 %v1282, 0.0
      %v1301 = vmax.f32 %v1284, 0.0
      %v1302 = vpack.c.bf16 %v1286, %v1286
      %v1303 = vpack.c.bf16 %v1287, %v1287
      %v1304 = vpack.c.bf16 %v1288, %v1288
      %v1305 = vpack.c.bf16 %v1289, %v1289
      %v1306 = vpack.c.bf16 %v1290, %v1290
      %v1307 = vpack.c.bf16 %v1291, %v1291
      %v1308 = vpack.c.bf16 %v1292, %v1292
      %v1309 = vpack.c.bf16 %v1293, %v1293
      %v1310 = vpack.c.bf16 %v1294, %v1294
      %v1311 = vpack.c.bf16 %v1295, %v1295
      %v1312 = vpack.c.bf16 %v1296, %v1296
      %v1313 = vpack.c.bf16 %v1297, %v1297
      %v1314 = vpack.c.bf16 %v1298, %v1298
      %v1315 = vpack.c.bf16 %v1299, %v1299
      %v1316 = vpack.c.bf16 %v1300, %v1300
      %v1317 = vpack.c.bf16 %v1301, %v1301
      %1318 = vst [vmem:[%s332] sm:$0xf] %v1302
      %1319 = vst [vmem:[%s332 + $0x4] sm:$0xf] %v1303
      %1320 = vst [vmem:[%s332 + $0x8] sm:$0xf] %v1304
      %1321 = vst [vmem:[%s332 + $0xc] sm:$0xf] %v1305
      %1322 = vst [vmem:[%s332 + $0x10] sm:$0xf] %v1306
      %1323 = vst [vmem:[%s332 + $0x14] sm:$0xf] %v1307
      %1324 = vst [vmem:[%s332 + $0x18] sm:$0xf] %v1308
      %1325 = vst [vmem:[%s332 + $0x1c] sm:$0xf] %v1309
      %1326 = vst [vmem:[%s332 + $0x20] sm:$0xf] %v1310
      %1327 = vst [vmem:[%s332 + $0x24] sm:$0xf] %v1311
      %1328 = vst [vmem:[%s332 + $0x28] sm:$0xf] %v1312
      %1329 = vst [vmem:[%s332 + $0x2c] sm:$0xf] %v1313
      %1330 = vst [vmem:[%s332 + $0x30] sm:$0xf] %v1314
      %1331 = vst [vmem:[%s332 + $0x34] sm:$0xf] %v1315
      %1332 = vst [vmem:[%s332 + $0x38] sm:$0xf] %v1316
      %1333 = vst [vmem:[%s332 + $0x3c] sm:$0xf] %v1317
      %s1334 = smul.u32 8, %s21
      %p1335 = scmp.lt.s32.totalorder %s20, 1
      %s1336 = scalar_select %p1335, %s20, 1
      %p1337 = scmp.lt.s32.totalorder %s1334, 15
      %s1338 = scalar_select %p1337, %s1334, 15
      %p1339 = scmp.lt.s32.totalorder %s22, 0
      %s1340 = scalar_select %p1339, %s22, 0
      %s1341 = smul.addr %s1338, 2
      %s1342 = sadd.s32 %s1340, %s1341
      %s1343 = smul.addr %s1336, 32
      %s1344 = sadd.s32 %s1342, %s1343
      %s1345 = smul.addr %s1344, 4
      %s1346 = scalar_lea.vmem %s4, %s1345
      // Predicated region
      $region41: #{cam_forward.10} parent=35 // pred_check
        %p1347 = pneg %p166
      $region42: #{cam_forward.10} parent=35 // pred_check_branch
        %1349 = sbr.rel (%p1347) target = $region44
      $region43: #{cam_forward.10} parent=35 // pred_region
        %s1350 = smul.u32 8, %s21
      $region44: #{cam_forward.10} parent=35 // pred_fallthru
        _
    $region36: #{cam_forward.10} parent=5 // pred_fallthru
      _
    %p1351 = scmp.le.s32.totalorder 2, %s10
    // Predicated region
    $region45: #{cam_forward.10} parent=5 // pred_check
      %p1352 = pneg %p1351
    $region46: #{cam_forward.10} parent=5 // pred_check_branch
      %1354 = sbr.rel (%p1352) target = $region48
    $region47: #{cam_forward.10} parent=5 // pred_region
      %s1355 = ssub.s32 %s10, 2
      // Predicated region
      $region49: #{cam_forward.10} parent=47 // pred_check
        %p1356 = pneg %p172
      $region50: #{cam_forward.10} parent=47 // pred_check_branch
        %1358 = sbr.rel (%p1356) target = $region52
      $region51: #{cam_forward.10} parent=47 // pred_region
        %s1359 = smul.u32 8, %s24
        %p1360 = scmp.lt.s32.totalorder %s23, 1
        %s1361 = scalar_select %p1360, %s23, 1
        %p1362 = scmp.lt.s32.totalorder %s1359, 15
        %s1363 = scalar_select %p1362, %s1359, 15
        %p1364 = scmp.lt.s32.totalorder %s25, 0
        %s1365 = scalar_select %p1364, %s25, 0
        %s1366 = smul.addr %s1363, 2
        %s1367 = sadd.s32 %s1365, %s1366
        %s1368 = smul.addr %s1361, 32
        %s1369 = sadd.s32 %s1367, %s1368
        %s1370 = smul.addr %s1369, 4
        %s1371 = scalar_lea.vmem %s4, %s1370
      $region52: #{cam_forward.10} parent=47 // pred_fallthru
        _
    $region48: #{cam_forward.10} parent=5 // pred_fallthru
      _
  $region6: #{cam_forward.10} parent=0 // loop_footer
    %s14 = sadd.s32 1, %s10
  $region7: #{cam_forward.10} parent=0 // loop_footer_branch
    %9 = sbr.rel target = $region3
  $region8: #{cam_forward.10} parent=0 // loop_exit
    _

// kernel: cam_forward.11
$region0: #{cam_forward.11}
  #allocation0 [shape = 'u32[]', space=smem, size = 0x4, offset = 0x4, fixed_abs, tag = 'smem constant byte address 0x4 - core index']
  #allocation1 [shape = 'u32[72,128]{1,0:T(1,128)}', space=vmem, size = 0x9000, scoped, tag = 'internal scratch']
  #allocation2 [shape = 'bf16[128,72]{1,0:T(8,128)(2,1)}', space=vmem, size = 0x8000, scoped, tag = 'scratch operand']
  %s0 = inlined_call_operand.vmem [shape: bf16[2,24,24,8], index: 0, kind: input, shape index: {}, may-alias: {0,1}]
  %s1 = inlined_call_operand.vmem [shape: bf16[2,24,24,8], index: 1, kind: input, shape index: {}, may-alias: {0,1}]
  %s2 = inlined_call_operand.vmem [shape: bf16[72,128], index: 2, kind: input, shape index: {}]
  %s3 = inlined_call_operand.vmem [shape: f32[1,128], index: 3, kind: input, shape index: {}]
  %s4 = inlined_call_operand.vmem [shape: bf16[2,16,16,128], index: 4, kind: output, shape index: {}]
  %s5 = sld [smem:[#allocation0]]
  $region53: #{cam_forward.11} parent=0
    _
  %s7 = ssub.s32 1, %s5
  %s8 = scalar_select 0, %s7, %s5
  loop: start=0, step=1, limit=6
  $region2: #{cam_forward.11} parent=0 // loop_pre_header
    _
  $region3: #{cam_forward.11} parent=0 // loop_header
    %s10 = sphi 0, %s14
    %p11 = scmp.ge.s32.totalorder %s10, 6
    %s17 = sphi 0, %s36
    %s18 = sphi 0, %s32
    %s19 = sphi 0, %s28
    %s20 = sphi 0, %s17
    %s21 = sphi 0, %s18
    %s22 = sphi 0, %s19
    %s23 = sphi 0, %s20
    %s24 = sphi 0, %s21
    %s25 = sphi 0, %s22
    %s41 = sphi 0, %s43
    %s44 = sphi 0, %s41
    %s45 = sphi 0, %s44
    %s61 = sphi 0, %s45
    %s71 = sphi 0, %s73
    %s74 = sphi 0, %s71
    %s75 = sphi 0, %s74
    %s91 = sphi 0, %s75
    %s97 = sphi 0, %s99
    %s100 = sphi 0, %s97
    %s101 = sphi 0, %s100
    %s117 = sphi 0, %s101
    %s123 = sphi 0, %s125
    %s126 = sphi 0, %s123
    %s127 = sphi 0, %s126
    %s143 = sphi 0, %s127
    %s153 = sphi 0, %s155
    %s156 = sphi 0, %s153
    %s157 = sphi 0, %s156
    %s173 = sphi 0, %s157
  $region4: #{cam_forward.11} parent=0 // loop_header_branch
    %13 = sbr.rel (%p11) target = $region8
  $region5: #{cam_forward.11} parent=0 // loop_body
    %s15 = ssub.s32 %s10, 1
    %s16 = ssub.s32 %s10, 2
    %s26 = sadd.s32 1, %s19
    %p27 = scmp.ge.s32.totalorder %s26, 1
    %s28 = scalar_select %p27, 0, %s26
    %s29 = sadd.s32 1, %s18
    %s30 = scalar_select %p27, %s29, %s18
    %p31 = scmp.ge.s32.totalorder %s30, 2
    %s32 = scalar_select %p31, 0, %s30
    %s33 = sadd.s32 1, %s17
    %s34 = scalar_select %p31, %s33, %s17
    %p35 = scmp.ge.s32.totalorder %s34, 2
    %s36 = scalar_select %p35, 0, %s34
    %s37 = ssub.s32 %s17, %s36
    %s38 = ssub.s32 %s18, %s32
    %s39 = sor.u32 %s37, %s38
    %p40 = scmp.eq.s32.totalorder %s39, 0
    %s42 = sadd.s32 %s41, 1
    %s43 = scalar_select %p40, %s41, %s42
    %p46 = pneg %p40
    %p47 = scmp.eq.s32.totalorder %s10, 3
    %p48 = por %p46, %p47
    %p49 = scmp.ne.s32.totalorder %s41, %s44
    %p50 = scmp.eq.s32.totalorder %s10, 0
    %p51 = por %p49, %p50
    %p52 = scmp.ne.s32.totalorder %s41, %s44
    %p53 = scmp.eq.s32.totalorder %s15, 3
    %p54 = por %p52, %p53
    %p55 = scmp.ne.s32.totalorder %s44, %s45
    %p56 = scmp.eq.s32.totalorder %s15, 0
    %p57 = por %p55, %p56
    %p58 = scmp.ne.s32.totalorder %s44, %s45
    %p59 = scmp.eq.s32.totalorder %s16, 3
    %p60 = por %p58, %p59
    %p62 = scmp.ne.s32.totalorder %s45, %s61
    %p63 = scmp.eq.s32.totalorder %s16, 0
    %p64 = por %p62, %p63
    %s65 = sadd.s32 %s18, 1
    %s66 = sadd.s32 %s32, 1
    %s67 = ssub.s32 %s17, %s36
    %s68 = ssub.s32 %s65, %s66
    %s69 = sor.u32 %s67, %s68
    %p70 = scmp.eq.s32.totalorder %s69, 0
    %s72 = sadd.s32 %s71, 1
    %s73 = scalar_select %p70, %s71, %s72
    %p76 = pneg %p70
    %p77 = scmp.eq.s32.totalorder %s10, 3
    %p78 = por %p76, %p77
    %p79 = scmp.ne.s32.totalorder %s71, %s74
    %p80 = scmp.eq.s32.totalorder %s10, 0
    %p81 = por %p79, %p80
    %p82 = scmp.ne.s32.totalorder %s71, %s74
    %p83 = scmp.eq.s32.totalorder %s15, 3
    %p84 = por %p82, %p83
    %p85 = scmp.ne.s32.totalorder %s74, %s75
    %p86 = scmp.eq.s32.totalorder %s15, 0
    %p87 = por %p85, %p86
    %p88 = scmp.ne.s32.totalorder %s74, %s75
    %p89 = scmp.eq.s32.totalorder %s16, 3
    %p90 = por %p88, %p89
    %p92 = scmp.ne.s32.totalorder %s75, %s91
    %p93 = scmp.eq.s32.totalorder %s16, 0
    %p94 = por %p92, %p93
    %s95 = ssub.s32 %s19, %s28
    %p96 = scmp.eq.s32.totalorder %s95, 0
    %s98 = sadd.s32 %s97, 1
    %s99 = scalar_select %p96, %s97, %s98
    %p102 = pneg %p96
    %p103 = scmp.eq.s32.totalorder %s10, 3
    %p104 = por %p102, %p103
    %p105 = scmp.ne.s32.totalorder %s97, %s100
    %p106 = scmp.eq.s32.totalorder %s10, 0
    %p107 = por %p105, %p106
    %p108 = scmp.ne.s32.totalorder %s97, %s100
    %p109 = scmp.eq.s32.totalorder %s15, 3
    %p110 = por %p108, %p109
    %p111 = scmp.ne.s32.totalorder %s100, %s101
    %p112 = scmp.eq.s32.totalorder %s15, 0
    %p113 = por %p111, %p112
    %p114 = scmp.ne.s32.totalorder %s100, %s101
    %p115 = scmp.eq.s32.totalorder %s16, 3
    %p116 = por %p114, %p115
    %p118 = scmp.ne.s32.totalorder %s101, %s117
    %p119 = scmp.eq.s32.totalorder %s16, 0
    %p120 = por %p118, %p119
    %s121 = ssub.s32 %s19, %s28
    %p122 = scmp.eq.s32.totalorder %s121, 0
    %s124 = sadd.s32 %s123, 1
    %s125 = scalar_select %p122, %s123, %s124
    %p128 = pneg %p122
    %p129 = scmp.eq.s32.totalorder %s10, 3
    %p130 = por %p128, %p129
    %p131 = scmp.ne.s32.totalorder %s123, %s126
    %p132 = scmp.eq.s32.totalorder %s10, 0
    %p133 = por %p131, %p132
    %p134 = scmp.ne.s32.totalorder %s123, %s126
    %p135 = scmp.eq.s32.totalorder %s15, 3
    %p136 = por %p134, %p135
    %p137 = scmp.ne.s32.totalorder %s126, %s127
    %p138 = scmp.eq.s32.totalorder %s15, 0
    %p139 = por %p137, %p138
    %p140 = scmp.ne.s32.totalorder %s126, %s127
    %p141 = scmp.eq.s32.totalorder %s16, 3
    %p142 = por %p140, %p141
    %p144 = scmp.ne.s32.totalorder %s127, %s143
    %p145 = scmp.eq.s32.totalorder %s16, 0
    %p146 = por %p144, %p145
    %s147 = ssub.s32 %s17, %s36
    %s148 = ssub.s32 %s18, %s32
    %s149 = sor.u32 %s147, %s148
    %s150 = ssub.s32 %s19, %s28
    %s151 = sor.u32 %s149, %s150
    %p152 = scmp.eq.s32.totalorder %s151, 0
    %s154 = sadd.s32 %s153, 1
    %s155 = scalar_select %p152, %s153, %s154
    %p158 = pneg %p152
    %p159 = scmp.eq.s32.totalorder %s10, 3
    %p160 = por %p158, %p159
    %p161 = scmp.ne.s32.totalorder %s153, %s156
    %p162 = scmp.eq.s32.totalorder %s10, 0
    %p163 = por %p161, %p162
    %p164 = scmp.ne.s32.totalorder %s153, %s156
    %p165 = scmp.eq.s32.totalorder %s15, 3
    %p166 = por %p164, %p165
    %p167 = scmp.ne.s32.totalorder %s156, %s157
    %p168 = scmp.eq.s32.totalorder %s15, 0
    %p169 = por %p167, %p168
    %p170 = scmp.ne.s32.totalorder %s156, %s157
    %p171 = scmp.eq.s32.totalorder %s16, 3
    %p172 = por %p170, %p171
    %p174 = scmp.ne.s32.totalorder %s157, %s173
    %p175 = scmp.eq.s32.totalorder %s16, 0
    %p176 = por %p174, %p175
    %p177 = scmp.le.s32.totalorder 1, %s10
    %p178 = scmp.lt.s32.totalorder %s10, 5
    %p179 = pnand %p177, %p178
    %p180 = pneg %p179
    // Predicated region
    $region9: #{cam_forward.11} parent=5 // pred_check
      _
    $region10: #{cam_forward.11} parent=5 // pred_check_branch
      %182 = sbr.rel (%p179) target = $region12
    $region11: #{cam_forward.11} parent=5 // pred_region
      %s183 = ssub.s32 %s10, 1
      // Predicated region
      $region13: #{cam_forward.11} parent=11 // pred_check
        %p184 = pneg %p113
      $region14: #{cam_forward.11} parent=11 // pred_check_branch
        %186 = sbr.rel (%p184) target = $region16
      $region15: #{cam_forward.11} parent=11 // pred_region
        %p187 = scmp.lt.s32.totalorder %s22, 0
        %s188 = scalar_select %p187, %s22, 0
        %s189 = smul.addr %s188, 4
        %s190 = scalar_lea.vmem %s2, %s189
      $region16: #{cam_forward.11} parent=11 // pred_fallthru
        _
      // Predicated region
      $region17: #{cam_forward.11} parent=11 // pred_check
        %p191 = pneg %p139
      $region18: #{cam_forward.11} parent=11 // pred_check_branch
        %193 = sbr.rel (%p191) target = $region20
      $region19: #{cam_forward.11} parent=11 // pred_region
        %p194 = scmp.lt.s32.totalorder %s22, 0
        %s195 = scalar_select %p194, %s22, 0
        %s196 = scalar_lea.vmem %s3, %s195
      $region20: #{cam_forward.11} parent=11 // pred_fallthru
        _
    $region12: #{cam_forward.11} parent=5 // pred_fallthru
      _
    %p197 = scmp.lt.s32.totalorder %s10, 4
    // Predicated region
    $region21: #{cam_forward.11} parent=5 // pred_check
      %p198 = pneg %p197
    $region22: #{cam_forward.11} parent=5 // pred_check_branch
      %200 = sbr.rel (%p198) target = $region24
    $region23: #{cam_forward.11} parent=5 // pred_region
      // Predicated region
      $region25: #{cam_forward.11} parent=23 // pred_check
        %p201 = pneg %p51
      $region26: #{cam_forward.11} parent=23 // pred_check_branch
        %203 = sbr.rel (%p201) target = $region28
      $region27: #{cam_forward.11} parent=23 // pred_region
        %s204 = smul.u32 8, %s18
        %p205 = scmp.lt.s32.totalorder %s17, 1
        %s206 = scalar_select %p205, %s17, 1
        %p207 = scmp.lt.s32.totalorder %s204, 23
        %s208 = scalar_select %p207, %s204, 23
        %s209 = smul.addr %s208, 3
        %s210 = smul.addr %s206, 72
        %s211 = sadd.s32 %s209, %s210
        %s212 = smul.addr %s211, 4
        %s213 = scalar_lea.vmem %s0, %s212
        %s214 = smul.u32 8, %s18
      $region28: #{cam_forward.11} parent=23 // pred_fallthru
        _
      // Predicated region
      $region29: #{cam_forward.11} parent=23 // pred_check
        %p215 = pneg %p81
      $region30: #{cam_forward.11} parent=23 // pred_check_branch
        %217 = sbr.rel (%p215) target = $region32
      $region31: #{cam_forward.11} parent=23 // pred_region
        %s218 = sadd.s32 %s18, 1
        %s219 = smul.u32 8, %s218
        %p220 = scmp.lt.s32.totalorder %s17, 1
        %s221 = scalar_select %p220, %s17, 1
        %p222 = scmp.lt.s32.totalorder %s219, 23
        %s223 = scalar_select %p222, %s219, 23
        %s224 = smul.addr %s223, 3
        %s225 = smul.addr %s221, 72
        %s226 = sadd.s32 %s224, %s225
        %s227 = smul.addr %s226, 4
        %s228 = scalar_lea.vmem %s1, %s227
        %s229 = sadd.s32 %s18, 1
        %s230 = smul.u32 8, %s229
      $region32: #{cam_forward.11} parent=23 // pred_fallthru
        _
    $region24: #{cam_forward.11} parent=5 // pred_fallthru
      _
    %p231 = scmp.le.s32.totalorder 1, %s10
    %p232 = scmp.lt.s32.totalorder %s10, 5
    %p233 = pnand %p231, %p232
    %p234 = pneg %p233
    // Predicated region
    $region33: #{cam_forward.11} parent=5 // pred_check
      _
    $region34: #{cam_forward.11} parent=5 // pred_check_branch
      %236 = sbr.rel (%p233) target = $region36
    $region35: #{cam_forward.11} parent=5 // pred_region
      %s237 = ssub.s32 %s10, 1
      %s238 = smul.u32 8, %s21
      %p239 = scmp.lt.s32.totalorder %s20, 1
      %s240 = scalar_select %p239, %s20, 1
      %p241 = scmp.lt.s32.totalorder %s238, 23
      %s242 = scalar_select %p241, %s238, 23
      %s243 = smul.addr %s242, 3
      %s244 = smul.addr %s240, 72
      %s245 = sadd.s32 %s243, %s244
      %s246 = smul.addr %s245, 4
      %s247 = scalar_lea.vmem %s0, %s246
      %p248 = pneg %p57
      %p249 = pneg %p54
      %s250 = sadd.s32 %s21, 1
      %s251 = smul.u32 8, %s250
      %p252 = scmp.lt.s32.totalorder %s20, 1
      %s253 = scalar_select %p252, %s20, 1
      %p254 = scmp.lt.s32.totalorder %s251, 23
      %s255 = scalar_select %p254, %s251, 23
      %s256 = smul.addr %s255, 3
      %s257 = smul.addr %s253, 72
      %s258 = sadd.s32 %s256, %s257
      %s259 = smul.addr %s258, 4
      %s260 = scalar_lea.vmem %s1, %s259
      %p261 = pneg %p87
      %p262 = pneg %p84
      %p263 = scmp.lt.s32.totalorder %s22, 0
      %s264 = scalar_select %p263, %s22, 0
      %s265 = smul.addr %s264, 4
      %s266 = scalar_lea.vmem %s2, %s265
      %p267 = pneg %p113
      %p268 = pneg %p110
      %p269 = scmp.lt.s32.totalorder %s22, 0
      %s270 = scalar_select %p269, %s22, 0
      %s271 = scalar_lea.vmem %s3, %s270
      %p272 = pneg %p139
      %p273 = pneg %p136
      %p274 = pneg %p169
      %p275 = pneg %p166
      %s276 = smul.u32 8, %s21
      %p277 = scmp.lt.s32.totalorder %s20, 1
      %s278 = scalar_select %p277, %s20, 1
      %p279 = scmp.lt.s32.totalorder %s276, 15
      %s280 = scalar_select %p279, %s276, 15
      %p281 = scmp.lt.s32.totalorder %s22, 0
      %s282 = scalar_select %p281, %s22, 0
      %s283 = smul.addr %s280, 2
      %s284 = sadd.s32 %s282, %s283
      %s285 = smul.addr %s278, 32
      %s286 = sadd.s32 %s284, %s285
      %s287 = smul.addr %s286, 4
      %s288 = scalar_lea.vmem %s4, %s287
      %s289 = smul.u32 8, %s21
      %p290 = scmp.lt.s32.totalorder %s20, 1
      %s291 = scalar_select %p290, %s20, 1
      %p292 = scmp.lt.s32.totalorder %s289, 23
      %s293 = scalar_select %p292, %s289, 23
      %s294 = smul.addr %s293, 3
      %s295 = smul.addr %s291, 72
      %s296 = sadd.s32 %s294, %s295
      %s297 = smul.addr %s296, 4
      %s298 = scalar_lea.vmem %s0, %s297
      %s299 = smul.u32 8, %s21
      %s300 = sadd.s32 %s21, 1
      %s301 = smul.u32 8, %s300
      %p302 = scmp.lt.s32.totalorder %s20, 1
      %s303 = scalar_select %p302, %s20, 1
      %p304 = scmp.lt.s32.totalorder %s301, 23
      %s305 = scalar_select %p304, %s301, 23
      %s306 = smul.addr %s305, 3
      %s307 = smul.addr %s303, 72
      %s308 = sadd.s32 %s306, %s307
      %s309 = smul.addr %s308, 4
      %s310 = scalar_lea.vmem %s1, %s309
      %s311 = sadd.s32 %s21, 1
      %s312 = smul.u32 8, %s311
      %p313 = scmp.lt.s32.totalorder %s22, 0
      %s314 = scalar_select %p313, %s22, 0
      %s315 = smul.addr %s314, 4
      %s316 = scalar_lea.vmem %s2, %s315
      %p317 = scmp.lt.s32.totalorder %s22, 0
      %s318 = scalar_select %p317, %s22, 0
      %s319 = scalar_lea.vmem %s3, %s318
      %s320 = smul.u32 8, %s21
      %p321 = scmp.lt.s32.totalorder %s20, 1
      %s322 = scalar_select %p321, %s20, 1
      %p323 = scmp.lt.s32.totalorder %s320, 15
      %s324 = scalar_select %p323, %s320, 15
      %p325 = scmp.lt.s32.totalorder %s22, 0
      %s326 = scalar_select %p325, %s22, 0
      %s327 = smul.addr %s324, 2
      %s328 = sadd.s32 %s326, %s327
      %s329 = smul.addr %s322, 32
      %s330 = sadd.s32 %s328, %s329
      %s331 = smul.addr %s330, 4
      %s332 = scalar_lea.vmem %s4, %s331
      %s333 = smul.u32 8, %s21
      %p335 = scmp.eq.s32.totalorder %s22, 0
      // Predicated region
      $region37: #{cam_forward.11} parent=35 // pred_check
        %p336 = pneg %p335
      $region38: #{cam_forward.11} parent=35 // pred_check_branch
        %338 = sbr.rel (%p336) target = $region40
      $region39: #{cam_forward.11} parent=35 // pred_region
        %v339 = vld [vmem:[%s298] sm:$0xf]
        %v340 = vld [vmem:[%s298 + $0x4] sm:$0xf]
        %v341 = vld [vmem:[%s298 + $0x8] sm:$0xf]
        %v342 = vld [vmem:[%s298 + $0xc] sm:$0xf]
        %v343 = vld [vmem:[%s298 + $0x10] sm:$0xf]
        %v344 = vld [vmem:[%s298 + $0x14] sm:$0xf]
        %v345 = vld [vmem:[%s298 + $0x18] sm:$0xf]
        %v346 = vld [vmem:[%s298 + $0x1c] sm:$0xf]
        %v347 = vld [vmem:[%s298 + $0x20] sm:$0xf]
        %v348 = vld [vmem:[%s298 + $0x24] sm:$0xf]
        %v349 = vld [vmem:[%s298 + $0x28] sm:$0xf]
        %v350 = vld [vmem:[%s298 + $0x2c] sm:$0xf]
        %v351 = vld [vmem:[%s298 + $0x30] sm:$0xf]
        %v352 = vld [vmem:[%s298 + $0x34] sm:$0xf]
        %v353 = vld [vmem:[%s298 + $0x38] sm:$0xf]
        %v354 = vld [vmem:[%s298 + $0x3c] sm:$0xf]
        %v355 = vld [vmem:[%s298 + $0x40] sm:$0xf]
        %v356 = vld [vmem:[%s298 + $0x44] sm:$0xf]
        %v357 = vld [vmem:[%s298 + $0x48] sm:$0xf]
        %v358 = vld [vmem:[%s298 + $0x4c] sm:$0xf]
        %v359 = vld [vmem:[%s298 + $0x50] sm:$0xf]
        %v360 = vld [vmem:[%s298 + $0x54] sm:$0xf]
        %v361 = vld [vmem:[%s298 + $0x58] sm:$0xf]
        %v362 = vld [vmem:[%s298 + $0x5c] sm:$0xf]
        %v363 = vld [vmem:[%s310] sm:$0xf]
        %v364 = vld [vmem:[%s310 + $0x4] sm:$0xf]
        %v365 = vld [vmem:[%s310 + $0x8] sm:$0xf]
        %v366 = vld [vmem:[%s310 + $0xc] sm:$0xf]
        %v367 = vld [vmem:[%s310 + $0x10] sm:$0xf]
        %v368 = vld [vmem:[%s310 + $0x14] sm:$0xf]
        %v369 = vld [vmem:[%s310 + $0x18] sm:$0xf]
        %v370 = vld [vmem:[%s310 + $0x1c] sm:$0xf]
        %v371 = vld [vmem:[%s310 + $0x20] sm:$0xf]
        %v372 = vld [vmem:[%s310 + $0x24] sm:$0xf]
        %v373 = vld [vmem:[%s310 + $0x28] sm:$0xf]
        %v374 = vld [vmem:[%s310 + $0x2c] sm:$0xf]
        %v375 = vld [vmem:[%s310 + $0x30] sm:$0xf]
        %v376 = vld [vmem:[%s310 + $0x34] sm:$0xf]
        %v377 = vld [vmem:[%s310 + $0x38] sm:$0xf]
        %v378 = vld [vmem:[%s310 + $0x3c] sm:$0xf]
        %v379 = vld [vmem:[%s310 + $0x40] sm:$0xf]
        %v380 = vld [vmem:[%s310 + $0x44] sm:$0xf]
        %v381 = vld [vmem:[%s310 + $0x48] sm:$0xf]
        %v382 = vld [vmem:[%s310 + $0x4c] sm:$0xf]
        %v383 = vld [vmem:[%s310 + $0x50] sm:$0xf]
        %v384 = vld [vmem:[%s310 + $0x54] sm:$0xf]
        %v385 = vld [vmem:[%s310 + $0x58] sm:$0xf]
        %v386 = vld [vmem:[%s310 + $0x5c] sm:$0xf]
        %v403 = vunpack.c.l.b16 %v339
        %v404 = vunpack.c.l.b16 %v340
        %v405 = vunpack.c.l.b16 %v342
        %v406 = vunpack.c.l.b16 %v343
        %v407 = vunpack.c.l.b16 %v345
        %v408 = vunpack.c.l.b16 %v346
        %v409 = vunpack.c.l.b16 %v348
        %v410 = vunpack.c.l.b16 %v349
        %v411 = vunpack.c.l.b16 %v351
        %v412 = vunpack.c.l.b16 %v352
        %v413 = vunpack.c.l.b16 %v354
        %v414 = vunpack.c.l.b16 %v355
        %v415 = vunpack.c.l.b16 %v357
        %v416 = vunpack.c.l.b16 %v358
        %v417 = vunpack.c.l.b16 %v360
        %v418 = vunpack.c.l.b16 %v361
        %v419 = vpack.c.b16 %v404, %v403
        %v420 = vpack.c.b16 %v406, %v405
        %v421 = vpack.c.b16 %v408, %v407
        %v422 = vpack.c.b16 %v410, %v409
        %v423 = vpack.c.b16 %v412, %v411
        %v424 = vpack.c.b16 %v414, %v413
        %v425 = vpack.c.b16 %v416, %v415
        %v426 = vpack.c.b16 %v418, %v417
        %v435 = vunpack.c.l.b16 %v341
        %v436 = vunpack.c.l.b16 %v344
        %v437 = vunpack.c.l.b16 %v347
        %v438 = vunpack.c.l.b16 %v350
        %v439 = vunpack.c.l.b16 %v353
        %v440 = vunpack.c.l.b16 %v356
        %v441 = vunpack.c.l.b16 %v359
        %v442 = vunpack.c.l.b16 %v362
        %v443 = vpack.c.b16 %v435, %v435
        %v444 = vpack.c.b16 %v436, %v436
        %v445 = vpack.c.b16 %v437, %v437
        %v446 = vpack.c.b16 %v438, %v438
        %v447 = vpack.c.b16 %v439, %v439
        %v448 = vpack.c.b16 %v440, %v440
        %v449 = vpack.c.b16 %v441, %v441
        %v450 = vpack.c.b16 %v442, %v442
        %vm451 = vcmask 1045504
        %v452 = vrot.slane %v419, 2
        %v453 = vrot.slane %v443, 2
        %v454 = vsel %vm451, %v452, %v453
        %v455 = vrot.slane %v420, 2
        %v456 = vrot.slane %v444, 2
        %v457 = vsel %vm451, %v455, %v456
        %v458 = vrot.slane %v421, 2
        %v459 = vrot.slane %v445, 2
        %v460 = vsel %vm451, %v458, %v459
        %v461 = vrot.slane %v422, 2
        %v462 = vrot.slane %v446, 2
        %v463 = vsel %vm451, %v461, %v462
        %v464 = vrot.slane %v423, 2
        %v465 = vrot.slane %v447, 2
        %v466 = vsel %vm451, %v464, %v465
        %v467 = vrot.slane %v424, 2
        %v468 = vrot.slane %v448, 2
        %v469 = vsel %vm451, %v467, %v468
        %v470 = vrot.slane %v425, 2
        %v471 = vrot.slane %v449, 2
        %v472 = vsel %vm451, %v470, %v471
        %v473 = vrot.slane %v426, 2
        %v474 = vrot.slane %v450, 2
        %v475 = vsel %vm451, %v473, %v474
        %476 = vrot.lane.b32.xlu0 %v454, 8
        %v477 = vpop.permute.xlu0 %476
        %478 = vrot.lane.b32.xlu0 %v457, 8
        %v479 = vpop.permute.xlu0 %478
        %480 = vrot.lane.b32.xlu0 %v460, 8
        %v481 = vpop.permute.xlu0 %480
        %482 = vrot.lane.b32.xlu0 %v463, 8
        %v483 = vpop.permute.xlu0 %482
        %484 = vrot.lane.b32.xlu0 %v466, 8
        %v485 = vpop.permute.xlu0 %484
        %486 = vrot.lane.b32.xlu0 %v469, 8
        %v487 = vpop.permute.xlu0 %486
        %488 = vrot.lane.b32.xlu0 %v472, 8
        %v489 = vpop.permute.xlu0 %488
        %490 = vrot.lane.b32.xlu0 %v475, 8
        %v491 = vpop.permute.xlu0 %490
        %v492 = vpack.c.b16 %v435, %v404
        %v493 = vpack.c.b16 %v436, %v406
        %v494 = vpack.c.b16 %v437, %v408
        %v495 = vpack.c.b16 %v438, %v410
        %v496 = vpack.c.b16 %v439, %v412
        %v497 = vpack.c.b16 %v440, %v414
        %v498 = vpack.c.b16 %v441, %v416
        %v499 = vpack.c.b16 %v442, %v418
        %500 = vrot.lane.b32.xlu0 %v492, 16
        %v501 = vpop.permute.xlu0 %500
        %502 = vrot.lane.b32.xlu0 %v493, 16
        %v503 = vpop.permute.xlu0 %502
        %504 = vrot.lane.b32.xlu0 %v494, 16
        %v505 = vpop.permute.xlu0 %504
        %506 = vrot.lane.b32.xlu0 %v495, 16
        %v507 = vpop.permute.xlu0 %506
        %508 = vrot.lane.b32.xlu0 %v496, 16
        %v509 = vpop.permute.xlu0 %508
        %510 = vrot.lane.b32.xlu0 %v497, 16
        %v511 = vpop.permute.xlu0 %510
        %512 = vrot.lane.b32.xlu0 %v498, 16
        %v513 = vpop.permute.xlu0 %512
        %514 = vrot.lane.b32.xlu0 %v499, 16
        %v515 = vpop.permute.xlu0 %514
        %v524 = vunpack.c.l.b16 %v363
        %v525 = vunpack.c.l.b16 %v364
        %v526 = vunpack.c.l.b16 %v366
        %v527 = vunpack.c.l.b16 %v367
        %v528 = vunpack.c.l.b16 %v369
        %v529 = vunpack.c.l.b16 %v370
        %v530 = vunpack.c.l.b16 %v372
        %v531 = vunpack.c.l.b16 %v373
        %v532 = vpack.c.b16 %v525, %v524
        %v533 = vpack.c.b16 %v527, %v526
        %v534 = vpack.c.b16 %v529, %v528
        %v535 = vpack.c.b16 %v531, %v530
        %536 = vrot.lane.b32.xlu0 %v423, 24
        %v537 = vpop.permute.xlu0 %536
        %538 = vrot.lane.b32.xlu0 %v424, 24
        %v539 = vpop.permute.xlu0 %538
        %540 = vrot.lane.b32.xlu0 %v425, 24
        %v541 = vpop.permute.xlu0 %540
        %542 = vrot.lane.b32.xlu0 %v426, 24
        %v543 = vpop.permute.xlu0 %542
        %544 = vrot.lane.b32.xlu0 %v532, 24
        %v545 = vpop.permute.xlu0 %544
        %546 = vrot.lane.b32.xlu0 %v533, 24
        %v547 = vpop.permute.xlu0 %546
        %548 = vrot.lane.b32.xlu0 %v534, 24
        %v549 = vpop.permute.xlu0 %548
        %550 = vrot.lane.b32.xlu0 %v535, 24
        %v551 = vpop.permute.xlu0 %550
        %v556 = vunpack.c.l.b16 %v365
        %v557 = vunpack.c.l.b16 %v368
        %v558 = vunpack.c.l.b16 %v371
        %v559 = vunpack.c.l.b16 %v374
        %v560 = vpack.c.b16 %v556, %v556
        %v561 = vpack.c.b16 %v557, %v557
        %v562 = vpack.c.b16 %v558, %v558
        %v563 = vpack.c.b16 %v559, %v559
        %v564 = vrot.slane %v532, 2
        %v565 = vrot.slane %v560, 2
        %v566 = vsel %vm451, %v564, %v565
        %v567 = vrot.slane %v533, 2
        %v568 = vrot.slane %v561, 2
        %v569 = vsel %vm451, %v567, %v568
        %v570 = vrot.slane %v534, 2
        %v571 = vrot.slane %v562, 2
        %v572 = vsel %vm451, %v570, %v571
        %v573 = vrot.slane %v535, 2
        %v574 = vrot.slane %v563, 2
        %v575 = vsel %vm451, %v573, %v574
        %576 = vrot.lane.b32.xlu0 %v466, 32
        %v577 = vpop.permute.xlu0 %576
        %578 = vrot.lane.b32.xlu0 %v469, 32
        %v579 = vpop.permute.xlu0 %578
        %580 = vrot.lane.b32.xlu0 %v472, 32
        %v581 = vpop.permute.xlu0 %580
        %582 = vrot.lane.b32.xlu0 %v475, 32
        %v583 = vpop.permute.xlu0 %582
        %584 = vrot.lane.b32.xlu0 %v566, 32
        %v585 = vpop.permute.xlu0 %584
        %586 = vrot.lane.b32.xlu0 %v569, 32
        %v587 = vpop.permute.xlu0 %586
        %588 = vrot.lane.b32.xlu0 %v572, 32
        %v589 = vpop.permute.xlu0 %588
        %590 = vrot.lane.b32.xlu0 %v575, 32
        %v591 = vpop.permute.xlu0 %590
        %v592 = vpack.c.b16 %v556, %v525
        %v593 = vpack.c.b16 %v557, %v527
        %v594 = vpack.c.b16 %v558, %v529
        %v595 = vpack.c.b16 %v559, %v531
        %596 = vrot.lane.b32.xlu0 %v496, 40
        %v597 = vpop.permute.xlu0 %596
        %598 = vrot.lane.b32.xlu0 %v497, 40
        %v599 = vpop.permute.xlu0 %598
        %600 = vrot.lane.b32.xlu0 %v498, 40
        %v601 = vpop.permute.xlu0 %600
        %602 = vrot.lane.b32.xlu0 %v499, 40
        %v603 = vpop.permute.xlu0 %602
        %604 = vrot.lane.b32.xlu0 %v592, 40
        %v605 = vpop.permute.xlu0 %604
        %606 = vrot.lane.b32.xlu0 %v593, 40
        %v607 = vpop.permute.xlu0 %606
        %608 = vrot.lane.b32.xlu0 %v594, 40
        %v609 = vpop.permute.xlu0 %608
        %610 = vrot.lane.b32.xlu0 %v595, 40
        %v611 = vpop.permute.xlu0 %610
        %v620 = vunpack.c.l.b16 %v375
        %v621 = vunpack.c.l.b16 %v376
        %v622 = vunpack.c.l.b16 %v378
        %v623 = vunpack.c.l.b16 %v379
        %v624 = vunpack.c.l.b16 %v381
        %v625 = vunpack.c.l.b16 %v382
        %v626 = vunpack.c.l.b16 %v384
        %v627 = vunpack.c.l.b16 %v385
        %v628 = vpack.c.b16 %v621, %v620
        %v629 = vpack.c.b16 %v623, %v622
        %v630 = vpack.c.b16 %v625, %v624
        %v631 = vpack.c.b16 %v627, %v626
        %632 = vrot.lane.b32.xlu0 %v532, 48
        %v633 = vpop.permute.xlu0 %632
        %634 = vrot.lane.b32.xlu0 %v533, 48
        %v635 = vpop.permute.xlu0 %634
        %636 = vrot.lane.b32.xlu0 %v534, 48
        %v637 = vpop.permute.xlu0 %636
        %638 = vrot.lane.b32.xlu0 %v535, 48
        %v639 = vpop.permute.xlu0 %638
        %640 = vrot.lane.b32.xlu0 %v628, 48
        %v641 = vpop.permute.xlu0 %640
        %642 = vrot.lane.b32.xlu0 %v629, 48
        %v643 = vpop.permute.xlu0 %642
        %644 = vrot.lane.b32.xlu0 %v630, 48
        %v645 = vpop.permute.xlu0 %644
        %646 = vrot.lane.b32.xlu0 %v631, 48
        %v647 = vpop.permute.xlu0 %646
        %v652 = vunpack.c.l.b16 %v377
        %v653 = vunpack.c.l.b16 %v380
        %v654 = vunpack.c.l.b16 %v383
        %v655 = vunpack.c.l.b16 %v386
        %v656 = vpack.c.b16 %v652, %v652
        %v657 = vpack.c.b16 %v653, %v653
        %v658 = vpack.c.b16 %v654, %v654
        %v659 = vpack.c.b16 %v655, %v655
        %v660 = vrot.slane %v628, 2
        %v661 = vrot.slane %v656, 2
        %v662 = vsel %vm451, %v660, %v661
        %v663 = vrot.slane %v629, 2
        %v664 = vrot.slane %v657, 2
        %v665 = vsel %vm451, %v663, %v664
        %v666 = vrot.slane %v630, 2
        %v667 = vrot.slane %v658, 2
        %v668 = vsel %vm451, %v666, %v667
        %v669 = vrot.slane %v631, 2
        %v670 = vrot.slane %v659, 2
        %v671 = vsel %vm451, %v669, %v670
        %672 = vrot.lane.b32.xlu0 %v566, 56
        %v673 = vpop.permute.xlu0 %672
        %674 = vrot.lane.b32.xlu0 %v569, 56
        %v675 = vpop.permute.xlu0 %674
        %676 = vrot.lane.b32.xlu0 %v572, 56
        %v677 = vpop.permute.xlu0 %676
        %678 = vrot.lane.b32.xlu0 %v575, 56
        %v679 = vpop.permute.xlu0 %678
        %680 = vrot.lane.b32.xlu0 %v662, 56
        %v681 = vpop.permute.xlu0 %680
        %682 = vrot.lane.b32.xlu0 %v665, 56
        %v683 = vpop.permute.xlu0 %682
        %684 = vrot.lane.b32.xlu0 %v668, 56
        %v685 = vpop.permute.xlu0 %684
        %686 = vrot.lane.b32.xlu0 %v671, 56
        %v687 = vpop.permute.xlu0 %686
        %v688 = vpack.c.b16 %v652, %v621
        %v689 = vpack.c.b16 %v653, %v623
        %v690 = vpack.c.b16 %v654, %v625
        %v691 = vpack.c.b16 %v655, %v627
        %692 = vrot.lane.b32.xlu0 %v592, 64
        %v693 = vpop.permute.xlu0 %692
        %694 = vrot.lane.b32.xlu0 %v593, 64
        %v695 = vpop.permute.xlu0 %694
        %696 = vrot.lane.b32.xlu0 %v594, 64
        %v697 = vpop.permute.xlu0 %696
        %698 = vrot.lane.b32.xlu0 %v595, 64
        %v699 = vpop.permute.xlu0 %698
        %700 = vrot.lane.b32.xlu0 %v688, 64
        %v701 = vpop.permute.xlu0 %700
        %702 = vrot.lane.b32.xlu0 %v689, 64
        %v703 = vpop.permute.xlu0 %702
        %704 = vrot.lane.b32.xlu0 %v690, 64
        %v705 = vpop.permute.xlu0 %704
        %706 = vrot.lane.b32.xlu0 %v691, 64
        %v707 = vpop.permute.xlu0 %706
        %vm708 = vcmask 64512
        %v711 = vsel %vm708, %v419, %v477
        %v714 = vsel %vm708, %v420, %v479
        %v717 = vsel %vm708, %v421, %v481
        %v720 = vsel %vm708, %v422, %v483
        %v723 = vsel %vm708, %v423, %v485
        %v726 = vsel %vm708, %v424, %v487
        %v729 = vsel %vm708, %v425, %v489
        %v732 = vsel %vm708, %v426, %v491
        %vm733 = vcmask 130048
        %v735 = vsel %vm733, %v711, %v501
        %v737 = vsel %vm733, %v714, %v503
        %v739 = vsel %vm733, %v717, %v505
        %v741 = vsel %vm733, %v720, %v507
        %v743 = vsel %vm733, %v723, %v509
        %v745 = vsel %vm733, %v726, %v511
        %v747 = vsel %vm733, %v729, %v513
        %v749 = vsel %vm733, %v732, %v515
        %vm750 = vcmask 195584
        %v752 = vsel %vm750, %v735, %v537
        %v754 = vsel %vm750, %v737, %v539
        %v756 = vsel %vm750, %v739, %v541
        %v758 = vsel %vm750, %v741, %v543
        %v760 = vsel %vm750, %v743, %v545
        %v762 = vsel %vm750, %v745, %v547
        %v764 = vsel %vm750, %v747, %v549
        %v766 = vsel %vm750, %v749, %v551
        %vm767 = vcmask 261120
        %v769 = vsel %vm767, %v752, %v577
        %v771 = vsel %vm767, %v754, %v579
        %v773 = vsel %vm767, %v756, %v581
        %v775 = vsel %vm767, %v758, %v583
        %v777 = vsel %vm767, %v760, %v585
        %v779 = vsel %vm767, %v762, %v587
        %v781 = vsel %vm767, %v764, %v589
        %v783 = vsel %vm767, %v766, %v591
        %vm784 = vcmask 326656
        %v786 = vsel %vm784, %v769, %v597
        %v788 = vsel %vm784, %v771, %v599
        %v790 = vsel %vm784, %v773, %v601
        %v792 = vsel %vm784, %v775, %v603
        %v794 = vsel %vm784, %v777, %v605
        %v796 = vsel %vm784, %v779, %v607
        %v798 = vsel %vm784, %v781, %v609
        %v800 = vsel %vm784, %v783, %v611
        %vm801 = vcmask 392192
        %v803 = vsel %vm801, %v786, %v633
        %v805 = vsel %vm801, %v788, %v635
        %v807 = vsel %vm801, %v790, %v637
        %v809 = vsel %vm801, %v792, %v639
        %v811 = vsel %vm801, %v794, %v641
        %v813 = vsel %vm801, %v796, %v643
        %v815 = vsel %vm801, %v798, %v645
        %v817 = vsel %vm801, %v800, %v647
        %vm818 = vcmask 457728
        %v820 = vsel %vm818, %v803, %v673
        %v822 = vsel %vm818, %v805, %v675
        %v824 = vsel %vm818, %v807, %v677
        %v826 = vsel %vm818, %v809, %v679
        %v828 = vsel %vm818, %v811, %v681
        %v830 = vsel %vm818, %v813, %v683
        %v832 = vsel %vm818, %v815, %v685
        %v834 = vsel %vm818, %v817, %v687
        %vm835 = vcmask 523264
        %v837 = vsel %vm835, %v820, %v693
        %v839 = vsel %vm835, %v822, %v695
        %v841 = vsel %vm835, %v824, %v697
        %v843 = vsel %vm835, %v826, %v699
        %v845 = vsel %vm835, %v828, %v701
        %v847 = vsel %vm835, %v830, %v703
        %v849 = vsel %vm835, %v832, %v705
        %v851 = vsel %vm835, %v834, %v707
        %v860 = vunpack.c.l.b16 %v837
        %v861 = vunpack.c.h.b16 %v837
        %v862 = vunpack.c.l.b16 %v839
        %v863 = vunpack.c.h.b16 %v839
        %v864 = vunpack.c.l.b16 %v841
        %v865 = vunpack.c.h.b16 %v841
        %v866 = vunpack.c.l.b16 %v843
        %v867 = vunpack.c.h.b16 %v843
        %v868 = vunpack.c.l.b16 %v845
        %v869 = vunpack.c.h.b16 %v845
        %v870 = vunpack.c.l.b16 %v847
        %v871 = vunpack.c.h.b16 %v847
        %v872 = vunpack.c.l.b16 %v849
        %v873 = vunpack.c.h.b16 %v849
        %v874 = vunpack.c.l.b16 %v851
        %v875 = vunpack.c.h.b16 %v851
        %v876 = vpack.c.b16 %v860, %v860
        %v877 = vpack.c.b16 %v861, %v861
        %v878 = vpack.c.b16 %v862, %v862
        %v879 = vpack.c.b16 %v863, %v863
        %v880 = vpack.c.b16 %v864, %v864
        %v881 = vpack.c.b16 %v865, %v865
        %v882 = vpack.c.b16 %v866, %v866
        %v883 = vpack.c.b16 %v867, %v867
        %v884 = vpack.c.b16 %v868, %v868
        %v885 = vpack.c.b16 %v869, %v869
        %v886 = vpack.c.b16 %v870, %v870
        %v887 = vpack.c.b16 %v871, %v871
        %v888 = vpack.c.b16 %v872, %v872
        %v889 = vpack.c.b16 %v873, %v873
        %v890 = vpack.c.b16 %v874, %v874
        %v891 = vpack.c.b16 %v875, %v875
        %vm908 = vcmask 584704
        %909 = vst.msk [vmem:[#allocation2] sm:$0xf] %vm908, %v876
        %910 = vst.msk [vmem:[#allocation2 + $0x4] sm:$0xf] %vm908, %v877
        %911 = vst.msk [vmem:[#allocation2 + $0x8] sm:$0xf] %vm908, %v878
        %912 = vst.msk [vmem:[#allocation2 + $0xc] sm:$0xf] %vm908, %v879
        %913 = vst.msk [vmem:[#allocation2 + $0x10] sm:$0xf] %vm908, %v880
        %914 = vst.msk [vmem:[#allocation2 + $0x14] sm:$0xf] %vm908, %v881
        %915 = vst.msk [vmem:[#allocation2 + $0x18] sm:$0xf] %vm908, %v882
        %916 = vst.msk [vmem:[#allocation2 + $0x1c] sm:$0xf] %vm908, %v883
        %917 = vst.msk [vmem:[#allocation2 + $0x20] sm:$0xf] %vm908, %v884
        %918 = vst.msk [vmem:[#allocation2 + $0x24] sm:$0xf] %vm908, %v885
        %919 = vst.msk [vmem:[#allocation2 + $0x28] sm:$0xf] %vm908, %v886
        %920 = vst.msk [vmem:[#allocation2 + $0x2c] sm:$0xf] %vm908, %v887
        %921 = vst.msk [vmem:[#allocation2 + $0x30] sm:$0xf] %vm908, %v888
        %922 = vst.msk [vmem:[#allocation2 + $0x34] sm:$0xf] %vm908, %v889
        %923 = vst.msk [vmem:[#allocation2 + $0x38] sm:$0xf] %vm908, %v890
        %924 = vst.msk [vmem:[#allocation2 + $0x3c] sm:$0xf] %vm908, %v891
      $region40: #{cam_forward.11} parent=35 // pred_fallthru
        _
      %v925 = vld [vmem:[#allocation2] sm:$0xf]
      %v926 = vld [vmem:[#allocation2 + $0x4] sm:$0xf]
      %v927 = vld [vmem:[#allocation2 + $0x8] sm:$0xf]
      %v928 = vld [vmem:[#allocation2 + $0xc] sm:$0xf]
      %v929 = vld [vmem:[#allocation2 + $0x10] sm:$0xf]
      %v930 = vld [vmem:[#allocation2 + $0x14] sm:$0xf]
      %v931 = vld [vmem:[#allocation2 + $0x18] sm:$0xf]
      %v932 = vld [vmem:[#allocation2 + $0x1c] sm:$0xf]
      %v933 = vld [vmem:[#allocation2 + $0x20] sm:$0xf]
      %v934 = vld [vmem:[#allocation2 + $0x24] sm:$0xf]
      %v935 = vld [vmem:[#allocation2 + $0x28] sm:$0xf]
      %v936 = vld [vmem:[#allocation2 + $0x2c] sm:$0xf]
      %v937 = vld [vmem:[#allocation2 + $0x30] sm:$0xf]
      %v938 = vld [vmem:[#allocation2 + $0x34] sm:$0xf]
      %v939 = vld [vmem:[#allocation2 + $0x38] sm:$0xf]
      %v940 = vld [vmem:[#allocation2 + $0x3c] sm:$0xf]
      %v941 = vld [vmem:[%s316] sm:$0xf]
      %v942 = vld [vmem:[%s316 + $0x4] sm:$0xf]
      %v943 = vld [vmem:[%s316 + $0x8] sm:$0xf]
      %v944 = vld [vmem:[%s316 + $0xc] sm:$0xf]
      %v945 = vld [vmem:[%s316 + $0x10] sm:$0xf]
      %v946 = vld [vmem:[%s316 + $0x14] sm:$0xf]
      %v947 = vld [vmem:[%s316 + $0x18] sm:$0xf]
      %v948 = vld [vmem:[%s316 + $0x1c] sm:$0xf]
      %v949 = vld [vmem:[%s316 + $0x20] sm:$0xf]
      %v950 = vld [vmem:[%s319] sm:$0x1]
      %v952 = vperm.slane %v950, 0
      %v970 = vunpack.c.l.b16 %v925
      %v971 = vunpack.c.l.b16 %v926
      %v972 = vunpack.c.l.b16 %v927
      %v973 = vunpack.c.l.b16 %v928
      %v974 = vunpack.c.l.b16 %v929
      %v975 = vunpack.c.l.b16 %v930
      %v976 = vunpack.c.l.b16 %v931
      %v977 = vunpack.c.l.b16 %v932
      %v978 = vunpack.c.l.b16 %v933
      %v979 = vunpack.c.l.b16 %v934
      %v980 = vunpack.c.l.b16 %v935
      %v981 = vunpack.c.l.b16 %v936
      %v982 = vunpack.c.l.b16 %v937
      %v983 = vunpack.c.l.b16 %v938
      %v984 = vunpack.c.l.b16 %v939
      %v985 = vunpack.c.l.b16 %v940
      %v986 = vpack.c.b16 %v971, %v970
      %v987 = vpack.c.b16 %v973, %v972
      %v988 = vpack.c.b16 %v975, %v974
      %v989 = vpack.c.b16 %v977, %v976
      %v990 = vpack.c.b16 %v979, %v978
      %v991 = vpack.c.b16 %v981, %v980
      %v992 = vpack.c.b16 %v983, %v982
      %v993 = vpack.c.b16 %v985, %v984
      %v1003 = vunpack.c.l.b16 %v941
      %v1004 = vunpack.c.l.b16 %v942
      %v1005 = vunpack.c.l.b16 %v943
      %v1006 = vunpack.c.l.b16 %v944
      %v1007 = vunpack.c.l.b16 %v945
      %v1008 = vunpack.c.l.b16 %v946
      %v1009 = vunpack.c.l.b16 %v947
      %v1010 = vunpack.c.l.b16 %v948
      %v1011 = vunpack.c.l.b16 %v949
      %v1012 = vpack.c.b16 %v1004, %v1003
      %v1013 = vpack.c.b16 %v1006, %v1005
      %v1014 = vpack.c.b16 %v1008, %v1007
      %v1015 = vpack.c.b16 %v1010, %v1009
      %v1016 = vpack.c.b16 %v1011, %v1011
      %vm1021 = vcmask 588800
      %v1023 = vsel %vm1021, %v986, 0
      %v1026 = vsel %vm1021, %v987, 0
      %v1029 = vsel %vm1021, %v988, 0
      %v1032 = vsel %vm1021, %v989, 0
      %v1035 = vsel %vm1021, %v990, 0
      %v1038 = vsel %vm1021, %v991, 0
      %v1041 = vsel %vm1021, %v992, 0
      %v1044 = vsel %vm1021, %v993, 0
      %vm1046 = vcmask 1043456
      %v1048 = vsel %vm1046, %v1016, 0
      %1050 = vmatpush.bf16.msra.mxu0 0
      %1051 = vmatpush.bf16.msra.mxu0 0
      %1052 = vmatpush.bf16.msra.mxu0 0
      %1053 = vmatpush.bf16.msra.mxu0 %v1048
      %1054 = vmatpush.bf16.msra.mxu0 %v1015
      %1055 = vmatpush.bf16.msra.mxu0 %v1014
      %1056 = vmatpush.bf16.msra.mxu0 %v1013
      %1057 = vmatpush.bf16.msra.mxu0 %v1012
      %1058 = vmatmul.bf16.gmra.mxu0 %v1023
      %v1059 = vpop.f32.mrf.mxu0
      %v1060 = vadd.f32 %v952, %v1059
      %v1061 = vpop.f32.mrf.mxu0
      %v1062 = vadd.f32 %v952, %v1061
      %1063 = vmatmul.bf16.gmra.mxu0 %v1026
      %v1064 = vpop.f32.mrf.mxu0
      %v1065 = vadd.f32 %v952, %v1064
      %v1066 = vpop.f32.mrf.mxu0
      %v1067 = vadd.f32 %v952, %v1066
      %1068 = vmatmul.bf16.gmra.mxu0 %v1029
      %v1069 = vpop.f32.mrf.mxu0
      %v1070 = vadd.f32 %v952, %v1069
      %v1071 = vpop.f32.mrf.mxu0
      %v1072 = vadd.f32 %v952, %v1071
      %1073 = vmatmul.bf16.gmra.mxu0 %v1032
      %v1074 = vpop.f32.mrf.mxu0
      %v1075 = vadd.f32 %v952, %v1074
      %v1076 = vpop.f32.mrf.mxu0
      %v1077 = vadd.f32 %v952, %v1076
      %1078 = vmatmul.bf16.gmra.mxu0 %v1035
      %v1079 = vpop.f32.mrf.mxu0
      %v1080 = vadd.f32 %v952, %v1079
      %v1081 = vpop.f32.mrf.mxu0
      %v1082 = vadd.f32 %v952, %v1081
      %1083 = vmatmul.bf16.gmra.mxu0 %v1038
      %v1084 = vpop.f32.mrf.mxu0
      %v1085 = vadd.f32 %v952, %v1084
      %v1086 = vpop.f32.mrf.mxu0
      %v1087 = vadd.f32 %v952, %v1086
      %1088 = vmatmul.bf16.gmra.mxu0 %v1041
      %v1089 = vpop.f32.mrf.mxu0
      %v1090 = vadd.f32 %v952, %v1089
      %v1091 = vpop.f32.mrf.mxu0
      %v1092 = vadd.f32 %v952, %v1091
      %1093 = vmatmul.bf16.gmra.mxu0 %v1044
      %v1094 = vpop.f32.mrf.mxu0
      %v1095 = vadd.f32 %v952, %v1094
      %v1096 = vpop.f32.mrf.mxu0
      %v1097 = vadd.f32 %v952, %v1096
      %1098 = vdwg.mxu0
      %v1099 = vmax.f32 %v1060, 0.0
      %v1100 = vmax.f32 %v1062, 0.0
      %v1101 = vmax.f32 %v1065, 0.0
      %v1102 = vmax.f32 %v1067, 0.0
      %v1103 = vmax.f32 %v1070, 0.0
      %v1104 = vmax.f32 %v1072, 0.0
      %v1105 = vmax.f32 %v1075, 0.0
      %v1106 = vmax.f32 %v1077, 0.0
      %v1107 = vmax.f32 %v1080, 0.0
      %v1108 = vmax.f32 %v1082, 0.0
      %v1109 = vmax.f32 %v1085, 0.0
      %v1110 = vmax.f32 %v1087, 0.0
      %v1111 = vmax.f32 %v1090, 0.0
      %v1112 = vmax.f32 %v1092, 0.0
      %v1113 = vmax.f32 %v1095, 0.0
      %v1114 = vmax.f32 %v1097, 0.0
      %v1115 = vpack.c.bf16 %v1099, %v1099
      %v1116 = vpack.c.bf16 %v1100, %v1100
      %v1117 = vpack.c.bf16 %v1101, %v1101
      %v1118 = vpack.c.bf16 %v1102, %v1102
      %v1119 = vpack.c.bf16 %v1103, %v1103
      %v1120 = vpack.c.bf16 %v1104, %v1104
      %v1121 = vpack.c.bf16 %v1105, %v1105
      %v1122 = vpack.c.bf16 %v1106, %v1106
      %v1123 = vpack.c.bf16 %v1107, %v1107
      %v1124 = vpack.c.bf16 %v1108, %v1108
      %v1125 = vpack.c.bf16 %v1109, %v1109
      %v1126 = vpack.c.bf16 %v1110, %v1110
      %v1127 = vpack.c.bf16 %v1111, %v1111
      %v1128 = vpack.c.bf16 %v1112, %v1112
      %v1129 = vpack.c.bf16 %v1113, %v1113
      %v1130 = vpack.c.bf16 %v1114, %v1114
      %1131 = vst [vmem:[%s332] sm:$0xf] %v1115
      %1132 = vst [vmem:[%s332 + $0x4] sm:$0xf] %v1116
      %1133 = vst [vmem:[%s332 + $0x8] sm:$0xf] %v1117
      %1134 = vst [vmem:[%s332 + $0xc] sm:$0xf] %v1118
      %1135 = vst [vmem:[%s332 + $0x10] sm:$0xf] %v1119
      %1136 = vst [vmem:[%s332 + $0x14] sm:$0xf] %v1120
      %1137 = vst [vmem:[%s332 + $0x18] sm:$0xf] %v1121
      %1138 = vst [vmem:[%s332 + $0x1c] sm:$0xf] %v1122
      %1139 = vst [vmem:[%s332 + $0x20] sm:$0xf] %v1123
      %1140 = vst [vmem:[%s332 + $0x24] sm:$0xf] %v1124
      %1141 = vst [vmem:[%s332 + $0x28] sm:$0xf] %v1125
      %1142 = vst [vmem:[%s332 + $0x2c] sm:$0xf] %v1126
      %1143 = vst [vmem:[%s332 + $0x30] sm:$0xf] %v1127
      %1144 = vst [vmem:[%s332 + $0x34] sm:$0xf] %v1128
      %1145 = vst [vmem:[%s332 + $0x38] sm:$0xf] %v1129
      %1146 = vst [vmem:[%s332 + $0x3c] sm:$0xf] %v1130
      %s1147 = smul.u32 8, %s21
      %p1148 = scmp.lt.s32.totalorder %s20, 1
      %s1149 = scalar_select %p1148, %s20, 1
      %p1150 = scmp.lt.s32.totalorder %s1147, 15
      %s1151 = scalar_select %p1150, %s1147, 15
      %p1152 = scmp.lt.s32.totalorder %s22, 0
      %s1153 = scalar_select %p1152, %s22, 0
      %s1154 = smul.addr %s1151, 2
      %s1155 = sadd.s32 %s1153, %s1154
      %s1156 = smul.addr %s1149, 32
      %s1157 = sadd.s32 %s1155, %s1156
      %s1158 = smul.addr %s1157, 4
      %s1159 = scalar_lea.vmem %s4, %s1158
      // Predicated region
      $region41: #{cam_forward.11} parent=35 // pred_check
        %p1160 = pneg %p166
      $region42: #{cam_forward.11} parent=35 // pred_check_branch
        %1162 = sbr.rel (%p1160) target = $region44
      $region43: #{cam_forward.11} parent=35 // pred_region
        %s1163 = smul.u32 8, %s21
      $region44: #{cam_forward.11} parent=35 // pred_fallthru
        _
    $region36: #{cam_forward.11} parent=5 // pred_fallthru
      _
    %p1164 = scmp.le.s32.totalorder 2, %s10
    // Predicated region
    $region45: #{cam_forward.11} parent=5 // pred_check
      %p1165 = pneg %p1164
    $region46: #{cam_forward.11} parent=5 // pred_check_branch
      %1167 = sbr.rel (%p1165) target = $region48
    $region47: #{cam_forward.11} parent=5 // pred_region
      %s1168 = ssub.s32 %s10, 2
      // Predicated region
      $region49: #{cam_forward.11} parent=47 // pred_check
        %p1169 = pneg %p172
      $region50: #{cam_forward.11} parent=47 // pred_check_branch
        %1171 = sbr.rel (%p1169) target = $region52
      $region51: #{cam_forward.11} parent=47 // pred_region
        %s1172 = smul.u32 8, %s24
        %p1173 = scmp.lt.s32.totalorder %s23, 1
        %s1174 = scalar_select %p1173, %s23, 1
        %p1175 = scmp.lt.s32.totalorder %s1172, 15
        %s1176 = scalar_select %p1175, %s1172, 15
        %p1177 = scmp.lt.s32.totalorder %s25, 0
        %s1178 = scalar_select %p1177, %s25, 0
        %s1179 = smul.addr %s1176, 2
        %s1180 = sadd.s32 %s1178, %s1179
        %s1181 = smul.addr %s1174, 32
        %s1182 = sadd.s32 %s1180, %s1181
        %s1183 = smul.addr %s1182, 4
        %s1184 = scalar_lea.vmem %s4, %s1183
      $region52: #{cam_forward.11} parent=47 // pred_fallthru
        _
    $region48: #{cam_forward.11} parent=5 // pred_fallthru
      _
  $region6: #{cam_forward.11} parent=0 // loop_footer
    %s14 = sadd.s32 1, %s10
  $region7: #{cam_forward.11} parent=0 // loop_footer_branch
    %9 = sbr.rel target = $region3
  $region8: #{cam_forward.11} parent=0 // loop_exit
    _

// kernel: cam_forward.12
$region0: #{cam_forward.12}
  #allocation0 [shape = 'u32[]', space=smem, size = 0x4, offset = 0x4, fixed_abs, tag = 'smem constant byte address 0x4 - core index']
  #allocation1 [shape = 'u32[72,128]{1,0:T(1,128)}', space=vmem, size = 0x9000, scoped, tag = 'internal scratch']
  %s0 = inlined_call_operand.vmem [shape: bf16[512,16], index: 0, kind: input, shape index: {}]
  %s1 = inlined_call_operand.vmem [shape: bf16[16,128], index: 1, kind: input, shape index: {}]
  %s2 = inlined_call_operand.vmem [shape: f32[1,128], index: 2, kind: input, shape index: {}]
  %s3 = inlined_call_operand.vmem [shape: bf16[512,128], index: 3, kind: output, shape index: {}]
  %s4 = sld [smem:[#allocation0]]
  $region45: #{cam_forward.12} parent=0
    _
  %s6 = ssub.s32 1, %s4
  %s7 = scalar_select 0, %s6, %s4
  loop: start=0, step=1, limit=4
  $region2: #{cam_forward.12} parent=0 // loop_pre_header
    _
  $region3: #{cam_forward.12} parent=0 // loop_header
    %s9 = sphi 0, %s13
    %p10 = scmp.ge.s32.totalorder %s9, 4
    %s16 = sphi 0, %s28
    %s17 = sphi 0, %s24
    %s18 = sphi 0, %s16
    %s19 = sphi 0, %s17
    %s20 = sphi 0, %s18
    %s21 = sphi 0, %s19
    %s31 = sphi 0, %s33
    %s34 = sphi 0, %s31
    %s35 = sphi 0, %s34
    %s51 = sphi 0, %s35
    %s57 = sphi 0, %s59
    %s60 = sphi 0, %s57
    %s61 = sphi 0, %s60
    %s77 = sphi 0, %s61
    %s83 = sphi 0, %s85
    %s86 = sphi 0, %s83
    %s87 = sphi 0, %s86
    %s103 = sphi 0, %s87
    %s111 = sphi 0, %s113
    %s114 = sphi 0, %s111
    %s115 = sphi 0, %s114
    %s131 = sphi 0, %s115
  $region4: #{cam_forward.12} parent=0 // loop_header_branch
    %12 = sbr.rel (%p10) target = $region8
  $region5: #{cam_forward.12} parent=0 // loop_body
    %s14 = ssub.s32 %s9, 1
    %s15 = ssub.s32 %s9, 2
    %s22 = sadd.s32 1, %s17
    %p23 = scmp.ge.s32.totalorder %s22, 1
    %s24 = scalar_select %p23, 0, %s22
    %s25 = sadd.s32 1, %s16
    %s26 = scalar_select %p23, %s25, %s16
    %p27 = scmp.ge.s32.totalorder %s26, 2
    %s28 = scalar_select %p27, 0, %s26
    %s29 = ssub.s32 %s16, %s28
    %p30 = scmp.eq.s32.totalorder %s29, 0
    %s32 = sadd.s32 %s31, 1
    %s33 = scalar_select %p30, %s31, %s32
    %p36 = pneg %p30
    %p37 = scmp.eq.s32.totalorder %s9, 1
    %p38 = por %p36, %p37
    %p39 = scmp.ne.s32.totalorder %s31, %s34
    %p40 = scmp.eq.s32.totalorder %s9, 0
    %p41 = por %p39, %p40
    %p42 = scmp.ne.s32.totalorder %s31, %s34
    %p43 = scmp.eq.s32.totalorder %s14, 1
    %p44 = por %p42, %p43
    %p45 = scmp.ne.s32.totalorder %s34, %s35
    %p46 = scmp.eq.s32.totalorder %s14, 0
    %p47 = por %p45, %p46
    %p48 = scmp.ne.s32.totalorder %s34, %s35
    %p49 = scmp.eq.s32.totalorder %s15, 1
    %p50 = por %p48, %p49
    %p52 = scmp.ne.s32.totalorder %s35, %s51
    %p53 = scmp.eq.s32.totalorder %s15, 0
    %p54 = por %p52, %p53
    %s55 = ssub.s32 %s17, %s24
    %p56 = scmp.eq.s32.totalorder %s55, 0
    %s58 = sadd.s32 %s57, 1
    %s59 = scalar_select %p56, %s57, %s58
    %p62 = pneg %p56
    %p63 = scmp.eq.s32.totalorder %s9, 1
    %p64 = por %p62, %p63
    %p65 = scmp.ne.s32.totalorder %s57, %s60
    %p66 = scmp.eq.s32.totalorder %s9, 0
    %p67 = por %p65, %p66
    %p68 = scmp.ne.s32.totalorder %s57, %s60
    %p69 = scmp.eq.s32.totalorder %s14, 1
    %p70 = por %p68, %p69
    %p71 = scmp.ne.s32.totalorder %s60, %s61
    %p72 = scmp.eq.s32.totalorder %s14, 0
    %p73 = por %p71, %p72
    %p74 = scmp.ne.s32.totalorder %s60, %s61
    %p75 = scmp.eq.s32.totalorder %s15, 1
    %p76 = por %p74, %p75
    %p78 = scmp.ne.s32.totalorder %s61, %s77
    %p79 = scmp.eq.s32.totalorder %s15, 0
    %p80 = por %p78, %p79
    %s81 = ssub.s32 %s17, %s24
    %p82 = scmp.eq.s32.totalorder %s81, 0
    %s84 = sadd.s32 %s83, 1
    %s85 = scalar_select %p82, %s83, %s84
    %p88 = pneg %p82
    %p89 = scmp.eq.s32.totalorder %s9, 1
    %p90 = por %p88, %p89
    %p91 = scmp.ne.s32.totalorder %s83, %s86
    %p92 = scmp.eq.s32.totalorder %s9, 0
    %p93 = por %p91, %p92
    %p94 = scmp.ne.s32.totalorder %s83, %s86
    %p95 = scmp.eq.s32.totalorder %s14, 1
    %p96 = por %p94, %p95
    %p97 = scmp.ne.s32.totalorder %s86, %s87
    %p98 = scmp.eq.s32.totalorder %s14, 0
    %p99 = por %p97, %p98
    %p100 = scmp.ne.s32.totalorder %s86, %s87
    %p101 = scmp.eq.s32.totalorder %s15, 1
    %p102 = por %p100, %p101
    %p104 = scmp.ne.s32.totalorder %s87, %s103
    %p105 = scmp.eq.s32.totalorder %s15, 0
    %p106 = por %p104, %p105
    %s107 = ssub.s32 %s16, %s28
    %s108 = ssub.s32 %s17, %s24
    %s109 = sor.u32 %s107, %s108
    %p110 = scmp.eq.s32.totalorder %s109, 0
    %s112 = sadd.s32 %s111, 1
    %s113 = scalar_select %p110, %s111, %s112
    %p116 = pneg %p110
    %p117 = scmp.eq.s32.totalorder %s9, 1
    %p118 = por %p116, %p117
    %p119 = scmp.ne.s32.totalorder %s111, %s114
    %p120 = scmp.eq.s32.totalorder %s9, 0
    %p121 = por %p119, %p120
    %p122 = scmp.ne.s32.totalorder %s111, %s114
    %p123 = scmp.eq.s32.totalorder %s14, 1
    %p124 = por %p122, %p123
    %p125 = scmp.ne.s32.totalorder %s114, %s115
    %p126 = scmp.eq.s32.totalorder %s14, 0
    %p127 = por %p125, %p126
    %p128 = scmp.ne.s32.totalorder %s114, %s115
    %p129 = scmp.eq.s32.totalorder %s15, 1
    %p130 = por %p128, %p129
    %p132 = scmp.ne.s32.totalorder %s115, %s131
    %p133 = scmp.eq.s32.totalorder %s15, 0
    %p134 = por %p132, %p133
    %p135 = scmp.le.s32.totalorder 1, %s9
    %p136 = scmp.lt.s32.totalorder %s9, 3
    %p137 = pnand %p135, %p136
    %p138 = pneg %p137
    // Predicated region
    $region9: #{cam_forward.12} parent=5 // pred_check
      _
    $region10: #{cam_forward.12} parent=5 // pred_check_branch
      %140 = sbr.rel (%p137) target = $region12
    $region11: #{cam_forward.12} parent=5 // pred_region
      %s141 = ssub.s32 %s9, 1
      // Predicated region
      $region13: #{cam_forward.12} parent=11 // pred_check
        %p142 = pneg %p73
      $region14: #{cam_forward.12} parent=11 // pred_check_branch
        %144 = sbr.rel (%p142) target = $region16
      $region15: #{cam_forward.12} parent=11 // pred_region
        %p145 = scmp.lt.s32.totalorder %s19, 0
        %s146 = scalar_select %p145, %s19, 0
        %s147 = smul.addr %s146, 4
        %s148 = scalar_lea.vmem %s1, %s147
      $region16: #{cam_forward.12} parent=11 // pred_fallthru
        _
      // Predicated region
      $region17: #{cam_forward.12} parent=11 // pred_check
        %p149 = pneg %p99
      $region18: #{cam_forward.12} parent=11 // pred_check_branch
        %151 = sbr.rel (%p149) target = $region20
      $region19: #{cam_forward.12} parent=11 // pred_region
        %p152 = scmp.lt.s32.totalorder %s19, 0
        %s153 = scalar_select %p152, %s19, 0
        %s154 = scalar_lea.vmem %s2, %s153
      $region20: #{cam_forward.12} parent=11 // pred_fallthru
        _
    $region12: #{cam_forward.12} parent=5 // pred_fallthru
      _
    %p155 = scmp.lt.s32.totalorder %s9, 2
    // Predicated region
    $region21: #{cam_forward.12} parent=5 // pred_check
      %p156 = pneg %p155
    $region22: #{cam_forward.12} parent=5 // pred_check_branch
      %158 = sbr.rel (%p156) target = $region24
    $region23: #{cam_forward.12} parent=5 // pred_region
      // Predicated region
      $region25: #{cam_forward.12} parent=23 // pred_check
        %p159 = pneg %p41
      $region26: #{cam_forward.12} parent=23 // pred_check_branch
        %161 = sbr.rel (%p159) target = $region28
      $region27: #{cam_forward.12} parent=23 // pred_region
        %s162 = smul.u32 32, %s16
        %p163 = scmp.lt.s32.totalorder %s162, 63
        %s164 = scalar_select %p163, %s162, 63
        %s165 = smul.addr %s164, 4
        %s166 = scalar_lea.vmem %s0, %s165
        %s167 = smul.u32 32, %s16
      $region28: #{cam_forward.12} parent=23 // pred_fallthru
        _
    $region24: #{cam_forward.12} parent=5 // pred_fallthru
      _
    %p168 = scmp.le.s32.totalorder 1, %s9
    %p169 = scmp.lt.s32.totalorder %s9, 3
    %p170 = pnand %p168, %p169
    %p171 = pneg %p170
    // Predicated region
    $region29: #{cam_forward.12} parent=5 // pred_check
      _
    $region30: #{cam_forward.12} parent=5 // pred_check_branch
      %173 = sbr.rel (%p170) target = $region32
    $region31: #{cam_forward.12} parent=5 // pred_region
      %s174 = ssub.s32 %s9, 1
      %s175 = smul.u32 32, %s18
      %p176 = scmp.lt.s32.totalorder %s175, 63
      %s177 = scalar_select %p176, %s175, 63
      %s178 = smul.addr %s177, 4
      %s179 = scalar_lea.vmem %s0, %s178
      %p180 = pneg %p47
      %p181 = pneg %p44
      %p182 = scmp.lt.s32.totalorder %s19, 0
      %s183 = scalar_select %p182, %s19, 0
      %s184 = smul.addr %s183, 4
      %s185 = scalar_lea.vmem %s1, %s184
      %p186 = pneg %p73
      %p187 = pneg %p70
      %p188 = scmp.lt.s32.totalorder %s19, 0
      %s189 = scalar_select %p188, %s19, 0
      %s190 = scalar_lea.vmem %s2, %s189
      %p191 = pneg %p99
      %p192 = pneg %p96
      %p193 = pneg %p127
      %p194 = pneg %p124
      %s195 = smul.u32 32, %s18
      %p196 = scmp.lt.s32.totalorder %s195, 63
      %s197 = scalar_select %p196, %s195, 63
      %p198 = scmp.lt.s32.totalorder %s19, 0
      %s199 = scalar_select %p198, %s19, 0
      %s200 = sadd.s32 %s199, %s197
      %s201 = smul.addr %s200, 4
      %s202 = scalar_lea.vmem %s3, %s201
      %s203 = smul.u32 32, %s18
      %p204 = scmp.lt.s32.totalorder %s203, 63
      %s205 = scalar_select %p204, %s203, 63
      %s206 = smul.addr %s205, 4
      %s207 = scalar_lea.vmem %s0, %s206
      %s208 = smul.u32 32, %s18
      %p209 = scmp.lt.s32.totalorder %s19, 0
      %s210 = scalar_select %p209, %s19, 0
      %s211 = smul.addr %s210, 4
      %s212 = scalar_lea.vmem %s1, %s211
      %p213 = scmp.lt.s32.totalorder %s19, 0
      %s214 = scalar_select %p213, %s19, 0
      %s215 = scalar_lea.vmem %s2, %s214
      %s216 = smul.u32 32, %s18
      %p217 = scmp.lt.s32.totalorder %s216, 63
      %s218 = scalar_select %p217, %s216, 63
      %p219 = scmp.lt.s32.totalorder %s19, 0
      %s220 = scalar_select %p219, %s19, 0
      %s221 = sadd.s32 %s220, %s218
      %s222 = smul.addr %s221, 4
      %s223 = scalar_lea.vmem %s3, %s222
      %s224 = smul.u32 32, %s18
      %v226 = vld [vmem:[%s207] sm:$0xf]
      %v227 = vld [vmem:[%s207 + $0x4] sm:$0xf]
      %v228 = vld [vmem:[%s207 + $0x8] sm:$0xf]
      %v229 = vld [vmem:[%s207 + $0xc] sm:$0xf]
      %v230 = vld [vmem:[%s207 + $0x10] sm:$0xf]
      %v231 = vld [vmem:[%s207 + $0x14] sm:$0xf]
      %v232 = vld [vmem:[%s207 + $0x18] sm:$0xf]
      %v233 = vld [vmem:[%s207 + $0x1c] sm:$0xf]
      %v234 = vld [vmem:[%s207 + $0x20] sm:$0xf]
      %v235 = vld [vmem:[%s207 + $0x24] sm:$0xf]
      %v236 = vld [vmem:[%s207 + $0x28] sm:$0xf]
      %v237 = vld [vmem:[%s207 + $0x2c] sm:$0xf]
      %v238 = vld [vmem:[%s207 + $0x30] sm:$0xf]
      %v239 = vld [vmem:[%s207 + $0x34] sm:$0xf]
      %v240 = vld [vmem:[%s207 + $0x38] sm:$0xf]
      %v241 = vld [vmem:[%s207 + $0x3c] sm:$0xf]
      %v242 = vld [vmem:[%s207 + $0x40] sm:$0xf]
      %v243 = vld [vmem:[%s207 + $0x44] sm:$0xf]
      %v244 = vld [vmem:[%s207 + $0x48] sm:$0xf]
      %v245 = vld [vmem:[%s207 + $0x4c] sm:$0xf]
      %v246 = vld [vmem:[%s207 + $0x50] sm:$0xf]
      %v247 = vld [vmem:[%s207 + $0x54] sm:$0xf]
      %v248 = vld [vmem:[%s207 + $0x58] sm:$0xf]
      %v249 = vld [vmem:[%s207 + $0x5c] sm:$0xf]
      %v250 = vld [vmem:[%s207 + $0x60] sm:$0xf]
      %v251 = vld [vmem:[%s207 + $0x64] sm:$0xf]
      %v252 = vld [vmem:[%s207 + $0x68] sm:$0xf]
      %v253 = vld [vmem:[%s207 + $0x6c] sm:$0xf]
      %v254 = vld [vmem:[%s207 + $0x70] sm:$0xf]
      %v255 = vld [vmem:[%s207 + $0x74] sm:$0xf]
      %v256 = vld [vmem:[%s207 + $0x78] sm:$0xf]
      %v257 = vld [vmem:[%s207 + $0x7c] sm:$0xf]
      %v258 = vld [vmem:[%s212] sm:$0xf]
      %v259 = vld [vmem:[%s212 + $0x4] sm:$0xf]
      %v260 = vld [vmem:[%s215] sm:$0x1]
      %v262 = vperm.slane %v260, 0
      %v296 = vunpack.c.l.b16 %v226
      %v297 = vunpack.c.l.b16 %v227
      %v298 = vunpack.c.l.b16 %v228
      %v299 = vunpack.c.l.b16 %v229
      %v300 = vunpack.c.l.b16 %v230
      %v301 = vunpack.c.l.b16 %v231
      %v302 = vunpack.c.l.b16 %v232
      %v303 = vunpack.c.l.b16 %v233
      %v304 = vunpack.c.l.b16 %v234
      %v305 = vunpack.c.l.b16 %v235
      %v306 = vunpack.c.l.b16 %v236
      %v307 = vunpack.c.l.b16 %v237
      %v308 = vunpack.c.l.b16 %v238
      %v309 = vunpack.c.l.b16 %v239
      %v310 = vunpack.c.l.b16 %v240
      %v311 = vunpack.c.l.b16 %v241
      %v312 = vunpack.c.l.b16 %v242
      %v313 = vunpack.c.l.b16 %v243
      %v314 = vunpack.c.l.b16 %v244
      %v315 = vunpack.c.l.b16 %v245
      %v316 = vunpack.c.l.b16 %v246
      %v317 = vunpack.c.l.b16 %v247
      %v318 = vunpack.c.l.b16 %v248
      %v319 = vunpack.c.l.b16 %v249
      %v320 = vunpack.c.l.b16 %v250
      %v321 = vunpack.c.l.b16 %v251
      %v322 = vunpack.c.l.b16 %v252
      %v323 = vunpack.c.l.b16 %v253
      %v324 = vunpack.c.l.b16 %v254
      %v325 = vunpack.c.l.b16 %v255
      %v326 = vunpack.c.l.b16 %v256
      %v327 = vunpack.c.l.b16 %v257
      %v328 = vpack.c.b16 %v297, %v296
      %v329 = vpack.c.b16 %v299, %v298
      %v330 = vpack.c.b16 %v301, %v300
      %v331 = vpack.c.b16 %v303, %v302
      %v332 = vpack.c.b16 %v305, %v304
      %v333 = vpack.c.b16 %v307, %v306
      %v334 = vpack.c.b16 %v309, %v308
      %v335 = vpack.c.b16 %v311, %v310
      %v336 = vpack.c.b16 %v313, %v312
      %v337 = vpack.c.b16 %v315, %v314
      %v338 = vpack.c.b16 %v317, %v316
      %v339 = vpack.c.b16 %v319, %v318
      %v340 = vpack.c.b16 %v321, %v320
      %v341 = vpack.c.b16 %v323, %v322
      %v342 = vpack.c.b16 %v325, %v324
      %v343 = vpack.c.b16 %v327, %v326
      %v346 = vunpack.c.l.b16 %v258
      %v347 = vunpack.c.l.b16 %v259
      %v348 = vpack.c.b16 %v347, %v346
      %vm350 = vcmask 130048
      %v352 = vsel %vm350, %v328, 0
      %v355 = vsel %vm350, %v329, 0
      %v358 = vsel %vm350, %v330, 0
      %v361 = vsel %vm350, %v331, 0
      %v364 = vsel %vm350, %v332, 0
      %v367 = vsel %vm350, %v333, 0
      %v370 = vsel %vm350, %v334, 0
      %v373 = vsel %vm350, %v335, 0
      %v376 = vsel %vm350, %v336, 0
      %v379 = vsel %vm350, %v337, 0
      %v382 = vsel %vm350, %v338, 0
      %v385 = vsel %vm350, %v339, 0
      %v388 = vsel %vm350, %v340, 0
      %v391 = vsel %vm350, %v341, 0
      %v394 = vsel %vm350, %v342, 0
      %v397 = vsel %vm350, %v343, 0
      %399 = vmatpush.bf16.msra.mxu0 0
      %400 = vmatpush.bf16.msra.mxu0 0
      %401 = vmatpush.bf16.msra.mxu0 0
      %402 = vmatpush.bf16.msra.mxu0 0
      %403 = vmatpush.bf16.msra.mxu0 0
      %404 = vmatpush.bf16.msra.mxu0 0
      %405 = vmatpush.bf16.msra.mxu0 0
      %406 = vmatpush.bf16.msra.mxu0 %v348
      %407 = vmatmul.bf16.gmra.mxu0 %v352
      %v408 = vpop.f32.mrf.mxu0
      %v409 = vadd.f32 %v262, %v408
      %v410 = vpop.f32.mrf.mxu0
      %v411 = vadd.f32 %v262, %v410
      %412 = vmatmul.bf16.gmra.mxu0 %v355
      %v413 = vpop.f32.mrf.mxu0
      %v414 = vadd.f32 %v262, %v413
      %v415 = vpop.f32.mrf.mxu0
      %v416 = vadd.f32 %v262, %v415
      %417 = vmatmul.bf16.gmra.mxu0 %v358
      %v418 = vpop.f32.mrf.mxu0
      %v419 = vadd.f32 %v262, %v418
      %v420 = vpop.f32.mrf.mxu0
      %v421 = vadd.f32 %v262, %v420
      %422 = vmatmul.bf16.gmra.mxu0 %v361
      %v423 = vpop.f32.mrf.mxu0
      %v424 = vadd.f32 %v262, %v423
      %v425 = vpop.f32.mrf.mxu0
      %v426 = vadd.f32 %v262, %v425
      %427 = vmatmul.bf16.gmra.mxu0 %v364
      %v428 = vpop.f32.mrf.mxu0
      %v429 = vadd.f32 %v262, %v428
      %v430 = vpop.f32.mrf.mxu0
      %v431 = vadd.f32 %v262, %v430
      %432 = vmatmul.bf16.gmra.mxu0 %v367
      %v433 = vpop.f32.mrf.mxu0
      %v434 = vadd.f32 %v262, %v433
      %v435 = vpop.f32.mrf.mxu0
      %v436 = vadd.f32 %v262, %v435
      %437 = vmatmul.bf16.gmra.mxu0 %v370
      %v438 = vpop.f32.mrf.mxu0
      %v439 = vadd.f32 %v262, %v438
      %v440 = vpop.f32.mrf.mxu0
      %v441 = vadd.f32 %v262, %v440
      %442 = vmatmul.bf16.gmra.mxu0 %v373
      %v443 = vpop.f32.mrf.mxu0
      %v444 = vadd.f32 %v262, %v443
      %v445 = vpop.f32.mrf.mxu0
      %v446 = vadd.f32 %v262, %v445
      %447 = vmatmul.bf16.gmra.mxu0 %v376
      %v448 = vpop.f32.mrf.mxu0
      %v449 = vadd.f32 %v262, %v448
      %v450 = vpop.f32.mrf.mxu0
      %v451 = vadd.f32 %v262, %v450
      %452 = vmatmul.bf16.gmra.mxu0 %v379
      %v453 = vpop.f32.mrf.mxu0
      %v454 = vadd.f32 %v262, %v453
      %v455 = vpop.f32.mrf.mxu0
      %v456 = vadd.f32 %v262, %v455
      %457 = vmatmul.bf16.gmra.mxu0 %v382
      %v458 = vpop.f32.mrf.mxu0
      %v459 = vadd.f32 %v262, %v458
      %v460 = vpop.f32.mrf.mxu0
      %v461 = vadd.f32 %v262, %v460
      %462 = vmatmul.bf16.gmra.mxu0 %v385
      %v463 = vpop.f32.mrf.mxu0
      %v464 = vadd.f32 %v262, %v463
      %v465 = vpop.f32.mrf.mxu0
      %v466 = vadd.f32 %v262, %v465
      %467 = vmatmul.bf16.gmra.mxu0 %v388
      %v468 = vpop.f32.mrf.mxu0
      %v469 = vadd.f32 %v262, %v468
      %v470 = vpop.f32.mrf.mxu0
      %v471 = vadd.f32 %v262, %v470
      %472 = vmatmul.bf16.gmra.mxu0 %v391
      %v473 = vpop.f32.mrf.mxu0
      %v474 = vadd.f32 %v262, %v473
      %v475 = vpop.f32.mrf.mxu0
      %v476 = vadd.f32 %v262, %v475
      %477 = vmatmul.bf16.gmra.mxu0 %v394
      %v478 = vpop.f32.mrf.mxu0
      %v479 = vadd.f32 %v262, %v478
      %v480 = vpop.f32.mrf.mxu0
      %v481 = vadd.f32 %v262, %v480
      %482 = vmatmul.bf16.gmra.mxu0 %v397
      %v483 = vpop.f32.mrf.mxu0
      %v484 = vadd.f32 %v262, %v483
      %v485 = vpop.f32.mrf.mxu0
      %v486 = vadd.f32 %v262, %v485
      %487 = vdwg.mxu0
      %v488 = vmax.f32 %v409, 0.0
      %v489 = vmax.f32 %v411, 0.0
      %v490 = vmax.f32 %v414, 0.0
      %v491 = vmax.f32 %v416, 0.0
      %v492 = vmax.f32 %v419, 0.0
      %v493 = vmax.f32 %v421, 0.0
      %v494 = vmax.f32 %v424, 0.0
      %v495 = vmax.f32 %v426, 0.0
      %v496 = vmax.f32 %v429, 0.0
      %v497 = vmax.f32 %v431, 0.0
      %v498 = vmax.f32 %v434, 0.0
      %v499 = vmax.f32 %v436, 0.0
      %v500 = vmax.f32 %v439, 0.0
      %v501 = vmax.f32 %v441, 0.0
      %v502 = vmax.f32 %v444, 0.0
      %v503 = vmax.f32 %v446, 0.0
      %v504 = vmax.f32 %v449, 0.0
      %v505 = vmax.f32 %v451, 0.0
      %v506 = vmax.f32 %v454, 0.0
      %v507 = vmax.f32 %v456, 0.0
      %v508 = vmax.f32 %v459, 0.0
      %v509 = vmax.f32 %v461, 0.0
      %v510 = vmax.f32 %v464, 0.0
      %v511 = vmax.f32 %v466, 0.0
      %v512 = vmax.f32 %v469, 0.0
      %v513 = vmax.f32 %v471, 0.0
      %v514 = vmax.f32 %v474, 0.0
      %v515 = vmax.f32 %v476, 0.0
      %v516 = vmax.f32 %v479, 0.0
      %v517 = vmax.f32 %v481, 0.0
      %v518 = vmax.f32 %v484, 0.0
      %v519 = vmax.f32 %v486, 0.0
      %v520 = vpack.c.bf16 %v488, %v488
      %v521 = vpack.c.bf16 %v489, %v489
      %v522 = vpack.c.bf16 %v490, %v490
      %v523 = vpack.c.bf16 %v491, %v491
      %v524 = vpack.c.bf16 %v492, %v492
      %v525 = vpack.c.bf16 %v493, %v493
      %v526 = vpack.c.bf16 %v494, %v494
      %v527 = vpack.c.bf16 %v495, %v495
      %v528 = vpack.c.bf16 %v496, %v496
      %v529 = vpack.c.bf16 %v497, %v497
      %v530 = vpack.c.bf16 %v498, %v498
      %v531 = vpack.c.bf16 %v499, %v499
      %v532 = vpack.c.bf16 %v500, %v500
      %v533 = vpack.c.bf16 %v501, %v501
      %v534 = vpack.c.bf16 %v502, %v502
      %v535 = vpack.c.bf16 %v503, %v503
      %v536 = vpack.c.bf16 %v504, %v504
      %v537 = vpack.c.bf16 %v505, %v505
      %v538 = vpack.c.bf16 %v506, %v506
      %v539 = vpack.c.bf16 %v507, %v507
      %v540 = vpack.c.bf16 %v508, %v508
      %v541 = vpack.c.bf16 %v509, %v509
      %v542 = vpack.c.bf16 %v510, %v510
      %v543 = vpack.c.bf16 %v511, %v511
      %v544 = vpack.c.bf16 %v512, %v512
      %v545 = vpack.c.bf16 %v513, %v513
      %v546 = vpack.c.bf16 %v514, %v514
      %v547 = vpack.c.bf16 %v515, %v515
      %v548 = vpack.c.bf16 %v516, %v516
      %v549 = vpack.c.bf16 %v517, %v517
      %v550 = vpack.c.bf16 %v518, %v518
      %v551 = vpack.c.bf16 %v519, %v519
      %552 = vst [vmem:[%s223] sm:$0xf] %v520
      %553 = vst [vmem:[%s223 + $0x4] sm:$0xf] %v521
      %554 = vst [vmem:[%s223 + $0x8] sm:$0xf] %v522
      %555 = vst [vmem:[%s223 + $0xc] sm:$0xf] %v523
      %556 = vst [vmem:[%s223 + $0x10] sm:$0xf] %v524
      %557 = vst [vmem:[%s223 + $0x14] sm:$0xf] %v525
      %558 = vst [vmem:[%s223 + $0x18] sm:$0xf] %v526
      %559 = vst [vmem:[%s223 + $0x1c] sm:$0xf] %v527
      %560 = vst [vmem:[%s223 + $0x20] sm:$0xf] %v528
      %561 = vst [vmem:[%s223 + $0x24] sm:$0xf] %v529
      %562 = vst [vmem:[%s223 + $0x28] sm:$0xf] %v530
      %563 = vst [vmem:[%s223 + $0x2c] sm:$0xf] %v531
      %564 = vst [vmem:[%s223 + $0x30] sm:$0xf] %v532
      %565 = vst [vmem:[%s223 + $0x34] sm:$0xf] %v533
      %566 = vst [vmem:[%s223 + $0x38] sm:$0xf] %v534
      %567 = vst [vmem:[%s223 + $0x3c] sm:$0xf] %v535
      %568 = vst [vmem:[%s223 + $0x40] sm:$0xf] %v536
      %569 = vst [vmem:[%s223 + $0x44] sm:$0xf] %v537
      %570 = vst [vmem:[%s223 + $0x48] sm:$0xf] %v538
      %571 = vst [vmem:[%s223 + $0x4c] sm:$0xf] %v539
      %572 = vst [vmem:[%s223 + $0x50] sm:$0xf] %v540
      %573 = vst [vmem:[%s223 + $0x54] sm:$0xf] %v541
      %574 = vst [vmem:[%s223 + $0x58] sm:$0xf] %v542
      %575 = vst [vmem:[%s223 + $0x5c] sm:$0xf] %v543
      %576 = vst [vmem:[%s223 + $0x60] sm:$0xf] %v544
      %577 = vst [vmem:[%s223 + $0x64] sm:$0xf] %v545
      %578 = vst [vmem:[%s223 + $0x68] sm:$0xf] %v546
      %579 = vst [vmem:[%s223 + $0x6c] sm:$0xf] %v547
      %580 = vst [vmem:[%s223 + $0x70] sm:$0xf] %v548
      %581 = vst [vmem:[%s223 + $0x74] sm:$0xf] %v549
      %582 = vst [vmem:[%s223 + $0x78] sm:$0xf] %v550
      %583 = vst [vmem:[%s223 + $0x7c] sm:$0xf] %v551
      %s584 = smul.u32 32, %s18
      %p585 = scmp.lt.s32.totalorder %s584, 63
      %s586 = scalar_select %p585, %s584, 63
      %p587 = scmp.lt.s32.totalorder %s19, 0
      %s588 = scalar_select %p587, %s19, 0
      %s589 = sadd.s32 %s588, %s586
      %s590 = smul.addr %s589, 4
      %s591 = scalar_lea.vmem %s3, %s590
      // Predicated region
      $region33: #{cam_forward.12} parent=31 // pred_check
        %p592 = pneg %p124
      $region34: #{cam_forward.12} parent=31 // pred_check_branch
        %594 = sbr.rel (%p592) target = $region36
      $region35: #{cam_forward.12} parent=31 // pred_region
        %s595 = smul.u32 32, %s18
      $region36: #{cam_forward.12} parent=31 // pred_fallthru
        _
    $region32: #{cam_forward.12} parent=5 // pred_fallthru
      _
    %p596 = scmp.le.s32.totalorder 2, %s9
    // Predicated region
    $region37: #{cam_forward.12} parent=5 // pred_check
      %p597 = pneg %p596
    $region38: #{cam_forward.12} parent=5 // pred_check_branch
      %599 = sbr.rel (%p597) target = $region40
    $region39: #{cam_forward.12} parent=5 // pred_region
      %s600 = ssub.s32 %s9, 2
      // Predicated region
      $region41: #{cam_forward.12} parent=39 // pred_check
        %p601 = pneg %p130
      $region42: #{cam_forward.12} parent=39 // pred_check_branch
        %603 = sbr.rel (%p601) target = $region44
      $region43: #{cam_forward.12} parent=39 // pred_region
        %s604 = smul.u32 32, %s20
        %p605 = scmp.lt.s32.totalorder %s604, 63
        %s606 = scalar_select %p605, %s604, 63
        %p607 = scmp.lt.s32.totalorder %s21, 0
        %s608 = scalar_select %p607, %s21, 0
        %s609 = sadd.s32 %s608, %s606
        %s610 = smul.addr %s609, 4
        %s611 = scalar_lea.vmem %s3, %s610
      $region44: #{cam_forward.12} parent=39 // pred_fallthru
        _
    $region40: #{cam_forward.12} parent=5 // pred_fallthru
      _
  $region6: #{cam_forward.12} parent=0 // loop_footer
    %s13 = sadd.s32 1, %s9
  $region7: #{cam_forward.12} parent=0 // loop_footer_branch
    %8 = sbr.rel target = $region3
  $region8: #{cam_forward.12} parent=0 // loop_exit
    _

// kernel: cam_forward.13
$region0: #{cam_forward.13}
  #allocation0 [shape = 'u32[]', space=smem, size = 0x4, offset = 0x4, fixed_abs, tag = 'smem constant byte address 0x4 - core index']
  #allocation1 [shape = 'u32[72,128]{1,0:T(1,128)}', space=vmem, size = 0x9000, scoped, tag = 'internal scratch']
  #allocation2 [shape = 'bf16[128,144]{1,0:T(8,128)(2,1)}', space=vmem, size = 0x10000, scoped, tag = 'scratch operand']
  %s0 = inlined_call_operand.vmem [shape: bf16[2,24,18,16], index: 0, kind: input, shape index: {}, may-alias: {0,1}]
  %s1 = inlined_call_operand.vmem [shape: bf16[2,24,18,16], index: 1, kind: input, shape index: {}, may-alias: {0,1}]
  %s2 = inlined_call_operand.vmem [shape: bf16[144,128], index: 2, kind: input, shape index: {}]
  %s3 = inlined_call_operand.vmem [shape: f32[1,128], index: 3, kind: input, shape index: {}]
  %s4 = inlined_call_operand.vmem [shape: bf16[2,16,16,128], index: 4, kind: output, shape index: {}]
  %s5 = sld [smem:[#allocation0]]
  $region53: #{cam_forward.13} parent=0
    _
  %s7 = ssub.s32 1, %s5
  %s8 = scalar_select 0, %s7, %s5
  loop: start=0, step=1, limit=6
  $region2: #{cam_forward.13} parent=0 // loop_pre_header
    _
  $region3: #{cam_forward.13} parent=0 // loop_header
    %s10 = sphi 0, %s14
    %p11 = scmp.ge.s32.totalorder %s10, 6
    %s17 = sphi 0, %s36
    %s18 = sphi 0, %s32
    %s19 = sphi 0, %s28
    %s20 = sphi 0, %s17
    %s21 = sphi 0, %s18
    %s22 = sphi 0, %s19
    %s23 = sphi 0, %s20
    %s24 = sphi 0, %s21
    %s25 = sphi 0, %s22
    %s41 = sphi 0, %s43
    %s44 = sphi 0, %s41
    %s45 = sphi 0, %s44
    %s61 = sphi 0, %s45
    %s71 = sphi 0, %s73
    %s74 = sphi 0, %s71
    %s75 = sphi 0, %s74
    %s91 = sphi 0, %s75
    %s97 = sphi 0, %s99
    %s100 = sphi 0, %s97
    %s101 = sphi 0, %s100
    %s117 = sphi 0, %s101
    %s123 = sphi 0, %s125
    %s126 = sphi 0, %s123
    %s127 = sphi 0, %s126
    %s143 = sphi 0, %s127
    %s153 = sphi 0, %s155
    %s156 = sphi 0, %s153
    %s157 = sphi 0, %s156
    %s173 = sphi 0, %s157
  $region4: #{cam_forward.13} parent=0 // loop_header_branch
    %13 = sbr.rel (%p11) target = $region8
  $region5: #{cam_forward.13} parent=0 // loop_body
    %s15 = ssub.s32 %s10, 1
    %s16 = ssub.s32 %s10, 2
    %s26 = sadd.s32 1, %s19
    %p27 = scmp.ge.s32.totalorder %s26, 1
    %s28 = scalar_select %p27, 0, %s26
    %s29 = sadd.s32 1, %s18
    %s30 = scalar_select %p27, %s29, %s18
    %p31 = scmp.ge.s32.totalorder %s30, 2
    %s32 = scalar_select %p31, 0, %s30
    %s33 = sadd.s32 1, %s17
    %s34 = scalar_select %p31, %s33, %s17
    %p35 = scmp.ge.s32.totalorder %s34, 2
    %s36 = scalar_select %p35, 0, %s34
    %s37 = ssub.s32 %s17, %s36
    %s38 = ssub.s32 %s18, %s32
    %s39 = sor.u32 %s37, %s38
    %p40 = scmp.eq.s32.totalorder %s39, 0
    %s42 = sadd.s32 %s41, 1
    %s43 = scalar_select %p40, %s41, %s42
    %p46 = pneg %p40
    %p47 = scmp.eq.s32.totalorder %s10, 3
    %p48 = por %p46, %p47
    %p49 = scmp.ne.s32.totalorder %s41, %s44
    %p50 = scmp.eq.s32.totalorder %s10, 0
    %p51 = por %p49, %p50
    %p52 = scmp.ne.s32.totalorder %s41, %s44
    %p53 = scmp.eq.s32.totalorder %s15, 3
    %p54 = por %p52, %p53
    %p55 = scmp.ne.s32.totalorder %s44, %s45
    %p56 = scmp.eq.s32.totalorder %s15, 0
    %p57 = por %p55, %p56
    %p58 = scmp.ne.s32.totalorder %s44, %s45
    %p59 = scmp.eq.s32.totalorder %s16, 3
    %p60 = por %p58, %p59
    %p62 = scmp.ne.s32.totalorder %s45, %s61
    %p63 = scmp.eq.s32.totalorder %s16, 0
    %p64 = por %p62, %p63
    %s65 = sadd.s32 %s18, 1
    %s66 = sadd.s32 %s32, 1
    %s67 = ssub.s32 %s17, %s36
    %s68 = ssub.s32 %s65, %s66
    %s69 = sor.u32 %s67, %s68
    %p70 = scmp.eq.s32.totalorder %s69, 0
    %s72 = sadd.s32 %s71, 1
    %s73 = scalar_select %p70, %s71, %s72
    %p76 = pneg %p70
    %p77 = scmp.eq.s32.totalorder %s10, 3
    %p78 = por %p76, %p77
    %p79 = scmp.ne.s32.totalorder %s71, %s74
    %p80 = scmp.eq.s32.totalorder %s10, 0
    %p81 = por %p79, %p80
    %p82 = scmp.ne.s32.totalorder %s71, %s74
    %p83 = scmp.eq.s32.totalorder %s15, 3
    %p84 = por %p82, %p83
    %p85 = scmp.ne.s32.totalorder %s74, %s75
    %p86 = scmp.eq.s32.totalorder %s15, 0
    %p87 = por %p85, %p86
    %p88 = scmp.ne.s32.totalorder %s74, %s75
    %p89 = scmp.eq.s32.totalorder %s16, 3
    %p90 = por %p88, %p89
    %p92 = scmp.ne.s32.totalorder %s75, %s91
    %p93 = scmp.eq.s32.totalorder %s16, 0
    %p94 = por %p92, %p93
    %s95 = ssub.s32 %s19, %s28
    %p96 = scmp.eq.s32.totalorder %s95, 0
    %s98 = sadd.s32 %s97, 1
    %s99 = scalar_select %p96, %s97, %s98
    %p102 = pneg %p96
    %p103 = scmp.eq.s32.totalorder %s10, 3
    %p104 = por %p102, %p103
    %p105 = scmp.ne.s32.totalorder %s97, %s100
    %p106 = scmp.eq.s32.totalorder %s10, 0
    %p107 = por %p105, %p106
    %p108 = scmp.ne.s32.totalorder %s97, %s100
    %p109 = scmp.eq.s32.totalorder %s15, 3
    %p110 = por %p108, %p109
    %p111 = scmp.ne.s32.totalorder %s100, %s101
    %p112 = scmp.eq.s32.totalorder %s15, 0
    %p113 = por %p111, %p112
    %p114 = scmp.ne.s32.totalorder %s100, %s101
    %p115 = scmp.eq.s32.totalorder %s16, 3
    %p116 = por %p114, %p115
    %p118 = scmp.ne.s32.totalorder %s101, %s117
    %p119 = scmp.eq.s32.totalorder %s16, 0
    %p120 = por %p118, %p119
    %s121 = ssub.s32 %s19, %s28
    %p122 = scmp.eq.s32.totalorder %s121, 0
    %s124 = sadd.s32 %s123, 1
    %s125 = scalar_select %p122, %s123, %s124
    %p128 = pneg %p122
    %p129 = scmp.eq.s32.totalorder %s10, 3
    %p130 = por %p128, %p129
    %p131 = scmp.ne.s32.totalorder %s123, %s126
    %p132 = scmp.eq.s32.totalorder %s10, 0
    %p133 = por %p131, %p132
    %p134 = scmp.ne.s32.totalorder %s123, %s126
    %p135 = scmp.eq.s32.totalorder %s15, 3
    %p136 = por %p134, %p135
    %p137 = scmp.ne.s32.totalorder %s126, %s127
    %p138 = scmp.eq.s32.totalorder %s15, 0
    %p139 = por %p137, %p138
    %p140 = scmp.ne.s32.totalorder %s126, %s127
    %p141 = scmp.eq.s32.totalorder %s16, 3
    %p142 = por %p140, %p141
    %p144 = scmp.ne.s32.totalorder %s127, %s143
    %p145 = scmp.eq.s32.totalorder %s16, 0
    %p146 = por %p144, %p145
    %s147 = ssub.s32 %s17, %s36
    %s148 = ssub.s32 %s18, %s32
    %s149 = sor.u32 %s147, %s148
    %s150 = ssub.s32 %s19, %s28
    %s151 = sor.u32 %s149, %s150
    %p152 = scmp.eq.s32.totalorder %s151, 0
    %s154 = sadd.s32 %s153, 1
    %s155 = scalar_select %p152, %s153, %s154
    %p158 = pneg %p152
    %p159 = scmp.eq.s32.totalorder %s10, 3
    %p160 = por %p158, %p159
    %p161 = scmp.ne.s32.totalorder %s153, %s156
    %p162 = scmp.eq.s32.totalorder %s10, 0
    %p163 = por %p161, %p162
    %p164 = scmp.ne.s32.totalorder %s153, %s156
    %p165 = scmp.eq.s32.totalorder %s15, 3
    %p166 = por %p164, %p165
    %p167 = scmp.ne.s32.totalorder %s156, %s157
    %p168 = scmp.eq.s32.totalorder %s15, 0
    %p169 = por %p167, %p168
    %p170 = scmp.ne.s32.totalorder %s156, %s157
    %p171 = scmp.eq.s32.totalorder %s16, 3
    %p172 = por %p170, %p171
    %p174 = scmp.ne.s32.totalorder %s157, %s173
    %p175 = scmp.eq.s32.totalorder %s16, 0
    %p176 = por %p174, %p175
    %p177 = scmp.le.s32.totalorder 1, %s10
    %p178 = scmp.lt.s32.totalorder %s10, 5
    %p179 = pnand %p177, %p178
    %p180 = pneg %p179
    // Predicated region
    $region9: #{cam_forward.13} parent=5 // pred_check
      _
    $region10: #{cam_forward.13} parent=5 // pred_check_branch
      %182 = sbr.rel (%p179) target = $region12
    $region11: #{cam_forward.13} parent=5 // pred_region
      %s183 = ssub.s32 %s10, 1
      // Predicated region
      $region13: #{cam_forward.13} parent=11 // pred_check
        %p184 = pneg %p113
      $region14: #{cam_forward.13} parent=11 // pred_check_branch
        %186 = sbr.rel (%p184) target = $region16
      $region15: #{cam_forward.13} parent=11 // pred_region
        %p187 = scmp.lt.s32.totalorder %s22, 0
        %s188 = scalar_select %p187, %s22, 0
        %s189 = smul.addr %s188, 4
        %s190 = scalar_lea.vmem %s2, %s189
      $region16: #{cam_forward.13} parent=11 // pred_fallthru
        _
      // Predicated region
      $region17: #{cam_forward.13} parent=11 // pred_check
        %p191 = pneg %p139
      $region18: #{cam_forward.13} parent=11 // pred_check_branch
        %193 = sbr.rel (%p191) target = $region20
      $region19: #{cam_forward.13} parent=11 // pred_region
        %p194 = scmp.lt.s32.totalorder %s22, 0
        %s195 = scalar_select %p194, %s22, 0
        %s196 = scalar_lea.vmem %s3, %s195
      $region20: #{cam_forward.13} parent=11 // pred_fallthru
        _
    $region12: #{cam_forward.13} parent=5 // pred_fallthru
      _
    %p197 = scmp.lt.s32.totalorder %s10, 4
    // Predicated region
    $region21: #{cam_forward.13} parent=5 // pred_check
      %p198 = pneg %p197
    $region22: #{cam_forward.13} parent=5 // pred_check_branch
      %200 = sbr.rel (%p198) target = $region24
    $region23: #{cam_forward.13} parent=5 // pred_region
      // Predicated region
      $region25: #{cam_forward.13} parent=23 // pred_check
        %p201 = pneg %p51
      $region26: #{cam_forward.13} parent=23 // pred_check_branch
        %203 = sbr.rel (%p201) target = $region28
      $region27: #{cam_forward.13} parent=23 // pred_region
        %s204 = smul.u32 8, %s18
        %p205 = scmp.lt.s32.totalorder %s17, 1
        %s206 = scalar_select %p205, %s17, 1
        %p207 = scmp.lt.s32.totalorder %s204, 23
        %s208 = scalar_select %p207, %s204, 23
        %s209 = smul.addr %s208, 3
        %s210 = smul.addr %s206, 72
        %s211 = sadd.s32 %s209, %s210
        %s212 = smul.addr %s211, 4
        %s213 = scalar_lea.vmem %s0, %s212
        %s214 = smul.u32 8, %s18
      $region28: #{cam_forward.13} parent=23 // pred_fallthru
        _
      // Predicated region
      $region29: #{cam_forward.13} parent=23 // pred_check
        %p215 = pneg %p81
      $region30: #{cam_forward.13} parent=23 // pred_check_branch
        %217 = sbr.rel (%p215) target = $region32
      $region31: #{cam_forward.13} parent=23 // pred_region
        %s218 = sadd.s32 %s18, 1
        %s219 = smul.u32 8, %s218
        %p220 = scmp.lt.s32.totalorder %s17, 1
        %s221 = scalar_select %p220, %s17, 1
        %p222 = scmp.lt.s32.totalorder %s219, 23
        %s223 = scalar_select %p222, %s219, 23
        %s224 = smul.addr %s223, 3
        %s225 = smul.addr %s221, 72
        %s226 = sadd.s32 %s224, %s225
        %s227 = smul.addr %s226, 4
        %s228 = scalar_lea.vmem %s1, %s227
        %s229 = sadd.s32 %s18, 1
        %s230 = smul.u32 8, %s229
      $region32: #{cam_forward.13} parent=23 // pred_fallthru
        _
    $region24: #{cam_forward.13} parent=5 // pred_fallthru
      _
    %p231 = scmp.le.s32.totalorder 1, %s10
    %p232 = scmp.lt.s32.totalorder %s10, 5
    %p233 = pnand %p231, %p232
    %p234 = pneg %p233
    // Predicated region
    $region33: #{cam_forward.13} parent=5 // pred_check
      _
    $region34: #{cam_forward.13} parent=5 // pred_check_branch
      %236 = sbr.rel (%p233) target = $region36
    $region35: #{cam_forward.13} parent=5 // pred_region
      %s237 = ssub.s32 %s10, 1
      %s238 = smul.u32 8, %s21
      %p239 = scmp.lt.s32.totalorder %s20, 1
      %s240 = scalar_select %p239, %s20, 1
      %p241 = scmp.lt.s32.totalorder %s238, 23
      %s242 = scalar_select %p241, %s238, 23
      %s243 = smul.addr %s242, 3
      %s244 = smul.addr %s240, 72
      %s245 = sadd.s32 %s243, %s244
      %s246 = smul.addr %s245, 4
      %s247 = scalar_lea.vmem %s0, %s246
      %p248 = pneg %p57
      %p249 = pneg %p54
      %s250 = sadd.s32 %s21, 1
      %s251 = smul.u32 8, %s250
      %p252 = scmp.lt.s32.totalorder %s20, 1
      %s253 = scalar_select %p252, %s20, 1
      %p254 = scmp.lt.s32.totalorder %s251, 23
      %s255 = scalar_select %p254, %s251, 23
      %s256 = smul.addr %s255, 3
      %s257 = smul.addr %s253, 72
      %s258 = sadd.s32 %s256, %s257
      %s259 = smul.addr %s258, 4
      %s260 = scalar_lea.vmem %s1, %s259
      %p261 = pneg %p87
      %p262 = pneg %p84
      %p263 = scmp.lt.s32.totalorder %s22, 0
      %s264 = scalar_select %p263, %s22, 0
      %s265 = smul.addr %s264, 4
      %s266 = scalar_lea.vmem %s2, %s265
      %p267 = pneg %p113
      %p268 = pneg %p110
      %p269 = scmp.lt.s32.totalorder %s22, 0
      %s270 = scalar_select %p269, %s22, 0
      %s271 = scalar_lea.vmem %s3, %s270
      %p272 = pneg %p139
      %p273 = pneg %p136
      %p274 = pneg %p169
      %p275 = pneg %p166
      %s276 = smul.u32 8, %s21
      %p277 = scmp.lt.s32.totalorder %s20, 1
      %s278 = scalar_select %p277, %s20, 1
      %p279 = scmp.lt.s32.totalorder %s276, 15
      %s280 = scalar_select %p279, %s276, 15
      %p281 = scmp.lt.s32.totalorder %s22, 0
      %s282 = scalar_select %p281, %s22, 0
      %s283 = smul.addr %s280, 2
      %s284 = sadd.s32 %s282, %s283
      %s285 = smul.addr %s278, 32
      %s286 = sadd.s32 %s284, %s285
      %s287 = smul.addr %s286, 4
      %s288 = scalar_lea.vmem %s4, %s287
      %s289 = smul.u32 8, %s21
      %p290 = scmp.lt.s32.totalorder %s20, 1
      %s291 = scalar_select %p290, %s20, 1
      %p292 = scmp.lt.s32.totalorder %s289, 23
      %s293 = scalar_select %p292, %s289, 23
      %s294 = smul.addr %s293, 3
      %s295 = smul.addr %s291, 72
      %s296 = sadd.s32 %s294, %s295
      %s297 = smul.addr %s296, 4
      %s298 = scalar_lea.vmem %s0, %s297
      %s299 = smul.u32 8, %s21
      %s300 = sadd.s32 %s21, 1
      %s301 = smul.u32 8, %s300
      %p302 = scmp.lt.s32.totalorder %s20, 1
      %s303 = scalar_select %p302, %s20, 1
      %p304 = scmp.lt.s32.totalorder %s301, 23
      %s305 = scalar_select %p304, %s301, 23
      %s306 = smul.addr %s305, 3
      %s307 = smul.addr %s303, 72
      %s308 = sadd.s32 %s306, %s307
      %s309 = smul.addr %s308, 4
      %s310 = scalar_lea.vmem %s1, %s309
      %s311 = sadd.s32 %s21, 1
      %s312 = smul.u32 8, %s311
      %p313 = scmp.lt.s32.totalorder %s22, 0
      %s314 = scalar_select %p313, %s22, 0
      %s315 = smul.addr %s314, 4
      %s316 = scalar_lea.vmem %s2, %s315
      %p317 = scmp.lt.s32.totalorder %s22, 0
      %s318 = scalar_select %p317, %s22, 0
      %s319 = scalar_lea.vmem %s3, %s318
      %s320 = smul.u32 8, %s21
      %p321 = scmp.lt.s32.totalorder %s20, 1
      %s322 = scalar_select %p321, %s20, 1
      %p323 = scmp.lt.s32.totalorder %s320, 15
      %s324 = scalar_select %p323, %s320, 15
      %p325 = scmp.lt.s32.totalorder %s22, 0
      %s326 = scalar_select %p325, %s22, 0
      %s327 = smul.addr %s324, 2
      %s328 = sadd.s32 %s326, %s327
      %s329 = smul.addr %s322, 32
      %s330 = sadd.s32 %s328, %s329
      %s331 = smul.addr %s330, 4
      %s332 = scalar_lea.vmem %s4, %s331
      %s333 = smul.u32 8, %s21
      %p335 = scmp.eq.s32.totalorder %s22, 0
      // Predicated region
      $region37: #{cam_forward.13} parent=35 // pred_check
        %p336 = pneg %p335
      $region38: #{cam_forward.13} parent=35 // pred_check_branch
        %338 = sbr.rel (%p336) target = $region40
      $region39: #{cam_forward.13} parent=35 // pred_region
        %v339 = vld [vmem:[%s298] sm:$0xf]
        %v340 = vld [vmem:[%s298 + $0x4] sm:$0xf]
        %v341 = vld [vmem:[%s298 + $0x8] sm:$0x1]
        %v342 = vld [vmem:[%s298 + $0xc] sm:$0xf]
        %v343 = vld [vmem:[%s298 + $0x10] sm:$0xf]
        %v344 = vld [vmem:[%s298 + $0x14] sm:$0x1]
        %v345 = vld [vmem:[%s298 + $0x18] sm:$0xf]
        %v346 = vld [vmem:[%s298 + $0x1c] sm:$0xf]
        %v347 = vld [vmem:[%s298 + $0x20] sm:$0x1]
        %v348 = vld [vmem:[%s298 + $0x24] sm:$0xf]
        %v349 = vld [vmem:[%s298 + $0x28] sm:$0xf]
        %v350 = vld [vmem:[%s298 + $0x2c] sm:$0x1]
        %v351 = vld [vmem:[%s298 + $0x30] sm:$0xf]
        %v352 = vld [vmem:[%s298 + $0x34] sm:$0xf]
        %v353 = vld [vmem:[%s298 + $0x38] sm:$0x1]
        %v354 = vld [vmem:[%s298 + $0x3c] sm:$0xf]
        %v355 = vld [vmem:[%s298 + $0x40] sm:$0xf]
        %v356 = vld [vmem:[%s298 + $0x44] sm:$0x1]
        %v357 = vld [vmem:[%s298 + $0x48] sm:$0xf]
        %v358 = vld [vmem:[%s298 + $0x4c] sm:$0xf]
        %v359 = vld [vmem:[%s298 + $0x50] sm:$0x1]
        %v360 = vld [vmem:[%s298 + $0x54] sm:$0xf]
        %v361 = vld [vmem:[%s298 + $0x58] sm:$0xf]
        %v362 = vld [vmem:[%s298 + $0x5c] sm:$0x1]
        %v363 = vld [vmem:[%s310] sm:$0xf]
        %v364 = vld [vmem:[%s310 + $0x4] sm:$0xf]
        %v365 = vld [vmem:[%s310 + $0x8] sm:$0x1]
        %v366 = vld [vmem:[%s310 + $0xc] sm:$0xf]
        %v367 = vld [vmem:[%s310 + $0x10] sm:$0xf]
        %v368 = vld [vmem:[%s310 + $0x14] sm:$0x1]
        %v385 = vunpack.c.l.b16 %v339
        %v386 = vunpack.c.l.b16 %v340
        %v387 = vunpack.c.l.b16 %v342
        %v388 = vunpack.c.l.b16 %v343
        %v389 = vunpack.c.l.b16 %v345
        %v390 = vunpack.c.l.b16 %v346
        %v391 = vunpack.c.l.b16 %v348
        %v392 = vunpack.c.l.b16 %v349
        %v393 = vunpack.c.l.b16 %v351
        %v394 = vunpack.c.l.b16 %v352
        %v395 = vunpack.c.l.b16 %v354
        %v396 = vunpack.c.l.b16 %v355
        %v397 = vunpack.c.l.b16 %v357
        %v398 = vunpack.c.l.b16 %v358
        %v399 = vunpack.c.l.b16 %v360
        %v400 = vunpack.c.l.b16 %v361
        %v401 = vpack.c.b16 %v386, %v385
        %v402 = vpack.c.b16 %v388, %v387
        %v403 = vpack.c.b16 %v390, %v389
        %v404 = vpack.c.b16 %v392, %v391
        %v405 = vpack.c.b16 %v394, %v393
        %v406 = vpack.c.b16 %v396, %v395
        %v407 = vpack.c.b16 %v398, %v397
        %v408 = vpack.c.b16 %v400, %v399
        %v417 = vunpack.c.l.b16 %v341
        %v418 = vunpack.c.l.b16 %v344
        %v419 = vunpack.c.l.b16 %v347
        %v420 = vunpack.c.l.b16 %v350
        %v421 = vunpack.c.l.b16 %v353
        %v422 = vunpack.c.l.b16 %v356
        %v423 = vunpack.c.l.b16 %v359
        %v424 = vunpack.c.l.b16 %v362
        %v425 = vpack.c.b16 %v417, %v417
        %v426 = vpack.c.b16 %v418, %v418
        %v427 = vpack.c.b16 %v419, %v419
        %v428 = vpack.c.b16 %v420, %v420
        %v429 = vpack.c.b16 %v421, %v421
        %v430 = vpack.c.b16 %v422, %v422
        %v431 = vpack.c.b16 %v423, %v423
        %v432 = vpack.c.b16 %v424, %v424
        %vm433 = vsmask.f32 7424
        %v435 = vshrl.u32 %v401, 16
        %v437 = vshll.u32 %v401, 16
        %v439 = vrot.slane %v437, 1
        %v440 = vor.u32 %v435, %v439
        %v442 = vshll.u32 %v425, 16
        %v444 = vrot.slane %v442, 1
        %v445 = vsel %vm433, %v440, %v444
        %v447 = vshrl.u32 %v402, 16
        %v449 = vshll.u32 %v402, 16
        %v451 = vrot.slane %v449, 1
        %v452 = vor.u32 %v447, %v451
        %v454 = vshll.u32 %v426, 16
        %v456 = vrot.slane %v454, 1
        %v457 = vsel %vm433, %v452, %v456
        %v459 = vshrl.u32 %v403, 16
        %v461 = vshll.u32 %v403, 16
        %v463 = vrot.slane %v461, 1
        %v464 = vor.u32 %v459, %v463
        %v466 = vshll.u32 %v427, 16
        %v468 = vrot.slane %v466, 1
        %v469 = vsel %vm433, %v464, %v468
        %v471 = vshrl.u32 %v404, 16
        %v473 = vshll.u32 %v404, 16
        %v475 = vrot.slane %v473, 1
        %v476 = vor.u32 %v471, %v475
        %v478 = vshll.u32 %v428, 16
        %v480 = vrot.slane %v478, 1
        %v481 = vsel %vm433, %v476, %v480
        %v483 = vshrl.u32 %v405, 16
        %v485 = vshll.u32 %v405, 16
        %v487 = vrot.slane %v485, 1
        %v488 = vor.u32 %v483, %v487
        %v490 = vshll.u32 %v429, 16
        %v492 = vrot.slane %v490, 1
        %v493 = vsel %vm433, %v488, %v492
        %v495 = vshrl.u32 %v406, 16
        %v497 = vshll.u32 %v406, 16
        %v499 = vrot.slane %v497, 1
        %v500 = vor.u32 %v495, %v499
        %v502 = vshll.u32 %v430, 16
        %v504 = vrot.slane %v502, 1
        %v505 = vsel %vm433, %v500, %v504
        %v507 = vshrl.u32 %v407, 16
        %v509 = vshll.u32 %v407, 16
        %v511 = vrot.slane %v509, 1
        %v512 = vor.u32 %v507, %v511
        %v514 = vshll.u32 %v431, 16
        %v516 = vrot.slane %v514, 1
        %v517 = vsel %vm433, %v512, %v516
        %v519 = vshrl.u32 %v408, 16
        %v521 = vshll.u32 %v408, 16
        %v523 = vrot.slane %v521, 1
        %v524 = vor.u32 %v519, %v523
        %v526 = vshll.u32 %v432, 16
        %v528 = vrot.slane %v526, 1
        %v529 = vsel %vm433, %v524, %v528
        %530 = vrot.lane.b32.xlu0 %v445, 16
        %v531 = vpop.permute.xlu0 %530
        %532 = vrot.lane.b32.xlu0 %v457, 16
        %v533 = vpop.permute.xlu0 %532
        %534 = vrot.lane.b32.xlu0 %v469, 16
        %v535 = vpop.permute.xlu0 %534
        %536 = vrot.lane.b32.xlu0 %v481, 16
        %v537 = vpop.permute.xlu0 %536
        %538 = vrot.lane.b32.xlu0 %v493, 16
        %v539 = vpop.permute.xlu0 %538
        %540 = vrot.lane.b32.xlu0 %v505, 16
        %v541 = vpop.permute.xlu0 %540
        %542 = vrot.lane.b32.xlu0 %v517, 16
        %v543 = vpop.permute.xlu0 %542
        %544 = vrot.lane.b32.xlu0 %v529, 16
        %v545 = vpop.permute.xlu0 %544
        %vm546 = vcmask 1046528
        %v547 = vrot.slane %v401, 1
        %v548 = vrot.slane %v425, 1
        %v549 = vsel %vm546, %v547, %v548
        %v550 = vrot.slane %v402, 1
        %v551 = vrot.slane %v426, 1
        %v552 = vsel %vm546, %v550, %v551
        %v553 = vrot.slane %v403, 1
        %v554 = vrot.slane %v427, 1
        %v555 = vsel %vm546, %v553, %v554
        %v556 = vrot.slane %v404, 1
        %v557 = vrot.slane %v428, 1
        %v558 = vsel %vm546, %v556, %v557
        %v559 = vrot.slane %v405, 1
        %v560 = vrot.slane %v429, 1
        %v561 = vsel %vm546, %v559, %v560
        %v562 = vrot.slane %v406, 1
        %v563 = vrot.slane %v430, 1
        %v564 = vsel %vm546, %v562, %v563
        %v565 = vrot.slane %v407, 1
        %v566 = vrot.slane %v431, 1
        %v567 = vsel %vm546, %v565, %v566
        %v568 = vrot.slane %v408, 1
        %v569 = vrot.slane %v432, 1
        %v570 = vsel %vm546, %v568, %v569
        %571 = vrot.lane.b32.xlu0 %v549, 32
        %v572 = vpop.permute.xlu0 %571
        %573 = vrot.lane.b32.xlu0 %v552, 32
        %v574 = vpop.permute.xlu0 %573
        %575 = vrot.lane.b32.xlu0 %v555, 32
        %v576 = vpop.permute.xlu0 %575
        %577 = vrot.lane.b32.xlu0 %v558, 32
        %v578 = vpop.permute.xlu0 %577
        %579 = vrot.lane.b32.xlu0 %v561, 32
        %v580 = vpop.permute.xlu0 %579
        %581 = vrot.lane.b32.xlu0 %v564, 32
        %v582 = vpop.permute.xlu0 %581
        %583 = vrot.lane.b32.xlu0 %v567, 32
        %v584 = vpop.permute.xlu0 %583
        %585 = vrot.lane.b32.xlu0 %v570, 32
        %v586 = vpop.permute.xlu0 %585
        %v589 = vunpack.c.l.b16 %v363
        %v590 = vunpack.c.l.b16 %v364
        %v591 = vpack.c.b16 %v590, %v589
        %592 = vrot.lane.b32.xlu0 %v402, 48
        %v593 = vpop.permute.xlu0 %592
        %594 = vrot.lane.b32.xlu0 %v403, 48
        %v595 = vpop.permute.xlu0 %594
        %596 = vrot.lane.b32.xlu0 %v404, 48
        %v597 = vpop.permute.xlu0 %596
        %598 = vrot.lane.b32.xlu0 %v405, 48
        %v599 = vpop.permute.xlu0 %598
        %600 = vrot.lane.b32.xlu0 %v406, 48
        %v601 = vpop.permute.xlu0 %600
        %602 = vrot.lane.b32.xlu0 %v407, 48
        %v603 = vpop.permute.xlu0 %602
        %604 = vrot.lane.b32.xlu0 %v408, 48
        %v605 = vpop.permute.xlu0 %604
        %606 = vrot.lane.b32.xlu0 %v591, 48
        %v607 = vpop.permute.xlu0 %606
        %v609 = vunpack.c.l.b16 %v365
        %v610 = vpack.c.b16 %v609, %v609
        %v612 = vshrl.u32 %v591, 16
        %v614 = vshll.u32 %v591, 16
        %v616 = vrot.slane %v614, 1
        %v617 = vor.u32 %v612, %v616
        %v619 = vshll.u32 %v610, 16
        %v621 = vrot.slane %v619, 1
        %v622 = vsel %vm433, %v617, %v621
        %623 = vrot.lane.b32.xlu0 %v457, 64
        %v624 = vpop.permute.xlu0 %623
        %625 = vrot.lane.b32.xlu0 %v469, 64
        %v626 = vpop.permute.xlu0 %625
        %627 = vrot.lane.b32.xlu0 %v481, 64
        %v628 = vpop.permute.xlu0 %627
        %629 = vrot.lane.b32.xlu0 %v493, 64
        %v630 = vpop.permute.xlu0 %629
        %631 = vrot.lane.b32.xlu0 %v505, 64
        %v632 = vpop.permute.xlu0 %631
        %633 = vrot.lane.b32.xlu0 %v517, 64
        %v634 = vpop.permute.xlu0 %633
        %635 = vrot.lane.b32.xlu0 %v529, 64
        %v636 = vpop.permute.xlu0 %635
        %637 = vrot.lane.b32.xlu0 %v622, 64
        %v638 = vpop.permute.xlu0 %637
        %v639 = vrot.slane %v591, 1
        %v640 = vrot.slane %v610, 1
        %v641 = vsel %vm546, %v639, %v640
        %642 = vrot.lane.b32.xlu0 %v552, 80
        %v643 = vpop.permute.xlu0 %642
        %644 = vrot.lane.b32.xlu0 %v555, 80
        %v645 = vpop.permute.xlu0 %644
        %646 = vrot.lane.b32.xlu0 %v558, 80
        %v647 = vpop.permute.xlu0 %646
        %648 = vrot.lane.b32.xlu0 %v561, 80
        %v649 = vpop.permute.xlu0 %648
        %650 = vrot.lane.b32.xlu0 %v564, 80
        %v651 = vpop.permute.xlu0 %650
        %652 = vrot.lane.b32.xlu0 %v567, 80
        %v653 = vpop.permute.xlu0 %652
        %654 = vrot.lane.b32.xlu0 %v570, 80
        %v655 = vpop.permute.xlu0 %654
        %656 = vrot.lane.b32.xlu0 %v641, 80
        %v657 = vpop.permute.xlu0 %656
        %v660 = vunpack.c.l.b16 %v366
        %v661 = vunpack.c.l.b16 %v367
        %v662 = vpack.c.b16 %v661, %v660
        %663 = vrot.lane.b32.xlu0 %v403, 96
        %v664 = vpop.permute.xlu0 %663
        %665 = vrot.lane.b32.xlu0 %v404, 96
        %v666 = vpop.permute.xlu0 %665
        %667 = vrot.lane.b32.xlu0 %v405, 96
        %v668 = vpop.permute.xlu0 %667
        %669 = vrot.lane.b32.xlu0 %v406, 96
        %v670 = vpop.permute.xlu0 %669
        %671 = vrot.lane.b32.xlu0 %v407, 96
        %v672 = vpop.permute.xlu0 %671
        %673 = vrot.lane.b32.xlu0 %v408, 96
        %v674 = vpop.permute.xlu0 %673
        %675 = vrot.lane.b32.xlu0 %v591, 96
        %v676 = vpop.permute.xlu0 %675
        %677 = vrot.lane.b32.xlu0 %v662, 96
        %v678 = vpop.permute.xlu0 %677
        %v680 = vunpack.c.l.b16 %v368
        %v681 = vpack.c.b16 %v680, %v680
        %v683 = vshrl.u32 %v662, 16
        %v685 = vshll.u32 %v662, 16
        %v687 = vrot.slane %v685, 1
        %v688 = vor.u32 %v683, %v687
        %v690 = vshll.u32 %v681, 16
        %v692 = vrot.slane %v690, 1
        %v693 = vsel %vm433, %v688, %v692
        %694 = vrot.lane.b32.xlu0 %v469, 112
        %v695 = vpop.permute.xlu0 %694
        %696 = vrot.lane.b32.xlu0 %v481, 112
        %v697 = vpop.permute.xlu0 %696
        %698 = vrot.lane.b32.xlu0 %v493, 112
        %v699 = vpop.permute.xlu0 %698
        %700 = vrot.lane.b32.xlu0 %v505, 112
        %v701 = vpop.permute.xlu0 %700
        %702 = vrot.lane.b32.xlu0 %v517, 112
        %v703 = vpop.permute.xlu0 %702
        %704 = vrot.lane.b32.xlu0 %v529, 112
        %v705 = vpop.permute.xlu0 %704
        %706 = vrot.lane.b32.xlu0 %v622, 112
        %v707 = vpop.permute.xlu0 %706
        %708 = vrot.lane.b32.xlu0 %v693, 112
        %v709 = vpop.permute.xlu0 %708
        %v710 = vrot.slane %v662, 1
        %v711 = vrot.slane %v681, 1
        %v712 = vsel %vm546, %v710, %v711
        %vm713 = vcmask 130048
        %v715 = vsel %vm713, %v401, %v531
        %v717 = vsel %vm713, %v402, %v533
        %v719 = vsel %vm713, %v403, %v535
        %v721 = vsel %vm713, %v404, %v537
        %v723 = vsel %vm713, %v405, %v539
        %v725 = vsel %vm713, %v406, %v541
        %v727 = vsel %vm713, %v407, %v543
        %v729 = vsel %vm713, %v408, %v545
        %vm730 = vcmask 261120
        %v732 = vsel %vm730, %v715, %v572
        %v734 = vsel %vm730, %v717, %v574
        %v736 = vsel %vm730, %v719, %v576
        %v738 = vsel %vm730, %v721, %v578
        %v740 = vsel %vm730, %v723, %v580
        %v742 = vsel %vm730, %v725, %v582
        %v744 = vsel %vm730, %v727, %v584
        %v746 = vsel %vm730, %v729, %v586
        %vm747 = vcmask 392192
        %v749 = vsel %vm747, %v732, %v593
        %v751 = vsel %vm747, %v734, %v595
        %v753 = vsel %vm747, %v736, %v597
        %v755 = vsel %vm747, %v738, %v599
        %v757 = vsel %vm747, %v740, %v601
        %v759 = vsel %vm747, %v742, %v603
        %v761 = vsel %vm747, %v744, %v605
        %v763 = vsel %vm747, %v746, %v607
        %vm764 = vcmask 523264
        %v766 = vsel %vm764, %v749, %v624
        %v768 = vsel %vm764, %v751, %v626
        %v770 = vsel %vm764, %v753, %v628
        %v772 = vsel %vm764, %v755, %v630
        %v774 = vsel %vm764, %v757, %v632
        %v776 = vsel %vm764, %v759, %v634
        %v778 = vsel %vm764, %v761, %v636
        %v780 = vsel %vm764, %v763, %v638
        %vm781 = vcmask 654336
        %v783 = vsel %vm781, %v766, %v643
        %v785 = vsel %vm781, %v768, %v645
        %v787 = vsel %vm781, %v770, %v647
        %v789 = vsel %vm781, %v772, %v649
        %v791 = vsel %vm781, %v774, %v651
        %v793 = vsel %vm781, %v776, %v653
        %v795 = vsel %vm781, %v778, %v655
        %v797 = vsel %vm781, %v780, %v657
        %vm798 = vcmask 785408
        %v800 = vsel %vm798, %v783, %v664
        %v802 = vsel %vm798, %v785, %v666
        %v804 = vsel %vm798, %v787, %v668
        %v806 = vsel %vm798, %v789, %v670
        %v808 = vsel %vm798, %v791, %v672
        %v810 = vsel %vm798, %v793, %v674
        %v812 = vsel %vm798, %v795, %v676
        %v814 = vsel %vm798, %v797, %v678
        %vm815 = vcmask 916480
        %v817 = vsel %vm815, %v800, %v695
        %v819 = vsel %vm815, %v802, %v697
        %v821 = vsel %vm815, %v804, %v699
        %v823 = vsel %vm815, %v806, %v701
        %v825 = vsel %vm815, %v808, %v703
        %v827 = vsel %vm815, %v810, %v705
        %v829 = vsel %vm815, %v812, %v707
        %v831 = vsel %vm815, %v814, %v709
        %v840 = vunpack.c.l.b16 %v817
        %v841 = vunpack.c.l.b16 %v555
        %v842 = vunpack.c.h.b16 %v817
        %v843 = vunpack.c.h.b16 %v555
        %v844 = vunpack.c.l.b16 %v819
        %v845 = vunpack.c.l.b16 %v558
        %v846 = vunpack.c.h.b16 %v819
        %v847 = vunpack.c.h.b16 %v558
        %v848 = vunpack.c.l.b16 %v821
        %v849 = vunpack.c.l.b16 %v561
        %v850 = vunpack.c.h.b16 %v821
        %v851 = vunpack.c.h.b16 %v561
        %v852 = vunpack.c.l.b16 %v823
        %v853 = vunpack.c.l.b16 %v564
        %v854 = vunpack.c.h.b16 %v823
        %v855 = vunpack.c.h.b16 %v564
        %v856 = vunpack.c.l.b16 %v825
        %v857 = vunpack.c.l.b16 %v567
        %v858 = vunpack.c.h.b16 %v825
        %v859 = vunpack.c.h.b16 %v567
        %v860 = vunpack.c.l.b16 %v827
        %v861 = vunpack.c.l.b16 %v570
        %v862 = vunpack.c.h.b16 %v827
        %v863 = vunpack.c.h.b16 %v570
        %v864 = vunpack.c.l.b16 %v829
        %v865 = vunpack.c.l.b16 %v641
        %v866 = vunpack.c.h.b16 %v829
        %v867 = vunpack.c.h.b16 %v641
        %v868 = vunpack.c.l.b16 %v831
        %v869 = vunpack.c.l.b16 %v712
        %v870 = vunpack.c.h.b16 %v831
        %v871 = vunpack.c.h.b16 %v712
        %v872 = vpack.c.b16 %v841, %v840
        %v873 = vpack.c.b16 %v843, %v842
        %v874 = vpack.c.b16 %v845, %v844
        %v875 = vpack.c.b16 %v847, %v846
        %v876 = vpack.c.b16 %v849, %v848
        %v877 = vpack.c.b16 %v851, %v850
        %v878 = vpack.c.b16 %v853, %v852
        %v879 = vpack.c.b16 %v855, %v854
        %v880 = vpack.c.b16 %v857, %v856
        %v881 = vpack.c.b16 %v859, %v858
        %v882 = vpack.c.b16 %v861, %v860
        %v883 = vpack.c.b16 %v863, %v862
        %v884 = vpack.c.b16 %v865, %v864
        %v885 = vpack.c.b16 %v867, %v866
        %v886 = vpack.c.b16 %v869, %v868
        %v887 = vpack.c.b16 %v871, %v870
        %vm904 = vcmask 1043456
        %vm905 = vcmask 130052
        %vm906 = vmor %vm905, %vm904
        %907 = vst.msk [vmem:[#allocation2] sm:$0xff] %vm906, %v872
        %908 = vst.msk [vmem:[#allocation2 + $0x8] sm:$0xff] %vm906, %v873
        %909 = vst.msk [vmem:[#allocation2 + $0x10] sm:$0xff] %vm906, %v874
        %910 = vst.msk [vmem:[#allocation2 + $0x18] sm:$0xff] %vm906, %v875
        %911 = vst.msk [vmem:[#allocation2 + $0x20] sm:$0xff] %vm906, %v876
        %912 = vst.msk [vmem:[#allocation2 + $0x28] sm:$0xff] %vm906, %v877
        %913 = vst.msk [vmem:[#allocation2 + $0x30] sm:$0xff] %vm906, %v878
        %914 = vst.msk [vmem:[#allocation2 + $0x38] sm:$0xff] %vm906, %v879
        %915 = vst.msk [vmem:[#allocation2 + $0x40] sm:$0xff] %vm906, %v880
        %916 = vst.msk [vmem:[#allocation2 + $0x48] sm:$0xff] %vm906, %v881
        %917 = vst.msk [vmem:[#allocation2 + $0x50] sm:$0xff] %vm906, %v882
        %918 = vst.msk [vmem:[#allocation2 + $0x58] sm:$0xff] %vm906, %v883
        %919 = vst.msk [vmem:[#allocation2 + $0x60] sm:$0xff] %vm906, %v884
        %920 = vst.msk [vmem:[#allocation2 + $0x68] sm:$0xff] %vm906, %v885
        %921 = vst.msk [vmem:[#allocation2 + $0x70] sm:$0xff] %vm906, %v886
        %922 = vst.msk [vmem:[#allocation2 + $0x78] sm:$0xff] %vm906, %v887
      $region40: #{cam_forward.13} parent=35 // pred_fallthru
        _
      %v923 = vld [vmem:[#allocation2] sm:$0xff]
      %v924 = vld [vmem:[#allocation2 + $0x8] sm:$0xff]
      %v925 = vld [vmem:[#allocation2 + $0x10] sm:$0xff]
      %v926 = vld [vmem:[#allocation2 + $0x18] sm:$0xff]
      %v927 = vld [vmem:[#allocation2 + $0x20] sm:$0xff]
      %v928 = vld [vmem:[#allocation2 + $0x28] sm:$0xff]
      %v929 = vld [vmem:[#allocation2 + $0x30] sm:$0xff]
      %v930 = vld [vmem:[#allocation2 + $0x38] sm:$0xff]
      %v931 = vld [vmem:[#allocation2 + $0x40] sm:$0xff]
      %v932 = vld [vmem:[#allocation2 + $0x48] sm:$0xff]
      %v933 = vld [vmem:[#allocation2 + $0x50] sm:$0xff]
      %v934 = vld [vmem:[#allocation2 + $0x58] sm:$0xff]
      %v935 = vld [vmem:[#allocation2 + $0x60] sm:$0xff]
      %v936 = vld [vmem:[#allocation2 + $0x68] sm:$0xff]
      %v937 = vld [vmem:[#allocation2 + $0x70] sm:$0xff]
      %v938 = vld [vmem:[#allocation2 + $0x78] sm:$0xff]
      %v939 = vld [vmem:[%s316] sm:$0xf]
      %v940 = vld [vmem:[%s316 + $0x4] sm:$0xf]
      %v941 = vld [vmem:[%s316 + $0x8] sm:$0xf]
      %v942 = vld [vmem:[%s316 + $0xc] sm:$0xf]
      %v943 = vld [vmem:[%s316 + $0x10] sm:$0xf]
      %v944 = vld [vmem:[%s316 + $0x14] sm:$0xf]
      %v945 = vld [vmem:[%s316 + $0x18] sm:$0xf]
      %v946 = vld [vmem:[%s316 + $0x1c] sm:$0xf]
      %v947 = vld [vmem:[%s316 + $0x20] sm:$0xf]
      %v948 = vld [vmem:[%s316 + $0x24] sm:$0xf]
      %v949 = vld [vmem:[%s316 + $0x28] sm:$0xf]
      %v950 = vld [vmem:[%s316 + $0x2c] sm:$0xf]
      %v951 = vld [vmem:[%s316 + $0x30] sm:$0xf]
      %v952 = vld [vmem:[%s316 + $0x34] sm:$0xf]
      %v953 = vld [vmem:[%s316 + $0x38] sm:$0xf]
      %v954 = vld [vmem:[%s316 + $0x3c] sm:$0xf]
      %v955 = vld [vmem:[%s316 + $0x40] sm:$0xf]
      %v956 = vld [vmem:[%s316 + $0x44] sm:$0xf]
      %v957 = vld [vmem:[%s319] sm:$0x1]
      %v959 = vperm.slane %v957, 0
      %v977 = vunpack.c.l.b16 %v923
      %v978 = vunpack.c.h.b16 %v923
      %v979 = vunpack.c.l.b16 %v924
      %v980 = vunpack.c.h.b16 %v924
      %v981 = vunpack.c.l.b16 %v925
      %v982 = vunpack.c.h.b16 %v925
      %v983 = vunpack.c.l.b16 %v926
      %v984 = vunpack.c.h.b16 %v926
      %v985 = vunpack.c.l.b16 %v927
      %v986 = vunpack.c.h.b16 %v927
      %v987 = vunpack.c.l.b16 %v928
      %v988 = vunpack.c.h.b16 %v928
      %v989 = vunpack.c.l.b16 %v929
      %v990 = vunpack.c.h.b16 %v929
      %v991 = vunpack.c.l.b16 %v930
      %v992 = vunpack.c.h.b16 %v930
      %v993 = vunpack.c.l.b16 %v931
      %v994 = vunpack.c.h.b16 %v931
      %v995 = vunpack.c.l.b16 %v932
      %v996 = vunpack.c.h.b16 %v932
      %v997 = vunpack.c.l.b16 %v933
      %v998 = vunpack.c.h.b16 %v933
      %v999 = vunpack.c.l.b16 %v934
      %v1000 = vunpack.c.h.b16 %v934
      %v1001 = vunpack.c.l.b16 %v935
      %v1002 = vunpack.c.h.b16 %v935
      %v1003 = vunpack.c.l.b16 %v936
      %v1004 = vunpack.c.h.b16 %v936
      %v1005 = vunpack.c.l.b16 %v937
      %v1006 = vunpack.c.h.b16 %v937
      %v1007 = vunpack.c.l.b16 %v938
      %v1008 = vunpack.c.h.b16 %v938
      %v1009 = vpack.c.b16 %v979, %v977
      %v1010 = vpack.c.b16 %v980, %v978
      %v1011 = vpack.c.b16 %v983, %v981
      %v1012 = vpack.c.b16 %v984, %v982
      %v1013 = vpack.c.b16 %v987, %v985
      %v1014 = vpack.c.b16 %v988, %v986
      %v1015 = vpack.c.b16 %v991, %v989
      %v1016 = vpack.c.b16 %v992, %v990
      %v1017 = vpack.c.b16 %v995, %v993
      %v1018 = vpack.c.b16 %v996, %v994
      %v1019 = vpack.c.b16 %v999, %v997
      %v1020 = vpack.c.b16 %v1000, %v998
      %v1021 = vpack.c.b16 %v1003, %v1001
      %v1022 = vpack.c.b16 %v1004, %v1002
      %v1023 = vpack.c.b16 %v1007, %v1005
      %v1024 = vpack.c.b16 %v1008, %v1006
      %v1051 = vunpack.c.l.b16 %v939
      %v1052 = vunpack.c.l.b16 %v940
      %v1053 = vunpack.c.l.b16 %v941
      %v1054 = vunpack.c.l.b16 %v942
      %v1055 = vunpack.c.l.b16 %v943
      %v1056 = vunpack.c.l.b16 %v944
      %v1057 = vunpack.c.l.b16 %v945
      %v1058 = vunpack.c.l.b16 %v946
      %v1059 = vunpack.c.l.b16 %v947
      %v1060 = vunpack.c.l.b16 %v948
      %v1061 = vunpack.c.l.b16 %v949
      %v1062 = vunpack.c.l.b16 %v950
      %v1063 = vunpack.c.l.b16 %v951
      %v1064 = vunpack.c.l.b16 %v952
      %v1065 = vunpack.c.l.b16 %v953
      %v1066 = vunpack.c.l.b16 %v954
      %v1067 = vunpack.c.l.b16 %v955
      %v1068 = vunpack.c.l.b16 %v956
      %v1069 = vpack.c.b16 %v1052, %v1051
      %v1070 = vpack.c.b16 %v1054, %v1053
      %v1071 = vpack.c.b16 %v1056, %v1055
      %v1072 = vpack.c.b16 %v1058, %v1057
      %v1073 = vpack.c.b16 %v1060, %v1059
      %v1074 = vpack.c.b16 %v1062, %v1061
      %v1075 = vpack.c.b16 %v1064, %v1063
      %v1076 = vpack.c.b16 %v1066, %v1065
      %v1077 = vpack.c.b16 %v1068, %v1067
      %vm1087 = vcmask 130048
      %v1089 = vsel %vm1087, %v1010, 0
      %v1092 = vsel %vm1087, %v1012, 0
      %v1095 = vsel %vm1087, %v1014, 0
      %v1098 = vsel %vm1087, %v1016, 0
      %v1101 = vsel %vm1087, %v1018, 0
      %v1104 = vsel %vm1087, %v1020, 0
      %v1107 = vsel %vm1087, %v1022, 0
      %v1110 = vsel %vm1087, %v1024, 0
      %1112 = vmatpush.bf16.msra.mxu0 %v1076
      %1113 = vmatpush.bf16.msra.mxu0 %v1075
      %1114 = vmatpush.bf16.msra.mxu0 %v1074
      %1115 = vmatpush.bf16.msra.mxu0 %v1073
      %1116 = vmatpush.bf16.msra.mxu0 %v1072
      %1117 = vmatpush.bf16.msra.mxu0 %v1071
      %1118 = vmatpush.bf16.msra.mxu0 %v1070
      %1119 = vmatpush.bf16.msra.mxu0 %v1069
      %1120 = vmatmul.bf16.gmra.mxu0 %v1009
      %v1121 = vpop.f32.mrf.mxu0
      %v1122 = vadd.f32 %v959, %v1121
      %v1123 = vpop.f32.mrf.mxu0
      %v1124 = vadd.f32 %v959, %v1123
      %1125 = vmatmul.bf16.gmra.mxu0 %v1011
      %v1126 = vpop.f32.mrf.mxu0
      %v1127 = vadd.f32 %v959, %v1126
      %v1128 = vpop.f32.mrf.mxu0
      %v1129 = vadd.f32 %v959, %v1128
      %1130 = vmatmul.bf16.gmra.mxu0 %v1013
      %v1131 = vpop.f32.mrf.mxu0
      %v1132 = vadd.f32 %v959, %v1131
      %v1133 = vpop.f32.mrf.mxu0
      %v1134 = vadd.f32 %v959, %v1133
      %1135 = vmatmul.bf16.gmra.mxu0 %v1015
      %v1136 = vpop.f32.mrf.mxu0
      %v1137 = vadd.f32 %v959, %v1136
      %v1138 = vpop.f32.mrf.mxu0
      %v1139 = vadd.f32 %v959, %v1138
      %1140 = vmatmul.bf16.gmra.mxu0 %v1017
      %v1141 = vpop.f32.mrf.mxu0
      %v1142 = vadd.f32 %v959, %v1141
      %v1143 = vpop.f32.mrf.mxu0
      %v1144 = vadd.f32 %v959, %v1143
      %1145 = vmatmul.bf16.gmra.mxu0 %v1019
      %v1146 = vpop.f32.mrf.mxu0
      %v1147 = vadd.f32 %v959, %v1146
      %v1148 = vpop.f32.mrf.mxu0
      %v1149 = vadd.f32 %v959, %v1148
      %1150 = vmatmul.bf16.gmra.mxu0 %v1021
      %v1151 = vpop.f32.mrf.mxu0
      %v1152 = vadd.f32 %v959, %v1151
      %v1153 = vpop.f32.mrf.mxu0
      %v1154 = vadd.f32 %v959, %v1153
      %1155 = vmatmul.bf16.gmra.mxu0 %v1023
      %v1156 = vpop.f32.mrf.mxu0
      %v1157 = vadd.f32 %v959, %v1156
      %v1158 = vpop.f32.mrf.mxu0
      %v1159 = vadd.f32 %v959, %v1158
      %1160 = vdwg.mxu0
      %1161 = vmatpush.bf16.msra.mxu0 0
      %1162 = vmatpush.bf16.msra.mxu0 0
      %1163 = vmatpush.bf16.msra.mxu0 0
      %1164 = vmatpush.bf16.msra.mxu0 0
      %1165 = vmatpush.bf16.msra.mxu0 0
      %1166 = vmatpush.bf16.msra.mxu0 0
      %1167 = vmatpush.bf16.msra.mxu0 0
      %1168 = vmatpush.bf16.msra.mxu0 %v1077
      %1169 = vmatmul.bf16.gmra.mxu0 %v1089
      %v1170 = vpop.f32.mrf.mxu0
      %v1171 = vadd.f32 %v1122, %v1170
      %v1172 = vpop.f32.mrf.mxu0
      %v1173 = vadd.f32 %v1124, %v1172
      %1174 = vmatmul.bf16.gmra.mxu0 %v1092
      %v1175 = vpop.f32.mrf.mxu0
      %v1176 = vadd.f32 %v1127, %v1175
      %v1177 = vpop.f32.mrf.mxu0
      %v1178 = vadd.f32 %v1129, %v1177
      %1179 = vmatmul.bf16.gmra.mxu0 %v1095
      %v1180 = vpop.f32.mrf.mxu0
      %v1181 = vadd.f32 %v1132, %v1180
      %v1182 = vpop.f32.mrf.mxu0
      %v1183 = vadd.f32 %v1134, %v1182
      %1184 = vmatmul.bf16.gmra.mxu0 %v1098
      %v1185 = vpop.f32.mrf.mxu0
      %v1186 = vadd.f32 %v1137, %v1185
      %v1187 = vpop.f32.mrf.mxu0
      %v1188 = vadd.f32 %v1139, %v1187
      %1189 = vmatmul.bf16.gmra.mxu0 %v1101
      %v1190 = vpop.f32.mrf.mxu0
      %v1191 = vadd.f32 %v1142, %v1190
      %v1192 = vpop.f32.mrf.mxu0
      %v1193 = vadd.f32 %v1144, %v1192
      %1194 = vmatmul.bf16.gmra.mxu0 %v1104
      %v1195 = vpop.f32.mrf.mxu0
      %v1196 = vadd.f32 %v1147, %v1195
      %v1197 = vpop.f32.mrf.mxu0
      %v1198 = vadd.f32 %v1149, %v1197
      %1199 = vmatmul.bf16.gmra.mxu0 %v1107
      %v1200 = vpop.f32.mrf.mxu0
      %v1201 = vadd.f32 %v1152, %v1200
      %v1202 = vpop.f32.mrf.mxu0
      %v1203 = vadd.f32 %v1154, %v1202
      %1204 = vmatmul.bf16.gmra.mxu0 %v1110
      %v1205 = vpop.f32.mrf.mxu0
      %v1206 = vadd.f32 %v1157, %v1205
      %v1207 = vpop.f32.mrf.mxu0
      %v1208 = vadd.f32 %v1159, %v1207
      %1209 = vdwg.mxu0
      %v1210 = vmax.f32 %v1171, 0.0
      %v1211 = vmax.f32 %v1173, 0.0
      %v1212 = vmax.f32 %v1176, 0.0
      %v1213 = vmax.f32 %v1178, 0.0
      %v1214 = vmax.f32 %v1181, 0.0
      %v1215 = vmax.f32 %v1183, 0.0
      %v1216 = vmax.f32 %v1186, 0.0
      %v1217 = vmax.f32 %v1188, 0.0
      %v1218 = vmax.f32 %v1191, 0.0
      %v1219 = vmax.f32 %v1193, 0.0
      %v1220 = vmax.f32 %v1196, 0.0
      %v1221 = vmax.f32 %v1198, 0.0
      %v1222 = vmax.f32 %v1201, 0.0
      %v1223 = vmax.f32 %v1203, 0.0
      %v1224 = vmax.f32 %v1206, 0.0
      %v1225 = vmax.f32 %v1208, 0.0
      %v1226 = vpack.c.bf16 %v1210, %v1210
      %v1227 = vpack.c.bf16 %v1211, %v1211
      %v1228 = vpack.c.bf16 %v1212, %v1212
      %v1229 = vpack.c.bf16 %v1213, %v1213
      %v1230 = vpack.c.bf16 %v1214, %v1214
      %v1231 = vpack.c.bf16 %v1215, %v1215
      %v1232 = vpack.c.bf16 %v1216, %v1216
      %v1233 = vpack.c.bf16 %v1217, %v1217
      %v1234 = vpack.c.bf16 %v1218, %v1218
      %v1235 = vpack.c.bf16 %v1219, %v1219
      %v1236 = vpack.c.bf16 %v1220, %v1220
      %v1237 = vpack.c.bf16 %v1221, %v1221
      %v1238 = vpack.c.bf16 %v1222, %v1222
      %v1239 = vpack.c.bf16 %v1223, %v1223
      %v1240 = vpack.c.bf16 %v1224, %v1224
      %v1241 = vpack.c.bf16 %v1225, %v1225
      %1242 = vst [vmem:[%s332] sm:$0xf] %v1226
      %1243 = vst [vmem:[%s332 + $0x4] sm:$0xf] %v1227
      %1244 = vst [vmem:[%s332 + $0x8] sm:$0xf] %v1228
      %1245 = vst [vmem:[%s332 + $0xc] sm:$0xf] %v1229
      %1246 = vst [vmem:[%s332 + $0x10] sm:$0xf] %v1230
      %1247 = vst [vmem:[%s332 + $0x14] sm:$0xf] %v1231
      %1248 = vst [vmem:[%s332 + $0x18] sm:$0xf] %v1232
      %1249 = vst [vmem:[%s332 + $0x1c] sm:$0xf] %v1233
      %1250 = vst [vmem:[%s332 + $0x20] sm:$0xf] %v1234
      %1251 = vst [vmem:[%s332 + $0x24] sm:$0xf] %v1235
      %1252 = vst [vmem:[%s332 + $0x28] sm:$0xf] %v1236
      %1253 = vst [vmem:[%s332 + $0x2c] sm:$0xf] %v1237
      %1254 = vst [vmem:[%s332 + $0x30] sm:$0xf] %v1238
      %1255 = vst [vmem:[%s332 + $0x34] sm:$0xf] %v1239
      %1256 = vst [vmem:[%s332 + $0x38] sm:$0xf] %v1240
      %1257 = vst [vmem:[%s332 + $0x3c] sm:$0xf] %v1241
      %s1258 = smul.u32 8, %s21
      %p1259 = scmp.lt.s32.totalorder %s20, 1
      %s1260 = scalar_select %p1259, %s20, 1
      %p1261 = scmp.lt.s32.totalorder %s1258, 15
      %s1262 = scalar_select %p1261, %s1258, 15
      %p1263 = scmp.lt.s32.totalorder %s22, 0
      %s1264 = scalar_select %p1263, %s22, 0
      %s1265 = smul.addr %s1262, 2
      %s1266 = sadd.s32 %s1264, %s1265
      %s1267 = smul.addr %s1260, 32
      %s1268 = sadd.s32 %s1266, %s1267
      %s1269 = smul.addr %s1268, 4
      %s1270 = scalar_lea.vmem %s4, %s1269
      // Predicated region
      $region41: #{cam_forward.13} parent=35 // pred_check
        %p1271 = pneg %p166
      $region42: #{cam_forward.13} parent=35 // pred_check_branch
        %1273 = sbr.rel (%p1271) target = $region44
      $region43: #{cam_forward.13} parent=35 // pred_region
        %s1274 = smul.u32 8, %s21
      $region44: #{cam_forward.13} parent=35 // pred_fallthru
        _
    $region36: #{cam_forward.13} parent=5 // pred_fallthru
      _
    %p1275 = scmp.le.s32.totalorder 2, %s10
    // Predicated region
    $region45: #{cam_forward.13} parent=5 // pred_check
      %p1276 = pneg %p1275
    $region46: #{cam_forward.13} parent=5 // pred_check_branch
      %1278 = sbr.rel (%p1276) target = $region48
    $region47: #{cam_forward.13} parent=5 // pred_region
      %s1279 = ssub.s32 %s10, 2
      // Predicated region
      $region49: #{cam_forward.13} parent=47 // pred_check
        %p1280 = pneg %p172
      $region50: #{cam_forward.13} parent=47 // pred_check_branch
        %1282 = sbr.rel (%p1280) target = $region52
      $region51: #{cam_forward.13} parent=47 // pred_region
        %s1283 = smul.u32 8, %s24
        %p1284 = scmp.lt.s32.totalorder %s23, 1
        %s1285 = scalar_select %p1284, %s23, 1
        %p1286 = scmp.lt.s32.totalorder %s1283, 15
        %s1287 = scalar_select %p1286, %s1283, 15
        %p1288 = scmp.lt.s32.totalorder %s25, 0
        %s1289 = scalar_select %p1288, %s25, 0
        %s1290 = smul.addr %s1287, 2
        %s1291 = sadd.s32 %s1289, %s1290
        %s1292 = smul.addr %s1285, 32
        %s1293 = sadd.s32 %s1291, %s1292
        %s1294 = smul.addr %s1293, 4
        %s1295 = scalar_lea.vmem %s4, %s1294
      $region52: #{cam_forward.13} parent=47 // pred_fallthru
        _
    $region48: #{cam_forward.13} parent=5 // pred_fallthru
      _
  $region6: #{cam_forward.13} parent=0 // loop_footer
    %s14 = sadd.s32 1, %s10
  $region7: #{cam_forward.13} parent=0 // loop_footer_branch
    %9 = sbr.rel target = $region3
  $region8: #{cam_forward.13} parent=0 // loop_exit
    _

</llo_original>
